<compile_context>
chip_gen: v7x
topology: tpu7x:2x2x1
jax: 0.10.0
libtpu: 0.0.40
codegen_flags: <defaults>
</compile_context>

<pallas_src>
import functools
import math

import jax
import jax.numpy as jnp
from jax.experimental import pallas as pl
from jax.experimental.pallas import tpu as pltpu


def ts_encoder_kernel(
    seq_ref,                       # (B_blk, T, 2K+1)  [ x | mask | decay ]
    wA_ref, bA_ref,                # (2K, K+3H), (1, K+3H)   std_emb ⊕ t_gru_x x-side (block-diag)
    wih_ref, bih_ref,              # (2, K, 3H), (2, 1, 3H)  x-side of t_gru_alpha / standard_gru
    whh_ref, bn_ref,               # (3, H, 3H), (3, 1, H)   h-side of the three GRUs (+ b_hn)
    wC_ref, bC_ref,                # (2H, 2K), (1, 2K)       hist_reg_x ⊕ hist_reg_alpha (block-diag)
    wD_ref, bD_ref,                # (2K, K), (1, K)         hist_reg on cat([x_t_s_1, x_t_u])
    out_ref,                       # (B_blk, T*H)            lane-dense flat output block
    h_scr, hx_scr, ha_scr,         # (B_blk, H) f32 recurrent state
):
    tb = pl.program_id(1)

    @pl.when(tb == 0)
    def _():
        h_scr[...] = jnp.zeros_like(h_scr)
        hx_scr[...] = jnp.zeros_like(hx_scr)
        ha_scr[...] = jnp.zeros_like(ha_scr)

    T = seq_ref.shape[1]
    K = (seq_ref.shape[2] - 1) // 2
    H = h_scr.shape[-1]

    # Hoist all weights out of the timestep loop (VMEM-resident for the whole grid).
    wA, bA = wA_ref[...], bA_ref[...]
    wih_a, wih_s = wih_ref[0], wih_ref[1]
    b_a, b_s = bih_ref[0], bih_ref[1]
    whh_x, whh_a, whh_s = whh_ref[0], whh_ref[1], whh_ref[2]
    bn_x, bn_a, bn_s = bn_ref[0], bn_ref[1], bn_ref[2]
    wC, bC = wC_ref[...], bC_ref[...]
    wD, bD = wD_ref[...], bD_ref[...]

    mxu = wA.dtype   # bf16 on the fast path, f32 on the parity path

    def dot(a, b):
        # MXU operands in `mxu` dtype, f32 accumulation; everything downstream stays f32.
        return jnp.dot(a.astype(mxu), b, preferred_element_type=jnp.float32)

    def gru_out(gx, gh, bn, h_in):
        """nn.GRUCell epilogue, gate order (r, z, n); r/z share one sigmoid over 2H lanes."""
        rz = jax.nn.sigmoid(gx[:, :2 * H] + gh[:, :2 * H])
        r, z = rz[:, :H], rz[:, H:]
        n = jnp.tanh(gx[:, 2 * H:] + r * (gh[:, 2 * H:] + bn))
        return (1.0 - z) * n + z * h_in

    # Static unroll over the T timesteps of this block (all slice indices static).
    for i in range(T):
        step = seq_ref[:, i, :]                    # (B_blk, 2K+1)
        x_t = step[:, :K]
        m_t = step[:, K:2 * K]
        dcol = step[:, 2 * K:2 * K + 1]            # (B_blk, 1)  1/log(e + |Δts|)

        c_t = 1.0 - m_t
        x_t_s = x_t * jnp.maximum(c_t, 0.0)

        # Fused matmul A: std_emb (sigmoid(c_t @ W + b)) and t_gru_x x-side gates in one pass.
        a_out = dot(jnp.concatenate([c_t, x_t_s], axis=-1), wA) + bA    # (B_blk, K+3H)
        alpha_t = jax.nn.sigmoid(a_out[:, :K])
        gx_x = a_out[:, K:]

        hxd = hx_scr[...] * dcol
        h_x = gru_out(gx_x, dot(hxd, whh_x), bn_x, hxd)

        gx_a = dot(alpha_t, wih_a) + b_a
        had = ha_scr[...] * dcol
        h_a = gru_out(gx_a, dot(had, whh_a), bn_a, had)

        # Fused matmul C: hist_reg_x(h_x) and hist_reg_alpha(h_alpha) in one pass.
        c_out = dot(jnp.concatenate([h_x, h_a], axis=-1), wC) + bC      # (B_blk, 2K)
        x_t_s_1 = c_out[:, :K] * jax.nn.sigmoid(c_out[:, K:])
        x_t_u = x_t * alpha_t

        # Fused matmul D: hist_reg(cat([x_t_s_1, x_t_u])) + ReLU (single (2K, K) weight).
        x_adj = jnp.maximum(
            dot(jnp.concatenate([x_t_s_1, x_t_u], axis=-1), wD) + bD, 0.0)

        gx_s = dot(x_adj, wih_s) + b_s
        h_new = gru_out(gx_s, dot(h_scr[...], whh_s), bn_s, h_scr[...])

        # `h = h*h_m + (1-h_m)*h_state[-1]` in the PyTorch source is the identity
        # (h_state[-1] is the just-appended h), so the carried state is simply h_new.
        out_ref[:, i * H:(i + 1) * H] = h_new
        h_scr[...] = h_new
        hx_scr[...] = h_x
        ha_scr[...] = h_a


_GRU_NAMES = ("gx", "ga", "gs")   # t_gru_x, t_gru_alpha, standard_gru


def _pack_params(p, mxu_dtype):
    """Pack the 21 per-layer tensors into 10 fused kernel arrays (trace-time, one-off)."""
    K = p["std_w"].shape[0]
    H = p["gx_wih"].shape[-1]

    def gates(w):            # (3, A, H) -> (A, 3H), PyTorch gate order (r, z, n)
        return jnp.concatenate([w[0], w[1], w[2]], axis=1)

    def folded_b(bi, bh):    # (b_ir+b_hr, b_iz+b_hz, b_in); b_hn stays separate (inside r*(...))
        return jnp.concatenate([bi[0] + bh[0], bi[1] + bh[1], bi[2]], axis=1)

    # A: block-diag(std_emb W (K,K), t_gru_x W_ih (K,3H)) -> (2K, K+3H)
    wA = jnp.zeros((2 * K, K + 3 * H), jnp.float32)
    wA = wA.at[:K, :K].set(p["std_w"]).at[K:, K:].set(gates(p["gx_wih"]))
    bA = jnp.concatenate([p["std_b"], folded_b(p["gx_bih"], p["gx_bhh"])], axis=1)  # (1, K+3H)

    wih = jnp.stack([gates(p["ga_wih"]), gates(p["gs_wih"])])                       # (2, K, 3H)
    bih = jnp.stack([folded_b(p["ga_bih"], p["ga_bhh"]),
                     folded_b(p["gs_bih"], p["gs_bhh"])])                           # (2, 1, 3H)
    whh = jnp.stack([gates(p["gx_whh"]), gates(p["ga_whh"]), gates(p["gs_whh"])])   # (3, H, 3H)
    bn = jnp.stack([p["gx_bhh"][2], p["ga_bhh"][2], p["gs_bhh"][2]])                # (3, 1, H)

    # C: block-diag(hist_reg_x W (H,K), hist_reg_alpha W (H,K)) -> (2H, 2K)
    wC = jnp.zeros((2 * H, 2 * K), jnp.float32)
    wC = wC.at[:H, :K].set(p["hrx_w"]).at[H:, K:].set(p["hra_w"])
    bC = jnp.concatenate([p["hrx_b"], p["hra_b"]], axis=1)                          # (1, 2K)

    # D: stacked contraction for hist_reg(cat([x_t_s_1, x_t_u])) -> (2K, K)
    wD = jnp.concatenate([p["hr_w1"], p["hr_w2"]], axis=0)
    bD = p["hr_b"]                                                                  # (1, K)

    cast = lambda w: w.astype(mxu_dtype)
    # Weight matrices in the MXU dtype; biases stay f32 (added on the f32 accumulators).
    return (cast(wA), bA, cast(wih), bih, cast(whh), bn, cast(wC), bC, cast(wD), bD)


def _round_up(n, m):
    return ((n + m - 1) // m) * m


@functools.partial(jax.jit, static_argnames=("hid_dim", "mxu_dtype"))
def ts_encoder_pallas(x, mask, ts, params, hid_dim, mxu_dtype=jnp.bfloat16):
    """x: (B, L, K), mask: (B, L, K), ts: (B, L)  ->  (B, L, H)."""
    B, L, K = x.shape
    H = hid_dim

    # ---- block sizing --------------------------------------------------------
    # Batch block: fill the 8-row f32 sublane tile; cap at 64 rows so the batch grid axis can
    # still be sharded across v7x's two TensorCores for larger batches.
    B_blk = min(_round_up(B, 8), 64)
    B_pad = _round_up(B, B_blk)
    # Time block: 8 (or 16) timesteps statically unrolled per grid step; t_blk*H must be a
    # multiple of 128 so the flat output block is lane-dense (one dense writeback DMA / block).
    if (8 * H) % 128 == 0:
        t_blk = 8
    elif (16 * H) % 128 == 0:
        t_blk = 16
    else:
        # TODO(synk): fall back to a 3-D (B, t_blk, H) output layout for H not a multiple of 8.
        raise NotImplementedError(f"hid_dim={H} must be a multiple of 8")
    L_pad = _round_up(L, t_blk)

    # ---- input packing (cheap one-off XLA glue) -------------------------------
    x = x.astype(jnp.float32)
    mask = mask.astype(jnp.float32)
    ts = ts.astype(jnp.float32)
    d = jnp.concatenate([jnp.zeros((B, 1), jnp.float32),
                         jnp.abs(ts[:, 1:] - ts[:, :-1])], axis=1)
    decay = 1.0 / jnp.log(math.e + d)                                     # (B, L)
    seq = jnp.concatenate([x, mask, decay[:, :, None]], axis=-1)          # (B, L, 2K+1)
    seq = jnp.pad(seq, ((0, B_pad - B), (0, L_pad - L), (0, 0)))

    packed = _pack_params(params, mxu_dtype)
    F = 2 * K + 1

    def wspec(a):
        # Constant block index -> DMA'd once, VMEM-resident for the whole grid.
        # TODO(synk): at large H on v7x (64 MiB VMEM) add pipeline_mode=pl.Buffered(1) here to
        # single-buffer the never-changing weight blocks.
        nd = a.ndim
        return pl.BlockSpec(a.shape, lambda b, tb, _nd=nd: (0,) * _nd)

    out_flat = pl.pallas_call(
        ts_encoder_kernel,
        out_shape=jax.ShapeDtypeStruct((B_pad, L_pad * H), jnp.float32),
        grid_spec=pltpu.PrefetchScalarGridSpec(
            num_scalar_prefetch=0,
            grid=(B_pad // B_blk, L_pad // t_blk),
            in_specs=[pl.BlockSpec((B_blk, t_blk, F), lambda b, tb: (b, tb, 0))]
                     + [wspec(w) for w in packed],
            out_specs=pl.BlockSpec((B_blk, t_blk * H), lambda b, tb: (b, tb)),
            scratch_shapes=[pltpu.VMEM((B_blk, H), jnp.float32),   # h       (standard_gru)
                            pltpu.VMEM((B_blk, H), jnp.float32),   # h_x     (t_gru_x)
                            pltpu.VMEM((B_blk, H), jnp.float32)],  # h_alpha (t_gru_alpha)
        ),
        compiler_params=pltpu.CompilerParams(
            # batch blocks are independent (v7x megacore); time blocks are a strict recurrence
            dimension_semantics=("parallel", "arbitrary")),
    )(seq, *packed)

    return out_flat.reshape(B_pad, L_pad, H)[:B, :L, :]


def init_params(key, hid_dim, input_size):
    """Deterministic synthetic init (PyTorch-style uniform(-1/sqrt(fan), 1/sqrt(fan)))."""
    H, K = hid_dim, input_size

    def u(k, shape, fan_in):
        bound = 1.0 / math.sqrt(fan_in)
        return jax.random.uniform(k, shape, jnp.float32, -bound, bound)

    keys = iter(jax.random.split(key, 32))
    p = {}
    p["std_w"], p["std_b"] = u(next(keys), (K, K), K), u(next(keys), (1, K), K)
    for name in _GRU_NAMES:  # GRUCell(K, H): all params ~ U(-1/sqrt(H), 1/sqrt(H))
        p[f"{name}_wih"] = u(next(keys), (3, K, H), H)
        p[f"{name}_whh"] = u(next(keys), (3, H, H), H)
        p[f"{name}_bih"] = u(next(keys), (3, 1, H), H)
        p[f"{name}_bhh"] = u(next(keys), (3, 1, H), H)
    p["hrx_w"], p["hrx_b"] = u(next(keys), (H, K), H), u(next(keys), (1, K), H)
    p["hra_w"], p["hra_b"] = u(next(keys), (H, K), H), u(next(keys), (1, K), H)
    p["hr_w1"] = u(next(keys), (K, K), 2 * K)
    p["hr_w2"] = u(next(keys), (K, K), 2 * K)
    p["hr_b"] = u(next(keys), (1, K), 2 * K)
    return p


def ts_encoder_ref(x, mask, ts, params, hid_dim):
    """Pure-JAX reference mirroring the PyTorch forward pass exactly (unfused weights)."""
    B, L, K = x.shape
    H = hid_dim
    p = params
    hm = (ts != 0).astype(jnp.float32)

    def gru(x_in, h_in, wih, whh, bih, bhh):
        r = jax.nn.sigmoid(x_in @ wih[0] + bih[0] + h_in @ whh[0] + bhh[0])
        z = jax.nn.sigmoid(x_in @ wih[1] + bih[1] + h_in @ whh[1] + bhh[1])
        n = jnp.tanh(x_in @ wih[2] + bih[2] + r * (h_in @ whh[2] + bhh[2]))
        return (1.0 - z) * n + z * h_in

    h = jnp.zeros((B, H), jnp.float32)
    h_x = jnp.zeros((B, H), jnp.float32)
    h_a = jnp.zeros((B, H), jnp.float32)
    outs = []
    for t in range(L):
        x_t, m_t = x[:, t, :], mask[:, t, :]
        c_t = 1.0 - m_t
        d = jnp.zeros((B,), x.dtype) if t == 0 else jnp.abs(ts[:, t] - ts[:, t - 1])
        decay = (1.0 / jnp.log(math.e + d))[:, None]
        alpha_t = jax.nn.sigmoid(c_t @ p["std_w"] + p["std_b"])
        x_t_u = x_t * alpha_t
        x_t_s = x_t * jnp.maximum(c_t, 0.0)
        h_x = gru(x_t_s, h_x * decay, p["gx_wih"], p["gx_whh"], p["gx_bih"], p["gx_bhh"])
        h_a = gru(alpha_t, h_a * decay, p["ga_wih"], p["ga_whh"], p["ga_bih"], p["ga_bhh"])
        x_t_s_d = h_x @ p["hrx_w"] + p["hrx_b"]
        alpha_t_d = jax.nn.sigmoid(h_a @ p["hra_w"] + p["hra_b"])
        x_t_s_1 = x_t_s_d * alpha_t_d
        x_adj = jnp.maximum(x_t_s_1 @ p["hr_w1"] + x_t_u @ p["hr_w2"] + p["hr_b"], 0.0)
        h = gru(x_adj, h, p["gs_wih"], p["gs_whh"], p["gs_bih"], p["gs_bhh"])
        outs.append(h)
        h_m = hm[:, t, None]
        h = h * h_m + (1.0 - h_m) * h      # identity mix, kept for 1:1 PyTorch parity
    return jnp.stack(outs, axis=1)


if __name__ == "__main__":
    B, L, K, H = 2, 16, 10, 32   # batch, seq len, input_size (K), rnn_hid_size (H)

    root = jax.random.PRNGKey(0)
    k_par, k_x, k_mask, k_ts = jax.random.split(root, 4)

    params = init_params(k_par, hid_dim=H, input_size=K)
    x = jax.random.normal(k_x, (B, L, K), jnp.float32)
    mask = jax.random.bernoulli(k_mask, 0.3, (B, L, K)).astype(jnp.float32)
    ts = jnp.cumsum(jax.random.uniform(k_ts, (B, L), jnp.float32, 0.1, 2.0), axis=1)
    ts = ts.at[0, -2:].set(0.0)  # some zero timestamps (identity h_mask path either way)

    with jax.default_matmul_precision("highest"):
        ref = jax.block_until_ready(ts_encoder_ref(x, mask, ts, params, H))

    # f32 MXU path: tightened parity check against the pure-JAX reference.
    out_f32 = jax.block_until_ready(
        ts_encoder_pallas(x, mask, ts, params, hid_dim=H, mxu_dtype=jnp.float32))
    assert out_f32.shape == (B, L, H), out_f32.shape
    assert jnp.allclose(out_f32, ref, rtol=2e-3, atol=2e-3), \
        float(jnp.max(jnp.abs(out_f32 - ref)))

    # bf16 MXU path (default / fast): explicit looser error budget for bf16 operands in a
    # 16-step recurrence (gate math and accumulation remain f32).
    out_bf16 = jax.block_until_ready(
        ts_encoder_pallas(x, mask, ts, params, hid_dim=H))
    assert jnp.allclose(out_bf16, ref, rtol=6e-2, atol=6e-2), \
        float(jnp.max(jnp.abs(out_bf16 - ref)))

    print("KERNEL_OK")
</pallas_src>

<mosaic_0001>
module attributes {stable_mosaic.version = 11 : i64} {
  func.func @ts_encoder_kernel(%arg0: i32, %arg1: i32, %arg2: memref<8x8x21xf32, #tpu.memory_space<vmem>>, %arg3: memref<20x106xf32, #tpu.memory_space<vmem>>, %arg4: memref<1x106xf32, #tpu.memory_space<vmem>>, %arg5: memref<2x10x96xf32, #tpu.memory_space<vmem>>, %arg6: memref<2x1x96xf32, #tpu.memory_space<vmem>>, %arg7: memref<3x32x96xf32, #tpu.memory_space<vmem>>, %arg8: memref<3x1x32xf32, #tpu.memory_space<vmem>>, %arg9: memref<64x20xf32, #tpu.memory_space<vmem>>, %arg10: memref<1x20xf32, #tpu.memory_space<vmem>>, %arg11: memref<20x10xf32, #tpu.memory_space<vmem>>, %arg12: memref<1x10xf32, #tpu.memory_space<vmem>>, %arg13: memref<8x256xf32, #tpu.memory_space<vmem>>, %arg14: memref<8x32xf32, #tpu.memory_space<vmem>>, %arg15: memref<8x32xf32, #tpu.memory_space<vmem>>, %arg16: memref<8x32xf32, #tpu.memory_space<vmem>>) attributes {dimension_semantics = [#tpu.dimension_semantics<parallel>, #tpu.dimension_semantics<arbitrary>], iteration_bounds = array<i64: 1, 2>, scalar_prefetch = 0 : i64, scratch_operands = 3 : i64, tpu.core_type = #tpu.core_type<tc>, window_params = [{transform_indices = @transform_0, window_bounds = array<i64: 8, 8, 21>}, {pipeline_mode = #tpu.pipeline_mode<synchronous>, transform_indices = @transform_1, window_bounds = array<i64: 20, 106>}, {pipeline_mode = #tpu.pipeline_mode<synchronous>, transform_indices = @transform_2, window_bounds = array<i64: 1, 106>}, {pipeline_mode = #tpu.pipeline_mode<synchronous>, transform_indices = @transform_3, window_bounds = array<i64: 2, 10, 96>}, {pipeline_mode = #tpu.pipeline_mode<synchronous>, transform_indices = @transform_4, window_bounds = array<i64: 2, 1, 96>}, {pipeline_mode = #tpu.pipeline_mode<synchronous>, transform_indices = @transform_5, window_bounds = array<i64: 3, 32, 96>}, {pipeline_mode = #tpu.pipeline_mode<synchronous>, transform_indices = @transform_6, window_bounds = array<i64: 3, 1, 32>}, {pipeline_mode = #tpu.pipeline_mode<synchronous>, transform_indices = @transform_7, window_bounds = array<i64: 64, 20>}, {pipeline_mode = #tpu.pipeline_mode<synchronous>, transform_indices = @transform_8, window_bounds = array<i64: 1, 20>}, {pipeline_mode = #tpu.pipeline_mode<synchronous>, transform_indices = @transform_9, window_bounds = array<i64: 20, 10>}, {pipeline_mode = #tpu.pipeline_mode<synchronous>, transform_indices = @transform_10, window_bounds = array<i64: 1, 10>}, {transform_indices = @transform_11, window_bounds = array<i64: 8, 256>}]} {
    %c0_i32 = arith.constant 0 : i32
    %0 = arith.cmpi eq, %arg1, %c0_i32 : i32
    %1 = arith.extui %0 : i1 to i32
    %c0_i32_0 = arith.constant 0 : i32
    %2 = arith.cmpi ne, %1, %c0_i32_0 : i32
    scf.if %2 {
      %cst_331 = arith.constant 0.000000e+00 : f32
      %1045 = vector.broadcast %cst_331 : f32 to vector<8x32xf32>
      %c0_332 = arith.constant 0 : index
      %c0_333 = arith.constant 0 : index
      %1046 = vector.load %arg14[%c0_332, %c0_333] : memref<8x32xf32, #tpu.memory_space<vmem>>, vector<8x32xf32>
      tpu.vector_store %arg14[%c0_332, %c0_333], %1045 {strides = array<i32>} : memref<8x32xf32, #tpu.memory_space<vmem>>, vector<8x32xf32>,
      %cst_334 = arith.constant 0.000000e+00 : f32
      %1047 = vector.broadcast %cst_334 : f32 to vector<8x32xf32>
      %c0_335 = arith.constant 0 : index
      %c0_336 = arith.constant 0 : index
      %1048 = vector.load %arg15[%c0_335, %c0_336] : memref<8x32xf32, #tpu.memory_space<vmem>>, vector<8x32xf32>
      tpu.vector_store %arg15[%c0_335, %c0_336], %1047 {strides = array<i32>} : memref<8x32xf32, #tpu.memory_space<vmem>>, vector<8x32xf32>,
      %cst_337 = arith.constant 0.000000e+00 : f32
      %1049 = vector.broadcast %cst_337 : f32 to vector<8x32xf32>
      %c0_338 = arith.constant 0 : index
      %c0_339 = arith.constant 0 : index
      %1050 = vector.load %arg16[%c0_338, %c0_339] : memref<8x32xf32, #tpu.memory_space<vmem>>, vector<8x32xf32>
      tpu.vector_store %arg16[%c0_338, %c0_339], %1049 {strides = array<i32>} : memref<8x32xf32, #tpu.memory_space<vmem>>, vector<8x32xf32>,
    } else {
    }
    %c0 = arith.constant 0 : index
    %c0_1 = arith.constant 0 : index
    %3 = vector.load %arg3[%c0, %c0_1] : memref<20x106xf32, #tpu.memory_space<vmem>>, vector<20x106xf32>
    %c0_2 = arith.constant 0 : index
    %c0_3 = arith.constant 0 : index
    %4 = vector.load %arg4[%c0_2, %c0_3] : memref<1x106xf32, #tpu.memory_space<vmem>>, vector<1x106xf32>
    %c0_4 = arith.constant 0 : index
    %c0_5 = arith.constant 0 : index
    %c0_6 = arith.constant 0 : index
    %5 = vector.load %arg5[%c0_4, %c0_5, %c0_6] : memref<2x10x96xf32, #tpu.memory_space<vmem>>, vector<1x10x96xf32>
    %6 = vector.shape_cast %5 : vector<1x10x96xf32> to vector<10x96xf32>
    %c1 = arith.constant 1 : index
    %c0_7 = arith.constant 0 : index
    %c0_8 = arith.constant 0 : index
    %7 = vector.load %arg5[%c1, %c0_7, %c0_8] : memref<2x10x96xf32, #tpu.memory_space<vmem>>, vector<1x10x96xf32>
    %8 = vector.shape_cast %7 : vector<1x10x96xf32> to vector<10x96xf32>
    %c0_9 = arith.constant 0 : index
    %c0_10 = arith.constant 0 : index
    %c0_11 = arith.constant 0 : index
    %9 = vector.load %arg6[%c0_9, %c0_10, %c0_11] : memref<2x1x96xf32, #tpu.memory_space<vmem>>, vector<1x1x96xf32>
    %10 = vector.shape_cast %9 : vector<1x1x96xf32> to vector<1x96xf32>
    %c1_12 = arith.constant 1 : index
    %c0_13 = arith.constant 0 : index
    %c0_14 = arith.constant 0 : index
    %11 = vector.load %arg6[%c1_12, %c0_13, %c0_14] : memref<2x1x96xf32, #tpu.memory_space<vmem>>, vector<1x1x96xf32>
    %12 = vector.shape_cast %11 : vector<1x1x96xf32> to vector<1x96xf32>
    %c0_15 = arith.constant 0 : index
    %c0_16 = arith.constant 0 : index
    %c0_17 = arith.constant 0 : index
    %13 = vector.load %arg7[%c0_15, %c0_16, %c0_17] : memref<3x32x96xf32, #tpu.memory_space<vmem>>, vector<1x32x96xf32>
    %14 = vector.shape_cast %13 : vector<1x32x96xf32> to vector<32x96xf32>
    %c1_18 = arith.constant 1 : index
    %c0_19 = arith.constant 0 : index
    %c0_20 = arith.constant 0 : index
    %15 = vector.load %arg7[%c1_18, %c0_19, %c0_20] : memref<3x32x96xf32, #tpu.memory_space<vmem>>, vector<1x32x96xf32>
    %16 = vector.shape_cast %15 : vector<1x32x96xf32> to vector<32x96xf32>
    %c2 = arith.constant 2 : index
    %c0_21 = arith.constant 0 : index
    %c0_22 = arith.constant 0 : index
    %17 = vector.load %arg7[%c2, %c0_21, %c0_22] : memref<3x32x96xf32, #tpu.memory_space<vmem>>, vector<1x32x96xf32>
    %18 = vector.shape_cast %17 : vector<1x32x96xf32> to vector<32x96xf32>
    %c0_23 = arith.constant 0 : index
    %c0_24 = arith.constant 0 : index
    %c0_25 = arith.constant 0 : index
    %19 = vector.load %arg8[%c0_23, %c0_24, %c0_25] : memref<3x1x32xf32, #tpu.memory_space<vmem>>, vector<1x1x32xf32>
    %20 = vector.shape_cast %19 : vector<1x1x32xf32> to vector<1x32xf32>
    %c1_26 = arith.constant 1 : index
    %c0_27 = arith.constant 0 : index
    %c0_28 = arith.constant 0 : index
    %21 = vector.load %arg8[%c1_26, %c0_27, %c0_28] : memref<3x1x32xf32, #tpu.memory_space<vmem>>, vector<1x1x32xf32>
    %22 = vector.shape_cast %21 : vector<1x1x32xf32> to vector<1x32xf32>
    %c2_29 = arith.constant 2 : index
    %c0_30 = arith.constant 0 : index
    %c0_31 = arith.constant 0 : index
    %23 = vector.load %arg8[%c2_29, %c0_30, %c0_31] : memref<3x1x32xf32, #tpu.memory_space<vmem>>, vector<1x1x32xf32>
    %24 = vector.shape_cast %23 : vector<1x1x32xf32> to vector<1x32xf32>
    %c0_32 = arith.constant 0 : index
    %c0_33 = arith.constant 0 : index
    %25 = vector.load %arg9[%c0_32, %c0_33] : memref<64x20xf32, #tpu.memory_space<vmem>>, vector<64x20xf32>
    %c0_34 = arith.constant 0 : index
    %c0_35 = arith.constant 0 : index
    %26 = vector.load %arg10[%c0_34, %c0_35] : memref<1x20xf32, #tpu.memory_space<vmem>>, vector<1x20xf32>
    %c0_36 = arith.constant 0 : index
    %c0_37 = arith.constant 0 : index
    %27 = vector.load %arg11[%c0_36, %c0_37] : memref<20x10xf32, #tpu.memory_space<vmem>>, vector<20x10xf32>
    %c0_38 = arith.constant 0 : index
    %c0_39 = arith.constant 0 : index
    %28 = vector.load %arg12[%c0_38, %c0_39] : memref<1x10xf32, #tpu.memory_space<vmem>>, vector<1x10xf32>
    %c0_40 = arith.constant 0 : index
    %c0_41 = arith.constant 0 : index
    %c0_42 = arith.constant 0 : index
    %29 = vector.load %arg2[%c0_40, %c0_41, %c0_42] : memref<8x8x21xf32, #tpu.memory_space<vmem>>, vector<8x1x21xf32>
    %30 = vector.shape_cast %29 : vector<8x1x21xf32> to vector<8x21xf32>
    %31 = vector.extract_strided_slice %30 {offsets = [0, 0], sizes = [8, 10], strides = [1, 1]} : vector<8x21xf32> to vector<8x10xf32>
    %32 = vector.extract_strided_slice %30 {offsets = [0, 10], sizes = [8, 10], strides = [1, 1]} : vector<8x21xf32> to vector<8x10xf32>
    %33 = vector.extract_strided_slice %30 {offsets = [0, 20], sizes = [8, 1], strides = [1, 1]} : vector<8x21xf32> to vector<8x1xf32>
    %cst = arith.constant 1.000000e+00 : f32
    %34 = vector.broadcast %cst : f32 to vector<8x10xf32>
    %35 = arith.subf %34, %32 : vector<8x10xf32>
    %cst_43 = arith.constant 0.000000e+00 : f32
    %36 = vector.broadcast %cst_43 : f32 to vector<8x10xf32>
    %37 = arith.maximumf %35, %36 : vector<8x10xf32>
    %38 = arith.mulf %31, %37 : vector<8x10xf32>
    %39 = tpu.concatenate %35, %38 in 1 : vector<8x10xf32>, vector<8x10xf32> -> vector<8x20xf32>
    %cst_44 = arith.constant dense<0.000000e+00> : vector<8x106xf32>
    %40 = tpu.matmul %39, %3, %cst_44 {dimension_numbers = #tpu.dot_dimension_numbers<[1], [0], [0], [1], [0, 0, 1, 1], [], []>} : vector<8x20xf32>, vector<20x106xf32>, vector<8x106xf32> -> vector<8x106xf32>
    %41 = vector.broadcast %4 : vector<1x106xf32> to vector<8x106xf32>
    %42 = arith.addf %40, %41 : vector<8x106xf32>
    %43 = vector.extract_strided_slice %42 {offsets = [0, 0], sizes = [8, 10], strides = [1, 1]} : vector<8x106xf32> to vector<8x10xf32>
    %44 = arith.negf %43 : vector<8x10xf32>
    %45 = math.exp %44 : vector<8x10xf32>
    %cst_45 = arith.constant 1.000000e+00 : f32
    %46 = vector.broadcast %cst_45 : f32 to vector<8x10xf32>
    %47 = arith.addf %46, %45 : vector<8x10xf32>
    %48 = arith.divf %46, %47 : vector<8x10xf32>
    %49 = vector.extract_strided_slice %42 {offsets = [0, 10], sizes = [8, 96], strides = [1, 1]} : vector<8x106xf32> to vector<8x96xf32>
    %c0_46 = arith.constant 0 : index
    %c0_47 = arith.constant 0 : index
    %50 = vector.load %arg15[%c0_46, %c0_47] : memref<8x32xf32, #tpu.memory_space<vmem>>, vector<8x32xf32>
    %51 = vector.broadcast %33 : vector<8x1xf32> to vector<8x32xf32>
    %52 = arith.mulf %50, %51 : vector<8x32xf32>
    %cst_48 = arith.constant dense<0.000000e+00> : vector<8x96xf32>
    %53 = tpu.matmul %52, %14, %cst_48 {dimension_numbers = #tpu.dot_dimension_numbers<[1], [0], [0], [1], [0, 0, 1, 1], [], []>} : vector<8x32xf32>, vector<32x96xf32>, vector<8x96xf32> -> vector<8x96xf32>
    %54 = vector.extract_strided_slice %49 {offsets = [0, 0], sizes = [8, 64], strides = [1, 1]} : vector<8x96xf32> to vector<8x64xf32>
    %55 = vector.extract_strided_slice %53 {offsets = [0, 0], sizes = [8, 64], strides = [1, 1]} : vector<8x96xf32> to vector<8x64xf32>
    %56 = arith.addf %54, %55 : vector<8x64xf32>
    %57 = arith.negf %56 : vector<8x64xf32>
    %58 = math.exp %57 : vector<8x64xf32>
    %cst_49 = arith.constant 1.000000e+00 : f32
    %59 = vector.broadcast %cst_49 : f32 to vector<8x64xf32>
    %60 = arith.addf %59, %58 : vector<8x64xf32>
    %61 = arith.divf %59, %60 : vector<8x64xf32>
    %62 = vector.extract_strided_slice %61 {offsets = [0, 0], sizes = [8, 32], strides = [1, 1]} : vector<8x64xf32> to vector<8x32xf32>
    %63 = vector.extract_strided_slice %61 {offsets = [0, 32], sizes = [8, 32], strides = [1, 1]} : vector<8x64xf32> to vector<8x32xf32>
    %64 = vector.extract_strided_slice %49 {offsets = [0, 64], sizes = [8, 32], strides = [1, 1]} : vector<8x96xf32> to vector<8x32xf32>
    %65 = vector.extract_strided_slice %53 {offsets = [0, 64], sizes = [8, 32], strides = [1, 1]} : vector<8x96xf32> to vector<8x32xf32>
    %66 = vector.broadcast %20 : vector<1x32xf32> to vector<8x32xf32>
    %67 = arith.addf %65, %66 : vector<8x32xf32>
    %68 = arith.mulf %62, %67 : vector<8x32xf32>
    %69 = arith.addf %64, %68 : vector<8x32xf32>
    %70 = math.tanh %69 : vector<8x32xf32>
    %cst_50 = arith.constant 1.000000e+00 : f32
    %71 = vector.broadcast %cst_50 : f32 to vector<8x32xf32>
    %72 = arith.subf %71, %63 : vector<8x32xf32>
    %73 = arith.mulf %72, %70 : vector<8x32xf32>
    %74 = arith.mulf %63, %52 : vector<8x32xf32>
    %75 = arith.addf %73, %74 : vector<8x32xf32>
    %cst_51 = arith.constant dense<0.000000e+00> : vector<8x96xf32>
    %76 = tpu.matmul %48, %6, %cst_51 {dimension_numbers = #tpu.dot_dimension_numbers<[1], [0], [0], [1], [0, 0, 1, 1], [], []>} : vector<8x10xf32>, vector<10x96xf32>, vector<8x96xf32> -> vector<8x96xf32>
    %77 = vector.broadcast %10 : vector<1x96xf32> to vector<8x96xf32>
    %78 = arith.addf %76, %77 : vector<8x96xf32>
    %c0_52 = arith.constant 0 : index
    %c0_53 = arith.constant 0 : index
    %79 = vector.load %arg16[%c0_52, %c0_53] : memref<8x32xf32, #tpu.memory_space<vmem>>, vector<8x32xf32>
    %80 = vector.broadcast %33 : vector<8x1xf32> to vector<8x32xf32>
    %81 = arith.mulf %79, %80 : vector<8x32xf32>
    %cst_54 = arith.constant dense<0.000000e+00> : vector<8x96xf32>
    %82 = tpu.matmul %81, %16, %cst_54 {dimension_numbers = #tpu.dot_dimension_numbers<[1], [0], [0], [1], [0, 0, 1, 1], [], []>} : vector<8x32xf32>, vector<32x96xf32>, vector<8x96xf32> -> vector<8x96xf32>
    %83 = vector.extract_strided_slice %78 {offsets = [0, 0], sizes = [8, 64], strides = [1, 1]} : vector<8x96xf32> to vector<8x64xf32>
    %84 = vector.extract_strided_slice %82 {offsets = [0, 0], sizes = [8, 64], strides = [1, 1]} : vector<8x96xf32> to vector<8x64xf32>
    %85 = arith.addf %83, %84 : vector<8x64xf32>
    %86 = arith.negf %85 : vector<8x64xf32>
    %87 = math.exp %86 : vector<8x64xf32>
    %cst_55 = arith.constant 1.000000e+00 : f32
    %88 = vector.broadcast %cst_55 : f32 to vector<8x64xf32>
    %89 = arith.addf %88, %87 : vector<8x64xf32>
    %90 = arith.divf %88, %89 : vector<8x64xf32>
    %91 = vector.extract_strided_slice %90 {offsets = [0, 0], sizes = [8, 32], strides = [1, 1]} : vector<8x64xf32> to vector<8x32xf32>
    %92 = vector.extract_strided_slice %90 {offsets = [0, 32], sizes = [8, 32], strides = [1, 1]} : vector<8x64xf32> to vector<8x32xf32>
    %93 = vector.extract_strided_slice %78 {offsets = [0, 64], sizes = [8, 32], strides = [1, 1]} : vector<8x96xf32> to vector<8x32xf32>
    %94 = vector.extract_strided_slice %82 {offsets = [0, 64], sizes = [8, 32], strides = [1, 1]} : vector<8x96xf32> to vector<8x32xf32>
    %95 = vector.broadcast %22 : vector<1x32xf32> to vector<8x32xf32>
    %96 = arith.addf %94, %95 : vector<8x32xf32>
    %97 = arith.mulf %91, %96 : vector<8x32xf32>
    %98 = arith.addf %93, %97 : vector<8x32xf32>
    %99 = math.tanh %98 : vector<8x32xf32>
    %cst_56 = arith.constant 1.000000e+00 : f32
    %100 = vector.broadcast %cst_56 : f32 to vector<8x32xf32>
    %101 = arith.subf %100, %92 : vector<8x32xf32>
    %102 = arith.mulf %101, %99 : vector<8x32xf32>
    %103 = arith.mulf %92, %81 : vector<8x32xf32>
    %104 = arith.addf %102, %103 : vector<8x32xf32>
    %105 = tpu.concatenate %75, %104 in 1 : vector<8x32xf32>, vector<8x32xf32> -> vector<8x64xf32>
    %cst_57 = arith.constant dense<0.000000e+00> : vector<8x20xf32>
    %106 = tpu.matmul %105, %25, %cst_57 {dimension_numbers = #tpu.dot_dimension_numbers<[1], [0], [0], [1], [0, 0, 1, 1], [], []>} : vector<8x64xf32>, vector<64x20xf32>, vector<8x20xf32> -> vector<8x20xf32>
    %107 = vector.broadcast %26 : vector<1x20xf32> to vector<8x20xf32>
    %108 = arith.addf %106, %107 : vector<8x20xf32>
    %109 = vector.extract_strided_slice %108 {offsets = [0, 0], sizes = [8, 10], strides = [1, 1]} : vector<8x20xf32> to vector<8x10xf32>
    %110 = vector.extract_strided_slice %108 {offsets = [0, 10], sizes = [8, 10], strides = [1, 1]} : vector<8x20xf32> to vector<8x10xf32>
    %111 = arith.negf %110 : vector<8x10xf32>
    %112 = math.exp %111 : vector<8x10xf32>
    %cst_58 = arith.constant 1.000000e+00 : f32
    %113 = vector.broadcast %cst_58 : f32 to vector<8x10xf32>
    %114 = arith.addf %113, %112 : vector<8x10xf32>
    %115 = arith.divf %113, %114 : vector<8x10xf32>
    %116 = arith.mulf %109, %115 : vector<8x10xf32>
    %117 = arith.mulf %31, %48 : vector<8x10xf32>
    %118 = tpu.concatenate %116, %117 in 1 : vector<8x10xf32>, vector<8x10xf32> -> vector<8x20xf32>
    %cst_59 = arith.constant dense<0.000000e+00> : vector<8x10xf32>
    %119 = tpu.matmul %118, %27, %cst_59 {dimension_numbers = #tpu.dot_dimension_numbers<[1], [0], [0], [1], [0, 0, 1, 1], [], []>} : vector<8x20xf32>, vector<20x10xf32>, vector<8x10xf32> -> vector<8x10xf32>
    %120 = vector.broadcast %28 : vector<1x10xf32> to vector<8x10xf32>
    %121 = arith.addf %119, %120 : vector<8x10xf32>
    %cst_60 = arith.constant 0.000000e+00 : f32
    %122 = vector.broadcast %cst_60 : f32 to vector<8x10xf32>
    %123 = arith.maximumf %121, %122 : vector<8x10xf32>
    %cst_61 = arith.constant dense<0.000000e+00> : vector<8x96xf32>
    %124 = tpu.matmul %123, %8, %cst_61 {dimension_numbers = #tpu.dot_dimension_numbers<[1], [0], [0], [1], [0, 0, 1, 1], [], []>} : vector<8x10xf32>, vector<10x96xf32>, vector<8x96xf32> -> vector<8x96xf32>
    %125 = vector.broadcast %12 : vector<1x96xf32> to vector<8x96xf32>
    %126 = arith.addf %124, %125 : vector<8x96xf32>
    %c0_62 = arith.constant 0 : index
    %c0_63 = arith.constant 0 : index
    %127 = vector.load %arg14[%c0_62, %c0_63] : memref<8x32xf32, #tpu.memory_space<vmem>>, vector<8x32xf32>
    %cst_64 = arith.constant dense<0.000000e+00> : vector<8x96xf32>
    %128 = tpu.matmul %127, %18, %cst_64 {dimension_numbers = #tpu.dot_dimension_numbers<[1], [0], [0], [1], [0, 0, 1, 1], [], []>} : vector<8x32xf32>, vector<32x96xf32>, vector<8x96xf32> -> vector<8x96xf32>
    %c0_65 = arith.constant 0 : index
    %c0_66 = arith.constant 0 : index
    %129 = vector.load %arg14[%c0_65, %c0_66] : memref<8x32xf32, #tpu.memory_space<vmem>>, vector<8x32xf32>
    %130 = vector.extract_strided_slice %126 {offsets = [0, 0], sizes = [8, 64], strides = [1, 1]} : vector<8x96xf32> to vector<8x64xf32>
    %131 = vector.extract_strided_slice %128 {offsets = [0, 0], sizes = [8, 64], strides = [1, 1]} : vector<8x96xf32> to vector<8x64xf32>
    %132 = arith.addf %130, %131 : vector<8x64xf32>
    %133 = arith.negf %132 : vector<8x64xf32>
    %134 = math.exp %133 : vector<8x64xf32>
    %cst_67 = arith.constant 1.000000e+00 : f32
    %135 = vector.broadcast %cst_67 : f32 to vector<8x64xf32>
    %136 = arith.addf %135, %134 : vector<8x64xf32>
    %137 = arith.divf %135, %136 : vector<8x64xf32>
    %138 = vector.extract_strided_slice %137 {offsets = [0, 0], sizes = [8, 32], strides = [1, 1]} : vector<8x64xf32> to vector<8x32xf32>
    %139 = vector.extract_strided_slice %137 {offsets = [0, 32], sizes = [8, 32], strides = [1, 1]} : vector<8x64xf32> to vector<8x32xf32>
    %140 = vector.extract_strided_slice %126 {offsets = [0, 64], sizes = [8, 32], strides = [1, 1]} : vector<8x96xf32> to vector<8x32xf32>
    %141 = vector.extract_strided_slice %128 {offsets = [0, 64], sizes = [8, 32], strides = [1, 1]} : vector<8x96xf32> to vector<8x32xf32>
    %142 = vector.broadcast %24 : vector<1x32xf32> to vector<8x32xf32>
    %143 = arith.addf %141, %142 : vector<8x32xf32>
    %144 = arith.mulf %138, %143 : vector<8x32xf32>
    %145 = arith.addf %140, %144 : vector<8x32xf32>
    %146 = math.tanh %145 : vector<8x32xf32>
    %cst_68 = arith.constant 1.000000e+00 : f32
    %147 = vector.broadcast %cst_68 : f32 to vector<8x32xf32>
    %148 = arith.subf %147, %139 : vector<8x32xf32>
    %149 = arith.mulf %148, %146 : vector<8x32xf32>
    %150 = arith.mulf %139, %129 : vector<8x32xf32>
    %151 = arith.addf %149, %150 : vector<8x32xf32>
    %c0_69 = arith.constant 0 : index
    %c0_70 = arith.constant 0 : index
    %152 = vector.load %arg13[%c0_69, %c0_70] : memref<8x256xf32, #tpu.memory_space<vmem>>, vector<8x32xf32>
    tpu.vector_store %arg13[%c0_69, %c0_70], %151 {strides = array<i32>} : memref<8x256xf32, #tpu.memory_space<vmem>>, vector<8x32xf32>,
    %c0_71 = arith.constant 0 : index
    %c0_72 = arith.constant 0 : index
    %153 = vector.load %arg14[%c0_71, %c0_72] : memref<8x32xf32, #tpu.memory_space<vmem>>, vector<8x32xf32>
    tpu.vector_store %arg14[%c0_71, %c0_72], %151 {strides = array<i32>} : memref<8x32xf32, #tpu.memory_space<vmem>>, vector<8x32xf32>,
    %c0_73 = arith.constant 0 : index
    %c0_74 = arith.constant 0 : index
    %154 = vector.load %arg15[%c0_73, %c0_74] : memref<8x32xf32, #tpu.memory_space<vmem>>, vector<8x32xf32>
    tpu.vector_store %arg15[%c0_73, %c0_74], %75 {strides = array<i32>} : memref<8x32xf32, #tpu.memory_space<vmem>>, vector<8x32xf32>,
    %c0_75 = arith.constant 0 : index
    %c0_76 = arith.constant 0 : index
    %155 = vector.load %arg16[%c0_75, %c0_76] : memref<8x32xf32, #tpu.memory_space<vmem>>, vector<8x32xf32>
    tpu.vector_store %arg16[%c0_75, %c0_76], %104 {strides = array<i32>} : memref<8x32xf32, #tpu.memory_space<vmem>>, vector<8x32xf32>,
    %c0_77 = arith.constant 0 : index
    %c1_78 = arith.constant 1 : index
    %c0_79 = arith.constant 0 : index
    %156 = vector.load %arg2[%c0_77, %c1_78, %c0_79] : memref<8x8x21xf32, #tpu.memory_space<vmem>>, vector<8x1x21xf32>
    %157 = vector.shape_cast %156 : vector<8x1x21xf32> to vector<8x21xf32>
    %158 = vector.extract_strided_slice %157 {offsets = [0, 0], sizes = [8, 10], strides = [1, 1]} : vector<8x21xf32> to vector<8x10xf32>
    %159 = vector.extract_strided_slice %157 {offsets = [0, 10], sizes = [8, 10], strides = [1, 1]} : vector<8x21xf32> to vector<8x10xf32>
    %160 = vector.extract_strided_slice %157 {offsets = [0, 20], sizes = [8, 1], strides = [1, 1]} : vector<8x21xf32> to vector<8x1xf32>
    %cst_80 = arith.constant 1.000000e+00 : f32
    %161 = vector.broadcast %cst_80 : f32 to vector<8x10xf32>
    %162 = arith.subf %161, %159 : vector<8x10xf32>
    %cst_81 = arith.constant 0.000000e+00 : f32
    %163 = vector.broadcast %cst_81 : f32 to vector<8x10xf32>
    %164 = arith.maximumf %162, %163 : vector<8x10xf32>
    %165 = arith.mulf %158, %164 : vector<8x10xf32>
    %166 = tpu.concatenate %162, %165 in 1 : vector<8x10xf32>, vector<8x10xf32> -> vector<8x20xf32>
    %cst_82 = arith.constant dense<0.000000e+00> : vector<8x106xf32>
    %167 = tpu.matmul %166, %3, %cst_82 {dimension_numbers = #tpu.dot_dimension_numbers<[1], [0], [0], [1], [0, 0, 1, 1], [], []>} : vector<8x20xf32>, vector<20x106xf32>, vector<8x106xf32> -> vector<8x106xf32>
    %168 = vector.broadcast %4 : vector<1x106xf32> to vector<8x106xf32>
    %169 = arith.addf %167, %168 : vector<8x106xf32>
    %170 = vector.extract_strided_slice %169 {offsets = [0, 0], sizes = [8, 10], strides = [1, 1]} : vector<8x106xf32> to vector<8x10xf32>
    %171 = arith.negf %170 : vector<8x10xf32>
    %172 = math.exp %171 : vector<8x10xf32>
    %cst_83 = arith.constant 1.000000e+00 : f32
    %173 = vector.broadcast %cst_83 : f32 to vector<8x10xf32>
    %174 = arith.addf %173, %172 : vector<8x10xf32>
    %175 = arith.divf %173, %174 : vector<8x10xf32>
    %176 = vector.extract_strided_slice %169 {offsets = [0, 10], sizes = [8, 96], strides = [1, 1]} : vector<8x106xf32> to vector<8x96xf32>
    %c0_84 = arith.constant 0 : index
    %c0_85 = arith.constant 0 : index
    %177 = vector.load %arg15[%c0_84, %c0_85] : memref<8x32xf32, #tpu.memory_space<vmem>>, vector<8x32xf32>
    %178 = vector.broadcast %160 : vector<8x1xf32> to vector<8x32xf32>
    %179 = arith.mulf %177, %178 : vector<8x32xf32>
    %cst_86 = arith.constant dense<0.000000e+00> : vector<8x96xf32>
    %180 = tpu.matmul %179, %14, %cst_86 {dimension_numbers = #tpu.dot_dimension_numbers<[1], [0], [0], [1], [0, 0, 1, 1], [], []>} : vector<8x32xf32>, vector<32x96xf32>, vector<8x96xf32> -> vector<8x96xf32>
    %181 = vector.extract_strided_slice %176 {offsets = [0, 0], sizes = [8, 64], strides = [1, 1]} : vector<8x96xf32> to vector<8x64xf32>
    %182 = vector.extract_strided_slice %180 {offsets = [0, 0], sizes = [8, 64], strides = [1, 1]} : vector<8x96xf32> to vector<8x64xf32>
    %183 = arith.addf %181, %182 : vector<8x64xf32>
    %184 = arith.negf %183 : vector<8x64xf32>
    %185 = math.exp %184 : vector<8x64xf32>
    %cst_87 = arith.constant 1.000000e+00 : f32
    %186 = vector.broadcast %cst_87 : f32 to vector<8x64xf32>
    %187 = arith.addf %186, %185 : vector<8x64xf32>
    %188 = arith.divf %186, %187 : vector<8x64xf32>
    %189 = vector.extract_strided_slice %188 {offsets = [0, 0], sizes = [8, 32], strides = [1, 1]} : vector<8x64xf32> to vector<8x32xf32>
    %190 = vector.extract_strided_slice %188 {offsets = [0, 32], sizes = [8, 32], strides = [1, 1]} : vector<8x64xf32> to vector<8x32xf32>
    %191 = vector.extract_strided_slice %176 {offsets = [0, 64], sizes = [8, 32], strides = [1, 1]} : vector<8x96xf32> to vector<8x32xf32>
    %192 = vector.extract_strided_slice %180 {offsets = [0, 64], sizes = [8, 32], strides = [1, 1]} : vector<8x96xf32> to vector<8x32xf32>
    %193 = vector.broadcast %20 : vector<1x32xf32> to vector<8x32xf32>
    %194 = arith.addf %192, %193 : vector<8x32xf32>
    %195 = arith.mulf %189, %194 : vector<8x32xf32>
    %196 = arith.addf %191, %195 : vector<8x32xf32>
    %197 = math.tanh %196 : vector<8x32xf32>
    %cst_88 = arith.constant 1.000000e+00 : f32
    %198 = vector.broadcast %cst_88 : f32 to vector<8x32xf32>
    %199 = arith.subf %198, %190 : vector<8x32xf32>
    %200 = arith.mulf %199, %197 : vector<8x32xf32>
    %201 = arith.mulf %190, %179 : vector<8x32xf32>
    %202 = arith.addf %200, %201 : vector<8x32xf32>
    %cst_89 = arith.constant dense<0.000000e+00> : vector<8x96xf32>
    %203 = tpu.matmul %175, %6, %cst_89 {dimension_numbers = #tpu.dot_dimension_numbers<[1], [0], [0], [1], [0, 0, 1, 1], [], []>} : vector<8x10xf32>, vector<10x96xf32>, vector<8x96xf32> -> vector<8x96xf32>
    %204 = vector.broadcast %10 : vector<1x96xf32> to vector<8x96xf32>
    %205 = arith.addf %203, %204 : vector<8x96xf32>
    %c0_90 = arith.constant 0 : index
    %c0_91 = arith.constant 0 : index
    %206 = vector.load %arg16[%c0_90, %c0_91] : memref<8x32xf32, #tpu.memory_space<vmem>>, vector<8x32xf32>
    %207 = vector.broadcast %160 : vector<8x1xf32> to vector<8x32xf32>
    %208 = arith.mulf %206, %207 : vector<8x32xf32>
    %cst_92 = arith.constant dense<0.000000e+00> : vector<8x96xf32>
    %209 = tpu.matmul %208, %16, %cst_92 {dimension_numbers = #tpu.dot_dimension_numbers<[1], [0], [0], [1], [0, 0, 1, 1], [], []>} : vector<8x32xf32>, vector<32x96xf32>, vector<8x96xf32> -> vector<8x96xf32>
    %210 = vector.extract_strided_slice %205 {offsets = [0, 0], sizes = [8, 64], strides = [1, 1]} : vector<8x96xf32> to vector<8x64xf32>
    %211 = vector.extract_strided_slice %209 {offsets = [0, 0], sizes = [8, 64], strides = [1, 1]} : vector<8x96xf32> to vector<8x64xf32>
    %212 = arith.addf %210, %211 : vector<8x64xf32>
    %213 = arith.negf %212 : vector<8x64xf32>
    %214 = math.exp %213 : vector<8x64xf32>
    %cst_93 = arith.constant 1.000000e+00 : f32
    %215 = vector.broadcast %cst_93 : f32 to vector<8x64xf32>
    %216 = arith.addf %215, %214 : vector<8x64xf32>
    %217 = arith.divf %215, %216 : vector<8x64xf32>
    %218 = vector.extract_strided_slice %217 {offsets = [0, 0], sizes = [8, 32], strides = [1, 1]} : vector<8x64xf32> to vector<8x32xf32>
    %219 = vector.extract_strided_slice %217 {offsets = [0, 32], sizes = [8, 32], strides = [1, 1]} : vector<8x64xf32> to vector<8x32xf32>
    %220 = vector.extract_strided_slice %205 {offsets = [0, 64], sizes = [8, 32], strides = [1, 1]} : vector<8x96xf32> to vector<8x32xf32>
    %221 = vector.extract_strided_slice %209 {offsets = [0, 64], sizes = [8, 32], strides = [1, 1]} : vector<8x96xf32> to vector<8x32xf32>
    %222 = vector.broadcast %22 : vector<1x32xf32> to vector<8x32xf32>
    %223 = arith.addf %221, %222 : vector<8x32xf32>
    %224 = arith.mulf %218, %223 : vector<8x32xf32>
    %225 = arith.addf %220, %224 : vector<8x32xf32>
    %226 = math.tanh %225 : vector<8x32xf32>
    %cst_94 = arith.constant 1.000000e+00 : f32
    %227 = vector.broadcast %cst_94 : f32 to vector<8x32xf32>
    %228 = arith.subf %227, %219 : vector<8x32xf32>
    %229 = arith.mulf %228, %226 : vector<8x32xf32>
    %230 = arith.mulf %219, %208 : vector<8x32xf32>
    %231 = arith.addf %229, %230 : vector<8x32xf32>
    %232 = tpu.concatenate %202, %231 in 1 : vector<8x32xf32>, vector<8x32xf32> -> vector<8x64xf32>
    %cst_95 = arith.constant dense<0.000000e+00> : vector<8x20xf32>
    %233 = tpu.matmul %232, %25, %cst_95 {dimension_numbers = #tpu.dot_dimension_numbers<[1], [0], [0], [1], [0, 0, 1, 1], [], []>} : vector<8x64xf32>, vector<64x20xf32>, vector<8x20xf32> -> vector<8x20xf32>
    %234 = vector.broadcast %26 : vector<1x20xf32> to vector<8x20xf32>
    %235 = arith.addf %233, %234 : vector<8x20xf32>
    %236 = vector.extract_strided_slice %235 {offsets = [0, 0], sizes = [8, 10], strides = [1, 1]} : vector<8x20xf32> to vector<8x10xf32>
    %237 = vector.extract_strided_slice %235 {offsets = [0, 10], sizes = [8, 10], strides = [1, 1]} : vector<8x20xf32> to vector<8x10xf32>
    %238 = arith.negf %237 : vector<8x10xf32>
    %239 = math.exp %238 : vector<8x10xf32>
    %cst_96 = arith.constant 1.000000e+00 : f32
    %240 = vector.broadcast %cst_96 : f32 to vector<8x10xf32>
    %241 = arith.addf %240, %239 : vector<8x10xf32>
    %242 = arith.divf %240, %241 : vector<8x10xf32>
    %243 = arith.mulf %236, %242 : vector<8x10xf32>
    %244 = arith.mulf %158, %175 : vector<8x10xf32>
    %245 = tpu.concatenate %243, %244 in 1 : vector<8x10xf32>, vector<8x10xf32> -> vector<8x20xf32>
    %cst_97 = arith.constant dense<0.000000e+00> : vector<8x10xf32>
    %246 = tpu.matmul %245, %27, %cst_97 {dimension_numbers = #tpu.dot_dimension_numbers<[1], [0], [0], [1], [0, 0, 1, 1], [], []>} : vector<8x20xf32>, vector<20x10xf32>, vector<8x10xf32> -> vector<8x10xf32>
    %247 = vector.broadcast %28 : vector<1x10xf32> to vector<8x10xf32>
    %248 = arith.addf %246, %247 : vector<8x10xf32>
    %cst_98 = arith.constant 0.000000e+00 : f32
    %249 = vector.broadcast %cst_98 : f32 to vector<8x10xf32>
    %250 = arith.maximumf %248, %249 : vector<8x10xf32>
    %cst_99 = arith.constant dense<0.000000e+00> : vector<8x96xf32>
    %251 = tpu.matmul %250, %8, %cst_99 {dimension_numbers = #tpu.dot_dimension_numbers<[1], [0], [0], [1], [0, 0, 1, 1], [], []>} : vector<8x10xf32>, vector<10x96xf32>, vector<8x96xf32> -> vector<8x96xf32>
    %252 = vector.broadcast %12 : vector<1x96xf32> to vector<8x96xf32>
    %253 = arith.addf %251, %252 : vector<8x96xf32>
    %c0_100 = arith.constant 0 : index
    %c0_101 = arith.constant 0 : index
    %254 = vector.load %arg14[%c0_100, %c0_101] : memref<8x32xf32, #tpu.memory_space<vmem>>, vector<8x32xf32>
    %cst_102 = arith.constant dense<0.000000e+00> : vector<8x96xf32>
    %255 = tpu.matmul %254, %18, %cst_102 {dimension_numbers = #tpu.dot_dimension_numbers<[1], [0], [0], [1], [0, 0, 1, 1], [], []>} : vector<8x32xf32>, vector<32x96xf32>, vector<8x96xf32> -> vector<8x96xf32>
    %c0_103 = arith.constant 0 : index
    %c0_104 = arith.constant 0 : index
    %256 = vector.load %arg14[%c0_103, %c0_104] : memref<8x32xf32, #tpu.memory_space<vmem>>, vector<8x32xf32>
    %257 = vector.extract_strided_slice %253 {offsets = [0, 0], sizes = [8, 64], strides = [1, 1]} : vector<8x96xf32> to vector<8x64xf32>
    %258 = vector.extract_strided_slice %255 {offsets = [0, 0], sizes = [8, 64], strides = [1, 1]} : vector<8x96xf32> to vector<8x64xf32>
    %259 = arith.addf %257, %258 : vector<8x64xf32>
    %260 = arith.negf %259 : vector<8x64xf32>
    %261 = math.exp %260 : vector<8x64xf32>
    %cst_105 = arith.constant 1.000000e+00 : f32
    %262 = vector.broadcast %cst_105 : f32 to vector<8x64xf32>
    %263 = arith.addf %262, %261 : vector<8x64xf32>
    %264 = arith.divf %262, %263 : vector<8x64xf32>
    %265 = vector.extract_strided_slice %264 {offsets = [0, 0], sizes = [8, 32], strides = [1, 1]} : vector<8x64xf32> to vector<8x32xf32>
    %266 = vector.extract_strided_slice %264 {offsets = [0, 32], sizes = [8, 32], strides = [1, 1]} : vector<8x64xf32> to vector<8x32xf32>
    %267 = vector.extract_strided_slice %253 {offsets = [0, 64], sizes = [8, 32], strides = [1, 1]} : vector<8x96xf32> to vector<8x32xf32>
    %268 = vector.extract_strided_slice %255 {offsets = [0, 64], sizes = [8, 32], strides = [1, 1]} : vector<8x96xf32> to vector<8x32xf32>
    %269 = vector.broadcast %24 : vector<1x32xf32> to vector<8x32xf32>
    %270 = arith.addf %268, %269 : vector<8x32xf32>
    %271 = arith.mulf %265, %270 : vector<8x32xf32>
    %272 = arith.addf %267, %271 : vector<8x32xf32>
    %273 = math.tanh %272 : vector<8x32xf32>
    %cst_106 = arith.constant 1.000000e+00 : f32
    %274 = vector.broadcast %cst_106 : f32 to vector<8x32xf32>
    %275 = arith.subf %274, %266 : vector<8x32xf32>
    %276 = arith.mulf %275, %273 : vector<8x32xf32>
    %277 = arith.mulf %266, %256 : vector<8x32xf32>
    %278 = arith.addf %276, %277 : vector<8x32xf32>
    %c0_107 = arith.constant 0 : index
    %c32 = arith.constant 32 : index
    %279 = vector.load %arg13[%c0_107, %c32] : memref<8x256xf32, #tpu.memory_space<vmem>>, vector<8x32xf32>
    tpu.vector_store %arg13[%c0_107, %c32], %278 {strides = array<i32>} : memref<8x256xf32, #tpu.memory_space<vmem>>, vector<8x32xf32>,
    %c0_108 = arith.constant 0 : index
    %c0_109 = arith.constant 0 : index
    %280 = vector.load %arg14[%c0_108, %c0_109] : memref<8x32xf32, #tpu.memory_space<vmem>>, vector<8x32xf32>
    tpu.vector_store %arg14[%c0_108, %c0_109], %278 {strides = array<i32>} : memref<8x32xf32, #tpu.memory_space<vmem>>, vector<8x32xf32>,
    %c0_110 = arith.constant 0 : index
    %c0_111 = arith.constant 0 : index
    %281 = vector.load %arg15[%c0_110, %c0_111] : memref<8x32xf32, #tpu.memory_space<vmem>>, vector<8x32xf32>
    tpu.vector_store %arg15[%c0_110, %c0_111], %202 {strides = array<i32>} : memref<8x32xf32, #tpu.memory_space<vmem>>, vector<8x32xf32>,
    %c0_112 = arith.constant 0 : index
    %c0_113 = arith.constant 0 : index
    %282 = vector.load %arg16[%c0_112, %c0_113] : memref<8x32xf32, #tpu.memory_space<vmem>>, vector<8x32xf32>
    tpu.vector_store %arg16[%c0_112, %c0_113], %231 {strides = array<i32>} : memref<8x32xf32, #tpu.memory_space<vmem>>, vector<8x32xf32>,
    %c0_114 = arith.constant 0 : index
    %c2_115 = arith.constant 2 : index
    %c0_116 = arith.constant 0 : index
    %283 = vector.load %arg2[%c0_114, %c2_115, %c0_116] : memref<8x8x21xf32, #tpu.memory_space<vmem>>, vector<8x1x21xf32>
    %284 = vector.shape_cast %283 : vector<8x1x21xf32> to vector<8x21xf32>
    %285 = vector.extract_strided_slice %284 {offsets = [0, 0], sizes = [8, 10], strides = [1, 1]} : vector<8x21xf32> to vector<8x10xf32>
    %286 = vector.extract_strided_slice %284 {offsets = [0, 10], sizes = [8, 10], strides = [1, 1]} : vector<8x21xf32> to vector<8x10xf32>
    %287 = vector.extract_strided_slice %284 {offsets = [0, 20], sizes = [8, 1], strides = [1, 1]} : vector<8x21xf32> to vector<8x1xf32>
    %cst_117 = arith.constant 1.000000e+00 : f32
    %288 = vector.broadcast %cst_117 : f32 to vector<8x10xf32>
    %289 = arith.subf %288, %286 : vector<8x10xf32>
    %cst_118 = arith.constant 0.000000e+00 : f32
    %290 = vector.broadcast %cst_118 : f32 to vector<8x10xf32>
    %291 = arith.maximumf %289, %290 : vector<8x10xf32>
    %292 = arith.mulf %285, %291 : vector<8x10xf32>
    %293 = tpu.concatenate %289, %292 in 1 : vector<8x10xf32>, vector<8x10xf32> -> vector<8x20xf32>
    %cst_119 = arith.constant dense<0.000000e+00> : vector<8x106xf32>
    %294 = tpu.matmul %293, %3, %cst_119 {dimension_numbers = #tpu.dot_dimension_numbers<[1], [0], [0], [1], [0, 0, 1, 1], [], []>} : vector<8x20xf32>, vector<20x106xf32>, vector<8x106xf32> -> vector<8x106xf32>
    %295 = vector.broadcast %4 : vector<1x106xf32> to vector<8x106xf32>
    %296 = arith.addf %294, %295 : vector<8x106xf32>
    %297 = vector.extract_strided_slice %296 {offsets = [0, 0], sizes = [8, 10], strides = [1, 1]} : vector<8x106xf32> to vector<8x10xf32>
    %298 = arith.negf %297 : vector<8x10xf32>
    %299 = math.exp %298 : vector<8x10xf32>
    %cst_120 = arith.constant 1.000000e+00 : f32
    %300 = vector.broadcast %cst_120 : f32 to vector<8x10xf32>
    %301 = arith.addf %300, %299 : vector<8x10xf32>
    %302 = arith.divf %300, %301 : vector<8x10xf32>
    %303 = vector.extract_strided_slice %296 {offsets = [0, 10], sizes = [8, 96], strides = [1, 1]} : vector<8x106xf32> to vector<8x96xf32>
    %c0_121 = arith.constant 0 : index
    %c0_122 = arith.constant 0 : index
    %304 = vector.load %arg15[%c0_121, %c0_122] : memref<8x32xf32, #tpu.memory_space<vmem>>, vector<8x32xf32>
    %305 = vector.broadcast %287 : vector<8x1xf32> to vector<8x32xf32>
    %306 = arith.mulf %304, %305 : vector<8x32xf32>
    %cst_123 = arith.constant dense<0.000000e+00> : vector<8x96xf32>
    %307 = tpu.matmul %306, %14, %cst_123 {dimension_numbers = #tpu.dot_dimension_numbers<[1], [0], [0], [1], [0, 0, 1, 1], [], []>} : vector<8x32xf32>, vector<32x96xf32>, vector<8x96xf32> -> vector<8x96xf32>
    %308 = vector.extract_strided_slice %303 {offsets = [0, 0], sizes = [8, 64], strides = [1, 1]} : vector<8x96xf32> to vector<8x64xf32>
    %309 = vector.extract_strided_slice %307 {offsets = [0, 0], sizes = [8, 64], strides = [1, 1]} : vector<8x96xf32> to vector<8x64xf32>
    %310 = arith.addf %308, %309 : vector<8x64xf32>
    %311 = arith.negf %310 : vector<8x64xf32>
    %312 = math.exp %311 : vector<8x64xf32>
    %cst_124 = arith.constant 1.000000e+00 : f32
    %313 = vector.broadcast %cst_124 : f32 to vector<8x64xf32>
    %314 = arith.addf %313, %312 : vector<8x64xf32>
    %315 = arith.divf %313, %314 : vector<8x64xf32>
    %316 = vector.extract_strided_slice %315 {offsets = [0, 0], sizes = [8, 32], strides = [1, 1]} : vector<8x64xf32> to vector<8x32xf32>
    %317 = vector.extract_strided_slice %315 {offsets = [0, 32], sizes = [8, 32], strides = [1, 1]} : vector<8x64xf32> to vector<8x32xf32>
    %318 = vector.extract_strided_slice %303 {offsets = [0, 64], sizes = [8, 32], strides = [1, 1]} : vector<8x96xf32> to vector<8x32xf32>
    %319 = vector.extract_strided_slice %307 {offsets = [0, 64], sizes = [8, 32], strides = [1, 1]} : vector<8x96xf32> to vector<8x32xf32>
    %320 = vector.broadcast %20 : vector<1x32xf32> to vector<8x32xf32>
    %321 = arith.addf %319, %320 : vector<8x32xf32>
    %322 = arith.mulf %316, %321 : vector<8x32xf32>
    %323 = arith.addf %318, %322 : vector<8x32xf32>
    %324 = math.tanh %323 : vector<8x32xf32>
    %cst_125 = arith.constant 1.000000e+00 : f32
    %325 = vector.broadcast %cst_125 : f32 to vector<8x32xf32>
    %326 = arith.subf %325, %317 : vector<8x32xf32>
    %327 = arith.mulf %326, %324 : vector<8x32xf32>
    %328 = arith.mulf %317, %306 : vector<8x32xf32>
    %329 = arith.addf %327, %328 : vector<8x32xf32>
    %cst_126 = arith.constant dense<0.000000e+00> : vector<8x96xf32>
    %330 = tpu.matmul %302, %6, %cst_126 {dimension_numbers = #tpu.dot_dimension_numbers<[1], [0], [0], [1], [0, 0, 1, 1], [], []>} : vector<8x10xf32>, vector<10x96xf32>, vector<8x96xf32> -> vector<8x96xf32>
    %331 = vector.broadcast %10 : vector<1x96xf32> to vector<8x96xf32>
    %332 = arith.addf %330, %331 : vector<8x96xf32>
    %c0_127 = arith.constant 0 : index
    %c0_128 = arith.constant 0 : index
    %333 = vector.load %arg16[%c0_127, %c0_128] : memref<8x32xf32, #tpu.memory_space<vmem>>, vector<8x32xf32>
    %334 = vector.broadcast %287 : vector<8x1xf32> to vector<8x32xf32>
    %335 = arith.mulf %333, %334 : vector<8x32xf32>
    %cst_129 = arith.constant dense<0.000000e+00> : vector<8x96xf32>
    %336 = tpu.matmul %335, %16, %cst_129 {dimension_numbers = #tpu.dot_dimension_numbers<[1], [0], [0], [1], [0, 0, 1, 1], [], []>} : vector<8x32xf32>, vector<32x96xf32>, vector<8x96xf32> -> vector<8x96xf32>
    %337 = vector.extract_strided_slice %332 {offsets = [0, 0], sizes = [8, 64], strides = [1, 1]} : vector<8x96xf32> to vector<8x64xf32>
    %338 = vector.extract_strided_slice %336 {offsets = [0, 0], sizes = [8, 64], strides = [1, 1]} : vector<8x96xf32> to vector<8x64xf32>
    %339 = arith.addf %337, %338 : vector<8x64xf32>
    %340 = arith.negf %339 : vector<8x64xf32>
    %341 = math.exp %340 : vector<8x64xf32>
    %cst_130 = arith.constant 1.000000e+00 : f32
    %342 = vector.broadcast %cst_130 : f32 to vector<8x64xf32>
    %343 = arith.addf %342, %341 : vector<8x64xf32>
    %344 = arith.divf %342, %343 : vector<8x64xf32>
    %345 = vector.extract_strided_slice %344 {offsets = [0, 0], sizes = [8, 32], strides = [1, 1]} : vector<8x64xf32> to vector<8x32xf32>
    %346 = vector.extract_strided_slice %344 {offsets = [0, 32], sizes = [8, 32], strides = [1, 1]} : vector<8x64xf32> to vector<8x32xf32>
    %347 = vector.extract_strided_slice %332 {offsets = [0, 64], sizes = [8, 32], strides = [1, 1]} : vector<8x96xf32> to vector<8x32xf32>
    %348 = vector.extract_strided_slice %336 {offsets = [0, 64], sizes = [8, 32], strides = [1, 1]} : vector<8x96xf32> to vector<8x32xf32>
    %349 = vector.broadcast %22 : vector<1x32xf32> to vector<8x32xf32>
    %350 = arith.addf %348, %349 : vector<8x32xf32>
    %351 = arith.mulf %345, %350 : vector<8x32xf32>
    %352 = arith.addf %347, %351 : vector<8x32xf32>
    %353 = math.tanh %352 : vector<8x32xf32>
    %cst_131 = arith.constant 1.000000e+00 : f32
    %354 = vector.broadcast %cst_131 : f32 to vector<8x32xf32>
    %355 = arith.subf %354, %346 : vector<8x32xf32>
    %356 = arith.mulf %355, %353 : vector<8x32xf32>
    %357 = arith.mulf %346, %335 : vector<8x32xf32>
    %358 = arith.addf %356, %357 : vector<8x32xf32>
    %359 = tpu.concatenate %329, %358 in 1 : vector<8x32xf32>, vector<8x32xf32> -> vector<8x64xf32>
    %cst_132 = arith.constant dense<0.000000e+00> : vector<8x20xf32>
    %360 = tpu.matmul %359, %25, %cst_132 {dimension_numbers = #tpu.dot_dimension_numbers<[1], [0], [0], [1], [0, 0, 1, 1], [], []>} : vector<8x64xf32>, vector<64x20xf32>, vector<8x20xf32> -> vector<8x20xf32>
    %361 = vector.broadcast %26 : vector<1x20xf32> to vector<8x20xf32>
    %362 = arith.addf %360, %361 : vector<8x20xf32>
    %363 = vector.extract_strided_slice %362 {offsets = [0, 0], sizes = [8, 10], strides = [1, 1]} : vector<8x20xf32> to vector<8x10xf32>
    %364 = vector.extract_strided_slice %362 {offsets = [0, 10], sizes = [8, 10], strides = [1, 1]} : vector<8x20xf32> to vector<8x10xf32>
    %365 = arith.negf %364 : vector<8x10xf32>
    %366 = math.exp %365 : vector<8x10xf32>
    %cst_133 = arith.constant 1.000000e+00 : f32
    %367 = vector.broadcast %cst_133 : f32 to vector<8x10xf32>
    %368 = arith.addf %367, %366 : vector<8x10xf32>
    %369 = arith.divf %367, %368 : vector<8x10xf32>
    %370 = arith.mulf %363, %369 : vector<8x10xf32>
    %371 = arith.mulf %285, %302 : vector<8x10xf32>
    %372 = tpu.concatenate %370, %371 in 1 : vector<8x10xf32>, vector<8x10xf32> -> vector<8x20xf32>
    %cst_134 = arith.constant dense<0.000000e+00> : vector<8x10xf32>
    %373 = tpu.matmul %372, %27, %cst_134 {dimension_numbers = #tpu.dot_dimension_numbers<[1], [0], [0], [1], [0, 0, 1, 1], [], []>} : vector<8x20xf32>, vector<20x10xf32>, vector<8x10xf32> -> vector<8x10xf32>
    %374 = vector.broadcast %28 : vector<1x10xf32> to vector<8x10xf32>
    %375 = arith.addf %373, %374 : vector<8x10xf32>
    %cst_135 = arith.constant 0.000000e+00 : f32
    %376 = vector.broadcast %cst_135 : f32 to vector<8x10xf32>
    %377 = arith.maximumf %375, %376 : vector<8x10xf32>
    %cst_136 = arith.constant dense<0.000000e+00> : vector<8x96xf32>
    %378 = tpu.matmul %377, %8, %cst_136 {dimension_numbers = #tpu.dot_dimension_numbers<[1], [0], [0], [1], [0, 0, 1, 1], [], []>} : vector<8x10xf32>, vector<10x96xf32>, vector<8x96xf32> -> vector<8x96xf32>
    %379 = vector.broadcast %12 : vector<1x96xf32> to vector<8x96xf32>
    %380 = arith.addf %378, %379 : vector<8x96xf32>
    %c0_137 = arith.constant 0 : index
    %c0_138 = arith.constant 0 : index
    %381 = vector.load %arg14[%c0_137, %c0_138] : memref<8x32xf32, #tpu.memory_space<vmem>>, vector<8x32xf32>
    %cst_139 = arith.constant dense<0.000000e+00> : vector<8x96xf32>
    %382 = tpu.matmul %381, %18, %cst_139 {dimension_numbers = #tpu.dot_dimension_numbers<[1], [0], [0], [1], [0, 0, 1, 1], [], []>} : vector<8x32xf32>, vector<32x96xf32>, vector<8x96xf32> -> vector<8x96xf32>
    %c0_140 = arith.constant 0 : index
    %c0_141 = arith.constant 0 : index
    %383 = vector.load %arg14[%c0_140, %c0_141] : memref<8x32xf32, #tpu.memory_space<vmem>>, vector<8x32xf32>
    %384 = vector.extract_strided_slice %380 {offsets = [0, 0], sizes = [8, 64], strides = [1, 1]} : vector<8x96xf32> to vector<8x64xf32>
    %385 = vector.extract_strided_slice %382 {offsets = [0, 0], sizes = [8, 64], strides = [1, 1]} : vector<8x96xf32> to vector<8x64xf32>
    %386 = arith.addf %384, %385 : vector<8x64xf32>
    %387 = arith.negf %386 : vector<8x64xf32>
    %388 = math.exp %387 : vector<8x64xf32>
    %cst_142 = arith.constant 1.000000e+00 : f32
    %389 = vector.broadcast %cst_142 : f32 to vector<8x64xf32>
    %390 = arith.addf %389, %388 : vector<8x64xf32>
    %391 = arith.divf %389, %390 : vector<8x64xf32>
    %392 = vector.extract_strided_slice %391 {offsets = [0, 0], sizes = [8, 32], strides = [1, 1]} : vector<8x64xf32> to vector<8x32xf32>
    %393 = vector.extract_strided_slice %391 {offsets = [0, 32], sizes = [8, 32], strides = [1, 1]} : vector<8x64xf32> to vector<8x32xf32>
    %394 = vector.extract_strided_slice %380 {offsets = [0, 64], sizes = [8, 32], strides = [1, 1]} : vector<8x96xf32> to vector<8x32xf32>
    %395 = vector.extract_strided_slice %382 {offsets = [0, 64], sizes = [8, 32], strides = [1, 1]} : vector<8x96xf32> to vector<8x32xf32>
    %396 = vector.broadcast %24 : vector<1x32xf32> to vector<8x32xf32>
    %397 = arith.addf %395, %396 : vector<8x32xf32>
    %398 = arith.mulf %392, %397 : vector<8x32xf32>
    %399 = arith.addf %394, %398 : vector<8x32xf32>
    %400 = math.tanh %399 : vector<8x32xf32>
    %cst_143 = arith.constant 1.000000e+00 : f32
    %401 = vector.broadcast %cst_143 : f32 to vector<8x32xf32>
    %402 = arith.subf %401, %393 : vector<8x32xf32>
    %403 = arith.mulf %402, %400 : vector<8x32xf32>
    %404 = arith.mulf %393, %383 : vector<8x32xf32>
    %405 = arith.addf %403, %404 : vector<8x32xf32>
    %c0_144 = arith.constant 0 : index
    %c64 = arith.constant 64 : index
    %406 = vector.load %arg13[%c0_144, %c64] : memref<8x256xf32, #tpu.memory_space<vmem>>, vector<8x32xf32>
    tpu.vector_store %arg13[%c0_144, %c64], %405 {strides = array<i32>} : memref<8x256xf32, #tpu.memory_space<vmem>>, vector<8x32xf32>,
    %c0_145 = arith.constant 0 : index
    %c0_146 = arith.constant 0 : index
    %407 = vector.load %arg14[%c0_145, %c0_146] : memref<8x32xf32, #tpu.memory_space<vmem>>, vector<8x32xf32>
    tpu.vector_store %arg14[%c0_145, %c0_146], %405 {strides = array<i32>} : memref<8x32xf32, #tpu.memory_space<vmem>>, vector<8x32xf32>,
    %c0_147 = arith.constant 0 : index
    %c0_148 = arith.constant 0 : index
    %408 = vector.load %arg15[%c0_147, %c0_148] : memref<8x32xf32, #tpu.memory_space<vmem>>, vector<8x32xf32>
    tpu.vector_store %arg15[%c0_147, %c0_148], %329 {strides = array<i32>} : memref<8x32xf32, #tpu.memory_space<vmem>>, vector<8x32xf32>,
    %c0_149 = arith.constant 0 : index
    %c0_150 = arith.constant 0 : index
    %409 = vector.load %arg16[%c0_149, %c0_150] : memref<8x32xf32, #tpu.memory_space<vmem>>, vector<8x32xf32>
    tpu.vector_store %arg16[%c0_149, %c0_150], %358 {strides = array<i32>} : memref<8x32xf32, #tpu.memory_space<vmem>>, vector<8x32xf32>,
    %c0_151 = arith.constant 0 : index
    %c3 = arith.constant 3 : index
    %c0_152 = arith.constant 0 : index
    %410 = vector.load %arg2[%c0_151, %c3, %c0_152] : memref<8x8x21xf32, #tpu.memory_space<vmem>>, vector<8x1x21xf32>
    %411 = vector.shape_cast %410 : vector<8x1x21xf32> to vector<8x21xf32>
    %412 = vector.extract_strided_slice %411 {offsets = [0, 0], sizes = [8, 10], strides = [1, 1]} : vector<8x21xf32> to vector<8x10xf32>
    %413 = vector.extract_strided_slice %411 {offsets = [0, 10], sizes = [8, 10], strides = [1, 1]} : vector<8x21xf32> to vector<8x10xf32>
    %414 = vector.extract_strided_slice %411 {offsets = [0, 20], sizes = [8, 1], strides = [1, 1]} : vector<8x21xf32> to vector<8x1xf32>
    %cst_153 = arith.constant 1.000000e+00 : f32
    %415 = vector.broadcast %cst_153 : f32 to vector<8x10xf32>
    %416 = arith.subf %415, %413 : vector<8x10xf32>
    %cst_154 = arith.constant 0.000000e+00 : f32
    %417 = vector.broadcast %cst_154 : f32 to vector<8x10xf32>
    %418 = arith.maximumf %416, %417 : vector<8x10xf32>
    %419 = arith.mulf %412, %418 : vector<8x10xf32>
    %420 = tpu.concatenate %416, %419 in 1 : vector<8x10xf32>, vector<8x10xf32> -> vector<8x20xf32>
    %cst_155 = arith.constant dense<0.000000e+00> : vector<8x106xf32>
    %421 = tpu.matmul %420, %3, %cst_155 {dimension_numbers = #tpu.dot_dimension_numbers<[1], [0], [0], [1], [0, 0, 1, 1], [], []>} : vector<8x20xf32>, vector<20x106xf32>, vector<8x106xf32> -> vector<8x106xf32>
    %422 = vector.broadcast %4 : vector<1x106xf32> to vector<8x106xf32>
    %423 = arith.addf %421, %422 : vector<8x106xf32>
    %424 = vector.extract_strided_slice %423 {offsets = [0, 0], sizes = [8, 10], strides = [1, 1]} : vector<8x106xf32> to vector<8x10xf32>
    %425 = arith.negf %424 : vector<8x10xf32>
    %426 = math.exp %425 : vector<8x10xf32>
    %cst_156 = arith.constant 1.000000e+00 : f32
    %427 = vector.broadcast %cst_156 : f32 to vector<8x10xf32>
    %428 = arith.addf %427, %426 : vector<8x10xf32>
    %429 = arith.divf %427, %428 : vector<8x10xf32>
    %430 = vector.extract_strided_slice %423 {offsets = [0, 10], sizes = [8, 96], strides = [1, 1]} : vector<8x106xf32> to vector<8x96xf32>
    %c0_157 = arith.constant 0 : index
    %c0_158 = arith.constant 0 : index
    %431 = vector.load %arg15[%c0_157, %c0_158] : memref<8x32xf32, #tpu.memory_space<vmem>>, vector<8x32xf32>
    %432 = vector.broadcast %414 : vector<8x1xf32> to vector<8x32xf32>
    %433 = arith.mulf %431, %432 : vector<8x32xf32>
    %cst_159 = arith.constant dense<0.000000e+00> : vector<8x96xf32>
    %434 = tpu.matmul %433, %14, %cst_159 {dimension_numbers = #tpu.dot_dimension_numbers<[1], [0], [0], [1], [0, 0, 1, 1], [], []>} : vector<8x32xf32>, vector<32x96xf32>, vector<8x96xf32> -> vector<8x96xf32>
    %435 = vector.extract_strided_slice %430 {offsets = [0, 0], sizes = [8, 64], strides = [1, 1]} : vector<8x96xf32> to vector<8x64xf32>
    %436 = vector.extract_strided_slice %434 {offsets = [0, 0], sizes = [8, 64], strides = [1, 1]} : vector<8x96xf32> to vector<8x64xf32>
    %437 = arith.addf %435, %436 : vector<8x64xf32>
    %438 = arith.negf %437 : vector<8x64xf32>
    %439 = math.exp %438 : vector<8x64xf32>
    %cst_160 = arith.constant 1.000000e+00 : f32
    %440 = vector.broadcast %cst_160 : f32 to vector<8x64xf32>
    %441 = arith.addf %440, %439 : vector<8x64xf32>
    %442 = arith.divf %440, %441 : vector<8x64xf32>
    %443 = vector.extract_strided_slice %442 {offsets = [0, 0], sizes = [8, 32], strides = [1, 1]} : vector<8x64xf32> to vector<8x32xf32>
    %444 = vector.extract_strided_slice %442 {offsets = [0, 32], sizes = [8, 32], strides = [1, 1]} : vector<8x64xf32> to vector<8x32xf32>
    %445 = vector.extract_strided_slice %430 {offsets = [0, 64], sizes = [8, 32], strides = [1, 1]} : vector<8x96xf32> to vector<8x32xf32>
    %446 = vector.extract_strided_slice %434 {offsets = [0, 64], sizes = [8, 32], strides = [1, 1]} : vector<8x96xf32> to vector<8x32xf32>
    %447 = vector.broadcast %20 : vector<1x32xf32> to vector<8x32xf32>
    %448 = arith.addf %446, %447 : vector<8x32xf32>
    %449 = arith.mulf %443, %448 : vector<8x32xf32>
    %450 = arith.addf %445, %449 : vector<8x32xf32>
    %451 = math.tanh %450 : vector<8x32xf32>
    %cst_161 = arith.constant 1.000000e+00 : f32
    %452 = vector.broadcast %cst_161 : f32 to vector<8x32xf32>
    %453 = arith.subf %452, %444 : vector<8x32xf32>
    %454 = arith.mulf %453, %451 : vector<8x32xf32>
    %455 = arith.mulf %444, %433 : vector<8x32xf32>
    %456 = arith.addf %454, %455 : vector<8x32xf32>
    %cst_162 = arith.constant dense<0.000000e+00> : vector<8x96xf32>
    %457 = tpu.matmul %429, %6, %cst_162 {dimension_numbers = #tpu.dot_dimension_numbers<[1], [0], [0], [1], [0, 0, 1, 1], [], []>} : vector<8x10xf32>, vector<10x96xf32>, vector<8x96xf32> -> vector<8x96xf32>
    %458 = vector.broadcast %10 : vector<1x96xf32> to vector<8x96xf32>
    %459 = arith.addf %457, %458 : vector<8x96xf32>
    %c0_163 = arith.constant 0 : index
    %c0_164 = arith.constant 0 : index
    %460 = vector.load %arg16[%c0_163, %c0_164] : memref<8x32xf32, #tpu.memory_space<vmem>>, vector<8x32xf32>
    %461 = vector.broadcast %414 : vector<8x1xf32> to vector<8x32xf32>
    %462 = arith.mulf %460, %461 : vector<8x32xf32>
    %cst_165 = arith.constant dense<0.000000e+00> : vector<8x96xf32>
    %463 = tpu.matmul %462, %16, %cst_165 {dimension_numbers = #tpu.dot_dimension_numbers<[1], [0], [0], [1], [0, 0, 1, 1], [], []>} : vector<8x32xf32>, vector<32x96xf32>, vector<8x96xf32> -> vector<8x96xf32>
    %464 = vector.extract_strided_slice %459 {offsets = [0, 0], sizes = [8, 64], strides = [1, 1]} : vector<8x96xf32> to vector<8x64xf32>
    %465 = vector.extract_strided_slice %463 {offsets = [0, 0], sizes = [8, 64], strides = [1, 1]} : vector<8x96xf32> to vector<8x64xf32>
    %466 = arith.addf %464, %465 : vector<8x64xf32>
    %467 = arith.negf %466 : vector<8x64xf32>
    %468 = math.exp %467 : vector<8x64xf32>
    %cst_166 = arith.constant 1.000000e+00 : f32
    %469 = vector.broadcast %cst_166 : f32 to vector<8x64xf32>
    %470 = arith.addf %469, %468 : vector<8x64xf32>
    %471 = arith.divf %469, %470 : vector<8x64xf32>
    %472 = vector.extract_strided_slice %471 {offsets = [0, 0], sizes = [8, 32], strides = [1, 1]} : vector<8x64xf32> to vector<8x32xf32>
    %473 = vector.extract_strided_slice %471 {offsets = [0, 32], sizes = [8, 32], strides = [1, 1]} : vector<8x64xf32> to vector<8x32xf32>
    %474 = vector.extract_strided_slice %459 {offsets = [0, 64], sizes = [8, 32], strides = [1, 1]} : vector<8x96xf32> to vector<8x32xf32>
    %475 = vector.extract_strided_slice %463 {offsets = [0, 64], sizes = [8, 32], strides = [1, 1]} : vector<8x96xf32> to vector<8x32xf32>
    %476 = vector.broadcast %22 : vector<1x32xf32> to vector<8x32xf32>
    %477 = arith.addf %475, %476 : vector<8x32xf32>
    %478 = arith.mulf %472, %477 : vector<8x32xf32>
    %479 = arith.addf %474, %478 : vector<8x32xf32>
    %480 = math.tanh %479 : vector<8x32xf32>
    %cst_167 = arith.constant 1.000000e+00 : f32
    %481 = vector.broadcast %cst_167 : f32 to vector<8x32xf32>
    %482 = arith.subf %481, %473 : vector<8x32xf32>
    %483 = arith.mulf %482, %480 : vector<8x32xf32>
    %484 = arith.mulf %473, %462 : vector<8x32xf32>
    %485 = arith.addf %483, %484 : vector<8x32xf32>
    %486 = tpu.concatenate %456, %485 in 1 : vector<8x32xf32>, vector<8x32xf32> -> vector<8x64xf32>
    %cst_168 = arith.constant dense<0.000000e+00> : vector<8x20xf32>
    %487 = tpu.matmul %486, %25, %cst_168 {dimension_numbers = #tpu.dot_dimension_numbers<[1], [0], [0], [1], [0, 0, 1, 1], [], []>} : vector<8x64xf32>, vector<64x20xf32>, vector<8x20xf32> -> vector<8x20xf32>
    %488 = vector.broadcast %26 : vector<1x20xf32> to vector<8x20xf32>
    %489 = arith.addf %487, %488 : vector<8x20xf32>
    %490 = vector.extract_strided_slice %489 {offsets = [0, 0], sizes = [8, 10], strides = [1, 1]} : vector<8x20xf32> to vector<8x10xf32>
    %491 = vector.extract_strided_slice %489 {offsets = [0, 10], sizes = [8, 10], strides = [1, 1]} : vector<8x20xf32> to vector<8x10xf32>
    %492 = arith.negf %491 : vector<8x10xf32>
    %493 = math.exp %492 : vector<8x10xf32>
    %cst_169 = arith.constant 1.000000e+00 : f32
    %494 = vector.broadcast %cst_169 : f32 to vector<8x10xf32>
    %495 = arith.addf %494, %493 : vector<8x10xf32>
    %496 = arith.divf %494, %495 : vector<8x10xf32>
    %497 = arith.mulf %490, %496 : vector<8x10xf32>
    %498 = arith.mulf %412, %429 : vector<8x10xf32>
    %499 = tpu.concatenate %497, %498 in 1 : vector<8x10xf32>, vector<8x10xf32> -> vector<8x20xf32>
    %cst_170 = arith.constant dense<0.000000e+00> : vector<8x10xf32>
    %500 = tpu.matmul %499, %27, %cst_170 {dimension_numbers = #tpu.dot_dimension_numbers<[1], [0], [0], [1], [0, 0, 1, 1], [], []>} : vector<8x20xf32>, vector<20x10xf32>, vector<8x10xf32> -> vector<8x10xf32>
    %501 = vector.broadcast %28 : vector<1x10xf32> to vector<8x10xf32>
    %502 = arith.addf %500, %501 : vector<8x10xf32>
    %cst_171 = arith.constant 0.000000e+00 : f32
    %503 = vector.broadcast %cst_171 : f32 to vector<8x10xf32>
    %504 = arith.maximumf %502, %503 : vector<8x10xf32>
    %cst_172 = arith.constant dense<0.000000e+00> : vector<8x96xf32>
    %505 = tpu.matmul %504, %8, %cst_172 {dimension_numbers = #tpu.dot_dimension_numbers<[1], [0], [0], [1], [0, 0, 1, 1], [], []>} : vector<8x10xf32>, vector<10x96xf32>, vector<8x96xf32> -> vector<8x96xf32>
    %506 = vector.broadcast %12 : vector<1x96xf32> to vector<8x96xf32>
    %507 = arith.addf %505, %506 : vector<8x96xf32>
    %c0_173 = arith.constant 0 : index
    %c0_174 = arith.constant 0 : index
    %508 = vector.load %arg14[%c0_173, %c0_174] : memref<8x32xf32, #tpu.memory_space<vmem>>, vector<8x32xf32>
    %cst_175 = arith.constant dense<0.000000e+00> : vector<8x96xf32>
    %509 = tpu.matmul %508, %18, %cst_175 {dimension_numbers = #tpu.dot_dimension_numbers<[1], [0], [0], [1], [0, 0, 1, 1], [], []>} : vector<8x32xf32>, vector<32x96xf32>, vector<8x96xf32> -> vector<8x96xf32>
    %c0_176 = arith.constant 0 : index
    %c0_177 = arith.constant 0 : index
    %510 = vector.load %arg14[%c0_176, %c0_177] : memref<8x32xf32, #tpu.memory_space<vmem>>, vector<8x32xf32>
    %511 = vector.extract_strided_slice %507 {offsets = [0, 0], sizes = [8, 64], strides = [1, 1]} : vector<8x96xf32> to vector<8x64xf32>
    %512 = vector.extract_strided_slice %509 {offsets = [0, 0], sizes = [8, 64], strides = [1, 1]} : vector<8x96xf32> to vector<8x64xf32>
    %513 = arith.addf %511, %512 : vector<8x64xf32>
    %514 = arith.negf %513 : vector<8x64xf32>
    %515 = math.exp %514 : vector<8x64xf32>
    %cst_178 = arith.constant 1.000000e+00 : f32
    %516 = vector.broadcast %cst_178 : f32 to vector<8x64xf32>
    %517 = arith.addf %516, %515 : vector<8x64xf32>
    %518 = arith.divf %516, %517 : vector<8x64xf32>
    %519 = vector.extract_strided_slice %518 {offsets = [0, 0], sizes = [8, 32], strides = [1, 1]} : vector<8x64xf32> to vector<8x32xf32>
    %520 = vector.extract_strided_slice %518 {offsets = [0, 32], sizes = [8, 32], strides = [1, 1]} : vector<8x64xf32> to vector<8x32xf32>
    %521 = vector.extract_strided_slice %507 {offsets = [0, 64], sizes = [8, 32], strides = [1, 1]} : vector<8x96xf32> to vector<8x32xf32>
    %522 = vector.extract_strided_slice %509 {offsets = [0, 64], sizes = [8, 32], strides = [1, 1]} : vector<8x96xf32> to vector<8x32xf32>
    %523 = vector.broadcast %24 : vector<1x32xf32> to vector<8x32xf32>
    %524 = arith.addf %522, %523 : vector<8x32xf32>
    %525 = arith.mulf %519, %524 : vector<8x32xf32>
    %526 = arith.addf %521, %525 : vector<8x32xf32>
    %527 = math.tanh %526 : vector<8x32xf32>
    %cst_179 = arith.constant 1.000000e+00 : f32
    %528 = vector.broadcast %cst_179 : f32 to vector<8x32xf32>
    %529 = arith.subf %528, %520 : vector<8x32xf32>
    %530 = arith.mulf %529, %527 : vector<8x32xf32>
    %531 = arith.mulf %520, %510 : vector<8x32xf32>
    %532 = arith.addf %530, %531 : vector<8x32xf32>
    %c0_180 = arith.constant 0 : index
    %c96 = arith.constant 96 : index
    %533 = vector.load %arg13[%c0_180, %c96] : memref<8x256xf32, #tpu.memory_space<vmem>>, vector<8x32xf32>
    tpu.vector_store %arg13[%c0_180, %c96], %532 {strides = array<i32>} : memref<8x256xf32, #tpu.memory_space<vmem>>, vector<8x32xf32>,
    %c0_181 = arith.constant 0 : index
    %c0_182 = arith.constant 0 : index
    %534 = vector.load %arg14[%c0_181, %c0_182] : memref<8x32xf32, #tpu.memory_space<vmem>>, vector<8x32xf32>
    tpu.vector_store %arg14[%c0_181, %c0_182], %532 {strides = array<i32>} : memref<8x32xf32, #tpu.memory_space<vmem>>, vector<8x32xf32>,
    %c0_183 = arith.constant 0 : index
    %c0_184 = arith.constant 0 : index
    %535 = vector.load %arg15[%c0_183, %c0_184] : memref<8x32xf32, #tpu.memory_space<vmem>>, vector<8x32xf32>
    tpu.vector_store %arg15[%c0_183, %c0_184], %456 {strides = array<i32>} : memref<8x32xf32, #tpu.memory_space<vmem>>, vector<8x32xf32>,
    %c0_185 = arith.constant 0 : index
    %c0_186 = arith.constant 0 : index
    %536 = vector.load %arg16[%c0_185, %c0_186] : memref<8x32xf32, #tpu.memory_space<vmem>>, vector<8x32xf32>
    tpu.vector_store %arg16[%c0_185, %c0_186], %485 {strides = array<i32>} : memref<8x32xf32, #tpu.memory_space<vmem>>, vector<8x32xf32>,
    %c0_187 = arith.constant 0 : index
    %c4 = arith.constant 4 : index
    %c0_188 = arith.constant 0 : index
    %537 = vector.load %arg2[%c0_187, %c4, %c0_188] : memref<8x8x21xf32, #tpu.memory_space<vmem>>, vector<8x1x21xf32>
    %538 = vector.shape_cast %537 : vector<8x1x21xf32> to vector<8x21xf32>
    %539 = vector.extract_strided_slice %538 {offsets = [0, 0], sizes = [8, 10], strides = [1, 1]} : vector<8x21xf32> to vector<8x10xf32>
    %540 = vector.extract_strided_slice %538 {offsets = [0, 10], sizes = [8, 10], strides = [1, 1]} : vector<8x21xf32> to vector<8x10xf32>
    %541 = vector.extract_strided_slice %538 {offsets = [0, 20], sizes = [8, 1], strides = [1, 1]} : vector<8x21xf32> to vector<8x1xf32>
    %cst_189 = arith.constant 1.000000e+00 : f32
    %542 = vector.broadcast %cst_189 : f32 to vector<8x10xf32>
    %543 = arith.subf %542, %540 : vector<8x10xf32>
    %cst_190 = arith.constant 0.000000e+00 : f32
    %544 = vector.broadcast %cst_190 : f32 to vector<8x10xf32>
    %545 = arith.maximumf %543, %544 : vector<8x10xf32>
    %546 = arith.mulf %539, %545 : vector<8x10xf32>
    %547 = tpu.concatenate %543, %546 in 1 : vector<8x10xf32>, vector<8x10xf32> -> vector<8x20xf32>
    %cst_191 = arith.constant dense<0.000000e+00> : vector<8x106xf32>
    %548 = tpu.matmul %547, %3, %cst_191 {dimension_numbers = #tpu.dot_dimension_numbers<[1], [0], [0], [1], [0, 0, 1, 1], [], []>} : vector<8x20xf32>, vector<20x106xf32>, vector<8x106xf32> -> vector<8x106xf32>
    %549 = vector.broadcast %4 : vector<1x106xf32> to vector<8x106xf32>
    %550 = arith.addf %548, %549 : vector<8x106xf32>
    %551 = vector.extract_strided_slice %550 {offsets = [0, 0], sizes = [8, 10], strides = [1, 1]} : vector<8x106xf32> to vector<8x10xf32>
    %552 = arith.negf %551 : vector<8x10xf32>
    %553 = math.exp %552 : vector<8x10xf32>
    %cst_192 = arith.constant 1.000000e+00 : f32
    %554 = vector.broadcast %cst_192 : f32 to vector<8x10xf32>
    %555 = arith.addf %554, %553 : vector<8x10xf32>
    %556 = arith.divf %554, %555 : vector<8x10xf32>
    %557 = vector.extract_strided_slice %550 {offsets = [0, 10], sizes = [8, 96], strides = [1, 1]} : vector<8x106xf32> to vector<8x96xf32>
    %c0_193 = arith.constant 0 : index
    %c0_194 = arith.constant 0 : index
    %558 = vector.load %arg15[%c0_193, %c0_194] : memref<8x32xf32, #tpu.memory_space<vmem>>, vector<8x32xf32>
    %559 = vector.broadcast %541 : vector<8x1xf32> to vector<8x32xf32>
    %560 = arith.mulf %558, %559 : vector<8x32xf32>
    %cst_195 = arith.constant dense<0.000000e+00> : vector<8x96xf32>
    %561 = tpu.matmul %560, %14, %cst_195 {dimension_numbers = #tpu.dot_dimension_numbers<[1], [0], [0], [1], [0, 0, 1, 1], [], []>} : vector<8x32xf32>, vector<32x96xf32>, vector<8x96xf32> -> vector<8x96xf32>
    %562 = vector.extract_strided_slice %557 {offsets = [0, 0], sizes = [8, 64], strides = [1, 1]} : vector<8x96xf32> to vector<8x64xf32>
    %563 = vector.extract_strided_slice %561 {offsets = [0, 0], sizes = [8, 64], strides = [1, 1]} : vector<8x96xf32> to vector<8x64xf32>
    %564 = arith.addf %562, %563 : vector<8x64xf32>
    %565 = arith.negf %564 : vector<8x64xf32>
    %566 = math.exp %565 : vector<8x64xf32>
    %cst_196 = arith.constant 1.000000e+00 : f32
    %567 = vector.broadcast %cst_196 : f32 to vector<8x64xf32>
    %568 = arith.addf %567, %566 : vector<8x64xf32>
    %569 = arith.divf %567, %568 : vector<8x64xf32>
    %570 = vector.extract_strided_slice %569 {offsets = [0, 0], sizes = [8, 32], strides = [1, 1]} : vector<8x64xf32> to vector<8x32xf32>
    %571 = vector.extract_strided_slice %569 {offsets = [0, 32], sizes = [8, 32], strides = [1, 1]} : vector<8x64xf32> to vector<8x32xf32>
    %572 = vector.extract_strided_slice %557 {offsets = [0, 64], sizes = [8, 32], strides = [1, 1]} : vector<8x96xf32> to vector<8x32xf32>
    %573 = vector.extract_strided_slice %561 {offsets = [0, 64], sizes = [8, 32], strides = [1, 1]} : vector<8x96xf32> to vector<8x32xf32>
    %574 = vector.broadcast %20 : vector<1x32xf32> to vector<8x32xf32>
    %575 = arith.addf %573, %574 : vector<8x32xf32>
    %576 = arith.mulf %570, %575 : vector<8x32xf32>
    %577 = arith.addf %572, %576 : vector<8x32xf32>
    %578 = math.tanh %577 : vector<8x32xf32>
    %cst_197 = arith.constant 1.000000e+00 : f32
    %579 = vector.broadcast %cst_197 : f32 to vector<8x32xf32>
    %580 = arith.subf %579, %571 : vector<8x32xf32>
    %581 = arith.mulf %580, %578 : vector<8x32xf32>
    %582 = arith.mulf %571, %560 : vector<8x32xf32>
    %583 = arith.addf %581, %582 : vector<8x32xf32>
    %cst_198 = arith.constant dense<0.000000e+00> : vector<8x96xf32>
    %584 = tpu.matmul %556, %6, %cst_198 {dimension_numbers = #tpu.dot_dimension_numbers<[1], [0], [0], [1], [0, 0, 1, 1], [], []>} : vector<8x10xf32>, vector<10x96xf32>, vector<8x96xf32> -> vector<8x96xf32>
    %585 = vector.broadcast %10 : vector<1x96xf32> to vector<8x96xf32>
    %586 = arith.addf %584, %585 : vector<8x96xf32>
    %c0_199 = arith.constant 0 : index
    %c0_200 = arith.constant 0 : index
    %587 = vector.load %arg16[%c0_199, %c0_200] : memref<8x32xf32, #tpu.memory_space<vmem>>, vector<8x32xf32>
    %588 = vector.broadcast %541 : vector<8x1xf32> to vector<8x32xf32>
    %589 = arith.mulf %587, %588 : vector<8x32xf32>
    %cst_201 = arith.constant dense<0.000000e+00> : vector<8x96xf32>
    %590 = tpu.matmul %589, %16, %cst_201 {dimension_numbers = #tpu.dot_dimension_numbers<[1], [0], [0], [1], [0, 0, 1, 1], [], []>} : vector<8x32xf32>, vector<32x96xf32>, vector<8x96xf32> -> vector<8x96xf32>
    %591 = vector.extract_strided_slice %586 {offsets = [0, 0], sizes = [8, 64], strides = [1, 1]} : vector<8x96xf32> to vector<8x64xf32>
    %592 = vector.extract_strided_slice %590 {offsets = [0, 0], sizes = [8, 64], strides = [1, 1]} : vector<8x96xf32> to vector<8x64xf32>
    %593 = arith.addf %591, %592 : vector<8x64xf32>
    %594 = arith.negf %593 : vector<8x64xf32>
    %595 = math.exp %594 : vector<8x64xf32>
    %cst_202 = arith.constant 1.000000e+00 : f32
    %596 = vector.broadcast %cst_202 : f32 to vector<8x64xf32>
    %597 = arith.addf %596, %595 : vector<8x64xf32>
    %598 = arith.divf %596, %597 : vector<8x64xf32>
    %599 = vector.extract_strided_slice %598 {offsets = [0, 0], sizes = [8, 32], strides = [1, 1]} : vector<8x64xf32> to vector<8x32xf32>
    %600 = vector.extract_strided_slice %598 {offsets = [0, 32], sizes = [8, 32], strides = [1, 1]} : vector<8x64xf32> to vector<8x32xf32>
    %601 = vector.extract_strided_slice %586 {offsets = [0, 64], sizes = [8, 32], strides = [1, 1]} : vector<8x96xf32> to vector<8x32xf32>
    %602 = vector.extract_strided_slice %590 {offsets = [0, 64], sizes = [8, 32], strides = [1, 1]} : vector<8x96xf32> to vector<8x32xf32>
    %603 = vector.broadcast %22 : vector<1x32xf32> to vector<8x32xf32>
    %604 = arith.addf %602, %603 : vector<8x32xf32>
    %605 = arith.mulf %599, %604 : vector<8x32xf32>
    %606 = arith.addf %601, %605 : vector<8x32xf32>
    %607 = math.tanh %606 : vector<8x32xf32>
    %cst_203 = arith.constant 1.000000e+00 : f32
    %608 = vector.broadcast %cst_203 : f32 to vector<8x32xf32>
    %609 = arith.subf %608, %600 : vector<8x32xf32>
    %610 = arith.mulf %609, %607 : vector<8x32xf32>
    %611 = arith.mulf %600, %589 : vector<8x32xf32>
    %612 = arith.addf %610, %611 : vector<8x32xf32>
    %613 = tpu.concatenate %583, %612 in 1 : vector<8x32xf32>, vector<8x32xf32> -> vector<8x64xf32>
    %cst_204 = arith.constant dense<0.000000e+00> : vector<8x20xf32>
    %614 = tpu.matmul %613, %25, %cst_204 {dimension_numbers = #tpu.dot_dimension_numbers<[1], [0], [0], [1], [0, 0, 1, 1], [], []>} : vector<8x64xf32>, vector<64x20xf32>, vector<8x20xf32> -> vector<8x20xf32>
    %615 = vector.broadcast %26 : vector<1x20xf32> to vector<8x20xf32>
    %616 = arith.addf %614, %615 : vector<8x20xf32>
    %617 = vector.extract_strided_slice %616 {offsets = [0, 0], sizes = [8, 10], strides = [1, 1]} : vector<8x20xf32> to vector<8x10xf32>
    %618 = vector.extract_strided_slice %616 {offsets = [0, 10], sizes = [8, 10], strides = [1, 1]} : vector<8x20xf32> to vector<8x10xf32>
    %619 = arith.negf %618 : vector<8x10xf32>
    %620 = math.exp %619 : vector<8x10xf32>
    %cst_205 = arith.constant 1.000000e+00 : f32
    %621 = vector.broadcast %cst_205 : f32 to vector<8x10xf32>
    %622 = arith.addf %621, %620 : vector<8x10xf32>
    %623 = arith.divf %621, %622 : vector<8x10xf32>
    %624 = arith.mulf %617, %623 : vector<8x10xf32>
    %625 = arith.mulf %539, %556 : vector<8x10xf32>
    %626 = tpu.concatenate %624, %625 in 1 : vector<8x10xf32>, vector<8x10xf32> -> vector<8x20xf32>
    %cst_206 = arith.constant dense<0.000000e+00> : vector<8x10xf32>
    %627 = tpu.matmul %626, %27, %cst_206 {dimension_numbers = #tpu.dot_dimension_numbers<[1], [0], [0], [1], [0, 0, 1, 1], [], []>} : vector<8x20xf32>, vector<20x10xf32>, vector<8x10xf32> -> vector<8x10xf32>
    %628 = vector.broadcast %28 : vector<1x10xf32> to vector<8x10xf32>
    %629 = arith.addf %627, %628 : vector<8x10xf32>
    %cst_207 = arith.constant 0.000000e+00 : f32
    %630 = vector.broadcast %cst_207 : f32 to vector<8x10xf32>
    %631 = arith.maximumf %629, %630 : vector<8x10xf32>
    %cst_208 = arith.constant dense<0.000000e+00> : vector<8x96xf32>
    %632 = tpu.matmul %631, %8, %cst_208 {dimension_numbers = #tpu.dot_dimension_numbers<[1], [0], [0], [1], [0, 0, 1, 1], [], []>} : vector<8x10xf32>, vector<10x96xf32>, vector<8x96xf32> -> vector<8x96xf32>
    %633 = vector.broadcast %12 : vector<1x96xf32> to vector<8x96xf32>
    %634 = arith.addf %632, %633 : vector<8x96xf32>
    %c0_209 = arith.constant 0 : index
    %c0_210 = arith.constant 0 : index
    %635 = vector.load %arg14[%c0_209, %c0_210] : memref<8x32xf32, #tpu.memory_space<vmem>>, vector<8x32xf32>
    %cst_211 = arith.constant dense<0.000000e+00> : vector<8x96xf32>
    %636 = tpu.matmul %635, %18, %cst_211 {dimension_numbers = #tpu.dot_dimension_numbers<[1], [0], [0], [1], [0, 0, 1, 1], [], []>} : vector<8x32xf32>, vector<32x96xf32>, vector<8x96xf32> -> vector<8x96xf32>
    %c0_212 = arith.constant 0 : index
    %c0_213 = arith.constant 0 : index
    %637 = vector.load %arg14[%c0_212, %c0_213] : memref<8x32xf32, #tpu.memory_space<vmem>>, vector<8x32xf32>
    %638 = vector.extract_strided_slice %634 {offsets = [0, 0], sizes = [8, 64], strides = [1, 1]} : vector<8x96xf32> to vector<8x64xf32>
    %639 = vector.extract_strided_slice %636 {offsets = [0, 0], sizes = [8, 64], strides = [1, 1]} : vector<8x96xf32> to vector<8x64xf32>
    %640 = arith.addf %638, %639 : vector<8x64xf32>
    %641 = arith.negf %640 : vector<8x64xf32>
    %642 = math.exp %641 : vector<8x64xf32>
    %cst_214 = arith.constant 1.000000e+00 : f32
    %643 = vector.broadcast %cst_214 : f32 to vector<8x64xf32>
    %644 = arith.addf %643, %642 : vector<8x64xf32>
    %645 = arith.divf %643, %644 : vector<8x64xf32>
    %646 = vector.extract_strided_slice %645 {offsets = [0, 0], sizes = [8, 32], strides = [1, 1]} : vector<8x64xf32> to vector<8x32xf32>
    %647 = vector.extract_strided_slice %645 {offsets = [0, 32], sizes = [8, 32], strides = [1, 1]} : vector<8x64xf32> to vector<8x32xf32>
    %648 = vector.extract_strided_slice %634 {offsets = [0, 64], sizes = [8, 32], strides = [1, 1]} : vector<8x96xf32> to vector<8x32xf32>
    %649 = vector.extract_strided_slice %636 {offsets = [0, 64], sizes = [8, 32], strides = [1, 1]} : vector<8x96xf32> to vector<8x32xf32>
    %650 = vector.broadcast %24 : vector<1x32xf32> to vector<8x32xf32>
    %651 = arith.addf %649, %650 : vector<8x32xf32>
    %652 = arith.mulf %646, %651 : vector<8x32xf32>
    %653 = arith.addf %648, %652 : vector<8x32xf32>
    %654 = math.tanh %653 : vector<8x32xf32>
    %cst_215 = arith.constant 1.000000e+00 : f32
    %655 = vector.broadcast %cst_215 : f32 to vector<8x32xf32>
    %656 = arith.subf %655, %647 : vector<8x32xf32>
    %657 = arith.mulf %656, %654 : vector<8x32xf32>
    %658 = arith.mulf %647, %637 : vector<8x32xf32>
    %659 = arith.addf %657, %658 : vector<8x32xf32>
    %c0_216 = arith.constant 0 : index
    %c128 = arith.constant 128 : index
    %660 = vector.load %arg13[%c0_216, %c128] : memref<8x256xf32, #tpu.memory_space<vmem>>, vector<8x32xf32>
    tpu.vector_store %arg13[%c0_216, %c128], %659 {strides = array<i32>} : memref<8x256xf32, #tpu.memory_space<vmem>>, vector<8x32xf32>,
    %c0_217 = arith.constant 0 : index
    %c0_218 = arith.constant 0 : index
    %661 = vector.load %arg14[%c0_217, %c0_218] : memref<8x32xf32, #tpu.memory_space<vmem>>, vector<8x32xf32>
    tpu.vector_store %arg14[%c0_217, %c0_218], %659 {strides = array<i32>} : memref<8x32xf32, #tpu.memory_space<vmem>>, vector<8x32xf32>,
    %c0_219 = arith.constant 0 : index
    %c0_220 = arith.constant 0 : index
    %662 = vector.load %arg15[%c0_219, %c0_220] : memref<8x32xf32, #tpu.memory_space<vmem>>, vector<8x32xf32>
    tpu.vector_store %arg15[%c0_219, %c0_220], %583 {strides = array<i32>} : memref<8x32xf32, #tpu.memory_space<vmem>>, vector<8x32xf32>,
    %c0_221 = arith.constant 0 : index
    %c0_222 = arith.constant 0 : index
    %663 = vector.load %arg16[%c0_221, %c0_222] : memref<8x32xf32, #tpu.memory_space<vmem>>, vector<8x32xf32>
    tpu.vector_store %arg16[%c0_221, %c0_222], %612 {strides = array<i32>} : memref<8x32xf32, #tpu.memory_space<vmem>>, vector<8x32xf32>,
    %c0_223 = arith.constant 0 : index
    %c5 = arith.constant 5 : index
    %c0_224 = arith.constant 0 : index
    %664 = vector.load %arg2[%c0_223, %c5, %c0_224] : memref<8x8x21xf32, #tpu.memory_space<vmem>>, vector<8x1x21xf32>
    %665 = vector.shape_cast %664 : vector<8x1x21xf32> to vector<8x21xf32>
    %666 = vector.extract_strided_slice %665 {offsets = [0, 0], sizes = [8, 10], strides = [1, 1]} : vector<8x21xf32> to vector<8x10xf32>
    %667 = vector.extract_strided_slice %665 {offsets = [0, 10], sizes = [8, 10], strides = [1, 1]} : vector<8x21xf32> to vector<8x10xf32>
    %668 = vector.extract_strided_slice %665 {offsets = [0, 20], sizes = [8, 1], strides = [1, 1]} : vector<8x21xf32> to vector<8x1xf32>
    %cst_225 = arith.constant 1.000000e+00 : f32
    %669 = vector.broadcast %cst_225 : f32 to vector<8x10xf32>
    %670 = arith.subf %669, %667 : vector<8x10xf32>
    %cst_226 = arith.constant 0.000000e+00 : f32
    %671 = vector.broadcast %cst_226 : f32 to vector<8x10xf32>
    %672 = arith.maximumf %670, %671 : vector<8x10xf32>
    %673 = arith.mulf %666, %672 : vector<8x10xf32>
    %674 = tpu.concatenate %670, %673 in 1 : vector<8x10xf32>, vector<8x10xf32> -> vector<8x20xf32>
    %cst_227 = arith.constant dense<0.000000e+00> : vector<8x106xf32>
    %675 = tpu.matmul %674, %3, %cst_227 {dimension_numbers = #tpu.dot_dimension_numbers<[1], [0], [0], [1], [0, 0, 1, 1], [], []>} : vector<8x20xf32>, vector<20x106xf32>, vector<8x106xf32> -> vector<8x106xf32>
    %676 = vector.broadcast %4 : vector<1x106xf32> to vector<8x106xf32>
    %677 = arith.addf %675, %676 : vector<8x106xf32>
    %678 = vector.extract_strided_slice %677 {offsets = [0, 0], sizes = [8, 10], strides = [1, 1]} : vector<8x106xf32> to vector<8x10xf32>
    %679 = arith.negf %678 : vector<8x10xf32>
    %680 = math.exp %679 : vector<8x10xf32>
    %cst_228 = arith.constant 1.000000e+00 : f32
    %681 = vector.broadcast %cst_228 : f32 to vector<8x10xf32>
    %682 = arith.addf %681, %680 : vector<8x10xf32>
    %683 = arith.divf %681, %682 : vector<8x10xf32>
    %684 = vector.extract_strided_slice %677 {offsets = [0, 10], sizes = [8, 96], strides = [1, 1]} : vector<8x106xf32> to vector<8x96xf32>
    %c0_229 = arith.constant 0 : index
    %c0_230 = arith.constant 0 : index
    %685 = vector.load %arg15[%c0_229, %c0_230] : memref<8x32xf32, #tpu.memory_space<vmem>>, vector<8x32xf32>
    %686 = vector.broadcast %668 : vector<8x1xf32> to vector<8x32xf32>
    %687 = arith.mulf %685, %686 : vector<8x32xf32>
    %cst_231 = arith.constant dense<0.000000e+00> : vector<8x96xf32>
    %688 = tpu.matmul %687, %14, %cst_231 {dimension_numbers = #tpu.dot_dimension_numbers<[1], [0], [0], [1], [0, 0, 1, 1], [], []>} : vector<8x32xf32>, vector<32x96xf32>, vector<8x96xf32> -> vector<8x96xf32>
    %689 = vector.extract_strided_slice %684 {offsets = [0, 0], sizes = [8, 64], strides = [1, 1]} : vector<8x96xf32> to vector<8x64xf32>
    %690 = vector.extract_strided_slice %688 {offsets = [0, 0], sizes = [8, 64], strides = [1, 1]} : vector<8x96xf32> to vector<8x64xf32>
    %691 = arith.addf %689, %690 : vector<8x64xf32>
    %692 = arith.negf %691 : vector<8x64xf32>
    %693 = math.exp %692 : vector<8x64xf32>
    %cst_232 = arith.constant 1.000000e+00 : f32
    %694 = vector.broadcast %cst_232 : f32 to vector<8x64xf32>
    %695 = arith.addf %694, %693 : vector<8x64xf32>
    %696 = arith.divf %694, %695 : vector<8x64xf32>
    %697 = vector.extract_strided_slice %696 {offsets = [0, 0], sizes = [8, 32], strides = [1, 1]} : vector<8x64xf32> to vector<8x32xf32>
    %698 = vector.extract_strided_slice %696 {offsets = [0, 32], sizes = [8, 32], strides = [1, 1]} : vector<8x64xf32> to vector<8x32xf32>
    %699 = vector.extract_strided_slice %684 {offsets = [0, 64], sizes = [8, 32], strides = [1, 1]} : vector<8x96xf32> to vector<8x32xf32>
    %700 = vector.extract_strided_slice %688 {offsets = [0, 64], sizes = [8, 32], strides = [1, 1]} : vector<8x96xf32> to vector<8x32xf32>
    %701 = vector.broadcast %20 : vector<1x32xf32> to vector<8x32xf32>
    %702 = arith.addf %700, %701 : vector<8x32xf32>
    %703 = arith.mulf %697, %702 : vector<8x32xf32>
    %704 = arith.addf %699, %703 : vector<8x32xf32>
    %705 = math.tanh %704 : vector<8x32xf32>
    %cst_233 = arith.constant 1.000000e+00 : f32
    %706 = vector.broadcast %cst_233 : f32 to vector<8x32xf32>
    %707 = arith.subf %706, %698 : vector<8x32xf32>
    %708 = arith.mulf %707, %705 : vector<8x32xf32>
    %709 = arith.mulf %698, %687 : vector<8x32xf32>
    %710 = arith.addf %708, %709 : vector<8x32xf32>
    %cst_234 = arith.constant dense<0.000000e+00> : vector<8x96xf32>
    %711 = tpu.matmul %683, %6, %cst_234 {dimension_numbers = #tpu.dot_dimension_numbers<[1], [0], [0], [1], [0, 0, 1, 1], [], []>} : vector<8x10xf32>, vector<10x96xf32>, vector<8x96xf32> -> vector<8x96xf32>
    %712 = vector.broadcast %10 : vector<1x96xf32> to vector<8x96xf32>
    %713 = arith.addf %711, %712 : vector<8x96xf32>
    %c0_235 = arith.constant 0 : index
    %c0_236 = arith.constant 0 : index
    %714 = vector.load %arg16[%c0_235, %c0_236] : memref<8x32xf32, #tpu.memory_space<vmem>>, vector<8x32xf32>
    %715 = vector.broadcast %668 : vector<8x1xf32> to vector<8x32xf32>
    %716 = arith.mulf %714, %715 : vector<8x32xf32>
    %cst_237 = arith.constant dense<0.000000e+00> : vector<8x96xf32>
    %717 = tpu.matmul %716, %16, %cst_237 {dimension_numbers = #tpu.dot_dimension_numbers<[1], [0], [0], [1], [0, 0, 1, 1], [], []>} : vector<8x32xf32>, vector<32x96xf32>, vector<8x96xf32> -> vector<8x96xf32>
    %718 = vector.extract_strided_slice %713 {offsets = [0, 0], sizes = [8, 64], strides = [1, 1]} : vector<8x96xf32> to vector<8x64xf32>
    %719 = vector.extract_strided_slice %717 {offsets = [0, 0], sizes = [8, 64], strides = [1, 1]} : vector<8x96xf32> to vector<8x64xf32>
    %720 = arith.addf %718, %719 : vector<8x64xf32>
    %721 = arith.negf %720 : vector<8x64xf32>
    %722 = math.exp %721 : vector<8x64xf32>
    %cst_238 = arith.constant 1.000000e+00 : f32
    %723 = vector.broadcast %cst_238 : f32 to vector<8x64xf32>
    %724 = arith.addf %723, %722 : vector<8x64xf32>
    %725 = arith.divf %723, %724 : vector<8x64xf32>
    %726 = vector.extract_strided_slice %725 {offsets = [0, 0], sizes = [8, 32], strides = [1, 1]} : vector<8x64xf32> to vector<8x32xf32>
    %727 = vector.extract_strided_slice %725 {offsets = [0, 32], sizes = [8, 32], strides = [1, 1]} : vector<8x64xf32> to vector<8x32xf32>
    %728 = vector.extract_strided_slice %713 {offsets = [0, 64], sizes = [8, 32], strides = [1, 1]} : vector<8x96xf32> to vector<8x32xf32>
    %729 = vector.extract_strided_slice %717 {offsets = [0, 64], sizes = [8, 32], strides = [1, 1]} : vector<8x96xf32> to vector<8x32xf32>
    %730 = vector.broadcast %22 : vector<1x32xf32> to vector<8x32xf32>
    %731 = arith.addf %729, %730 : vector<8x32xf32>
    %732 = arith.mulf %726, %731 : vector<8x32xf32>
    %733 = arith.addf %728, %732 : vector<8x32xf32>
    %734 = math.tanh %733 : vector<8x32xf32>
    %cst_239 = arith.constant 1.000000e+00 : f32
    %735 = vector.broadcast %cst_239 : f32 to vector<8x32xf32>
    %736 = arith.subf %735, %727 : vector<8x32xf32>
    %737 = arith.mulf %736, %734 : vector<8x32xf32>
    %738 = arith.mulf %727, %716 : vector<8x32xf32>
    %739 = arith.addf %737, %738 : vector<8x32xf32>
    %740 = tpu.concatenate %710, %739 in 1 : vector<8x32xf32>, vector<8x32xf32> -> vector<8x64xf32>
    %cst_240 = arith.constant dense<0.000000e+00> : vector<8x20xf32>
    %741 = tpu.matmul %740, %25, %cst_240 {dimension_numbers = #tpu.dot_dimension_numbers<[1], [0], [0], [1], [0, 0, 1, 1], [], []>} : vector<8x64xf32>, vector<64x20xf32>, vector<8x20xf32> -> vector<8x20xf32>
    %742 = vector.broadcast %26 : vector<1x20xf32> to vector<8x20xf32>
    %743 = arith.addf %741, %742 : vector<8x20xf32>
    %744 = vector.extract_strided_slice %743 {offsets = [0, 0], sizes = [8, 10], strides = [1, 1]} : vector<8x20xf32> to vector<8x10xf32>
    %745 = vector.extract_strided_slice %743 {offsets = [0, 10], sizes = [8, 10], strides = [1, 1]} : vector<8x20xf32> to vector<8x10xf32>
    %746 = arith.negf %745 : vector<8x10xf32>
    %747 = math.exp %746 : vector<8x10xf32>
    %cst_241 = arith.constant 1.000000e+00 : f32
    %748 = vector.broadcast %cst_241 : f32 to vector<8x10xf32>
    %749 = arith.addf %748, %747 : vector<8x10xf32>
    %750 = arith.divf %748, %749 : vector<8x10xf32>
    %751 = arith.mulf %744, %750 : vector<8x10xf32>
    %752 = arith.mulf %666, %683 : vector<8x10xf32>
    %753 = tpu.concatenate %751, %752 in 1 : vector<8x10xf32>, vector<8x10xf32> -> vector<8x20xf32>
    %cst_242 = arith.constant dense<0.000000e+00> : vector<8x10xf32>
    %754 = tpu.matmul %753, %27, %cst_242 {dimension_numbers = #tpu.dot_dimension_numbers<[1], [0], [0], [1], [0, 0, 1, 1], [], []>} : vector<8x20xf32>, vector<20x10xf32>, vector<8x10xf32> -> vector<8x10xf32>
    %755 = vector.broadcast %28 : vector<1x10xf32> to vector<8x10xf32>
    %756 = arith.addf %754, %755 : vector<8x10xf32>
    %cst_243 = arith.constant 0.000000e+00 : f32
    %757 = vector.broadcast %cst_243 : f32 to vector<8x10xf32>
    %758 = arith.maximumf %756, %757 : vector<8x10xf32>
    %cst_244 = arith.constant dense<0.000000e+00> : vector<8x96xf32>
    %759 = tpu.matmul %758, %8, %cst_244 {dimension_numbers = #tpu.dot_dimension_numbers<[1], [0], [0], [1], [0, 0, 1, 1], [], []>} : vector<8x10xf32>, vector<10x96xf32>, vector<8x96xf32> -> vector<8x96xf32>
    %760 = vector.broadcast %12 : vector<1x96xf32> to vector<8x96xf32>
    %761 = arith.addf %759, %760 : vector<8x96xf32>
    %c0_245 = arith.constant 0 : index
    %c0_246 = arith.constant 0 : index
    %762 = vector.load %arg14[%c0_245, %c0_246] : memref<8x32xf32, #tpu.memory_space<vmem>>, vector<8x32xf32>
    %cst_247 = arith.constant dense<0.000000e+00> : vector<8x96xf32>
    %763 = tpu.matmul %762, %18, %cst_247 {dimension_numbers = #tpu.dot_dimension_numbers<[1], [0], [0], [1], [0, 0, 1, 1], [], []>} : vector<8x32xf32>, vector<32x96xf32>, vector<8x96xf32> -> vector<8x96xf32>
    %c0_248 = arith.constant 0 : index
    %c0_249 = arith.constant 0 : index
    %764 = vector.load %arg14[%c0_248, %c0_249] : memref<8x32xf32, #tpu.memory_space<vmem>>, vector<8x32xf32>
    %765 = vector.extract_strided_slice %761 {offsets = [0, 0], sizes = [8, 64], strides = [1, 1]} : vector<8x96xf32> to vector<8x64xf32>
    %766 = vector.extract_strided_slice %763 {offsets = [0, 0], sizes = [8, 64], strides = [1, 1]} : vector<8x96xf32> to vector<8x64xf32>
    %767 = arith.addf %765, %766 : vector<8x64xf32>
    %768 = arith.negf %767 : vector<8x64xf32>
    %769 = math.exp %768 : vector<8x64xf32>
    %cst_250 = arith.constant 1.000000e+00 : f32
    %770 = vector.broadcast %cst_250 : f32 to vector<8x64xf32>
    %771 = arith.addf %770, %769 : vector<8x64xf32>
    %772 = arith.divf %770, %771 : vector<8x64xf32>
    %773 = vector.extract_strided_slice %772 {offsets = [0, 0], sizes = [8, 32], strides = [1, 1]} : vector<8x64xf32> to vector<8x32xf32>
    %774 = vector.extract_strided_slice %772 {offsets = [0, 32], sizes = [8, 32], strides = [1, 1]} : vector<8x64xf32> to vector<8x32xf32>
    %775 = vector.extract_strided_slice %761 {offsets = [0, 64], sizes = [8, 32], strides = [1, 1]} : vector<8x96xf32> to vector<8x32xf32>
    %776 = vector.extract_strided_slice %763 {offsets = [0, 64], sizes = [8, 32], strides = [1, 1]} : vector<8x96xf32> to vector<8x32xf32>
    %777 = vector.broadcast %24 : vector<1x32xf32> to vector<8x32xf32>
    %778 = arith.addf %776, %777 : vector<8x32xf32>
    %779 = arith.mulf %773, %778 : vector<8x32xf32>
    %780 = arith.addf %775, %779 : vector<8x32xf32>
    %781 = math.tanh %780 : vector<8x32xf32>
    %cst_251 = arith.constant 1.000000e+00 : f32
    %782 = vector.broadcast %cst_251 : f32 to vector<8x32xf32>
    %783 = arith.subf %782, %774 : vector<8x32xf32>
    %784 = arith.mulf %783, %781 : vector<8x32xf32>
    %785 = arith.mulf %774, %764 : vector<8x32xf32>
    %786 = arith.addf %784, %785 : vector<8x32xf32>
    %c0_252 = arith.constant 0 : index
    %c160 = arith.constant 160 : index
    %787 = vector.load %arg13[%c0_252, %c160] : memref<8x256xf32, #tpu.memory_space<vmem>>, vector<8x32xf32>
    tpu.vector_store %arg13[%c0_252, %c160], %786 {strides = array<i32>} : memref<8x256xf32, #tpu.memory_space<vmem>>, vector<8x32xf32>,
    %c0_253 = arith.constant 0 : index
    %c0_254 = arith.constant 0 : index
    %788 = vector.load %arg14[%c0_253, %c0_254] : memref<8x32xf32, #tpu.memory_space<vmem>>, vector<8x32xf32>
    tpu.vector_store %arg14[%c0_253, %c0_254], %786 {strides = array<i32>} : memref<8x32xf32, #tpu.memory_space<vmem>>, vector<8x32xf32>,
    %c0_255 = arith.constant 0 : index
    %c0_256 = arith.constant 0 : index
    %789 = vector.load %arg15[%c0_255, %c0_256] : memref<8x32xf32, #tpu.memory_space<vmem>>, vector<8x32xf32>
    tpu.vector_store %arg15[%c0_255, %c0_256], %710 {strides = array<i32>} : memref<8x32xf32, #tpu.memory_space<vmem>>, vector<8x32xf32>,
    %c0_257 = arith.constant 0 : index
    %c0_258 = arith.constant 0 : index
    %790 = vector.load %arg16[%c0_257, %c0_258] : memref<8x32xf32, #tpu.memory_space<vmem>>, vector<8x32xf32>
    tpu.vector_store %arg16[%c0_257, %c0_258], %739 {strides = array<i32>} : memref<8x32xf32, #tpu.memory_space<vmem>>, vector<8x32xf32>,
    %c0_259 = arith.constant 0 : index
    %c6 = arith.constant 6 : index
    %c0_260 = arith.constant 0 : index
    %791 = vector.load %arg2[%c0_259, %c6, %c0_260] : memref<8x8x21xf32, #tpu.memory_space<vmem>>, vector<8x1x21xf32>
    %792 = vector.shape_cast %791 : vector<8x1x21xf32> to vector<8x21xf32>
    %793 = vector.extract_strided_slice %792 {offsets = [0, 0], sizes = [8, 10], strides = [1, 1]} : vector<8x21xf32> to vector<8x10xf32>
    %794 = vector.extract_strided_slice %792 {offsets = [0, 10], sizes = [8, 10], strides = [1, 1]} : vector<8x21xf32> to vector<8x10xf32>
    %795 = vector.extract_strided_slice %792 {offsets = [0, 20], sizes = [8, 1], strides = [1, 1]} : vector<8x21xf32> to vector<8x1xf32>
    %cst_261 = arith.constant 1.000000e+00 : f32
    %796 = vector.broadcast %cst_261 : f32 to vector<8x10xf32>
    %797 = arith.subf %796, %794 : vector<8x10xf32>
    %cst_262 = arith.constant 0.000000e+00 : f32
    %798 = vector.broadcast %cst_262 : f32 to vector<8x10xf32>
    %799 = arith.maximumf %797, %798 : vector<8x10xf32>
    %800 = arith.mulf %793, %799 : vector<8x10xf32>
    %801 = tpu.concatenate %797, %800 in 1 : vector<8x10xf32>, vector<8x10xf32> -> vector<8x20xf32>
    %cst_263 = arith.constant dense<0.000000e+00> : vector<8x106xf32>
    %802 = tpu.matmul %801, %3, %cst_263 {dimension_numbers = #tpu.dot_dimension_numbers<[1], [0], [0], [1], [0, 0, 1, 1], [], []>} : vector<8x20xf32>, vector<20x106xf32>, vector<8x106xf32> -> vector<8x106xf32>
    %803 = vector.broadcast %4 : vector<1x106xf32> to vector<8x106xf32>
    %804 = arith.addf %802, %803 : vector<8x106xf32>
    %805 = vector.extract_strided_slice %804 {offsets = [0, 0], sizes = [8, 10], strides = [1, 1]} : vector<8x106xf32> to vector<8x10xf32>
    %806 = arith.negf %805 : vector<8x10xf32>
    %807 = math.exp %806 : vector<8x10xf32>
    %cst_264 = arith.constant 1.000000e+00 : f32
    %808 = vector.broadcast %cst_264 : f32 to vector<8x10xf32>
    %809 = arith.addf %808, %807 : vector<8x10xf32>
    %810 = arith.divf %808, %809 : vector<8x10xf32>
    %811 = vector.extract_strided_slice %804 {offsets = [0, 10], sizes = [8, 96], strides = [1, 1]} : vector<8x106xf32> to vector<8x96xf32>
    %c0_265 = arith.constant 0 : index
    %c0_266 = arith.constant 0 : index
    %812 = vector.load %arg15[%c0_265, %c0_266] : memref<8x32xf32, #tpu.memory_space<vmem>>, vector<8x32xf32>
    %813 = vector.broadcast %795 : vector<8x1xf32> to vector<8x32xf32>
    %814 = arith.mulf %812, %813 : vector<8x32xf32>
    %cst_267 = arith.constant dense<0.000000e+00> : vector<8x96xf32>
    %815 = tpu.matmul %814, %14, %cst_267 {dimension_numbers = #tpu.dot_dimension_numbers<[1], [0], [0], [1], [0, 0, 1, 1], [], []>} : vector<8x32xf32>, vector<32x96xf32>, vector<8x96xf32> -> vector<8x96xf32>
    %816 = vector.extract_strided_slice %811 {offsets = [0, 0], sizes = [8, 64], strides = [1, 1]} : vector<8x96xf32> to vector<8x64xf32>
    %817 = vector.extract_strided_slice %815 {offsets = [0, 0], sizes = [8, 64], strides = [1, 1]} : vector<8x96xf32> to vector<8x64xf32>
    %818 = arith.addf %816, %817 : vector<8x64xf32>
    %819 = arith.negf %818 : vector<8x64xf32>
    %820 = math.exp %819 : vector<8x64xf32>
    %cst_268 = arith.constant 1.000000e+00 : f32
    %821 = vector.broadcast %cst_268 : f32 to vector<8x64xf32>
    %822 = arith.addf %821, %820 : vector<8x64xf32>
    %823 = arith.divf %821, %822 : vector<8x64xf32>
    %824 = vector.extract_strided_slice %823 {offsets = [0, 0], sizes = [8, 32], strides = [1, 1]} : vector<8x64xf32> to vector<8x32xf32>
    %825 = vector.extract_strided_slice %823 {offsets = [0, 32], sizes = [8, 32], strides = [1, 1]} : vector<8x64xf32> to vector<8x32xf32>
    %826 = vector.extract_strided_slice %811 {offsets = [0, 64], sizes = [8, 32], strides = [1, 1]} : vector<8x96xf32> to vector<8x32xf32>
    %827 = vector.extract_strided_slice %815 {offsets = [0, 64], sizes = [8, 32], strides = [1, 1]} : vector<8x96xf32> to vector<8x32xf32>
    %828 = vector.broadcast %20 : vector<1x32xf32> to vector<8x32xf32>
    %829 = arith.addf %827, %828 : vector<8x32xf32>
    %830 = arith.mulf %824, %829 : vector<8x32xf32>
    %831 = arith.addf %826, %830 : vector<8x32xf32>
    %832 = math.tanh %831 : vector<8x32xf32>
    %cst_269 = arith.constant 1.000000e+00 : f32
    %833 = vector.broadcast %cst_269 : f32 to vector<8x32xf32>
    %834 = arith.subf %833, %825 : vector<8x32xf32>
    %835 = arith.mulf %834, %832 : vector<8x32xf32>
    %836 = arith.mulf %825, %814 : vector<8x32xf32>
    %837 = arith.addf %835, %836 : vector<8x32xf32>
    %cst_270 = arith.constant dense<0.000000e+00> : vector<8x96xf32>
    %838 = tpu.matmul %810, %6, %cst_270 {dimension_numbers = #tpu.dot_dimension_numbers<[1], [0], [0], [1], [0, 0, 1, 1], [], []>} : vector<8x10xf32>, vector<10x96xf32>, vector<8x96xf32> -> vector<8x96xf32>
    %839 = vector.broadcast %10 : vector<1x96xf32> to vector<8x96xf32>
    %840 = arith.addf %838, %839 : vector<8x96xf32>
    %c0_271 = arith.constant 0 : index
    %c0_272 = arith.constant 0 : index
    %841 = vector.load %arg16[%c0_271, %c0_272] : memref<8x32xf32, #tpu.memory_space<vmem>>, vector<8x32xf32>
    %842 = vector.broadcast %795 : vector<8x1xf32> to vector<8x32xf32>
    %843 = arith.mulf %841, %842 : vector<8x32xf32>
    %cst_273 = arith.constant dense<0.000000e+00> : vector<8x96xf32>
    %844 = tpu.matmul %843, %16, %cst_273 {dimension_numbers = #tpu.dot_dimension_numbers<[1], [0], [0], [1], [0, 0, 1, 1], [], []>} : vector<8x32xf32>, vector<32x96xf32>, vector<8x96xf32> -> vector<8x96xf32>
    %845 = vector.extract_strided_slice %840 {offsets = [0, 0], sizes = [8, 64], strides = [1, 1]} : vector<8x96xf32> to vector<8x64xf32>
    %846 = vector.extract_strided_slice %844 {offsets = [0, 0], sizes = [8, 64], strides = [1, 1]} : vector<8x96xf32> to vector<8x64xf32>
    %847 = arith.addf %845, %846 : vector<8x64xf32>
    %848 = arith.negf %847 : vector<8x64xf32>
    %849 = math.exp %848 : vector<8x64xf32>
    %cst_274 = arith.constant 1.000000e+00 : f32
    %850 = vector.broadcast %cst_274 : f32 to vector<8x64xf32>
    %851 = arith.addf %850, %849 : vector<8x64xf32>
    %852 = arith.divf %850, %851 : vector<8x64xf32>
    %853 = vector.extract_strided_slice %852 {offsets = [0, 0], sizes = [8, 32], strides = [1, 1]} : vector<8x64xf32> to vector<8x32xf32>
    %854 = vector.extract_strided_slice %852 {offsets = [0, 32], sizes = [8, 32], strides = [1, 1]} : vector<8x64xf32> to vector<8x32xf32>
    %855 = vector.extract_strided_slice %840 {offsets = [0, 64], sizes = [8, 32], strides = [1, 1]} : vector<8x96xf32> to vector<8x32xf32>
    %856 = vector.extract_strided_slice %844 {offsets = [0, 64], sizes = [8, 32], strides = [1, 1]} : vector<8x96xf32> to vector<8x32xf32>
    %857 = vector.broadcast %22 : vector<1x32xf32> to vector<8x32xf32>
    %858 = arith.addf %856, %857 : vector<8x32xf32>
    %859 = arith.mulf %853, %858 : vector<8x32xf32>
    %860 = arith.addf %855, %859 : vector<8x32xf32>
    %861 = math.tanh %860 : vector<8x32xf32>
    %cst_275 = arith.constant 1.000000e+00 : f32
    %862 = vector.broadcast %cst_275 : f32 to vector<8x32xf32>
    %863 = arith.subf %862, %854 : vector<8x32xf32>
    %864 = arith.mulf %863, %861 : vector<8x32xf32>
    %865 = arith.mulf %854, %843 : vector<8x32xf32>
    %866 = arith.addf %864, %865 : vector<8x32xf32>
    %867 = tpu.concatenate %837, %866 in 1 : vector<8x32xf32>, vector<8x32xf32> -> vector<8x64xf32>
    %cst_276 = arith.constant dense<0.000000e+00> : vector<8x20xf32>
    %868 = tpu.matmul %867, %25, %cst_276 {dimension_numbers = #tpu.dot_dimension_numbers<[1], [0], [0], [1], [0, 0, 1, 1], [], []>} : vector<8x64xf32>, vector<64x20xf32>, vector<8x20xf32> -> vector<8x20xf32>
    %869 = vector.broadcast %26 : vector<1x20xf32> to vector<8x20xf32>
    %870 = arith.addf %868, %869 : vector<8x20xf32>
    %871 = vector.extract_strided_slice %870 {offsets = [0, 0], sizes = [8, 10], strides = [1, 1]} : vector<8x20xf32> to vector<8x10xf32>
    %872 = vector.extract_strided_slice %870 {offsets = [0, 10], sizes = [8, 10], strides = [1, 1]} : vector<8x20xf32> to vector<8x10xf32>
    %873 = arith.negf %872 : vector<8x10xf32>
    %874 = math.exp %873 : vector<8x10xf32>
    %cst_277 = arith.constant 1.000000e+00 : f32
    %875 = vector.broadcast %cst_277 : f32 to vector<8x10xf32>
    %876 = arith.addf %875, %874 : vector<8x10xf32>
    %877 = arith.divf %875, %876 : vector<8x10xf32>
    %878 = arith.mulf %871, %877 : vector<8x10xf32>
    %879 = arith.mulf %793, %810 : vector<8x10xf32>
    %880 = tpu.concatenate %878, %879 in 1 : vector<8x10xf32>, vector<8x10xf32> -> vector<8x20xf32>
    %cst_278 = arith.constant dense<0.000000e+00> : vector<8x10xf32>
    %881 = tpu.matmul %880, %27, %cst_278 {dimension_numbers = #tpu.dot_dimension_numbers<[1], [0], [0], [1], [0, 0, 1, 1], [], []>} : vector<8x20xf32>, vector<20x10xf32>, vector<8x10xf32> -> vector<8x10xf32>
    %882 = vector.broadcast %28 : vector<1x10xf32> to vector<8x10xf32>
    %883 = arith.addf %881, %882 : vector<8x10xf32>
    %cst_279 = arith.constant 0.000000e+00 : f32
    %884 = vector.broadcast %cst_279 : f32 to vector<8x10xf32>
    %885 = arith.maximumf %883, %884 : vector<8x10xf32>
    %cst_280 = arith.constant dense<0.000000e+00> : vector<8x96xf32>
    %886 = tpu.matmul %885, %8, %cst_280 {dimension_numbers = #tpu.dot_dimension_numbers<[1], [0], [0], [1], [0, 0, 1, 1], [], []>} : vector<8x10xf32>, vector<10x96xf32>, vector<8x96xf32> -> vector<8x96xf32>
    %887 = vector.broadcast %12 : vector<1x96xf32> to vector<8x96xf32>
    %888 = arith.addf %886, %887 : vector<8x96xf32>
    %c0_281 = arith.constant 0 : index
    %c0_282 = arith.constant 0 : index
    %889 = vector.load %arg14[%c0_281, %c0_282] : memref<8x32xf32, #tpu.memory_space<vmem>>, vector<8x32xf32>
    %cst_283 = arith.constant dense<0.000000e+00> : vector<8x96xf32>
    %890 = tpu.matmul %889, %18, %cst_283 {dimension_numbers = #tpu.dot_dimension_numbers<[1], [0], [0], [1], [0, 0, 1, 1], [], []>} : vector<8x32xf32>, vector<32x96xf32>, vector<8x96xf32> -> vector<8x96xf32>
    %c0_284 = arith.constant 0 : index
    %c0_285 = arith.constant 0 : index
    %891 = vector.load %arg14[%c0_284, %c0_285] : memref<8x32xf32, #tpu.memory_space<vmem>>, vector<8x32xf32>
    %892 = vector.extract_strided_slice %888 {offsets = [0, 0], sizes = [8, 64], strides = [1, 1]} : vector<8x96xf32> to vector<8x64xf32>
    %893 = vector.extract_strided_slice %890 {offsets = [0, 0], sizes = [8, 64], strides = [1, 1]} : vector<8x96xf32> to vector<8x64xf32>
    %894 = arith.addf %892, %893 : vector<8x64xf32>
    %895 = arith.negf %894 : vector<8x64xf32>
    %896 = math.exp %895 : vector<8x64xf32>
    %cst_286 = arith.constant 1.000000e+00 : f32
    %897 = vector.broadcast %cst_286 : f32 to vector<8x64xf32>
    %898 = arith.addf %897, %896 : vector<8x64xf32>
    %899 = arith.divf %897, %898 : vector<8x64xf32>
    %900 = vector.extract_strided_slice %899 {offsets = [0, 0], sizes = [8, 32], strides = [1, 1]} : vector<8x64xf32> to vector<8x32xf32>
    %901 = vector.extract_strided_slice %899 {offsets = [0, 32], sizes = [8, 32], strides = [1, 1]} : vector<8x64xf32> to vector<8x32xf32>
    %902 = vector.extract_strided_slice %888 {offsets = [0, 64], sizes = [8, 32], strides = [1, 1]} : vector<8x96xf32> to vector<8x32xf32>
    %903 = vector.extract_strided_slice %890 {offsets = [0, 64], sizes = [8, 32], strides = [1, 1]} : vector<8x96xf32> to vector<8x32xf32>
    %904 = vector.broadcast %24 : vector<1x32xf32> to vector<8x32xf32>
    %905 = arith.addf %903, %904 : vector<8x32xf32>
    %906 = arith.mulf %900, %905 : vector<8x32xf32>
    %907 = arith.addf %902, %906 : vector<8x32xf32>
    %908 = math.tanh %907 : vector<8x32xf32>
    %cst_287 = arith.constant 1.000000e+00 : f32
    %909 = vector.broadcast %cst_287 : f32 to vector<8x32xf32>
    %910 = arith.subf %909, %901 : vector<8x32xf32>
    %911 = arith.mulf %910, %908 : vector<8x32xf32>
    %912 = arith.mulf %901, %891 : vector<8x32xf32>
    %913 = arith.addf %911, %912 : vector<8x32xf32>
    %c0_288 = arith.constant 0 : index
    %c192 = arith.constant 192 : index
    %914 = vector.load %arg13[%c0_288, %c192] : memref<8x256xf32, #tpu.memory_space<vmem>>, vector<8x32xf32>
    tpu.vector_store %arg13[%c0_288, %c192], %913 {strides = array<i32>} : memref<8x256xf32, #tpu.memory_space<vmem>>, vector<8x32xf32>,
    %c0_289 = arith.constant 0 : index
    %c0_290 = arith.constant 0 : index
    %915 = vector.load %arg14[%c0_289, %c0_290] : memref<8x32xf32, #tpu.memory_space<vmem>>, vector<8x32xf32>
    tpu.vector_store %arg14[%c0_289, %c0_290], %913 {strides = array<i32>} : memref<8x32xf32, #tpu.memory_space<vmem>>, vector<8x32xf32>,
    %c0_291 = arith.constant 0 : index
    %c0_292 = arith.constant 0 : index
    %916 = vector.load %arg15[%c0_291, %c0_292] : memref<8x32xf32, #tpu.memory_space<vmem>>, vector<8x32xf32>
    tpu.vector_store %arg15[%c0_291, %c0_292], %837 {strides = array<i32>} : memref<8x32xf32, #tpu.memory_space<vmem>>, vector<8x32xf32>,
    %c0_293 = arith.constant 0 : index
    %c0_294 = arith.constant 0 : index
    %917 = vector.load %arg16[%c0_293, %c0_294] : memref<8x32xf32, #tpu.memory_space<vmem>>, vector<8x32xf32>
    tpu.vector_store %arg16[%c0_293, %c0_294], %866 {strides = array<i32>} : memref<8x32xf32, #tpu.memory_space<vmem>>, vector<8x32xf32>,
    %c0_295 = arith.constant 0 : index
    %c7 = arith.constant 7 : index
    %c0_296 = arith.constant 0 : index
    %918 = vector.load %arg2[%c0_295, %c7, %c0_296] : memref<8x8x21xf32, #tpu.memory_space<vmem>>, vector<8x1x21xf32>
    %919 = vector.shape_cast %918 : vector<8x1x21xf32> to vector<8x21xf32>
    %920 = vector.extract_strided_slice %919 {offsets = [0, 0], sizes = [8, 10], strides = [1, 1]} : vector<8x21xf32> to vector<8x10xf32>
    %921 = vector.extract_strided_slice %919 {offsets = [0, 10], sizes = [8, 10], strides = [1, 1]} : vector<8x21xf32> to vector<8x10xf32>
    %922 = vector.extract_strided_slice %919 {offsets = [0, 20], sizes = [8, 1], strides = [1, 1]} : vector<8x21xf32> to vector<8x1xf32>
    %cst_297 = arith.constant 1.000000e+00 : f32
    %923 = vector.broadcast %cst_297 : f32 to vector<8x10xf32>
    %924 = arith.subf %923, %921 : vector<8x10xf32>
    %cst_298 = arith.constant 0.000000e+00 : f32
    %925 = vector.broadcast %cst_298 : f32 to vector<8x10xf32>
    %926 = arith.maximumf %924, %925 : vector<8x10xf32>
    %927 = arith.mulf %920, %926 : vector<8x10xf32>
    %928 = tpu.concatenate %924, %927 in 1 : vector<8x10xf32>, vector<8x10xf32> -> vector<8x20xf32>
    %cst_299 = arith.constant dense<0.000000e+00> : vector<8x106xf32>
    %929 = tpu.matmul %928, %3, %cst_299 {dimension_numbers = #tpu.dot_dimension_numbers<[1], [0], [0], [1], [0, 0, 1, 1], [], []>} : vector<8x20xf32>, vector<20x106xf32>, vector<8x106xf32> -> vector<8x106xf32>
    %930 = vector.broadcast %4 : vector<1x106xf32> to vector<8x106xf32>
    %931 = arith.addf %929, %930 : vector<8x106xf32>
    %932 = vector.extract_strided_slice %931 {offsets = [0, 0], sizes = [8, 10], strides = [1, 1]} : vector<8x106xf32> to vector<8x10xf32>
    %933 = arith.negf %932 : vector<8x10xf32>
    %934 = math.exp %933 : vector<8x10xf32>
    %cst_300 = arith.constant 1.000000e+00 : f32
    %935 = vector.broadcast %cst_300 : f32 to vector<8x10xf32>
    %936 = arith.addf %935, %934 : vector<8x10xf32>
    %937 = arith.divf %935, %936 : vector<8x10xf32>
    %938 = vector.extract_strided_slice %931 {offsets = [0, 10], sizes = [8, 96], strides = [1, 1]} : vector<8x106xf32> to vector<8x96xf32>
    %c0_301 = arith.constant 0 : index
    %c0_302 = arith.constant 0 : index
    %939 = vector.load %arg15[%c0_301, %c0_302] : memref<8x32xf32, #tpu.memory_space<vmem>>, vector<8x32xf32>
    %940 = vector.broadcast %922 : vector<8x1xf32> to vector<8x32xf32>
    %941 = arith.mulf %939, %940 : vector<8x32xf32>
    %cst_303 = arith.constant dense<0.000000e+00> : vector<8x96xf32>
    %942 = tpu.matmul %941, %14, %cst_303 {dimension_numbers = #tpu.dot_dimension_numbers<[1], [0], [0], [1], [0, 0, 1, 1], [], []>} : vector<8x32xf32>, vector<32x96xf32>, vector<8x96xf32> -> vector<8x96xf32>
    %943 = vector.extract_strided_slice %938 {offsets = [0, 0], sizes = [8, 64], strides = [1, 1]} : vector<8x96xf32> to vector<8x64xf32>
    %944 = vector.extract_strided_slice %942 {offsets = [0, 0], sizes = [8, 64], strides = [1, 1]} : vector<8x96xf32> to vector<8x64xf32>
    %945 = arith.addf %943, %944 : vector<8x64xf32>
    %946 = arith.negf %945 : vector<8x64xf32>
    %947 = math.exp %946 : vector<8x64xf32>
    %cst_304 = arith.constant 1.000000e+00 : f32
    %948 = vector.broadcast %cst_304 : f32 to vector<8x64xf32>
    %949 = arith.addf %948, %947 : vector<8x64xf32>
    %950 = arith.divf %948, %949 : vector<8x64xf32>
    %951 = vector.extract_strided_slice %950 {offsets = [0, 0], sizes = [8, 32], strides = [1, 1]} : vector<8x64xf32> to vector<8x32xf32>
    %952 = vector.extract_strided_slice %950 {offsets = [0, 32], sizes = [8, 32], strides = [1, 1]} : vector<8x64xf32> to vector<8x32xf32>
    %953 = vector.extract_strided_slice %938 {offsets = [0, 64], sizes = [8, 32], strides = [1, 1]} : vector<8x96xf32> to vector<8x32xf32>
    %954 = vector.extract_strided_slice %942 {offsets = [0, 64], sizes = [8, 32], strides = [1, 1]} : vector<8x96xf32> to vector<8x32xf32>
    %955 = vector.broadcast %20 : vector<1x32xf32> to vector<8x32xf32>
    %956 = arith.addf %954, %955 : vector<8x32xf32>
    %957 = arith.mulf %951, %956 : vector<8x32xf32>
    %958 = arith.addf %953, %957 : vector<8x32xf32>
    %959 = math.tanh %958 : vector<8x32xf32>
    %cst_305 = arith.constant 1.000000e+00 : f32
    %960 = vector.broadcast %cst_305 : f32 to vector<8x32xf32>
    %961 = arith.subf %960, %952 : vector<8x32xf32>
    %962 = arith.mulf %961, %959 : vector<8x32xf32>
    %963 = arith.mulf %952, %941 : vector<8x32xf32>
    %964 = arith.addf %962, %963 : vector<8x32xf32>
    %cst_306 = arith.constant dense<0.000000e+00> : vector<8x96xf32>
    %965 = tpu.matmul %937, %6, %cst_306 {dimension_numbers = #tpu.dot_dimension_numbers<[1], [0], [0], [1], [0, 0, 1, 1], [], []>} : vector<8x10xf32>, vector<10x96xf32>, vector<8x96xf32> -> vector<8x96xf32>
    %966 = vector.broadcast %10 : vector<1x96xf32> to vector<8x96xf32>
    %967 = arith.addf %965, %966 : vector<8x96xf32>
    %c0_307 = arith.constant 0 : index
    %c0_308 = arith.constant 0 : index
    %968 = vector.load %arg16[%c0_307, %c0_308] : memref<8x32xf32, #tpu.memory_space<vmem>>, vector<8x32xf32>
    %969 = vector.broadcast %922 : vector<8x1xf32> to vector<8x32xf32>
    %970 = arith.mulf %968, %969 : vector<8x32xf32>
    %cst_309 = arith.constant dense<0.000000e+00> : vector<8x96xf32>
    %971 = tpu.matmul %970, %16, %cst_309 {dimension_numbers = #tpu.dot_dimension_numbers<[1], [0], [0], [1], [0, 0, 1, 1], [], []>} : vector<8x32xf32>, vector<32x96xf32>, vector<8x96xf32> -> vector<8x96xf32>
    %972 = vector.extract_strided_slice %967 {offsets = [0, 0], sizes = [8, 64], strides = [1, 1]} : vector<8x96xf32> to vector<8x64xf32>
    %973 = vector.extract_strided_slice %971 {offsets = [0, 0], sizes = [8, 64], strides = [1, 1]} : vector<8x96xf32> to vector<8x64xf32>
    %974 = arith.addf %972, %973 : vector<8x64xf32>
    %975 = arith.negf %974 : vector<8x64xf32>
    %976 = math.exp %975 : vector<8x64xf32>
    %cst_310 = arith.constant 1.000000e+00 : f32
    %977 = vector.broadcast %cst_310 : f32 to vector<8x64xf32>
    %978 = arith.addf %977, %976 : vector<8x64xf32>
    %979 = arith.divf %977, %978 : vector<8x64xf32>
    %980 = vector.extract_strided_slice %979 {offsets = [0, 0], sizes = [8, 32], strides = [1, 1]} : vector<8x64xf32> to vector<8x32xf32>
    %981 = vector.extract_strided_slice %979 {offsets = [0, 32], sizes = [8, 32], strides = [1, 1]} : vector<8x64xf32> to vector<8x32xf32>
    %982 = vector.extract_strided_slice %967 {offsets = [0, 64], sizes = [8, 32], strides = [1, 1]} : vector<8x96xf32> to vector<8x32xf32>
    %983 = vector.extract_strided_slice %971 {offsets = [0, 64], sizes = [8, 32], strides = [1, 1]} : vector<8x96xf32> to vector<8x32xf32>
    %984 = vector.broadcast %22 : vector<1x32xf32> to vector<8x32xf32>
    %985 = arith.addf %983, %984 : vector<8x32xf32>
    %986 = arith.mulf %980, %985 : vector<8x32xf32>
    %987 = arith.addf %982, %986 : vector<8x32xf32>
    %988 = math.tanh %987 : vector<8x32xf32>
    %cst_311 = arith.constant 1.000000e+00 : f32
    %989 = vector.broadcast %cst_311 : f32 to vector<8x32xf32>
    %990 = arith.subf %989, %981 : vector<8x32xf32>
    %991 = arith.mulf %990, %988 : vector<8x32xf32>
    %992 = arith.mulf %981, %970 : vector<8x32xf32>
    %993 = arith.addf %991, %992 : vector<8x32xf32>
    %994 = tpu.concatenate %964, %993 in 1 : vector<8x32xf32>, vector<8x32xf32> -> vector<8x64xf32>
    %cst_312 = arith.constant dense<0.000000e+00> : vector<8x20xf32>
    %995 = tpu.matmul %994, %25, %cst_312 {dimension_numbers = #tpu.dot_dimension_numbers<[1], [0], [0], [1], [0, 0, 1, 1], [], []>} : vector<8x64xf32>, vector<64x20xf32>, vector<8x20xf32> -> vector<8x20xf32>
    %996 = vector.broadcast %26 : vector<1x20xf32> to vector<8x20xf32>
    %997 = arith.addf %995, %996 : vector<8x20xf32>
    %998 = vector.extract_strided_slice %997 {offsets = [0, 0], sizes = [8, 10], strides = [1, 1]} : vector<8x20xf32> to vector<8x10xf32>
    %999 = vector.extract_strided_slice %997 {offsets = [0, 10], sizes = [8, 10], strides = [1, 1]} : vector<8x20xf32> to vector<8x10xf32>
    %1000 = arith.negf %999 : vector<8x10xf32>
    %1001 = math.exp %1000 : vector<8x10xf32>
    %cst_313 = arith.constant 1.000000e+00 : f32
    %1002 = vector.broadcast %cst_313 : f32 to vector<8x10xf32>
    %1003 = arith.addf %1002, %1001 : vector<8x10xf32>
    %1004 = arith.divf %1002, %1003 : vector<8x10xf32>
    %1005 = arith.mulf %998, %1004 : vector<8x10xf32>
    %1006 = arith.mulf %920, %937 : vector<8x10xf32>
    %1007 = tpu.concatenate %1005, %1006 in 1 : vector<8x10xf32>, vector<8x10xf32> -> vector<8x20xf32>
    %cst_314 = arith.constant dense<0.000000e+00> : vector<8x10xf32>
    %1008 = tpu.matmul %1007, %27, %cst_314 {dimension_numbers = #tpu.dot_dimension_numbers<[1], [0], [0], [1], [0, 0, 1, 1], [], []>} : vector<8x20xf32>, vector<20x10xf32>, vector<8x10xf32> -> vector<8x10xf32>
    %1009 = vector.broadcast %28 : vector<1x10xf32> to vector<8x10xf32>
    %1010 = arith.addf %1008, %1009 : vector<8x10xf32>
    %cst_315 = arith.constant 0.000000e+00 : f32
    %1011 = vector.broadcast %cst_315 : f32 to vector<8x10xf32>
    %1012 = arith.maximumf %1010, %1011 : vector<8x10xf32>
    %cst_316 = arith.constant dense<0.000000e+00> : vector<8x96xf32>
    %1013 = tpu.matmul %1012, %8, %cst_316 {dimension_numbers = #tpu.dot_dimension_numbers<[1], [0], [0], [1], [0, 0, 1, 1], [], []>} : vector<8x10xf32>, vector<10x96xf32>, vector<8x96xf32> -> vector<8x96xf32>
    %1014 = vector.broadcast %12 : vector<1x96xf32> to vector<8x96xf32>
    %1015 = arith.addf %1013, %1014 : vector<8x96xf32>
    %c0_317 = arith.constant 0 : index
    %c0_318 = arith.constant 0 : index
    %1016 = vector.load %arg14[%c0_317, %c0_318] : memref<8x32xf32, #tpu.memory_space<vmem>>, vector<8x32xf32>
    %cst_319 = arith.constant dense<0.000000e+00> : vector<8x96xf32>
    %1017 = tpu.matmul %1016, %18, %cst_319 {dimension_numbers = #tpu.dot_dimension_numbers<[1], [0], [0], [1], [0, 0, 1, 1], [], []>} : vector<8x32xf32>, vector<32x96xf32>, vector<8x96xf32> -> vector<8x96xf32>
    %c0_320 = arith.constant 0 : index
    %c0_321 = arith.constant 0 : index
    %1018 = vector.load %arg14[%c0_320, %c0_321] : memref<8x32xf32, #tpu.memory_space<vmem>>, vector<8x32xf32>
    %1019 = vector.extract_strided_slice %1015 {offsets = [0, 0], sizes = [8, 64], strides = [1, 1]} : vector<8x96xf32> to vector<8x64xf32>
    %1020 = vector.extract_strided_slice %1017 {offsets = [0, 0], sizes = [8, 64], strides = [1, 1]} : vector<8x96xf32> to vector<8x64xf32>
    %1021 = arith.addf %1019, %1020 : vector<8x64xf32>
    %1022 = arith.negf %1021 : vector<8x64xf32>
    %1023 = math.exp %1022 : vector<8x64xf32>
    %cst_322 = arith.constant 1.000000e+00 : f32
    %1024 = vector.broadcast %cst_322 : f32 to vector<8x64xf32>
    %1025 = arith.addf %1024, %1023 : vector<8x64xf32>
    %1026 = arith.divf %1024, %1025 : vector<8x64xf32>
    %1027 = vector.extract_strided_slice %1026 {offsets = [0, 0], sizes = [8, 32], strides = [1, 1]} : vector<8x64xf32> to vector<8x32xf32>
    %1028 = vector.extract_strided_slice %1026 {offsets = [0, 32], sizes = [8, 32], strides = [1, 1]} : vector<8x64xf32> to vector<8x32xf32>
    %1029 = vector.extract_strided_slice %1015 {offsets = [0, 64], sizes = [8, 32], strides = [1, 1]} : vector<8x96xf32> to vector<8x32xf32>
    %1030 = vector.extract_strided_slice %1017 {offsets = [0, 64], sizes = [8, 32], strides = [1, 1]} : vector<8x96xf32> to vector<8x32xf32>
    %1031 = vector.broadcast %24 : vector<1x32xf32> to vector<8x32xf32>
    %1032 = arith.addf %1030, %1031 : vector<8x32xf32>
    %1033 = arith.mulf %1027, %1032 : vector<8x32xf32>
    %1034 = arith.addf %1029, %1033 : vector<8x32xf32>
    %1035 = math.tanh %1034 : vector<8x32xf32>
    %cst_323 = arith.constant 1.000000e+00 : f32
    %1036 = vector.broadcast %cst_323 : f32 to vector<8x32xf32>
    %1037 = arith.subf %1036, %1028 : vector<8x32xf32>
    %1038 = arith.mulf %1037, %1035 : vector<8x32xf32>
    %1039 = arith.mulf %1028, %1018 : vector<8x32xf32>
    %1040 = arith.addf %1038, %1039 : vector<8x32xf32>
    %c0_324 = arith.constant 0 : index
    %c224 = arith.constant 224 : index
    %1041 = vector.load %arg13[%c0_324, %c224] : memref<8x256xf32, #tpu.memory_space<vmem>>, vector<8x32xf32>
    tpu.vector_store %arg13[%c0_324, %c224], %1040 {strides = array<i32>} : memref<8x256xf32, #tpu.memory_space<vmem>>, vector<8x32xf32>,
    %c0_325 = arith.constant 0 : index
    %c0_326 = arith.constant 0 : index
    %1042 = vector.load %arg14[%c0_325, %c0_326] : memref<8x32xf32, #tpu.memory_space<vmem>>, vector<8x32xf32>
    tpu.vector_store %arg14[%c0_325, %c0_326], %1040 {strides = array<i32>} : memref<8x32xf32, #tpu.memory_space<vmem>>, vector<8x32xf32>,
    %c0_327 = arith.constant 0 : index
    %c0_328 = arith.constant 0 : index
    %1043 = vector.load %arg15[%c0_327, %c0_328] : memref<8x32xf32, #tpu.memory_space<vmem>>, vector<8x32xf32>
    tpu.vector_store %arg15[%c0_327, %c0_328], %964 {strides = array<i32>} : memref<8x32xf32, #tpu.memory_space<vmem>>, vector<8x32xf32>,
    %c0_329 = arith.constant 0 : index
    %c0_330 = arith.constant 0 : index
    %1044 = vector.load %arg16[%c0_329, %c0_330] : memref<8x32xf32, #tpu.memory_space<vmem>>, vector<8x32xf32>
    tpu.vector_store %arg16[%c0_329, %c0_330], %993 {strides = array<i32>} : memref<8x32xf32, #tpu.memory_space<vmem>>, vector<8x32xf32>,
    return
  }
  func.func @transform_0(%arg0: i32, %arg1: i32) -> (i32, i32, i32) {
    %c0_i32 = arith.constant 0 : i32
    %c0_i32_0 = arith.constant 0 : i32
    return %arg0, %arg1, %c0_i32 : i32, i32, i32
  }
  func.func @transform_1(%arg0: i32, %arg1: i32) -> (i32, i32) {
    %c0_i32 = arith.constant 0 : i32
    %c0_i32_0 = arith.constant 0 : i32
    %c0_i32_1 = arith.constant 0 : i32
    return %c0_i32, %c0_i32_0 : i32, i32
  }
  func.func @transform_2(%arg0: i32, %arg1: i32) -> (i32, i32) {
    %c0_i32 = arith.constant 0 : i32
    %c0_i32_0 = arith.constant 0 : i32
    %c0_i32_1 = arith.constant 0 : i32
    return %c0_i32, %c0_i32_0 : i32, i32
  }
  func.func @transform_3(%arg0: i32, %arg1: i32) -> (i32, i32, i32) {
    %c0_i32 = arith.constant 0 : i32
    %c0_i32_0 = arith.constant 0 : i32
    %c0_i32_1 = arith.constant 0 : i32
    %c0_i32_2 = arith.constant 0 : i32
    return %c0_i32, %c0_i32_0, %c0_i32_1 : i32, i32, i32
  }
  func.func @transform_4(%arg0: i32, %arg1: i32) -> (i32, i32, i32) {
    %c0_i32 = arith.constant 0 : i32
    %c0_i32_0 = arith.constant 0 : i32
    %c0_i32_1 = arith.constant 0 : i32
    %c0_i32_2 = arith.constant 0 : i32
    return %c0_i32, %c0_i32_0, %c0_i32_1 : i32, i32, i32
  }
  func.func @transform_5(%arg0: i32, %arg1: i32) -> (i32, i32, i32) {
    %c0_i32 = arith.constant 0 : i32
    %c0_i32_0 = arith.constant 0 : i32
    %c0_i32_1 = arith.constant 0 : i32
    %c0_i32_2 = arith.constant 0 : i32
    return %c0_i32, %c0_i32_0, %c0_i32_1 : i32, i32, i32
  }
  func.func @transform_6(%arg0: i32, %arg1: i32) -> (i32, i32, i32) {
    %c0_i32 = arith.constant 0 : i32
    %c0_i32_0 = arith.constant 0 : i32
    %c0_i32_1 = arith.constant 0 : i32
    %c0_i32_2 = arith.constant 0 : i32
    return %c0_i32, %c0_i32_0, %c0_i32_1 : i32, i32, i32
  }
  func.func @transform_7(%arg0: i32, %arg1: i32) -> (i32, i32) {
    %c0_i32 = arith.constant 0 : i32
    %c0_i32_0 = arith.constant 0 : i32
    %c0_i32_1 = arith.constant 0 : i32
    return %c0_i32, %c0_i32_0 : i32, i32
  }
  func.func @transform_8(%arg0: i32, %arg1: i32) -> (i32, i32) {
    %c0_i32 = arith.constant 0 : i32
    %c0_i32_0 = arith.constant 0 : i32
    %c0_i32_1 = arith.constant 0 : i32
    return %c0_i32, %c0_i32_0 : i32, i32
  }
  func.func @transform_9(%arg0: i32, %arg1: i32) -> (i32, i32) {
    %c0_i32 = arith.constant 0 : i32
    %c0_i32_0 = arith.constant 0 : i32
    %c0_i32_1 = arith.constant 0 : i32
    return %c0_i32, %c0_i32_0 : i32, i32
  }
  func.func @transform_10(%arg0: i32, %arg1: i32) -> (i32, i32) {
    %c0_i32 = arith.constant 0 : i32
    %c0_i32_0 = arith.constant 0 : i32
    %c0_i32_1 = arith.constant 0 : i32
    return %c0_i32, %c0_i32_0 : i32, i32
  }
  func.func @transform_11(%arg0: i32, %arg1: i32) -> (i32, i32) {
    %c0_i32 = arith.constant 0 : i32
    return %arg0, %arg1 : i32, i32
  }
}

</mosaic_0001>

<llo_original>
// kernel: ts_encoder_pallas.1
$region0: #{ts_encoder_pallas.1}
  #allocation0 [shape = 'u32[]', space=smem, size = 0x4, offset = 0x4, fixed_abs, tag = 'smem constant byte address 0x4 - core index']
  #allocation1 [shape = 'u32[144,128]{1,0:T(1,128)}', space=vmem, size = 0x12000, scoped, tag = 'internal scratch']
  #allocation2 [shape = 'f32[8,32]{1,0:T(8,128)}', space=vmem, size = 0x1000, scoped, tag = 'scratch operand']
  #allocation3 [shape = 'f32[8,32]{1,0:T(8,128)}', space=vmem, size = 0x1000, scoped, tag = 'scratch operand']
  #allocation4 [shape = 'f32[8,32]{1,0:T(8,128)}', space=vmem, size = 0x1000, scoped, tag = 'scratch operand']
  %s0 = inlined_call_operand.vmem [shape: f32[8,16,21], index: 0, kind: input, shape index: {}]
  %s1 = inlined_call_operand.vmem [shape: f32[20,106], index: 1, kind: input, shape index: {}]
  %s2 = inlined_call_operand.vmem [shape: f32[1,106], index: 2, kind: input, shape index: {}]
  %s3 = inlined_call_operand.vmem [shape: f32[2,10,96], index: 3, kind: input, shape index: {}]
  %s4 = inlined_call_operand.vmem [shape: f32[2,1,96], index: 4, kind: input, shape index: {}]
  %s5 = inlined_call_operand.vmem [shape: f32[3,32,96], index: 5, kind: input, shape index: {}]
  %s6 = inlined_call_operand.vmem [shape: f32[3,1,32], index: 6, kind: input, shape index: {}]
  %s7 = inlined_call_operand.vmem [shape: f32[64,20], index: 7, kind: input, shape index: {}]
  %s8 = inlined_call_operand.vmem [shape: f32[1,20], index: 8, kind: input, shape index: {}]
  %s9 = inlined_call_operand.vmem [shape: f32[20,10], index: 9, kind: input, shape index: {}]
  %s10 = inlined_call_operand.vmem [shape: f32[1,10], index: 10, kind: input, shape index: {}]
  %s11 = inlined_call_operand.vmem [shape: f32[8,512], index: 11, kind: output, shape index: {}]
  %s12 = sld [smem:[#allocation0]]
  $region119: #{ts_encoder_pallas.1} parent=0
    _
  %s14 = ssub.s32 1, %s12
  %s15 = scalar_select 0, %s14, %s12
  $region1: #{ts_encoder_pallas.1} parent=0
    #allocation5 [shape = 'u8[65536]{0}', space=vmem, size = 0x10000, scoped, tag = 'input window, operand 0']
    loop: start=0, step=1, limit=4
    $region2: #{ts_encoder_pallas.1} parent=1 // loop_pre_header
      _
    $region3: #{ts_encoder_pallas.1} parent=1 // loop_header
      %s17 = sphi 0, %s21
      %p18 = scmp.ge.s32.totalorder %s17, 4
      %s24 = sphi 0, %s36
      %s25 = sphi 0, %s32
      %s26 = sphi 0, %s24
      %s27 = sphi 0, %s25
      %s28 = sphi 0, %s26
      %s29 = sphi 0, %s27
      %s41 = sphi 0, %s43
      %s44 = sphi 0, %s41
      %s45 = sphi 0, %s44
      %s61 = sphi 0, %s45
      %s65 = sphi 0, %s65
      %s67 = sphi 0, %s65
      %s68 = sphi 0, %s67
      %s82 = sphi 0, %s68
      %s86 = sphi 0, %s86
      %s88 = sphi 0, %s86
      %s89 = sphi 0, %s88
      %s103 = sphi 0, %s89
      %s107 = sphi 0, %s107
      %s109 = sphi 0, %s107
      %s110 = sphi 0, %s109
      %s124 = sphi 0, %s110
      %s128 = sphi 0, %s128
      %s130 = sphi 0, %s128
      %s131 = sphi 0, %s130
      %s145 = sphi 0, %s131
      %s149 = sphi 0, %s149
      %s151 = sphi 0, %s149
      %s152 = sphi 0, %s151
      %s166 = sphi 0, %s152
      %s170 = sphi 0, %s170
      %s172 = sphi 0, %s170
      %s173 = sphi 0, %s172
      %s187 = sphi 0, %s173
      %s191 = sphi 0, %s191
      %s193 = sphi 0, %s191
      %s194 = sphi 0, %s193
      %s208 = sphi 0, %s194
      %s212 = sphi 0, %s212
      %s214 = sphi 0, %s212
      %s215 = sphi 0, %s214
      %s229 = sphi 0, %s215
      %s233 = sphi 0, %s233
      %s235 = sphi 0, %s233
      %s236 = sphi 0, %s235
      %s250 = sphi 0, %s236
      %s254 = sphi 0, %s254
      %s256 = sphi 0, %s254
      %s257 = sphi 0, %s256
      %s271 = sphi 0, %s257
      %s279 = sphi 0, %s281
      %s282 = sphi 0, %s279
      %s283 = sphi 0, %s282
      %s299 = sphi 0, %s283
    $region4: #{ts_encoder_pallas.1} parent=1 // loop_header_branch
      %20 = sbr.rel (%p18) target = $region8
    $region5: #{ts_encoder_pallas.1} parent=1 // loop_body
      %s22 = ssub.s32 %s17, 1
      %s23 = ssub.s32 %s17, 2
      %s30 = sadd.s32 1, %s25
      %p31 = scmp.ge.s32.totalorder %s30, 2
      %s32 = scalar_select %p31, 0, %s30
      %s33 = sadd.s32 1, %s24
      %s34 = scalar_select %p31, %s33, %s24
      %p35 = scmp.ge.s32.totalorder %s34, 1
      %s36 = scalar_select %p35, 0, %s34
      %s37 = ssub.s32 %s24, %s36
      %s38 = ssub.s32 %s25, %s32
      %s39 = sor.u32 %s37, %s38
      %p40 = scmp.eq.s32.totalorder %s39, 0
      %s42 = sadd.s32 %s41, 1
      %s43 = scalar_select %p40, %s41, %s42
      %p46 = pneg %p40
      %p47 = scmp.eq.s32.totalorder %s17, 1
      %p48 = por %p46, %p47
      %p49 = scmp.ne.s32.totalorder %s41, %s44
      %p50 = scmp.eq.s32.totalorder %s17, 0
      %p51 = por %p49, %p50
      %p52 = scmp.ne.s32.totalorder %s41, %s44
      %p53 = scmp.eq.s32.totalorder %s22, 1
      %p54 = por %p52, %p53
      %p55 = scmp.ne.s32.totalorder %s44, %s45
      %p56 = scmp.eq.s32.totalorder %s22, 0
      %p57 = por %p55, %p56
      %p58 = scmp.ne.s32.totalorder %s44, %s45
      %p59 = scmp.eq.s32.totalorder %s23, 1
      %p60 = por %p58, %p59
      %p62 = scmp.ne.s32.totalorder %s45, %s61
      %p63 = scmp.eq.s32.totalorder %s23, 0
      %p64 = por %p62, %p63
      %s66 = sadd.s32 %s65, 1
      %p69 = scmp.eq.s32.totalorder %s17, 1
      %p70 = scmp.ne.s32.totalorder %s65, %s67
      %p71 = scmp.eq.s32.totalorder %s17, 0
      %p72 = por %p70, %p71
      %p73 = scmp.ne.s32.totalorder %s65, %s67
      %p74 = scmp.eq.s32.totalorder %s22, 1
      %p75 = por %p73, %p74
      %p76 = scmp.ne.s32.totalorder %s67, %s68
      %p77 = scmp.eq.s32.totalorder %s22, 0
      %p78 = por %p76, %p77
      %p79 = scmp.ne.s32.totalorder %s67, %s68
      %p80 = scmp.eq.s32.totalorder %s23, 1
      %p81 = por %p79, %p80
      %p83 = scmp.ne.s32.totalorder %s68, %s82
      %p84 = scmp.eq.s32.totalorder %s23, 0
      %p85 = por %p83, %p84
      %s87 = sadd.s32 %s86, 1
      %p90 = scmp.eq.s32.totalorder %s17, 1
      %p91 = scmp.ne.s32.totalorder %s86, %s88
      %p92 = scmp.eq.s32.totalorder %s17, 0
      %p93 = por %p91, %p92
      %p94 = scmp.ne.s32.totalorder %s86, %s88
      %p95 = scmp.eq.s32.totalorder %s22, 1
      %p96 = por %p94, %p95
      %p97 = scmp.ne.s32.totalorder %s88, %s89
      %p98 = scmp.eq.s32.totalorder %s22, 0
      %p99 = por %p97, %p98
      %p100 = scmp.ne.s32.totalorder %s88, %s89
      %p101 = scmp.eq.s32.totalorder %s23, 1
      %p102 = por %p100, %p101
      %p104 = scmp.ne.s32.totalorder %s89, %s103
      %p105 = scmp.eq.s32.totalorder %s23, 0
      %p106 = por %p104, %p105
      %s108 = sadd.s32 %s107, 1
      %p111 = scmp.eq.s32.totalorder %s17, 1
      %p112 = scmp.ne.s32.totalorder %s107, %s109
      %p113 = scmp.eq.s32.totalorder %s17, 0
      %p114 = por %p112, %p113
      %p115 = scmp.ne.s32.totalorder %s107, %s109
      %p116 = scmp.eq.s32.totalorder %s22, 1
      %p117 = por %p115, %p116
      %p118 = scmp.ne.s32.totalorder %s109, %s110
      %p119 = scmp.eq.s32.totalorder %s22, 0
      %p120 = por %p118, %p119
      %p121 = scmp.ne.s32.totalorder %s109, %s110
      %p122 = scmp.eq.s32.totalorder %s23, 1
      %p123 = por %p121, %p122
      %p125 = scmp.ne.s32.totalorder %s110, %s124
      %p126 = scmp.eq.s32.totalorder %s23, 0
      %p127 = por %p125, %p126
      %s129 = sadd.s32 %s128, 1
      %p132 = scmp.eq.s32.totalorder %s17, 1
      %p133 = scmp.ne.s32.totalorder %s128, %s130
      %p134 = scmp.eq.s32.totalorder %s17, 0
      %p135 = por %p133, %p134
      %p136 = scmp.ne.s32.totalorder %s128, %s130
      %p137 = scmp.eq.s32.totalorder %s22, 1
      %p138 = por %p136, %p137
      %p139 = scmp.ne.s32.totalorder %s130, %s131
      %p140 = scmp.eq.s32.totalorder %s22, 0
      %p141 = por %p139, %p140
      %p142 = scmp.ne.s32.totalorder %s130, %s131
      %p143 = scmp.eq.s32.totalorder %s23, 1
      %p144 = por %p142, %p143
      %p146 = scmp.ne.s32.totalorder %s131, %s145
      %p147 = scmp.eq.s32.totalorder %s23, 0
      %p148 = por %p146, %p147
      %s150 = sadd.s32 %s149, 1
      %p153 = scmp.eq.s32.totalorder %s17, 1
      %p154 = scmp.ne.s32.totalorder %s149, %s151
      %p155 = scmp.eq.s32.totalorder %s17, 0
      %p156 = por %p154, %p155
      %p157 = scmp.ne.s32.totalorder %s149, %s151
      %p158 = scmp.eq.s32.totalorder %s22, 1
      %p159 = por %p157, %p158
      %p160 = scmp.ne.s32.totalorder %s151, %s152
      %p161 = scmp.eq.s32.totalorder %s22, 0
      %p162 = por %p160, %p161
      %p163 = scmp.ne.s32.totalorder %s151, %s152
      %p164 = scmp.eq.s32.totalorder %s23, 1
      %p165 = por %p163, %p164
      %p167 = scmp.ne.s32.totalorder %s152, %s166
      %p168 = scmp.eq.s32.totalorder %s23, 0
      %p169 = por %p167, %p168
      %s171 = sadd.s32 %s170, 1
      %p174 = scmp.eq.s32.totalorder %s17, 1
      %p175 = scmp.ne.s32.totalorder %s170, %s172
      %p176 = scmp.eq.s32.totalorder %s17, 0
      %p177 = por %p175, %p176
      %p178 = scmp.ne.s32.totalorder %s170, %s172
      %p179 = scmp.eq.s32.totalorder %s22, 1
      %p180 = por %p178, %p179
      %p181 = scmp.ne.s32.totalorder %s172, %s173
      %p182 = scmp.eq.s32.totalorder %s22, 0
      %p183 = por %p181, %p182
      %p184 = scmp.ne.s32.totalorder %s172, %s173
      %p185 = scmp.eq.s32.totalorder %s23, 1
      %p186 = por %p184, %p185
      %p188 = scmp.ne.s32.totalorder %s173, %s187
      %p189 = scmp.eq.s32.totalorder %s23, 0
      %p190 = por %p188, %p189
      %s192 = sadd.s32 %s191, 1
      %p195 = scmp.eq.s32.totalorder %s17, 1
      %p196 = scmp.ne.s32.totalorder %s191, %s193
      %p197 = scmp.eq.s32.totalorder %s17, 0
      %p198 = por %p196, %p197
      %p199 = scmp.ne.s32.totalorder %s191, %s193
      %p200 = scmp.eq.s32.totalorder %s22, 1
      %p201 = por %p199, %p200
      %p202 = scmp.ne.s32.totalorder %s193, %s194
      %p203 = scmp.eq.s32.totalorder %s22, 0
      %p204 = por %p202, %p203
      %p205 = scmp.ne.s32.totalorder %s193, %s194
      %p206 = scmp.eq.s32.totalorder %s23, 1
      %p207 = por %p205, %p206
      %p209 = scmp.ne.s32.totalorder %s194, %s208
      %p210 = scmp.eq.s32.totalorder %s23, 0
      %p211 = por %p209, %p210
      %s213 = sadd.s32 %s212, 1
      %p216 = scmp.eq.s32.totalorder %s17, 1
      %p217 = scmp.ne.s32.totalorder %s212, %s214
      %p218 = scmp.eq.s32.totalorder %s17, 0
      %p219 = por %p217, %p218
      %p220 = scmp.ne.s32.totalorder %s212, %s214
      %p221 = scmp.eq.s32.totalorder %s22, 1
      %p222 = por %p220, %p221
      %p223 = scmp.ne.s32.totalorder %s214, %s215
      %p224 = scmp.eq.s32.totalorder %s22, 0
      %p225 = por %p223, %p224
      %p226 = scmp.ne.s32.totalorder %s214, %s215
      %p227 = scmp.eq.s32.totalorder %s23, 1
      %p228 = por %p226, %p227
      %p230 = scmp.ne.s32.totalorder %s215, %s229
      %p231 = scmp.eq.s32.totalorder %s23, 0
      %p232 = por %p230, %p231
      %s234 = sadd.s32 %s233, 1
      %p237 = scmp.eq.s32.totalorder %s17, 1
      %p238 = scmp.ne.s32.totalorder %s233, %s235
      %p239 = scmp.eq.s32.totalorder %s17, 0
      %p240 = por %p238, %p239
      %p241 = scmp.ne.s32.totalorder %s233, %s235
      %p242 = scmp.eq.s32.totalorder %s22, 1
      %p243 = por %p241, %p242
      %p244 = scmp.ne.s32.totalorder %s235, %s236
      %p245 = scmp.eq.s32.totalorder %s22, 0
      %p246 = por %p244, %p245
      %p247 = scmp.ne.s32.totalorder %s235, %s236
      %p248 = scmp.eq.s32.totalorder %s23, 1
      %p249 = por %p247, %p248
      %p251 = scmp.ne.s32.totalorder %s236, %s250
      %p252 = scmp.eq.s32.totalorder %s23, 0
      %p253 = por %p251, %p252
      %s255 = sadd.s32 %s254, 1
      %p258 = scmp.eq.s32.totalorder %s17, 1
      %p259 = scmp.ne.s32.totalorder %s254, %s256
      %p260 = scmp.eq.s32.totalorder %s17, 0
      %p261 = por %p259, %p260
      %p262 = scmp.ne.s32.totalorder %s254, %s256
      %p263 = scmp.eq.s32.totalorder %s22, 1
      %p264 = por %p262, %p263
      %p265 = scmp.ne.s32.totalorder %s256, %s257
      %p266 = scmp.eq.s32.totalorder %s22, 0
      %p267 = por %p265, %p266
      %p268 = scmp.ne.s32.totalorder %s256, %s257
      %p269 = scmp.eq.s32.totalorder %s23, 1
      %p270 = por %p268, %p269
      %p272 = scmp.ne.s32.totalorder %s257, %s271
      %p273 = scmp.eq.s32.totalorder %s23, 0
      %p274 = por %p272, %p273
      %s275 = ssub.s32 %s24, %s36
      %s276 = ssub.s32 %s25, %s32
      %s277 = sor.u32 %s275, %s276
      %p278 = scmp.eq.s32.totalorder %s277, 0
      %s280 = sadd.s32 %s279, 1
      %s281 = scalar_select %p278, %s279, %s280
      %p284 = pneg %p278
      %p285 = scmp.eq.s32.totalorder %s17, 1
      %p286 = por %p284, %p285
      %p287 = scmp.ne.s32.totalorder %s279, %s282
      %p288 = scmp.eq.s32.totalorder %s17, 0
      %p289 = por %p287, %p288
      %p290 = scmp.ne.s32.totalorder %s279, %s282
      %p291 = scmp.eq.s32.totalorder %s22, 1
      %p292 = por %p290, %p291
      %p293 = scmp.ne.s32.totalorder %s282, %s283
      %p294 = scmp.eq.s32.totalorder %s22, 0
      %p295 = por %p293, %p294
      %p296 = scmp.ne.s32.totalorder %s282, %s283
      %p297 = scmp.eq.s32.totalorder %s23, 1
      %p298 = por %p296, %p297
      %p300 = scmp.ne.s32.totalorder %s283, %s299
      %p301 = scmp.eq.s32.totalorder %s23, 0
      %p302 = por %p300, %p301
      %p303 = scmp.le.s32.totalorder 1, %s17
      %p304 = scmp.lt.s32.totalorder %s17, 3
      %p305 = pnand %p303, %p304
      %p306 = pneg %p305
      // Predicated region
      $region9: #{ts_encoder_pallas.1} parent=5 // pred_check
        _
      $region10: #{ts_encoder_pallas.1} parent=5 // pred_check_branch
        %308 = sbr.rel (%p305) target = $region12
      $region11: #{ts_encoder_pallas.1} parent=5 // pred_region
        %s309 = ssub.s32 %s17, 1
        // Predicated region
        $region13: #{ts_encoder_pallas.1} parent=11 // pred_check
          %p310 = pneg %p78
        $region14: #{ts_encoder_pallas.1} parent=11 // pred_check_branch
          %312 = sbr.rel (%p310) target = $region16
        $region15: #{ts_encoder_pallas.1} parent=11 // pred_region
          _
        $region16: #{ts_encoder_pallas.1} parent=11 // pred_fallthru
          _
        // Predicated region
        $region17: #{ts_encoder_pallas.1} parent=11 // pred_check
          %p313 = pneg %p99
        $region18: #{ts_encoder_pallas.1} parent=11 // pred_check_branch
          %315 = sbr.rel (%p313) target = $region20
        $region19: #{ts_encoder_pallas.1} parent=11 // pred_region
          _
        $region20: #{ts_encoder_pallas.1} parent=11 // pred_fallthru
          _
        // Predicated region
        $region21: #{ts_encoder_pallas.1} parent=11 // pred_check
          %p316 = pneg %p120
        $region22: #{ts_encoder_pallas.1} parent=11 // pred_check_branch
          %318 = sbr.rel (%p316) target = $region24
        $region23: #{ts_encoder_pallas.1} parent=11 // pred_region
          _
        $region24: #{ts_encoder_pallas.1} parent=11 // pred_fallthru
          _
        // Predicated region
        $region25: #{ts_encoder_pallas.1} parent=11 // pred_check
          %p319 = pneg %p141
        $region26: #{ts_encoder_pallas.1} parent=11 // pred_check_branch
          %321 = sbr.rel (%p319) target = $region28
        $region27: #{ts_encoder_pallas.1} parent=11 // pred_region
          _
        $region28: #{ts_encoder_pallas.1} parent=11 // pred_fallthru
          _
        // Predicated region
        $region29: #{ts_encoder_pallas.1} parent=11 // pred_check
          %p322 = pneg %p162
        $region30: #{ts_encoder_pallas.1} parent=11 // pred_check_branch
          %324 = sbr.rel (%p322) target = $region32
        $region31: #{ts_encoder_pallas.1} parent=11 // pred_region
          _
        $region32: #{ts_encoder_pallas.1} parent=11 // pred_fallthru
          _
        // Predicated region
        $region33: #{ts_encoder_pallas.1} parent=11 // pred_check
          %p325 = pneg %p183
        $region34: #{ts_encoder_pallas.1} parent=11 // pred_check_branch
          %327 = sbr.rel (%p325) target = $region36
        $region35: #{ts_encoder_pallas.1} parent=11 // pred_region
          _
        $region36: #{ts_encoder_pallas.1} parent=11 // pred_fallthru
          _
        // Predicated region
        $region37: #{ts_encoder_pallas.1} parent=11 // pred_check
          %p328 = pneg %p204
        $region38: #{ts_encoder_pallas.1} parent=11 // pred_check_branch
          %330 = sbr.rel (%p328) target = $region40
        $region39: #{ts_encoder_pallas.1} parent=11 // pred_region
          _
        $region40: #{ts_encoder_pallas.1} parent=11 // pred_fallthru
          _
        // Predicated region
        $region41: #{ts_encoder_pallas.1} parent=11 // pred_check
          %p331 = pneg %p225
        $region42: #{ts_encoder_pallas.1} parent=11 // pred_check_branch
          %333 = sbr.rel (%p331) target = $region44
        $region43: #{ts_encoder_pallas.1} parent=11 // pred_region
          _
        $region44: #{ts_encoder_pallas.1} parent=11 // pred_fallthru
          _
        // Predicated region
        $region45: #{ts_encoder_pallas.1} parent=11 // pred_check
          %p334 = pneg %p246
        $region46: #{ts_encoder_pallas.1} parent=11 // pred_check_branch
          %336 = sbr.rel (%p334) target = $region48
        $region47: #{ts_encoder_pallas.1} parent=11 // pred_region
          _
        $region48: #{ts_encoder_pallas.1} parent=11 // pred_fallthru
          _
        // Predicated region
        $region49: #{ts_encoder_pallas.1} parent=11 // pred_check
          %p337 = pneg %p267
        $region50: #{ts_encoder_pallas.1} parent=11 // pred_check_branch
          %339 = sbr.rel (%p337) target = $region52
        $region51: #{ts_encoder_pallas.1} parent=11 // pred_region
          _
        $region52: #{ts_encoder_pallas.1} parent=11 // pred_fallthru
          _
      $region12: #{ts_encoder_pallas.1} parent=5 // pred_fallthru
        _
      %p340 = scmp.lt.s32.totalorder %s17, 2
      // Predicated region
      $region53: #{ts_encoder_pallas.1} parent=5 // pred_check
        %p341 = pneg %p340
      $region54: #{ts_encoder_pallas.1} parent=5 // pred_check_branch
        %343 = sbr.rel (%p341) target = $region56
      $region55: #{ts_encoder_pallas.1} parent=5 // pred_region
        // Predicated region
        $region57: #{ts_encoder_pallas.1} parent=55 // pred_check
          %p344 = pneg %p51
        $region58: #{ts_encoder_pallas.1} parent=55 // pred_check_branch
          %346 = sbr.rel (%p344) target = $region60
        $region59: #{ts_encoder_pallas.1} parent=55 // pred_region
          %s347 = sand.u32 %s41, 1
          %s348 = sand.u32 %s41, 1
          %s349 = smul.addr %s348, 64
          %s350 = scalar_lea.vmem [#allocation5], %s349
          %s351 = smul.u32 8, %s24
          %s352 = smul.addr %s351, 2
          %s353 = sadd.s32 %s25, %s352
          %s354 = smul.addr %s353, 8
          %s355 = scalar_lea.vmem %s0, %s354
          // Predicated region
          $region61: #{ts_encoder_pallas.1} parent=59 // pred_check
            _
          $region62: #{ts_encoder_pallas.1} parent=59 // pred_check_branch
            %357 = sbr.rel (0) target = $region64
          $region63: #{ts_encoder_pallas.1} parent=59 // pred_region
            // Predicated region
            $region65: #{ts_encoder_pallas.1} parent=63 // pred_check
              _
            $region66: #{ts_encoder_pallas.1} parent=63 // pred_check_branch
              %359 = sbr.rel (0) target = $region68
            $region67: #{ts_encoder_pallas.1} parent=63 // pred_region
              // Predicated region
              $region80: #{ts_encoder_pallas.1} parent=67 // pred_check
                _
              $region81: #{ts_encoder_pallas.1} parent=67 // pred_check_branch
                %388 = sbr.rel (0) target = $region83
              $region82: #{ts_encoder_pallas.1} parent=67 // pred_region
                loop: start=0, step=1, limit=1
                $region84: #{ts_encoder_pallas.1} parent=82 // loop_pre_header
                  _
                $region85: #{ts_encoder_pallas.1} parent=82 // loop_header
                  %s390 = sphi 0, %s394
                  %p391 = scmp.ge.s32.totalorder %s390, 1
                  %s395 = sphi %s355, %s355
                  %s396 = sphi %s350, %s350
                $region86: #{ts_encoder_pallas.1} parent=82 // loop_header_branch
                  %393 = sbr.rel (%p391) target = $region90
                $region87: #{ts_encoder_pallas.1} parent=82 // loop_body
                  %v397 = vld [vmem:[%s395] sm:$0xff]
                  %398 = vst [vmem:[%s396] sm:$0xff] %v397
                  %v399 = vld [vmem:[%s395 + $0x10] sm:$0xff]
                  %400 = vst [vmem:[%s396 + $0x8] sm:$0xff] %v399
                  %v401 = vld [vmem:[%s395 + $0x20] sm:$0xff]
                  %402 = vst [vmem:[%s396 + $0x10] sm:$0xff] %v401
                  %v403 = vld [vmem:[%s395 + $0x30] sm:$0xff]
                  %404 = vst [vmem:[%s396 + $0x18] sm:$0xff] %v403
                  %v405 = vld [vmem:[%s395 + $0x40] sm:$0xff]
                  %406 = vst [vmem:[%s396 + $0x20] sm:$0xff] %v405
                  %v407 = vld [vmem:[%s395 + $0x50] sm:$0xff]
                  %408 = vst [vmem:[%s396 + $0x28] sm:$0xff] %v407
                  %v409 = vld [vmem:[%s395 + $0x60] sm:$0xff]
                  %410 = vst [vmem:[%s396 + $0x30] sm:$0xff] %v409
                  %v411 = vld [vmem:[%s395 + $0x70] sm:$0xff]
                  %412 = vst [vmem:[%s396 + $0x38] sm:$0xff] %v411
                $region88: #{ts_encoder_pallas.1} parent=82 // loop_footer
                  %s394 = sadd.s32 1, %s390
                $region89: #{ts_encoder_pallas.1} parent=82 // loop_footer_branch
                  %389 = sbr.rel target = $region85
                $region90: #{ts_encoder_pallas.1} parent=82 // loop_exit
                  _
              $region83: #{ts_encoder_pallas.1} parent=67 // pred_fallthru
                _
              // Predicated region
              $region91: #{ts_encoder_pallas.1} parent=67 // pred_check
                _
              $region92: #{ts_encoder_pallas.1} parent=67 // pred_check_branch
                %414 = sbr.rel target = $region94
              $region93: #{ts_encoder_pallas.1} parent=67 // pred_region
                _
              $region94: #{ts_encoder_pallas.1} parent=67 // pred_fallthru
                _
            $region68: #{ts_encoder_pallas.1} parent=63 // pred_fallthru
              _
            // Predicated region
            $region69: #{ts_encoder_pallas.1} parent=63 // pred_check
              _
            $region70: #{ts_encoder_pallas.1} parent=63 // pred_check_branch
              %361 = sbr.rel target = $region72
            $region71: #{ts_encoder_pallas.1} parent=63 // pred_region
              loop: start=0, step=1, limit=1
              $region73: #{ts_encoder_pallas.1} parent=71 // loop_pre_header
                _
              $region74: #{ts_encoder_pallas.1} parent=71 // loop_header
                %s364 = sphi 0, %s368
                %p365 = scmp.ge.s32.totalorder %s364, 1
                %s369 = sphi %s355, %s355
                %s370 = sphi %s350, %s350
              $region75: #{ts_encoder_pallas.1} parent=71 // loop_header_branch
                %367 = sbr.rel (%p365) target = $region79
              $region76: #{ts_encoder_pallas.1} parent=71 // loop_body
                %v371 = vld [vmem:[%s369] sm:$0xff]
                %372 = vst [vmem:[%s370] sm:$0xff] %v371
                %v373 = vld [vmem:[%s369 + $0x10] sm:$0xff]
                %374 = vst [vmem:[%s370 + $0x8] sm:$0xff] %v373
                %v375 = vld [vmem:[%s369 + $0x20] sm:$0xff]
                %376 = vst [vmem:[%s370 + $0x10] sm:$0xff] %v375
                %v377 = vld [vmem:[%s369 + $0x30] sm:$0xff]
                %378 = vst [vmem:[%s370 + $0x18] sm:$0xff] %v377
                %v379 = vld [vmem:[%s369 + $0x40] sm:$0xff]
                %380 = vst [vmem:[%s370 + $0x20] sm:$0xff] %v379
                %v381 = vld [vmem:[%s369 + $0x50] sm:$0xff]
                %382 = vst [vmem:[%s370 + $0x28] sm:$0xff] %v381
                %v383 = vld [vmem:[%s369 + $0x60] sm:$0xff]
                %384 = vst [vmem:[%s370 + $0x30] sm:$0xff] %v383
                %v385 = vld [vmem:[%s369 + $0x70] sm:$0xff]
                %386 = vst [vmem:[%s370 + $0x38] sm:$0xff] %v385
              $region77: #{ts_encoder_pallas.1} parent=71 // loop_footer
                %s368 = sadd.s32 1, %s364
              $region78: #{ts_encoder_pallas.1} parent=71 // loop_footer_branch
                %363 = sbr.rel target = $region74
              $region79: #{ts_encoder_pallas.1} parent=71 // loop_exit
                _
            $region72: #{ts_encoder_pallas.1} parent=63 // pred_fallthru
              _
          $region64: #{ts_encoder_pallas.1} parent=59 // pred_fallthru
            _
          %415 = vnop
        $region60: #{ts_encoder_pallas.1} parent=55 // pred_fallthru
          _
      $region56: #{ts_encoder_pallas.1} parent=5 // pred_fallthru
        _
      %p416 = scmp.le.s32.totalorder 1, %s17
      %p417 = scmp.lt.s32.totalorder %s17, 3
      %p418 = pnand %p416, %p417
      %p419 = pneg %p418
      // Predicated region
      $region95: #{ts_encoder_pallas.1} parent=5 // pred_check
        _
      $region96: #{ts_encoder_pallas.1} parent=5 // pred_check_branch
        %421 = sbr.rel (%p418) target = $region98
      $region97: #{ts_encoder_pallas.1} parent=5 // pred_region
        %s422 = ssub.s32 %s17, 1
        %s423 = sand.u32 %s44, 1
        %s424 = sand.u32 %s44, 1
        %s425 = smul.addr %s424, 64
        %s426 = scalar_lea.vmem [#allocation5], %s425
        // Predicated region
        $region99: #{ts_encoder_pallas.1} parent=97 // pred_check
          %p427 = pneg %p57
        $region100: #{ts_encoder_pallas.1} parent=97 // pred_check_branch
          %429 = sbr.rel (%p427) target = $region102
        $region101: #{ts_encoder_pallas.1} parent=97 // pred_region
          _
        $region102: #{ts_encoder_pallas.1} parent=97 // pred_fallthru
          _
        %s430 = sand.u32 %s44, 1
        %s431 = sand.u32 %s44, 1
        %s432 = smul.addr %s431, 64
        %s433 = scalar_lea.vmem [#allocation5], %s432
        %p434 = pneg %p57
        %p435 = pneg %p54
        %p436 = pneg %p78
        %p437 = pneg %p75
        %p438 = pneg %p99
        %p439 = pneg %p96
        %p440 = pneg %p120
        %p441 = pneg %p117
        %p442 = pneg %p141
        %p443 = pneg %p138
        %p444 = pneg %p162
        %p445 = pneg %p159
        %p446 = pneg %p183
        %p447 = pneg %p180
        %p448 = pneg %p204
        %p449 = pneg %p201
        %p450 = pneg %p225
        %p451 = pneg %p222
        %p452 = pneg %p246
        %p453 = pneg %p243
        %p454 = pneg %p267
        %p455 = pneg %p264
        %p456 = pneg %p295
        %p457 = pneg %p292
        %s458 = smul.u32 2, %s27
        %p459 = scmp.lt.s32.totalorder %s26, 0
        %s460 = scalar_select %p459, %s26, 0
        %p461 = scmp.lt.s32.totalorder %s458, 3
        %s462 = scalar_select %p461, %s458, 3
        %s463 = smul.addr %s460, 4
        %s464 = sadd.s32 %s462, %s463
        %s465 = smul.addr %s464, 8
        %s466 = scalar_lea.vmem %s11, %s465
        %s467 = smul.u32 8, %s26
        %s468 = smul.u32 2, %s27
        %p469 = scmp.lt.s32.totalorder %s26, 0
        %s470 = scalar_select %p469, %s26, 0
        %p471 = scmp.lt.s32.totalorder %s468, 3
        %s472 = scalar_select %p471, %s468, 3
        %s473 = smul.addr %s470, 4
        %s474 = sadd.s32 %s472, %s473
        %s475 = smul.addr %s474, 8
        %s476 = scalar_lea.vmem %s11, %s475
        %s477 = smul.u32 2, %s27
        %p478 = scmp.eq.s32.totalorder %s27, 0
        // Predicated region
        $region103: #{ts_encoder_pallas.1} parent=97 // pred_check
          %p479 = pneg %p478
        $region104: #{ts_encoder_pallas.1} parent=97 // pred_check_branch
          %481 = sbr.rel (%p479) target = $region106
        $region105: #{ts_encoder_pallas.1} parent=97 // pred_region
          %vm482 = vcmask 261120
          %483 = vst.msk [vmem:[#allocation2] sm:$0xff] %vm482, 0.0
          %484 = vst.msk [vmem:[#allocation3] sm:$0xff] %vm482, 0.0
          %485 = vst.msk [vmem:[#allocation4] sm:$0xff] %vm482, 0.0
        $region106: #{ts_encoder_pallas.1} parent=97 // pred_fallthru
          _
        %v486 = vld [vmem:[%s1] sm:$0xff]
        %v487 = vld [vmem:[%s1 + $0x8] sm:$0xff]
        %v488 = vld [vmem:[%s1 + $0x10] sm:$0xf]
        %v489 = vld [vmem:[%s2] sm:$0x1]
        %v490 = vld [vmem:[%s3] sm:$0xff]
        %v491 = vld [vmem:[%s3 + $0x8] sm:$0x3]
        %s492 = scalar_lea.vmem %s3, 16
        %v493 = vld [vmem:[%s492] sm:$0xff]
        %v494 = vld [vmem:[%s492 + $0x8] sm:$0x3]
        %v495 = vld [vmem:[%s4] sm:$0x1]
        %s496 = scalar_lea.vmem %s4, 1
        %v497 = vld [vmem:[%s496] sm:$0x1]
        %v498 = vld [vmem:[%s5] sm:$0xff]
        %v499 = vld [vmem:[%s5 + $0x8] sm:$0xff]
        %v500 = vld [vmem:[%s5 + $0x10] sm:$0xff]
        %v501 = vld [vmem:[%s5 + $0x18] sm:$0xff]
        %s502 = scalar_lea.vmem %s5, 32
        %v503 = vld [vmem:[%s502] sm:$0xff]
        %v504 = vld [vmem:[%s502 + $0x8] sm:$0xff]
        %v505 = vld [vmem:[%s502 + $0x10] sm:$0xff]
        %v506 = vld [vmem:[%s502 + $0x18] sm:$0xff]
        %s507 = scalar_lea.vmem %s5, 64
        %v508 = vld [vmem:[%s507] sm:$0xff]
        %v509 = vld [vmem:[%s507 + $0x8] sm:$0xff]
        %v510 = vld [vmem:[%s507 + $0x10] sm:$0xff]
        %v511 = vld [vmem:[%s507 + $0x18] sm:$0xff]
        %v512 = vld [vmem:[%s6] sm:$0x1]
        %s513 = scalar_lea.vmem %s6, 1
        %v514 = vld [vmem:[%s513] sm:$0x1]
        %s515 = scalar_lea.vmem %s6, 2
        %v516 = vld [vmem:[%s515] sm:$0x1]
        %v517 = vld [vmem:[%s7] sm:$0xff]
        %v518 = vld [vmem:[%s7 + $0x8] sm:$0xff]
        %v519 = vld [vmem:[%s7 + $0x10] sm:$0xff]
        %v520 = vld [vmem:[%s7 + $0x18] sm:$0xff]
        %v521 = vld [vmem:[%s7 + $0x20] sm:$0xff]
        %v522 = vld [vmem:[%s7 + $0x28] sm:$0xff]
        %v523 = vld [vmem:[%s7 + $0x30] sm:$0xff]
        %v524 = vld [vmem:[%s7 + $0x38] sm:$0xff]
        %v525 = vld [vmem:[%s8] sm:$0x1]
        %v526 = vld [vmem:[%s9] sm:$0xff]
        %v527 = vld [vmem:[%s9 + $0x8] sm:$0xff]
        %v528 = vld [vmem:[%s9 + $0x10] sm:$0xf]
        %v529 = vld [vmem:[%s10] sm:$0x1]
        %v530 = vld [vmem:[%s426] sm:$0x1]
        %v531 = vld [vmem:[%s426 + $0x8] sm:$0x1]
        %v532 = vld [vmem:[%s426 + $0x10] sm:$0x1]
        %v533 = vld [vmem:[%s426 + $0x18] sm:$0x1]
        %v534 = vld [vmem:[%s426 + $0x20] sm:$0x1]
        %v535 = vld [vmem:[%s426 + $0x28] sm:$0x1]
        %v536 = vld [vmem:[%s426 + $0x30] sm:$0x1]
        %v537 = vld [vmem:[%s426 + $0x38] sm:$0x1]
        %v538 = vsub.f32 1.0, %v530
        %v539 = vsub.f32 1.0, %v531
        %v540 = vsub.f32 1.0, %v532
        %v541 = vsub.f32 1.0, %v533
        %v542 = vsub.f32 1.0, %v534
        %v543 = vsub.f32 1.0, %v535
        %v544 = vsub.f32 1.0, %v536
        %v545 = vsub.f32 1.0, %v537
        %v546 = vmax.f32 %v538, 0.0
        %v547 = vmax.f32 %v539, 0.0
        %v548 = vmax.f32 %v540, 0.0
        %v549 = vmax.f32 %v541, 0.0
        %v550 = vmax.f32 %v542, 0.0
        %v551 = vmax.f32 %v543, 0.0
        %v552 = vmax.f32 %v544, 0.0
        %v553 = vmax.f32 %v545, 0.0
        %562 = vrot.lane.b32.xlu0 %v546, 118
        %v563 = vpop.permute.xlu0 %562
        %564 = vrot.lane.b32.xlu0 %v547, 118
        %v565 = vpop.permute.xlu0 %564
        %566 = vrot.lane.b32.xlu0 %v548, 118
        %v567 = vpop.permute.xlu0 %566
        %568 = vrot.lane.b32.xlu0 %v549, 118
        %v569 = vpop.permute.xlu0 %568
        %570 = vrot.lane.b32.xlu0 %v550, 118
        %v571 = vpop.permute.xlu0 %570
        %572 = vrot.lane.b32.xlu0 %v551, 118
        %v573 = vpop.permute.xlu0 %572
        %574 = vrot.lane.b32.xlu0 %v552, 118
        %v575 = vpop.permute.xlu0 %574
        %576 = vrot.lane.b32.xlu0 %v553, 118
        %v577 = vpop.permute.xlu0 %576
        %v586 = vmul.f32 %v530, %v563
        %v587 = vmul.f32 %v531, %v565
        %v588 = vmul.f32 %v532, %v567
        %v589 = vmul.f32 %v533, %v569
        %v590 = vmul.f32 %v534, %v571
        %v591 = vmul.f32 %v535, %v573
        %v592 = vmul.f32 %v536, %v575
        %v593 = vmul.f32 %v537, %v577
        %v602 = vrot.slane %v539, 7
        %vm603 = vcmask 1041409
        %v604 = vsel %vm603, %v602, %v538
        %v605 = vrot.slane %v540, 6
        %vm606 = vcmask 1042434
        %v607 = vsel %vm606, %v605, %v604
        %v608 = vrot.slane %v541, 5
        %vm609 = vcmask 1043459
        %v610 = vsel %vm609, %v608, %v607
        %v611 = vrot.slane %v542, 4
        %vm612 = vcmask 1044484
        %v613 = vsel %vm612, %v611, %v610
        %v614 = vrot.slane %v543, 3
        %vm615 = vcmask 1045509
        %v616 = vsel %vm615, %v614, %v613
        %v617 = vrot.slane %v544, 2
        %vm618 = vcmask 1046534
        %v619 = vsel %vm618, %v617, %v616
        %v620 = vrot.slane %v545, 1
        %vm621 = vcmask 1047559
        %v622 = vsel %vm621, %v620, %v619
        %623 = vrot.lane.b32.xlu0 %v622, 118
        %v624 = vpop.permute.xlu0 %623
        %v634 = vrot.slane %v587, 7
        %v635 = vsel %vm603, %v634, %v586
        %v636 = vrot.slane %v588, 6
        %v637 = vsel %vm606, %v636, %v635
        %v638 = vrot.slane %v589, 5
        %v639 = vsel %vm609, %v638, %v637
        %v640 = vrot.slane %v590, 4
        %v641 = vsel %vm612, %v640, %v639
        %v642 = vrot.slane %v591, 3
        %v643 = vsel %vm615, %v642, %v641
        %v644 = vrot.slane %v592, 2
        %v645 = vsel %vm618, %v644, %v643
        %v646 = vrot.slane %v593, 1
        %v647 = vsel %vm621, %v646, %v645
        %648 = vrot.lane.b32.xlu0 %v647, 10
        %v649 = vpop.permute.xlu0 %648
        %vm651 = vcmask 80896
        %v652 = vsel %vm651, %v624, %v649
        %v654 = vlaneseq
        %v655 = vshrl.u32 %v654, 7
        %v656 = vsub.s32 0, %v655
        %v657 = vrot.slane %v489, %v656
        %vm659 = vcmask 162816
        %v661 = vsel %vm659, %v652, 0
        %vm663 = vcmask 1043456
        %v665 = vsel %vm663, %v488, 0
        %667 = vmatprep.subr.mxu0 0.0
        %668 = vmatpush1.msra.mxu0 %v486
        %669 = vmatprep.subr.mxu0 0.0
        %670 = vmatpush1.msra.mxu0 %v487
        %671 = vmatprep.subr.mxu0 0.0
        %672 = vmatpush1.msra.mxu0 %v665
        %673 = vmatprep.subr.mxu0 0.0
        %674 = vmatpush1.msra.mxu0 0.0
        %675 = vmatprep.subr.mxu0 0.0
        %676 = vmatpush1.msra.mxu0 0.0
        %677 = vmatprep.subr.mxu0 0.0
        %678 = vmatpush1.msra.mxu0 0.0
        %679 = vmatprep.subr.mxu0 0.0
        %680 = vmatpush1.msra.mxu0 0.0
        %681 = vmatprep.subr.mxu0 0.0
        %682 = vmatpush1.msra.mxu0 0.0
        %683 = vmatprep.subr.mxu0 0.0
        %684 = vmatpush1.msra.mxu0 0.0
        %685 = vmatprep.subr.mxu0 0.0
        %686 = vmatpush1.msra.mxu0 0.0
        %687 = vmatprep.subr.mxu0 0.0
        %688 = vmatpush1.msra.mxu0 0.0
        %689 = vmatprep.subr.mxu0 0.0
        %690 = vmatpush1.msra.mxu0 0.0
        %691 = vmatprep.subr.mxu0 0.0
        %692 = vmatpush1.msra.mxu0 0.0
        %693 = vmatprep.subr.mxu0 0.0
        %694 = vmatpush1.msra.mxu0 0.0
        %695 = vmatprep.subr.mxu0 0.0
        %696 = vmatpush1.msra.mxu0 0.0
        %697 = vmatprep.subr.mxu0 0.0
        %698 = vmatpush1.msra.mxu0 0.0
        %699 = vmatprep.subr.mxu0 0.0
        %700 = vmatpush1.msra.mxu0 0.0
        %701 = vmatprep.subr.mxu0 0.0
        %702 = vmatpush1.msra.mxu0 0.0
        %703 = vmatprep.subr.mxu0 0.0
        %704 = vmatpush1.msra.mxu0 0.0
        %705 = vmatprep.subr.mxu0 0.0
        %706 = vmatpush1.msra.mxu0 0.0
        %707 = vmatprep.subr.mxu0 0.0
        %708 = vmatpush1.msra.mxu0 0.0
        %709 = vmatprep.subr.mxu0 0.0
        %710 = vmatpush1.msra.mxu0 0.0
        %711 = vmatprep.subr.mxu0 0.0
        %712 = vmatpush1.msra.mxu0 0.0
        %713 = vmatprep.subr.mxu0 0.0
        %714 = vmatpush1.msra.mxu0 0.0
        %715 = vmatprep.subr.mxu0 0.0
        %716 = vmatpush1.msra.mxu0 0.0
        %717 = vmatprep.subr.mxu0 0.0
        %718 = vmatpush1.msra.mxu0 0.0
        %719 = vmatprep.subr.mxu0 0.0
        %720 = vmatpush1.msra.mxu0 0.0
        %721 = vmatprep.subr.mxu0 0.0
        %722 = vmatpush1.msra.mxu0 0.0
        %723 = vmatprep.subr.mxu0 0.0
        %724 = vmatpush1.msra.mxu0 0.0
        %725 = vmatprep.subr.mxu0 0.0
        %726 = vmatpush1.msra.mxu0 0.0
        %727 = vmatprep.subr.mxu0 0.0
        %728 = vmatpush1.msra.mxu0 0.0
        %729 = vmatprep.subr.mxu0 0.0
        %730 = vmatpush1.msra.mxu0 0.0
        %731 = vmatprep.mubr.f32.mxu0 0.0
        %732 = vmatmul.mubr.f32.gmra.mrb[0].mxu0 %v661
        %v733 = vpop.f32.mrb[0].mxu0
        %v734 = vadd.f32 %v657, %v733
        %v735 = vpop.f32.mrb[0].mxu0
        %736 = vdwg.mxu0
        %v737 = vxor.u32 %v734, 2147483648
        %v738 = vmul.f32 %v737, 1.442695
        %v739 = vpow.pop %v738
        %v740 = vadd.f32 %v739, 1.0
        %v741 = vrcp.pop %v740
        %v742 = vmul.f32 1.0, %v741
        %v743 = vld [vmem:[#allocation3] sm:$0xff]
        %745 = vset.pattern.permute.xlu0 20
        %746 = vperm.xlu0 %745, %v530
        %v747 = vpop.permute.xlu0 %746
        %749 = vset.pattern.permute.xlu0 20
        %750 = vperm.xlu0 %749, %v531
        %v751 = vpop.permute.xlu0 %750
        %753 = vset.pattern.permute.xlu0 20
        %754 = vperm.xlu0 %753, %v532
        %v755 = vpop.permute.xlu0 %754
        %757 = vset.pattern.permute.xlu0 20
        %758 = vperm.xlu0 %757, %v533
        %v759 = vpop.permute.xlu0 %758
        %761 = vset.pattern.permute.xlu0 20
        %762 = vperm.xlu0 %761, %v534
        %v763 = vpop.permute.xlu0 %762
        %765 = vset.pattern.permute.xlu0 20
        %766 = vperm.xlu0 %765, %v535
        %v767 = vpop.permute.xlu0 %766
        %769 = vset.pattern.permute.xlu0 20
        %770 = vperm.xlu0 %769, %v536
        %v771 = vpop.permute.xlu0 %770
        %773 = vset.pattern.permute.xlu0 20
        %774 = vperm.xlu0 %773, %v537
        %v775 = vpop.permute.xlu0 %774
        %v776 = vrot.slane %v751, 7
        %v777 = vsel %vm603, %v776, %v747
        %v778 = vrot.slane %v755, 6
        %v779 = vsel %vm606, %v778, %v777
        %v780 = vrot.slane %v759, 5
        %v781 = vsel %vm609, %v780, %v779
        %v782 = vrot.slane %v763, 4
        %v783 = vsel %vm612, %v782, %v781
        %v784 = vrot.slane %v767, 3
        %v785 = vsel %vm615, %v784, %v783
        %v786 = vrot.slane %v771, 2
        %v787 = vsel %vm618, %v786, %v785
        %v788 = vrot.slane %v775, 1
        %v789 = vsel %vm621, %v788, %v787
        %v791 = vmul.f32 %v743, %v789
        %vm792 = vcmask 261120
        %v794 = vsel %vm792, %v791, 0
        %796 = vmatprep.subr.mxu0 0.0
        %797 = vmatpush1.msra.mxu0 %v498
        %798 = vmatprep.subr.mxu0 0.0
        %799 = vmatpush1.msra.mxu0 %v499
        %800 = vmatprep.subr.mxu0 0.0
        %801 = vmatpush1.msra.mxu0 %v500
        %802 = vmatprep.subr.mxu0 0.0
        %803 = vmatpush1.msra.mxu0 %v501
        %804 = vmatprep.subr.mxu0 0.0
        %805 = vmatpush1.msra.mxu0 0.0
        %806 = vmatprep.subr.mxu0 0.0
        %807 = vmatpush1.msra.mxu0 0.0
        %808 = vmatprep.subr.mxu0 0.0
        %809 = vmatpush1.msra.mxu0 0.0
        %810 = vmatprep.subr.mxu0 0.0
        %811 = vmatpush1.msra.mxu0 0.0
        %812 = vmatprep.subr.mxu0 0.0
        %813 = vmatpush1.msra.mxu0 0.0
        %814 = vmatprep.subr.mxu0 0.0
        %815 = vmatpush1.msra.mxu0 0.0
        %816 = vmatprep.subr.mxu0 0.0
        %817 = vmatpush1.msra.mxu0 0.0
        %818 = vmatprep.subr.mxu0 0.0
        %819 = vmatpush1.msra.mxu0 0.0
        %820 = vmatprep.subr.mxu0 0.0
        %821 = vmatpush1.msra.mxu0 0.0
        %822 = vmatprep.subr.mxu0 0.0
        %823 = vmatpush1.msra.mxu0 0.0
        %824 = vmatprep.subr.mxu0 0.0
        %825 = vmatpush1.msra.mxu0 0.0
        %826 = vmatprep.subr.mxu0 0.0
        %827 = vmatpush1.msra.mxu0 0.0
        %828 = vmatprep.subr.mxu0 0.0
        %829 = vmatpush1.msra.mxu0 0.0
        %830 = vmatprep.subr.mxu0 0.0
        %831 = vmatpush1.msra.mxu0 0.0
        %832 = vmatprep.subr.mxu0 0.0
        %833 = vmatpush1.msra.mxu0 0.0
        %834 = vmatprep.subr.mxu0 0.0
        %835 = vmatpush1.msra.mxu0 0.0
        %836 = vmatprep.subr.mxu0 0.0
        %837 = vmatpush1.msra.mxu0 0.0
        %838 = vmatprep.subr.mxu0 0.0
        %839 = vmatpush1.msra.mxu0 0.0
        %840 = vmatprep.subr.mxu0 0.0
        %841 = vmatpush1.msra.mxu0 0.0
        %842 = vmatprep.subr.mxu0 0.0
        %843 = vmatpush1.msra.mxu0 0.0
        %844 = vmatprep.subr.mxu0 0.0
        %845 = vmatpush1.msra.mxu0 0.0
        %846 = vmatprep.subr.mxu0 0.0
        %847 = vmatpush1.msra.mxu0 0.0
        %848 = vmatprep.subr.mxu0 0.0
        %849 = vmatpush1.msra.mxu0 0.0
        %850 = vmatprep.subr.mxu0 0.0
        %851 = vmatpush1.msra.mxu0 0.0
        %852 = vmatprep.subr.mxu0 0.0
        %853 = vmatpush1.msra.mxu0 0.0
        %854 = vmatprep.subr.mxu0 0.0
        %855 = vmatpush1.msra.mxu0 0.0
        %856 = vmatprep.subr.mxu0 0.0
        %857 = vmatpush1.msra.mxu0 0.0
        %858 = vmatprep.subr.mxu0 0.0
        %859 = vmatpush1.msra.mxu0 0.0
        %860 = vmatprep.mubr.f32.mxu0 0.0
        %861 = vmatmul.mubr.f32.gmra.mrb[0].mxu0 %v794
        %v862 = vpop.f32.mrb[0].mxu0
        %v863 = vadd.f32 0.0, %v862
        %v864 = vpop.f32.mrb[0].mxu0
        %865 = vdwg.mxu0
        %867 = vrot.lane.b32.xlu0 %v863, 10
        %v868 = vpop.permute.xlu0 %867
        %v870 = vadd.f32 %v734, %v868
        %v871 = vxor.u32 %v870, 2147483648
        %v872 = vmul.f32 %v871, 1.442695
        %v873 = vpow.pop %v872
        %v874 = vadd.f32 %v873, 1.0
        %v875 = vrcp.pop %v874
        %v876 = vmul.f32 1.0, %v875
        %v878 = vlaneseq
        %v879 = vshrl.u32 %v878, 7
        %v880 = vsub.s32 0, %v879
        %v881 = vrot.slane %v512, %v880
        %882 = vrot.lane.b32.xlu0 %v881, 64
        %v883 = vpop.permute.xlu0 %882
        %v885 = vadd.f32 %v863, %v883
        %887 = vrot.lane.b32.xlu0 %v885, 74
        %v888 = vpop.permute.xlu0 %887
        %v890 = vmul.f32 %v876, %v888
        %892 = vrot.lane.b32.xlu0 %v890, 64
        %v893 = vpop.permute.xlu0 %892
        %v895 = vadd.f32 %v734, %v893
        %v896 = vtanh.pop %v895
        %v897 = vsub.f32 1.0, %v876
        %899 = vrot.lane.b32.xlu0 %v896, 96
        %v900 = vpop.permute.xlu0 %899
        %v902 = vmul.f32 %v897, %v900
        %903 = vrot.lane.b32.xlu0 %v791, 42
        %v904 = vpop.permute.xlu0 %903
        %v906 = vmul.f32 %v876, %v904
        %v907 = vadd.f32 %v902, %v906
        %v909 = vlaneseq
        %v910 = vshrl.u32 %v909, 7
        %v911 = vsub.s32 0, %v910
        %v912 = vrot.slane %v495, %v911
        %v915 = vsel %vm651, %v742, 0
        %vm917 = vcmask 1041408
        %v919 = vsel %vm917, %v491, 0
        %921 = vmatprep.subr.mxu0 0.0
        %922 = vmatpush1.msra.mxu0 %v490
        %923 = vmatprep.subr.mxu0 0.0
        %924 = vmatpush1.msra.mxu0 %v919
        %925 = vmatprep.subr.mxu0 0.0
        %926 = vmatpush1.msra.mxu0 0.0
        %927 = vmatprep.subr.mxu0 0.0
        %928 = vmatpush1.msra.mxu0 0.0
        %929 = vmatprep.subr.mxu0 0.0
        %930 = vmatpush1.msra.mxu0 0.0
        %931 = vmatprep.subr.mxu0 0.0
        %932 = vmatpush1.msra.mxu0 0.0
        %933 = vmatprep.subr.mxu0 0.0
        %934 = vmatpush1.msra.mxu0 0.0
        %935 = vmatprep.subr.mxu0 0.0
        %936 = vmatpush1.msra.mxu0 0.0
        %937 = vmatprep.subr.mxu0 0.0
        %938 = vmatpush1.msra.mxu0 0.0
        %939 = vmatprep.subr.mxu0 0.0
        %940 = vmatpush1.msra.mxu0 0.0
        %941 = vmatprep.subr.mxu0 0.0
        %942 = vmatpush1.msra.mxu0 0.0
        %943 = vmatprep.subr.mxu0 0.0
        %944 = vmatpush1.msra.mxu0 0.0
        %945 = vmatprep.subr.mxu0 0.0
        %946 = vmatpush1.msra.mxu0 0.0
        %947 = vmatprep.subr.mxu0 0.0
        %948 = vmatpush1.msra.mxu0 0.0
        %949 = vmatprep.subr.mxu0 0.0
        %950 = vmatpush1.msra.mxu0 0.0
        %951 = vmatprep.subr.mxu0 0.0
        %952 = vmatpush1.msra.mxu0 0.0
        %953 = vmatprep.subr.mxu0 0.0
        %954 = vmatpush1.msra.mxu0 0.0
        %955 = vmatprep.subr.mxu0 0.0
        %956 = vmatpush1.msra.mxu0 0.0
        %957 = vmatprep.subr.mxu0 0.0
        %958 = vmatpush1.msra.mxu0 0.0
        %959 = vmatprep.subr.mxu0 0.0
        %960 = vmatpush1.msra.mxu0 0.0
        %961 = vmatprep.subr.mxu0 0.0
        %962 = vmatpush1.msra.mxu0 0.0
        %963 = vmatprep.subr.mxu0 0.0
        %964 = vmatpush1.msra.mxu0 0.0
        %965 = vmatprep.subr.mxu0 0.0
        %966 = vmatpush1.msra.mxu0 0.0
        %967 = vmatprep.subr.mxu0 0.0
        %968 = vmatpush1.msra.mxu0 0.0
        %969 = vmatprep.subr.mxu0 0.0
        %970 = vmatpush1.msra.mxu0 0.0
        %971 = vmatprep.subr.mxu0 0.0
        %972 = vmatpush1.msra.mxu0 0.0
        %973 = vmatprep.subr.mxu0 0.0
        %974 = vmatpush1.msra.mxu0 0.0
        %975 = vmatprep.subr.mxu0 0.0
        %976 = vmatpush1.msra.mxu0 0.0
        %977 = vmatprep.subr.mxu0 0.0
        %978 = vmatpush1.msra.mxu0 0.0
        %979 = vmatprep.subr.mxu0 0.0
        %980 = vmatpush1.msra.mxu0 0.0
        %981 = vmatprep.subr.mxu0 0.0
        %982 = vmatpush1.msra.mxu0 0.0
        %983 = vmatprep.subr.mxu0 0.0
        %984 = vmatpush1.msra.mxu0 0.0
        %985 = vmatprep.mubr.f32.mxu0 0.0
        %986 = vmatmul.mubr.f32.gmra.mrb[0].mxu0 %v915
        %v987 = vpop.f32.mrb[0].mxu0
        %v988 = vadd.f32 %v912, %v987
        %v989 = vpop.f32.mrb[0].mxu0
        %990 = vdwg.mxu0
        %v991 = vld [vmem:[#allocation4] sm:$0xff]
        %v992 = vmul.f32 %v991, %v789
        %v994 = vsel %vm792, %v992, 0
        %996 = vmatprep.subr.mxu0 0.0
        %997 = vmatpush1.msra.mxu0 %v503
        %998 = vmatprep.subr.mxu0 0.0
        %999 = vmatpush1.msra.mxu0 %v504
        %1000 = vmatprep.subr.mxu0 0.0
        %1001 = vmatpush1.msra.mxu0 %v505
        %1002 = vmatprep.subr.mxu0 0.0
        %1003 = vmatpush1.msra.mxu0 %v506
        %1004 = vmatprep.subr.mxu0 0.0
        %1005 = vmatpush1.msra.mxu0 0.0
        %1006 = vmatprep.subr.mxu0 0.0
        %1007 = vmatpush1.msra.mxu0 0.0
        %1008 = vmatprep.subr.mxu0 0.0
        %1009 = vmatpush1.msra.mxu0 0.0
        %1010 = vmatprep.subr.mxu0 0.0
        %1011 = vmatpush1.msra.mxu0 0.0
        %1012 = vmatprep.subr.mxu0 0.0
        %1013 = vmatpush1.msra.mxu0 0.0
        %1014 = vmatprep.subr.mxu0 0.0
        %1015 = vmatpush1.msra.mxu0 0.0
        %1016 = vmatprep.subr.mxu0 0.0
        %1017 = vmatpush1.msra.mxu0 0.0
        %1018 = vmatprep.subr.mxu0 0.0
        %1019 = vmatpush1.msra.mxu0 0.0
        %1020 = vmatprep.subr.mxu0 0.0
        %1021 = vmatpush1.msra.mxu0 0.0
        %1022 = vmatprep.subr.mxu0 0.0
        %1023 = vmatpush1.msra.mxu0 0.0
        %1024 = vmatprep.subr.mxu0 0.0
        %1025 = vmatpush1.msra.mxu0 0.0
        %1026 = vmatprep.subr.mxu0 0.0
        %1027 = vmatpush1.msra.mxu0 0.0
        %1028 = vmatprep.subr.mxu0 0.0
        %1029 = vmatpush1.msra.mxu0 0.0
        %1030 = vmatprep.subr.mxu0 0.0
        %1031 = vmatpush1.msra.mxu0 0.0
        %1032 = vmatprep.subr.mxu0 0.0
        %1033 = vmatpush1.msra.mxu0 0.0
        %1034 = vmatprep.subr.mxu0 0.0
        %1035 = vmatpush1.msra.mxu0 0.0
        %1036 = vmatprep.subr.mxu0 0.0
        %1037 = vmatpush1.msra.mxu0 0.0
        %1038 = vmatprep.subr.mxu0 0.0
        %1039 = vmatpush1.msra.mxu0 0.0
        %1040 = vmatprep.subr.mxu0 0.0
        %1041 = vmatpush1.msra.mxu0 0.0
        %1042 = vmatprep.subr.mxu0 0.0
        %1043 = vmatpush1.msra.mxu0 0.0
        %1044 = vmatprep.subr.mxu0 0.0
        %1045 = vmatpush1.msra.mxu0 0.0
        %1046 = vmatprep.subr.mxu0 0.0
        %1047 = vmatpush1.msra.mxu0 0.0
        %1048 = vmatprep.subr.mxu0 0.0
        %1049 = vmatpush1.msra.mxu0 0.0
        %1050 = vmatprep.subr.mxu0 0.0
        %1051 = vmatpush1.msra.mxu0 0.0
        %1052 = vmatprep.subr.mxu0 0.0
        %1053 = vmatpush1.msra.mxu0 0.0
        %1054 = vmatprep.subr.mxu0 0.0
        %1055 = vmatpush1.msra.mxu0 0.0
        %1056 = vmatprep.subr.mxu0 0.0
        %1057 = vmatpush1.msra.mxu0 0.0
        %1058 = vmatprep.subr.mxu0 0.0
        %1059 = vmatpush1.msra.mxu0 0.0
        %1060 = vmatprep.mubr.f32.mxu0 0.0
        %1061 = vmatmul.mubr.f32.gmra.mrb[0].mxu0 %v994
        %v1062 = vpop.f32.mrb[0].mxu0
        %v1063 = vadd.f32 0.0, %v1062
        %v1064 = vpop.f32.mrb[0].mxu0
        %1065 = vdwg.mxu0
        %v1066 = vadd.f32 %v988, %v1063
        %v1067 = vxor.u32 %v1066, 2147483648
        %v1068 = vmul.f32 %v1067, 1.442695
        %v1069 = vpow.pop %v1068
        %v1070 = vadd.f32 %v1069, 1.0
        %v1071 = vrcp.pop %v1070
        %v1072 = vmul.f32 1.0, %v1071
        %v1074 = vlaneseq
        %v1075 = vshrl.u32 %v1074, 7
        %v1076 = vsub.s32 0, %v1075
        %v1077 = vrot.slane %v514, %v1076
        %1078 = vrot.lane.b32.xlu0 %v1077, 64
        %v1079 = vpop.permute.xlu0 %1078
        %v1081 = vadd.f32 %v1063, %v1079
        %1083 = vrot.lane.b32.xlu0 %v1081, 64
        %v1084 = vpop.permute.xlu0 %1083
        %v1086 = vmul.f32 %v1072, %v1084
        %1088 = vrot.lane.b32.xlu0 %v1086, 64
        %v1089 = vpop.permute.xlu0 %1088
        %v1091 = vadd.f32 %v988, %v1089
        %v1092 = vtanh.pop %v1091
        %v1093 = vsub.f32 1.0, %v1072
        %1095 = vrot.lane.b32.xlu0 %v1092, 96
        %v1096 = vpop.permute.xlu0 %1095
        %v1098 = vmul.f32 %v1093, %v1096
        %1099 = vrot.lane.b32.xlu0 %v992, 32
        %v1100 = vpop.permute.xlu0 %1099
        %v1102 = vmul.f32 %v1072, %v1100
        %v1103 = vadd.f32 %v1098, %v1102
        %1105 = vrot.lane.b32.xlu0 %v907, 86
        %v1106 = vpop.permute.xlu0 %1105
        %v1108 = vsel %vm792, %v1106, %v1103
        %v1110 = vlaneseq
        %v1111 = vshrl.u32 %v1110, 7
        %v1112 = vsub.s32 0, %v1111
        %v1113 = vrot.slane %v525, %v1112
        %vm1115 = vcmask 523264
        %v1117 = vsel %vm1115, %v1108, 0
        %1119 = vmatprep.subr.mxu0 0.0
        %1120 = vmatpush1.msra.mxu0 %v517
        %1121 = vmatprep.subr.mxu0 0.0
        %1122 = vmatpush1.msra.mxu0 %v518
        %1123 = vmatprep.subr.mxu0 0.0
        %1124 = vmatpush1.msra.mxu0 %v519
        %1125 = vmatprep.subr.mxu0 0.0
        %1126 = vmatpush1.msra.mxu0 %v520
        %1127 = vmatprep.subr.mxu0 0.0
        %1128 = vmatpush1.msra.mxu0 %v521
        %1129 = vmatprep.subr.mxu0 0.0
        %1130 = vmatpush1.msra.mxu0 %v522
        %1131 = vmatprep.subr.mxu0 0.0
        %1132 = vmatpush1.msra.mxu0 %v523
        %1133 = vmatprep.subr.mxu0 0.0
        %1134 = vmatpush1.msra.mxu0 %v524
        %1135 = vmatprep.subr.mxu0 0.0
        %1136 = vmatpush1.msra.mxu0 0.0
        %1137 = vmatprep.subr.mxu0 0.0
        %1138 = vmatpush1.msra.mxu0 0.0
        %1139 = vmatprep.subr.mxu0 0.0
        %1140 = vmatpush1.msra.mxu0 0.0
        %1141 = vmatprep.subr.mxu0 0.0
        %1142 = vmatpush1.msra.mxu0 0.0
        %1143 = vmatprep.subr.mxu0 0.0
        %1144 = vmatpush1.msra.mxu0 0.0
        %1145 = vmatprep.subr.mxu0 0.0
        %1146 = vmatpush1.msra.mxu0 0.0
        %1147 = vmatprep.subr.mxu0 0.0
        %1148 = vmatpush1.msra.mxu0 0.0
        %1149 = vmatprep.subr.mxu0 0.0
        %1150 = vmatpush1.msra.mxu0 0.0
        %1151 = vmatprep.subr.mxu0 0.0
        %1152 = vmatpush1.msra.mxu0 0.0
        %1153 = vmatprep.subr.mxu0 0.0
        %1154 = vmatpush1.msra.mxu0 0.0
        %1155 = vmatprep.subr.mxu0 0.0
        %1156 = vmatpush1.msra.mxu0 0.0
        %1157 = vmatprep.subr.mxu0 0.0
        %1158 = vmatpush1.msra.mxu0 0.0
        %1159 = vmatprep.subr.mxu0 0.0
        %1160 = vmatpush1.msra.mxu0 0.0
        %1161 = vmatprep.subr.mxu0 0.0
        %1162 = vmatpush1.msra.mxu0 0.0
        %1163 = vmatprep.subr.mxu0 0.0
        %1164 = vmatpush1.msra.mxu0 0.0
        %1165 = vmatprep.subr.mxu0 0.0
        %1166 = vmatpush1.msra.mxu0 0.0
        %1167 = vmatprep.subr.mxu0 0.0
        %1168 = vmatpush1.msra.mxu0 0.0
        %1169 = vmatprep.subr.mxu0 0.0
        %1170 = vmatpush1.msra.mxu0 0.0
        %1171 = vmatprep.subr.mxu0 0.0
        %1172 = vmatpush1.msra.mxu0 0.0
        %1173 = vmatprep.subr.mxu0 0.0
        %1174 = vmatpush1.msra.mxu0 0.0
        %1175 = vmatprep.subr.mxu0 0.0
        %1176 = vmatpush1.msra.mxu0 0.0
        %1177 = vmatprep.subr.mxu0 0.0
        %1178 = vmatpush1.msra.mxu0 0.0
        %1179 = vmatprep.subr.mxu0 0.0
        %1180 = vmatpush1.msra.mxu0 0.0
        %1181 = vmatprep.subr.mxu0 0.0
        %1182 = vmatpush1.msra.mxu0 0.0
        %1183 = vmatprep.mubr.f32.mxu0 0.0
        %1184 = vmatmul.mubr.f32.gmra.mrb[0].mxu0 %v1117
        %v1185 = vpop.f32.mrb[0].mxu0
        %v1186 = vadd.f32 %v1113, %v1185
        %v1187 = vpop.f32.mrb[0].mxu0
        %1188 = vdwg.mxu0
        %v1189 = vxor.u32 %v1186, 2147483648
        %v1190 = vmul.f32 %v1189, 1.442695
        %v1191 = vpow.pop %v1190
        %v1192 = vadd.f32 %v1191, 1.0
        %v1193 = vrcp.pop %v1192
        %v1194 = vmul.f32 1.0, %v1193
        %1196 = vrot.lane.b32.xlu0 %v1194, 118
        %v1197 = vpop.permute.xlu0 %1196
        %v1199 = vmul.f32 %v1186, %v1197
        %v1200 = vrot.slane %v742, 1
        %v1201 = vrot.slane %v742, 2
        %v1202 = vrot.slane %v742, 3
        %v1203 = vrot.slane %v742, 4
        %v1204 = vrot.slane %v742, 5
        %v1205 = vrot.slane %v742, 6
        %v1206 = vrot.slane %v742, 7
        %v1215 = vmul.f32 %v530, %v742
        %v1216 = vmul.f32 %v531, %v1200
        %v1217 = vmul.f32 %v532, %v1201
        %v1218 = vmul.f32 %v533, %v1202
        %v1219 = vmul.f32 %v534, %v1203
        %v1220 = vmul.f32 %v535, %v1204
        %v1221 = vmul.f32 %v536, %v1205
        %v1222 = vmul.f32 %v537, %v1206
        %v1231 = vrot.slane %v1216, 7
        %v1232 = vsel %vm603, %v1231, %v1215
        %v1233 = vrot.slane %v1217, 6
        %v1234 = vsel %vm606, %v1233, %v1232
        %v1235 = vrot.slane %v1218, 5
        %v1236 = vsel %vm609, %v1235, %v1234
        %v1237 = vrot.slane %v1219, 4
        %v1238 = vsel %vm612, %v1237, %v1236
        %v1239 = vrot.slane %v1220, 3
        %v1240 = vsel %vm615, %v1239, %v1238
        %v1241 = vrot.slane %v1221, 2
        %v1242 = vsel %vm618, %v1241, %v1240
        %v1243 = vrot.slane %v1222, 1
        %v1244 = vsel %vm621, %v1243, %v1242
        %1245 = vrot.lane.b32.xlu0 %v1244, 10
        %v1246 = vpop.permute.xlu0 %1245
        %v1248 = vsel %vm651, %v1199, %v1246
        %v1250 = vlaneseq
        %v1251 = vshrl.u32 %v1250, 7
        %v1252 = vsub.s32 0, %v1251
        %v1253 = vrot.slane %v529, %v1252
        %v1256 = vsel %vm659, %v1248, 0
        %v1259 = vsel %vm663, %v528, 0
        %1261 = vmatprep.subr.mxu0 0.0
        %1262 = vmatpush1.msra.mxu0 %v526
        %1263 = vmatprep.subr.mxu0 0.0
        %1264 = vmatpush1.msra.mxu0 %v527
        %1265 = vmatprep.subr.mxu0 0.0
        %1266 = vmatpush1.msra.mxu0 %v1259
        %1267 = vmatprep.subr.mxu0 0.0
        %1268 = vmatpush1.msra.mxu0 0.0
        %1269 = vmatprep.subr.mxu0 0.0
        %1270 = vmatpush1.msra.mxu0 0.0
        %1271 = vmatprep.subr.mxu0 0.0
        %1272 = vmatpush1.msra.mxu0 0.0
        %1273 = vmatprep.subr.mxu0 0.0
        %1274 = vmatpush1.msra.mxu0 0.0
        %1275 = vmatprep.subr.mxu0 0.0
        %1276 = vmatpush1.msra.mxu0 0.0
        %1277 = vmatprep.subr.mxu0 0.0
        %1278 = vmatpush1.msra.mxu0 0.0
        %1279 = vmatprep.subr.mxu0 0.0
        %1280 = vmatpush1.msra.mxu0 0.0
        %1281 = vmatprep.subr.mxu0 0.0
        %1282 = vmatpush1.msra.mxu0 0.0
        %1283 = vmatprep.subr.mxu0 0.0
        %1284 = vmatpush1.msra.mxu0 0.0
        %1285 = vmatprep.subr.mxu0 0.0
        %1286 = vmatpush1.msra.mxu0 0.0
        %1287 = vmatprep.subr.mxu0 0.0
        %1288 = vmatpush1.msra.mxu0 0.0
        %1289 = vmatprep.subr.mxu0 0.0
        %1290 = vmatpush1.msra.mxu0 0.0
        %1291 = vmatprep.subr.mxu0 0.0
        %1292 = vmatpush1.msra.mxu0 0.0
        %1293 = vmatprep.subr.mxu0 0.0
        %1294 = vmatpush1.msra.mxu0 0.0
        %1295 = vmatprep.subr.mxu0 0.0
        %1296 = vmatpush1.msra.mxu0 0.0
        %1297 = vmatprep.subr.mxu0 0.0
        %1298 = vmatpush1.msra.mxu0 0.0
        %1299 = vmatprep.subr.mxu0 0.0
        %1300 = vmatpush1.msra.mxu0 0.0
        %1301 = vmatprep.subr.mxu0 0.0
        %1302 = vmatpush1.msra.mxu0 0.0
        %1303 = vmatprep.subr.mxu0 0.0
        %1304 = vmatpush1.msra.mxu0 0.0
        %1305 = vmatprep.subr.mxu0 0.0
        %1306 = vmatpush1.msra.mxu0 0.0
        %1307 = vmatprep.subr.mxu0 0.0
        %1308 = vmatpush1.msra.mxu0 0.0
        %1309 = vmatprep.subr.mxu0 0.0
        %1310 = vmatpush1.msra.mxu0 0.0
        %1311 = vmatprep.subr.mxu0 0.0
        %1312 = vmatpush1.msra.mxu0 0.0
        %1313 = vmatprep.subr.mxu0 0.0
        %1314 = vmatpush1.msra.mxu0 0.0
        %1315 = vmatprep.subr.mxu0 0.0
        %1316 = vmatpush1.msra.mxu0 0.0
        %1317 = vmatprep.subr.mxu0 0.0
        %1318 = vmatpush1.msra.mxu0 0.0
        %1319 = vmatprep.subr.mxu0 0.0
        %1320 = vmatpush1.msra.mxu0 0.0
        %1321 = vmatprep.subr.mxu0 0.0
        %1322 = vmatpush1.msra.mxu0 0.0
        %1323 = vmatprep.subr.mxu0 0.0
        %1324 = vmatpush1.msra.mxu0 0.0
        %1325 = vmatprep.mubr.f32.mxu0 0.0
        %1326 = vmatmul.mubr.f32.gmra.mrb[0].mxu0 %v1256
        %v1327 = vpop.f32.mrb[0].mxu0
        %v1328 = vadd.f32 %v1253, %v1327
        %v1329 = vpop.f32.mrb[0].mxu0
        %1330 = vdwg.mxu0
        %v1331 = vmax.f32 %v1328, 0.0
        %v1333 = vlaneseq
        %v1334 = vshrl.u32 %v1333, 7
        %v1335 = vsub.s32 0, %v1334
        %v1336 = vrot.slane %v497, %v1335
        %v1339 = vsel %vm651, %v1331, 0
        %v1342 = vsel %vm917, %v494, 0
        %1344 = vmatprep.subr.mxu0 0.0
        %1345 = vmatpush1.msra.mxu0 %v493
        %1346 = vmatprep.subr.mxu0 0.0
        %1347 = vmatpush1.msra.mxu0 %v1342
        %1348 = vmatprep.subr.mxu0 0.0
        %1349 = vmatpush1.msra.mxu0 0.0
        %1350 = vmatprep.subr.mxu0 0.0
        %1351 = vmatpush1.msra.mxu0 0.0
        %1352 = vmatprep.subr.mxu0 0.0
        %1353 = vmatpush1.msra.mxu0 0.0
        %1354 = vmatprep.subr.mxu0 0.0
        %1355 = vmatpush1.msra.mxu0 0.0
        %1356 = vmatprep.subr.mxu0 0.0
        %1357 = vmatpush1.msra.mxu0 0.0
        %1358 = vmatprep.subr.mxu0 0.0
        %1359 = vmatpush1.msra.mxu0 0.0
        %1360 = vmatprep.subr.mxu0 0.0
        %1361 = vmatpush1.msra.mxu0 0.0
        %1362 = vmatprep.subr.mxu0 0.0
        %1363 = vmatpush1.msra.mxu0 0.0
        %1364 = vmatprep.subr.mxu0 0.0
        %1365 = vmatpush1.msra.mxu0 0.0
        %1366 = vmatprep.subr.mxu0 0.0
        %1367 = vmatpush1.msra.mxu0 0.0
        %1368 = vmatprep.subr.mxu0 0.0
        %1369 = vmatpush1.msra.mxu0 0.0
        %1370 = vmatprep.subr.mxu0 0.0
        %1371 = vmatpush1.msra.mxu0 0.0
        %1372 = vmatprep.subr.mxu0 0.0
        %1373 = vmatpush1.msra.mxu0 0.0
        %1374 = vmatprep.subr.mxu0 0.0
        %1375 = vmatpush1.msra.mxu0 0.0
        %1376 = vmatprep.subr.mxu0 0.0
        %1377 = vmatpush1.msra.mxu0 0.0
        %1378 = vmatprep.subr.mxu0 0.0
        %1379 = vmatpush1.msra.mxu0 0.0
        %1380 = vmatprep.subr.mxu0 0.0
        %1381 = vmatpush1.msra.mxu0 0.0
        %1382 = vmatprep.subr.mxu0 0.0
        %1383 = vmatpush1.msra.mxu0 0.0
        %1384 = vmatprep.subr.mxu0 0.0
        %1385 = vmatpush1.msra.mxu0 0.0
        %1386 = vmatprep.subr.mxu0 0.0
        %1387 = vmatpush1.msra.mxu0 0.0
        %1388 = vmatprep.subr.mxu0 0.0
        %1389 = vmatpush1.msra.mxu0 0.0
        %1390 = vmatprep.subr.mxu0 0.0
        %1391 = vmatpush1.msra.mxu0 0.0
        %1392 = vmatprep.subr.mxu0 0.0
        %1393 = vmatpush1.msra.mxu0 0.0
        %1394 = vmatprep.subr.mxu0 0.0
        %1395 = vmatpush1.msra.mxu0 0.0
        %1396 = vmatprep.subr.mxu0 0.0
        %1397 = vmatpush1.msra.mxu0 0.0
        %1398 = vmatprep.subr.mxu0 0.0
        %1399 = vmatpush1.msra.mxu0 0.0
        %1400 = vmatprep.subr.mxu0 0.0
        %1401 = vmatpush1.msra.mxu0 0.0
        %1402 = vmatprep.subr.mxu0 0.0
        %1403 = vmatpush1.msra.mxu0 0.0
        %1404 = vmatprep.subr.mxu0 0.0
        %1405 = vmatpush1.msra.mxu0 0.0
        %1406 = vmatprep.subr.mxu0 0.0
        %1407 = vmatpush1.msra.mxu0 0.0
        %1408 = vmatprep.mubr.f32.mxu0 0.0
        %1409 = vmatmul.mubr.f32.gmra.mrb[0].mxu0 %v1339
        %v1410 = vpop.f32.mrb[0].mxu0
        %v1411 = vadd.f32 %v1336, %v1410
        %v1412 = vpop.f32.mrb[0].mxu0
        %1413 = vdwg.mxu0
        %v1414 = vld [vmem:[#allocation2] sm:$0xff]
        %v1416 = vsel %vm792, %v1414, 0
        %1418 = vmatprep.subr.mxu0 0.0
        %1419 = vmatpush1.msra.mxu0 %v508
        %1420 = vmatprep.subr.mxu0 0.0
        %1421 = vmatpush1.msra.mxu0 %v509
        %1422 = vmatprep.subr.mxu0 0.0
        %1423 = vmatpush1.msra.mxu0 %v510
        %1424 = vmatprep.subr.mxu0 0.0
        %1425 = vmatpush1.msra.mxu0 %v511
        %1426 = vmatprep.subr.mxu0 0.0
        %1427 = vmatpush1.msra.mxu0 0.0
        %1428 = vmatprep.subr.mxu0 0.0
        %1429 = vmatpush1.msra.mxu0 0.0
        %1430 = vmatprep.subr.mxu0 0.0
        %1431 = vmatpush1.msra.mxu0 0.0
        %1432 = vmatprep.subr.mxu0 0.0
        %1433 = vmatpush1.msra.mxu0 0.0
        %1434 = vmatprep.subr.mxu0 0.0
        %1435 = vmatpush1.msra.mxu0 0.0
        %1436 = vmatprep.subr.mxu0 0.0
        %1437 = vmatpush1.msra.mxu0 0.0
        %1438 = vmatprep.subr.mxu0 0.0
        %1439 = vmatpush1.msra.mxu0 0.0
        %1440 = vmatprep.subr.mxu0 0.0
        %1441 = vmatpush1.msra.mxu0 0.0
        %1442 = vmatprep.subr.mxu0 0.0
        %1443 = vmatpush1.msra.mxu0 0.0
        %1444 = vmatprep.subr.mxu0 0.0
        %1445 = vmatpush1.msra.mxu0 0.0
        %1446 = vmatprep.subr.mxu0 0.0
        %1447 = vmatpush1.msra.mxu0 0.0
        %1448 = vmatprep.subr.mxu0 0.0
        %1449 = vmatpush1.msra.mxu0 0.0
        %1450 = vmatprep.subr.mxu0 0.0
        %1451 = vmatpush1.msra.mxu0 0.0
        %1452 = vmatprep.subr.mxu0 0.0
        %1453 = vmatpush1.msra.mxu0 0.0
        %1454 = vmatprep.subr.mxu0 0.0
        %1455 = vmatpush1.msra.mxu0 0.0
        %1456 = vmatprep.subr.mxu0 0.0
        %1457 = vmatpush1.msra.mxu0 0.0
        %1458 = vmatprep.subr.mxu0 0.0
        %1459 = vmatpush1.msra.mxu0 0.0
        %1460 = vmatprep.subr.mxu0 0.0
        %1461 = vmatpush1.msra.mxu0 0.0
        %1462 = vmatprep.subr.mxu0 0.0
        %1463 = vmatpush1.msra.mxu0 0.0
        %1464 = vmatprep.subr.mxu0 0.0
        %1465 = vmatpush1.msra.mxu0 0.0
        %1466 = vmatprep.subr.mxu0 0.0
        %1467 = vmatpush1.msra.mxu0 0.0
        %1468 = vmatprep.subr.mxu0 0.0
        %1469 = vmatpush1.msra.mxu0 0.0
        %1470 = vmatprep.subr.mxu0 0.0
        %1471 = vmatpush1.msra.mxu0 0.0
        %1472 = vmatprep.subr.mxu0 0.0
        %1473 = vmatpush1.msra.mxu0 0.0
        %1474 = vmatprep.subr.mxu0 0.0
        %1475 = vmatpush1.msra.mxu0 0.0
        %1476 = vmatprep.subr.mxu0 0.0
        %1477 = vmatpush1.msra.mxu0 0.0
        %1478 = vmatprep.subr.mxu0 0.0
        %1479 = vmatpush1.msra.mxu0 0.0
        %1480 = vmatprep.subr.mxu0 0.0
        %1481 = vmatpush1.msra.mxu0 0.0
        %1482 = vmatprep.mubr.f32.mxu0 0.0
        %1483 = vmatmul.mubr.f32.gmra.mrb[0].mxu0 %v1416
        %v1484 = vpop.f32.mrb[0].mxu0
        %v1485 = vadd.f32 0.0, %v1484
        %v1486 = vpop.f32.mrb[0].mxu0
        %1487 = vdwg.mxu0
        %v1488 = vadd.f32 %v1411, %v1485
        %v1489 = vxor.u32 %v1488, 2147483648
        %v1490 = vmul.f32 %v1489, 1.442695
        %v1491 = vpow.pop %v1490
        %v1492 = vadd.f32 %v1491, 1.0
        %v1493 = vrcp.pop %v1492
        %v1494 = vmul.f32 1.0, %v1493
        %v1496 = vlaneseq
        %v1497 = vshrl.u32 %v1496, 7
        %v1498 = vsub.s32 0, %v1497
        %v1499 = vrot.slane %v516, %v1498
        %1500 = vrot.lane.b32.xlu0 %v1499, 64
        %v1501 = vpop.permute.xlu0 %1500
        %v1503 = vadd.f32 %v1485, %v1501
        %1505 = vrot.lane.b32.xlu0 %v1503, 64
        %v1506 = vpop.permute.xlu0 %1505
        %v1508 = vmul.f32 %v1494, %v1506
        %1510 = vrot.lane.b32.xlu0 %v1508, 64
        %v1511 = vpop.permute.xlu0 %1510
        %v1513 = vadd.f32 %v1411, %v1511
        %v1514 = vtanh.pop %v1513
        %v1515 = vsub.f32 1.0, %v1494
        %1517 = vrot.lane.b32.xlu0 %v1514, 96
        %v1518 = vpop.permute.xlu0 %1517
        %v1520 = vmul.f32 %v1515, %v1518
        %1521 = vrot.lane.b32.xlu0 %v1414, 32
        %v1522 = vpop.permute.xlu0 %1521
        %v1524 = vmul.f32 %v1494, %v1522
        %v1525 = vadd.f32 %v1520, %v1524
        %1527 = vrot.lane.b32.xlu0 %v1525, 96
        %v1528 = vpop.permute.xlu0 %1527
        %1530 = vst.msk [vmem:[%s476] sm:$0xff] %vm792, %v1528
        %1531 = vst.msk [vmem:[#allocation2] sm:$0xff] %vm792, %v1528
        %1532 = vst.msk [vmem:[#allocation3] sm:$0xff] %vm792, %v1106
        %1534 = vrot.lane.b32.xlu0 %v1103, 96
        %v1535 = vpop.permute.xlu0 %1534
        %1537 = vst.msk [vmem:[#allocation4] sm:$0xff] %vm792, %v1535
        %v1538 = vld [vmem:[%s426 + $0x1] sm:$0x1]
        %v1539 = vld [vmem:[%s426 + $0x9] sm:$0x1]
        %v1540 = vld [vmem:[%s426 + $0x11] sm:$0x1]
        %v1541 = vld [vmem:[%s426 + $0x19] sm:$0x1]
        %v1542 = vld [vmem:[%s426 + $0x21] sm:$0x1]
        %v1543 = vld [vmem:[%s426 + $0x29] sm:$0x1]
        %v1544 = vld [vmem:[%s426 + $0x31] sm:$0x1]
        %v1545 = vld [vmem:[%s426 + $0x39] sm:$0x1]
        %v1546 = vsub.f32 1.0, %v1538
        %v1547 = vsub.f32 1.0, %v1539
        %v1548 = vsub.f32 1.0, %v1540
        %v1549 = vsub.f32 1.0, %v1541
        %v1550 = vsub.f32 1.0, %v1542
        %v1551 = vsub.f32 1.0, %v1543
        %v1552 = vsub.f32 1.0, %v1544
        %v1553 = vsub.f32 1.0, %v1545
        %v1554 = vmax.f32 %v1546, 0.0
        %v1555 = vmax.f32 %v1547, 0.0
        %v1556 = vmax.f32 %v1548, 0.0
        %v1557 = vmax.f32 %v1549, 0.0
        %v1558 = vmax.f32 %v1550, 0.0
        %v1559 = vmax.f32 %v1551, 0.0
        %v1560 = vmax.f32 %v1552, 0.0
        %v1561 = vmax.f32 %v1553, 0.0
        %1570 = vrot.lane.b32.xlu0 %v1554, 118
        %v1571 = vpop.permute.xlu0 %1570
        %1572 = vrot.lane.b32.xlu0 %v1555, 118
        %v1573 = vpop.permute.xlu0 %1572
        %1574 = vrot.lane.b32.xlu0 %v1556, 118
        %v1575 = vpop.permute.xlu0 %1574
        %1576 = vrot.lane.b32.xlu0 %v1557, 118
        %v1577 = vpop.permute.xlu0 %1576
        %1578 = vrot.lane.b32.xlu0 %v1558, 118
        %v1579 = vpop.permute.xlu0 %1578
        %1580 = vrot.lane.b32.xlu0 %v1559, 118
        %v1581 = vpop.permute.xlu0 %1580
        %1582 = vrot.lane.b32.xlu0 %v1560, 118
        %v1583 = vpop.permute.xlu0 %1582
        %1584 = vrot.lane.b32.xlu0 %v1561, 118
        %v1585 = vpop.permute.xlu0 %1584
        %v1594 = vmul.f32 %v1538, %v1571
        %v1595 = vmul.f32 %v1539, %v1573
        %v1596 = vmul.f32 %v1540, %v1575
        %v1597 = vmul.f32 %v1541, %v1577
        %v1598 = vmul.f32 %v1542, %v1579
        %v1599 = vmul.f32 %v1543, %v1581
        %v1600 = vmul.f32 %v1544, %v1583
        %v1601 = vmul.f32 %v1545, %v1585
        %v1610 = vrot.slane %v1547, 7
        %v1611 = vsel %vm603, %v1610, %v1546
        %v1612 = vrot.slane %v1548, 6
        %v1613 = vsel %vm606, %v1612, %v1611
        %v1614 = vrot.slane %v1549, 5
        %v1615 = vsel %vm609, %v1614, %v1613
        %v1616 = vrot.slane %v1550, 4
        %v1617 = vsel %vm612, %v1616, %v1615
        %v1618 = vrot.slane %v1551, 3
        %v1619 = vsel %vm615, %v1618, %v1617
        %v1620 = vrot.slane %v1552, 2
        %v1621 = vsel %vm618, %v1620, %v1619
        %v1622 = vrot.slane %v1553, 1
        %v1623 = vsel %vm621, %v1622, %v1621
        %1624 = vrot.lane.b32.xlu0 %v1623, 118
        %v1625 = vpop.permute.xlu0 %1624
        %v1635 = vrot.slane %v1595, 7
        %v1636 = vsel %vm603, %v1635, %v1594
        %v1637 = vrot.slane %v1596, 6
        %v1638 = vsel %vm606, %v1637, %v1636
        %v1639 = vrot.slane %v1597, 5
        %v1640 = vsel %vm609, %v1639, %v1638
        %v1641 = vrot.slane %v1598, 4
        %v1642 = vsel %vm612, %v1641, %v1640
        %v1643 = vrot.slane %v1599, 3
        %v1644 = vsel %vm615, %v1643, %v1642
        %v1645 = vrot.slane %v1600, 2
        %v1646 = vsel %vm618, %v1645, %v1644
        %v1647 = vrot.slane %v1601, 1
        %v1648 = vsel %vm621, %v1647, %v1646
        %1649 = vrot.lane.b32.xlu0 %v1648, 10
        %v1650 = vpop.permute.xlu0 %1649
        %v1652 = vsel %vm651, %v1625, %v1650
        %v1654 = vsel %vm659, %v1652, 0
        %1656 = vmatprep.subr.mxu0 0.0
        %1657 = vmatpush1.msra.mxu0 %v486
        %1658 = vmatprep.subr.mxu0 0.0
        %1659 = vmatpush1.msra.mxu0 %v487
        %1660 = vmatprep.subr.mxu0 0.0
        %1661 = vmatpush1.msra.mxu0 %v665
        %1662 = vmatprep.subr.mxu0 0.0
        %1663 = vmatpush1.msra.mxu0 0.0
        %1664 = vmatprep.subr.mxu0 0.0
        %1665 = vmatpush1.msra.mxu0 0.0
        %1666 = vmatprep.subr.mxu0 0.0
        %1667 = vmatpush1.msra.mxu0 0.0
        %1668 = vmatprep.subr.mxu0 0.0
        %1669 = vmatpush1.msra.mxu0 0.0
        %1670 = vmatprep.subr.mxu0 0.0
        %1671 = vmatpush1.msra.mxu0 0.0
        %1672 = vmatprep.subr.mxu0 0.0
        %1673 = vmatpush1.msra.mxu0 0.0
        %1674 = vmatprep.subr.mxu0 0.0
        %1675 = vmatpush1.msra.mxu0 0.0
        %1676 = vmatprep.subr.mxu0 0.0
        %1677 = vmatpush1.msra.mxu0 0.0
        %1678 = vmatprep.subr.mxu0 0.0
        %1679 = vmatpush1.msra.mxu0 0.0
        %1680 = vmatprep.subr.mxu0 0.0
        %1681 = vmatpush1.msra.mxu0 0.0
        %1682 = vmatprep.subr.mxu0 0.0
        %1683 = vmatpush1.msra.mxu0 0.0
        %1684 = vmatprep.subr.mxu0 0.0
        %1685 = vmatpush1.msra.mxu0 0.0
        %1686 = vmatprep.subr.mxu0 0.0
        %1687 = vmatpush1.msra.mxu0 0.0
        %1688 = vmatprep.subr.mxu0 0.0
        %1689 = vmatpush1.msra.mxu0 0.0
        %1690 = vmatprep.subr.mxu0 0.0
        %1691 = vmatpush1.msra.mxu0 0.0
        %1692 = vmatprep.subr.mxu0 0.0
        %1693 = vmatpush1.msra.mxu0 0.0
        %1694 = vmatprep.subr.mxu0 0.0
        %1695 = vmatpush1.msra.mxu0 0.0
        %1696 = vmatprep.subr.mxu0 0.0
        %1697 = vmatpush1.msra.mxu0 0.0
        %1698 = vmatprep.subr.mxu0 0.0
        %1699 = vmatpush1.msra.mxu0 0.0
        %1700 = vmatprep.subr.mxu0 0.0
        %1701 = vmatpush1.msra.mxu0 0.0
        %1702 = vmatprep.subr.mxu0 0.0
        %1703 = vmatpush1.msra.mxu0 0.0
        %1704 = vmatprep.subr.mxu0 0.0
        %1705 = vmatpush1.msra.mxu0 0.0
        %1706 = vmatprep.subr.mxu0 0.0
        %1707 = vmatpush1.msra.mxu0 0.0
        %1708 = vmatprep.subr.mxu0 0.0
        %1709 = vmatpush1.msra.mxu0 0.0
        %1710 = vmatprep.subr.mxu0 0.0
        %1711 = vmatpush1.msra.mxu0 0.0
        %1712 = vmatprep.subr.mxu0 0.0
        %1713 = vmatpush1.msra.mxu0 0.0
        %1714 = vmatprep.subr.mxu0 0.0
        %1715 = vmatpush1.msra.mxu0 0.0
        %1716 = vmatprep.subr.mxu0 0.0
        %1717 = vmatpush1.msra.mxu0 0.0
        %1718 = vmatprep.subr.mxu0 0.0
        %1719 = vmatpush1.msra.mxu0 0.0
        %1720 = vmatprep.mubr.f32.mxu0 0.0
        %1721 = vmatmul.mubr.f32.gmra.mrb[0].mxu0 %v1654
        %v1722 = vpop.f32.mrb[0].mxu0
        %v1723 = vadd.f32 %v657, %v1722
        %v1724 = vpop.f32.mrb[0].mxu0
        %1725 = vdwg.mxu0
        %v1726 = vxor.u32 %v1723, 2147483648
        %v1727 = vmul.f32 %v1726, 1.442695
        %v1728 = vpow.pop %v1727
        %v1729 = vadd.f32 %v1728, 1.0
        %v1730 = vrcp.pop %v1729
        %v1731 = vmul.f32 1.0, %v1730
        %v1732 = vld [vmem:[#allocation3] sm:$0xff]
        %1734 = vset.pattern.permute.xlu0 20
        %1735 = vperm.xlu0 %1734, %v1538
        %v1736 = vpop.permute.xlu0 %1735
        %1738 = vset.pattern.permute.xlu0 20
        %1739 = vperm.xlu0 %1738, %v1539
        %v1740 = vpop.permute.xlu0 %1739
        %1742 = vset.pattern.permute.xlu0 20
        %1743 = vperm.xlu0 %1742, %v1540
        %v1744 = vpop.permute.xlu0 %1743
        %1746 = vset.pattern.permute.xlu0 20
        %1747 = vperm.xlu0 %1746, %v1541
        %v1748 = vpop.permute.xlu0 %1747
        %1750 = vset.pattern.permute.xlu0 20
        %1751 = vperm.xlu0 %1750, %v1542
        %v1752 = vpop.permute.xlu0 %1751
        %1754 = vset.pattern.permute.xlu0 20
        %1755 = vperm.xlu0 %1754, %v1543
        %v1756 = vpop.permute.xlu0 %1755
        %1758 = vset.pattern.permute.xlu0 20
        %1759 = vperm.xlu0 %1758, %v1544
        %v1760 = vpop.permute.xlu0 %1759
        %1762 = vset.pattern.permute.xlu0 20
        %1763 = vperm.xlu0 %1762, %v1545
        %v1764 = vpop.permute.xlu0 %1763
        %v1765 = vrot.slane %v1740, 7
        %v1766 = vsel %vm603, %v1765, %v1736
        %v1767 = vrot.slane %v1744, 6
        %v1768 = vsel %vm606, %v1767, %v1766
        %v1769 = vrot.slane %v1748, 5
        %v1770 = vsel %vm609, %v1769, %v1768
        %v1771 = vrot.slane %v1752, 4
        %v1772 = vsel %vm612, %v1771, %v1770
        %v1773 = vrot.slane %v1756, 3
        %v1774 = vsel %vm615, %v1773, %v1772
        %v1775 = vrot.slane %v1760, 2
        %v1776 = vsel %vm618, %v1775, %v1774
        %v1777 = vrot.slane %v1764, 1
        %v1778 = vsel %vm621, %v1777, %v1776
        %v1780 = vmul.f32 %v1732, %v1778
        %v1782 = vsel %vm792, %v1780, 0
        %1784 = vmatprep.subr.mxu0 0.0
        %1785 = vmatpush1.msra.mxu0 %v498
        %1786 = vmatprep.subr.mxu0 0.0
        %1787 = vmatpush1.msra.mxu0 %v499
        %1788 = vmatprep.subr.mxu0 0.0
        %1789 = vmatpush1.msra.mxu0 %v500
        %1790 = vmatprep.subr.mxu0 0.0
        %1791 = vmatpush1.msra.mxu0 %v501
        %1792 = vmatprep.subr.mxu0 0.0
        %1793 = vmatpush1.msra.mxu0 0.0
        %1794 = vmatprep.subr.mxu0 0.0
        %1795 = vmatpush1.msra.mxu0 0.0
        %1796 = vmatprep.subr.mxu0 0.0
        %1797 = vmatpush1.msra.mxu0 0.0
        %1798 = vmatprep.subr.mxu0 0.0
        %1799 = vmatpush1.msra.mxu0 0.0
        %1800 = vmatprep.subr.mxu0 0.0
        %1801 = vmatpush1.msra.mxu0 0.0
        %1802 = vmatprep.subr.mxu0 0.0
        %1803 = vmatpush1.msra.mxu0 0.0
        %1804 = vmatprep.subr.mxu0 0.0
        %1805 = vmatpush1.msra.mxu0 0.0
        %1806 = vmatprep.subr.mxu0 0.0
        %1807 = vmatpush1.msra.mxu0 0.0
        %1808 = vmatprep.subr.mxu0 0.0
        %1809 = vmatpush1.msra.mxu0 0.0
        %1810 = vmatprep.subr.mxu0 0.0
        %1811 = vmatpush1.msra.mxu0 0.0
        %1812 = vmatprep.subr.mxu0 0.0
        %1813 = vmatpush1.msra.mxu0 0.0
        %1814 = vmatprep.subr.mxu0 0.0
        %1815 = vmatpush1.msra.mxu0 0.0
        %1816 = vmatprep.subr.mxu0 0.0
        %1817 = vmatpush1.msra.mxu0 0.0
        %1818 = vmatprep.subr.mxu0 0.0
        %1819 = vmatpush1.msra.mxu0 0.0
        %1820 = vmatprep.subr.mxu0 0.0
        %1821 = vmatpush1.msra.mxu0 0.0
        %1822 = vmatprep.subr.mxu0 0.0
        %1823 = vmatpush1.msra.mxu0 0.0
        %1824 = vmatprep.subr.mxu0 0.0
        %1825 = vmatpush1.msra.mxu0 0.0
        %1826 = vmatprep.subr.mxu0 0.0
        %1827 = vmatpush1.msra.mxu0 0.0
        %1828 = vmatprep.subr.mxu0 0.0
        %1829 = vmatpush1.msra.mxu0 0.0
        %1830 = vmatprep.subr.mxu0 0.0
        %1831 = vmatpush1.msra.mxu0 0.0
        %1832 = vmatprep.subr.mxu0 0.0
        %1833 = vmatpush1.msra.mxu0 0.0
        %1834 = vmatprep.subr.mxu0 0.0
        %1835 = vmatpush1.msra.mxu0 0.0
        %1836 = vmatprep.subr.mxu0 0.0
        %1837 = vmatpush1.msra.mxu0 0.0
        %1838 = vmatprep.subr.mxu0 0.0
        %1839 = vmatpush1.msra.mxu0 0.0
        %1840 = vmatprep.subr.mxu0 0.0
        %1841 = vmatpush1.msra.mxu0 0.0
        %1842 = vmatprep.subr.mxu0 0.0
        %1843 = vmatpush1.msra.mxu0 0.0
        %1844 = vmatprep.subr.mxu0 0.0
        %1845 = vmatpush1.msra.mxu0 0.0
        %1846 = vmatprep.subr.mxu0 0.0
        %1847 = vmatpush1.msra.mxu0 0.0
        %1848 = vmatprep.mubr.f32.mxu0 0.0
        %1849 = vmatmul.mubr.f32.gmra.mrb[0].mxu0 %v1782
        %v1850 = vpop.f32.mrb[0].mxu0
        %v1851 = vadd.f32 0.0, %v1850
        %v1852 = vpop.f32.mrb[0].mxu0
        %1853 = vdwg.mxu0
        %1855 = vrot.lane.b32.xlu0 %v1851, 10
        %v1856 = vpop.permute.xlu0 %1855
        %v1858 = vadd.f32 %v1723, %v1856
        %v1859 = vxor.u32 %v1858, 2147483648
        %v1860 = vmul.f32 %v1859, 1.442695
        %v1861 = vpow.pop %v1860
        %v1862 = vadd.f32 %v1861, 1.0
        %v1863 = vrcp.pop %v1862
        %v1864 = vmul.f32 1.0, %v1863
        %v1865 = vadd.f32 %v1851, %v883
        %1867 = vrot.lane.b32.xlu0 %v1865, 74
        %v1868 = vpop.permute.xlu0 %1867
        %v1870 = vmul.f32 %v1864, %v1868
        %1872 = vrot.lane.b32.xlu0 %v1870, 64
        %v1873 = vpop.permute.xlu0 %1872
        %v1875 = vadd.f32 %v1723, %v1873
        %v1876 = vtanh.pop %v1875
        %v1877 = vsub.f32 1.0, %v1864
        %1879 = vrot.lane.b32.xlu0 %v1876, 96
        %v1880 = vpop.permute.xlu0 %1879
        %v1882 = vmul.f32 %v1877, %v1880
        %1883 = vrot.lane.b32.xlu0 %v1780, 42
        %v1884 = vpop.permute.xlu0 %1883
        %v1886 = vmul.f32 %v1864, %v1884
        %v1887 = vadd.f32 %v1882, %v1886
        %v1889 = vsel %vm651, %v1731, 0
        %1891 = vmatprep.subr.mxu0 0.0
        %1892 = vmatpush1.msra.mxu0 %v490
        %1893 = vmatprep.subr.mxu0 0.0
        %1894 = vmatpush1.msra.mxu0 %v919
        %1895 = vmatprep.subr.mxu0 0.0
        %1896 = vmatpush1.msra.mxu0 0.0
        %1897 = vmatprep.subr.mxu0 0.0
        %1898 = vmatpush1.msra.mxu0 0.0
        %1899 = vmatprep.subr.mxu0 0.0
        %1900 = vmatpush1.msra.mxu0 0.0
        %1901 = vmatprep.subr.mxu0 0.0
        %1902 = vmatpush1.msra.mxu0 0.0
        %1903 = vmatprep.subr.mxu0 0.0
        %1904 = vmatpush1.msra.mxu0 0.0
        %1905 = vmatprep.subr.mxu0 0.0
        %1906 = vmatpush1.msra.mxu0 0.0
        %1907 = vmatprep.subr.mxu0 0.0
        %1908 = vmatpush1.msra.mxu0 0.0
        %1909 = vmatprep.subr.mxu0 0.0
        %1910 = vmatpush1.msra.mxu0 0.0
        %1911 = vmatprep.subr.mxu0 0.0
        %1912 = vmatpush1.msra.mxu0 0.0
        %1913 = vmatprep.subr.mxu0 0.0
        %1914 = vmatpush1.msra.mxu0 0.0
        %1915 = vmatprep.subr.mxu0 0.0
        %1916 = vmatpush1.msra.mxu0 0.0
        %1917 = vmatprep.subr.mxu0 0.0
        %1918 = vmatpush1.msra.mxu0 0.0
        %1919 = vmatprep.subr.mxu0 0.0
        %1920 = vmatpush1.msra.mxu0 0.0
        %1921 = vmatprep.subr.mxu0 0.0
        %1922 = vmatpush1.msra.mxu0 0.0
        %1923 = vmatprep.subr.mxu0 0.0
        %1924 = vmatpush1.msra.mxu0 0.0
        %1925 = vmatprep.subr.mxu0 0.0
        %1926 = vmatpush1.msra.mxu0 0.0
        %1927 = vmatprep.subr.mxu0 0.0
        %1928 = vmatpush1.msra.mxu0 0.0
        %1929 = vmatprep.subr.mxu0 0.0
        %1930 = vmatpush1.msra.mxu0 0.0
        %1931 = vmatprep.subr.mxu0 0.0
        %1932 = vmatpush1.msra.mxu0 0.0
        %1933 = vmatprep.subr.mxu0 0.0
        %1934 = vmatpush1.msra.mxu0 0.0
        %1935 = vmatprep.subr.mxu0 0.0
        %1936 = vmatpush1.msra.mxu0 0.0
        %1937 = vmatprep.subr.mxu0 0.0
        %1938 = vmatpush1.msra.mxu0 0.0
        %1939 = vmatprep.subr.mxu0 0.0
        %1940 = vmatpush1.msra.mxu0 0.0
        %1941 = vmatprep.subr.mxu0 0.0
        %1942 = vmatpush1.msra.mxu0 0.0
        %1943 = vmatprep.subr.mxu0 0.0
        %1944 = vmatpush1.msra.mxu0 0.0
        %1945 = vmatprep.subr.mxu0 0.0
        %1946 = vmatpush1.msra.mxu0 0.0
        %1947 = vmatprep.subr.mxu0 0.0
        %1948 = vmatpush1.msra.mxu0 0.0
        %1949 = vmatprep.subr.mxu0 0.0
        %1950 = vmatpush1.msra.mxu0 0.0
        %1951 = vmatprep.subr.mxu0 0.0
        %1952 = vmatpush1.msra.mxu0 0.0
        %1953 = vmatprep.subr.mxu0 0.0
        %1954 = vmatpush1.msra.mxu0 0.0
        %1955 = vmatprep.mubr.f32.mxu0 0.0
        %1956 = vmatmul.mubr.f32.gmra.mrb[0].mxu0 %v1889
        %v1957 = vpop.f32.mrb[0].mxu0
        %v1958 = vadd.f32 %v912, %v1957
        %v1959 = vpop.f32.mrb[0].mxu0
        %1960 = vdwg.mxu0
        %v1961 = vld [vmem:[#allocation4] sm:$0xff]
        %v1962 = vmul.f32 %v1961, %v1778
        %v1964 = vsel %vm792, %v1962, 0
        %1966 = vmatprep.subr.mxu0 0.0
        %1967 = vmatpush1.msra.mxu0 %v503
        %1968 = vmatprep.subr.mxu0 0.0
        %1969 = vmatpush1.msra.mxu0 %v504
        %1970 = vmatprep.subr.mxu0 0.0
        %1971 = vmatpush1.msra.mxu0 %v505
        %1972 = vmatprep.subr.mxu0 0.0
        %1973 = vmatpush1.msra.mxu0 %v506
        %1974 = vmatprep.subr.mxu0 0.0
        %1975 = vmatpush1.msra.mxu0 0.0
        %1976 = vmatprep.subr.mxu0 0.0
        %1977 = vmatpush1.msra.mxu0 0.0
        %1978 = vmatprep.subr.mxu0 0.0
        %1979 = vmatpush1.msra.mxu0 0.0
        %1980 = vmatprep.subr.mxu0 0.0
        %1981 = vmatpush1.msra.mxu0 0.0
        %1982 = vmatprep.subr.mxu0 0.0
        %1983 = vmatpush1.msra.mxu0 0.0
        %1984 = vmatprep.subr.mxu0 0.0
        %1985 = vmatpush1.msra.mxu0 0.0
        %1986 = vmatprep.subr.mxu0 0.0
        %1987 = vmatpush1.msra.mxu0 0.0
        %1988 = vmatprep.subr.mxu0 0.0
        %1989 = vmatpush1.msra.mxu0 0.0
        %1990 = vmatprep.subr.mxu0 0.0
        %1991 = vmatpush1.msra.mxu0 0.0
        %1992 = vmatprep.subr.mxu0 0.0
        %1993 = vmatpush1.msra.mxu0 0.0
        %1994 = vmatprep.subr.mxu0 0.0
        %1995 = vmatpush1.msra.mxu0 0.0
        %1996 = vmatprep.subr.mxu0 0.0
        %1997 = vmatpush1.msra.mxu0 0.0
        %1998 = vmatprep.subr.mxu0 0.0
        %1999 = vmatpush1.msra.mxu0 0.0
        %2000 = vmatprep.subr.mxu0 0.0
        %2001 = vmatpush1.msra.mxu0 0.0
        %2002 = vmatprep.subr.mxu0 0.0
        %2003 = vmatpush1.msra.mxu0 0.0
        %2004 = vmatprep.subr.mxu0 0.0
        %2005 = vmatpush1.msra.mxu0 0.0
        %2006 = vmatprep.subr.mxu0 0.0
        %2007 = vmatpush1.msra.mxu0 0.0
        %2008 = vmatprep.subr.mxu0 0.0
        %2009 = vmatpush1.msra.mxu0 0.0
        %2010 = vmatprep.subr.mxu0 0.0
        %2011 = vmatpush1.msra.mxu0 0.0
        %2012 = vmatprep.subr.mxu0 0.0
        %2013 = vmatpush1.msra.mxu0 0.0
        %2014 = vmatprep.subr.mxu0 0.0
        %2015 = vmatpush1.msra.mxu0 0.0
        %2016 = vmatprep.subr.mxu0 0.0
        %2017 = vmatpush1.msra.mxu0 0.0
        %2018 = vmatprep.subr.mxu0 0.0
        %2019 = vmatpush1.msra.mxu0 0.0
        %2020 = vmatprep.subr.mxu0 0.0
        %2021 = vmatpush1.msra.mxu0 0.0
        %2022 = vmatprep.subr.mxu0 0.0
        %2023 = vmatpush1.msra.mxu0 0.0
        %2024 = vmatprep.subr.mxu0 0.0
        %2025 = vmatpush1.msra.mxu0 0.0
        %2026 = vmatprep.subr.mxu0 0.0
        %2027 = vmatpush1.msra.mxu0 0.0
        %2028 = vmatprep.subr.mxu0 0.0
        %2029 = vmatpush1.msra.mxu0 0.0
        %2030 = vmatprep.mubr.f32.mxu0 0.0
        %2031 = vmatmul.mubr.f32.gmra.mrb[0].mxu0 %v1964
        %v2032 = vpop.f32.mrb[0].mxu0
        %v2033 = vadd.f32 0.0, %v2032
        %v2034 = vpop.f32.mrb[0].mxu0
        %2035 = vdwg.mxu0
        %v2036 = vadd.f32 %v1958, %v2033
        %v2037 = vxor.u32 %v2036, 2147483648
        %v2038 = vmul.f32 %v2037, 1.442695
        %v2039 = vpow.pop %v2038
        %v2040 = vadd.f32 %v2039, 1.0
        %v2041 = vrcp.pop %v2040
        %v2042 = vmul.f32 1.0, %v2041
        %v2043 = vadd.f32 %v2033, %v1079
        %2045 = vrot.lane.b32.xlu0 %v2043, 64
        %v2046 = vpop.permute.xlu0 %2045
        %v2048 = vmul.f32 %v2042, %v2046
        %2050 = vrot.lane.b32.xlu0 %v2048, 64
        %v2051 = vpop.permute.xlu0 %2050
        %v2053 = vadd.f32 %v1958, %v2051
        %v2054 = vtanh.pop %v2053
        %v2055 = vsub.f32 1.0, %v2042
        %2057 = vrot.lane.b32.xlu0 %v2054, 96
        %v2058 = vpop.permute.xlu0 %2057
        %v2060 = vmul.f32 %v2055, %v2058
        %2061 = vrot.lane.b32.xlu0 %v1962, 32
        %v2062 = vpop.permute.xlu0 %2061
        %v2064 = vmul.f32 %v2042, %v2062
        %v2065 = vadd.f32 %v2060, %v2064
        %2067 = vrot.lane.b32.xlu0 %v1887, 86
        %v2068 = vpop.permute.xlu0 %2067
        %v2070 = vsel %vm792, %v2068, %v2065
        %v2072 = vsel %vm1115, %v2070, 0
        %2074 = vmatprep.subr.mxu0 0.0
        %2075 = vmatpush1.msra.mxu0 %v517
        %2076 = vmatprep.subr.mxu0 0.0
        %2077 = vmatpush1.msra.mxu0 %v518
        %2078 = vmatprep.subr.mxu0 0.0
        %2079 = vmatpush1.msra.mxu0 %v519
        %2080 = vmatprep.subr.mxu0 0.0
        %2081 = vmatpush1.msra.mxu0 %v520
        %2082 = vmatprep.subr.mxu0 0.0
        %2083 = vmatpush1.msra.mxu0 %v521
        %2084 = vmatprep.subr.mxu0 0.0
        %2085 = vmatpush1.msra.mxu0 %v522
        %2086 = vmatprep.subr.mxu0 0.0
        %2087 = vmatpush1.msra.mxu0 %v523
        %2088 = vmatprep.subr.mxu0 0.0
        %2089 = vmatpush1.msra.mxu0 %v524
        %2090 = vmatprep.subr.mxu0 0.0
        %2091 = vmatpush1.msra.mxu0 0.0
        %2092 = vmatprep.subr.mxu0 0.0
        %2093 = vmatpush1.msra.mxu0 0.0
        %2094 = vmatprep.subr.mxu0 0.0
        %2095 = vmatpush1.msra.mxu0 0.0
        %2096 = vmatprep.subr.mxu0 0.0
        %2097 = vmatpush1.msra.mxu0 0.0
        %2098 = vmatprep.subr.mxu0 0.0
        %2099 = vmatpush1.msra.mxu0 0.0
        %2100 = vmatprep.subr.mxu0 0.0
        %2101 = vmatpush1.msra.mxu0 0.0
        %2102 = vmatprep.subr.mxu0 0.0
        %2103 = vmatpush1.msra.mxu0 0.0
        %2104 = vmatprep.subr.mxu0 0.0
        %2105 = vmatpush1.msra.mxu0 0.0
        %2106 = vmatprep.subr.mxu0 0.0
        %2107 = vmatpush1.msra.mxu0 0.0
        %2108 = vmatprep.subr.mxu0 0.0
        %2109 = vmatpush1.msra.mxu0 0.0
        %2110 = vmatprep.subr.mxu0 0.0
        %2111 = vmatpush1.msra.mxu0 0.0
        %2112 = vmatprep.subr.mxu0 0.0
        %2113 = vmatpush1.msra.mxu0 0.0
        %2114 = vmatprep.subr.mxu0 0.0
        %2115 = vmatpush1.msra.mxu0 0.0
        %2116 = vmatprep.subr.mxu0 0.0
        %2117 = vmatpush1.msra.mxu0 0.0
        %2118 = vmatprep.subr.mxu0 0.0
        %2119 = vmatpush1.msra.mxu0 0.0
        %2120 = vmatprep.subr.mxu0 0.0
        %2121 = vmatpush1.msra.mxu0 0.0
        %2122 = vmatprep.subr.mxu0 0.0
        %2123 = vmatpush1.msra.mxu0 0.0
        %2124 = vmatprep.subr.mxu0 0.0
        %2125 = vmatpush1.msra.mxu0 0.0
        %2126 = vmatprep.subr.mxu0 0.0
        %2127 = vmatpush1.msra.mxu0 0.0
        %2128 = vmatprep.subr.mxu0 0.0
        %2129 = vmatpush1.msra.mxu0 0.0
        %2130 = vmatprep.subr.mxu0 0.0
        %2131 = vmatpush1.msra.mxu0 0.0
        %2132 = vmatprep.subr.mxu0 0.0
        %2133 = vmatpush1.msra.mxu0 0.0
        %2134 = vmatprep.subr.mxu0 0.0
        %2135 = vmatpush1.msra.mxu0 0.0
        %2136 = vmatprep.subr.mxu0 0.0
        %2137 = vmatpush1.msra.mxu0 0.0
        %2138 = vmatprep.mubr.f32.mxu0 0.0
        %2139 = vmatmul.mubr.f32.gmra.mrb[0].mxu0 %v2072
        %v2140 = vpop.f32.mrb[0].mxu0
        %v2141 = vadd.f32 %v1113, %v2140
        %v2142 = vpop.f32.mrb[0].mxu0
        %2143 = vdwg.mxu0
        %v2144 = vxor.u32 %v2141, 2147483648
        %v2145 = vmul.f32 %v2144, 1.442695
        %v2146 = vpow.pop %v2145
        %v2147 = vadd.f32 %v2146, 1.0
        %v2148 = vrcp.pop %v2147
        %v2149 = vmul.f32 1.0, %v2148
        %2151 = vrot.lane.b32.xlu0 %v2149, 118
        %v2152 = vpop.permute.xlu0 %2151
        %v2154 = vmul.f32 %v2141, %v2152
        %v2155 = vrot.slane %v1731, 1
        %v2156 = vrot.slane %v1731, 2
        %v2157 = vrot.slane %v1731, 3
        %v2158 = vrot.slane %v1731, 4
        %v2159 = vrot.slane %v1731, 5
        %v2160 = vrot.slane %v1731, 6
        %v2161 = vrot.slane %v1731, 7
        %v2170 = vmul.f32 %v1538, %v1731
        %v2171 = vmul.f32 %v1539, %v2155
        %v2172 = vmul.f32 %v1540, %v2156
        %v2173 = vmul.f32 %v1541, %v2157
        %v2174 = vmul.f32 %v1542, %v2158
        %v2175 = vmul.f32 %v1543, %v2159
        %v2176 = vmul.f32 %v1544, %v2160
        %v2177 = vmul.f32 %v1545, %v2161
        %v2186 = vrot.slane %v2171, 7
        %v2187 = vsel %vm603, %v2186, %v2170
        %v2188 = vrot.slane %v2172, 6
        %v2189 = vsel %vm606, %v2188, %v2187
        %v2190 = vrot.slane %v2173, 5
        %v2191 = vsel %vm609, %v2190, %v2189
        %v2192 = vrot.slane %v2174, 4
        %v2193 = vsel %vm612, %v2192, %v2191
        %v2194 = vrot.slane %v2175, 3
        %v2195 = vsel %vm615, %v2194, %v2193
        %v2196 = vrot.slane %v2176, 2
        %v2197 = vsel %vm618, %v2196, %v2195
        %v2198 = vrot.slane %v2177, 1
        %v2199 = vsel %vm621, %v2198, %v2197
        %2200 = vrot.lane.b32.xlu0 %v2199, 10
        %v2201 = vpop.permute.xlu0 %2200
        %v2203 = vsel %vm651, %v2154, %v2201
        %v2205 = vsel %vm659, %v2203, 0
        %2207 = vmatprep.subr.mxu0 0.0
        %2208 = vmatpush1.msra.mxu0 %v526
        %2209 = vmatprep.subr.mxu0 0.0
        %2210 = vmatpush1.msra.mxu0 %v527
        %2211 = vmatprep.subr.mxu0 0.0
        %2212 = vmatpush1.msra.mxu0 %v1259
        %2213 = vmatprep.subr.mxu0 0.0
        %2214 = vmatpush1.msra.mxu0 0.0
        %2215 = vmatprep.subr.mxu0 0.0
        %2216 = vmatpush1.msra.mxu0 0.0
        %2217 = vmatprep.subr.mxu0 0.0
        %2218 = vmatpush1.msra.mxu0 0.0
        %2219 = vmatprep.subr.mxu0 0.0
        %2220 = vmatpush1.msra.mxu0 0.0
        %2221 = vmatprep.subr.mxu0 0.0
        %2222 = vmatpush1.msra.mxu0 0.0
        %2223 = vmatprep.subr.mxu0 0.0
        %2224 = vmatpush1.msra.mxu0 0.0
        %2225 = vmatprep.subr.mxu0 0.0
        %2226 = vmatpush1.msra.mxu0 0.0
        %2227 = vmatprep.subr.mxu0 0.0
        %2228 = vmatpush1.msra.mxu0 0.0
        %2229 = vmatprep.subr.mxu0 0.0
        %2230 = vmatpush1.msra.mxu0 0.0
        %2231 = vmatprep.subr.mxu0 0.0
        %2232 = vmatpush1.msra.mxu0 0.0
        %2233 = vmatprep.subr.mxu0 0.0
        %2234 = vmatpush1.msra.mxu0 0.0
        %2235 = vmatprep.subr.mxu0 0.0
        %2236 = vmatpush1.msra.mxu0 0.0
        %2237 = vmatprep.subr.mxu0 0.0
        %2238 = vmatpush1.msra.mxu0 0.0
        %2239 = vmatprep.subr.mxu0 0.0
        %2240 = vmatpush1.msra.mxu0 0.0
        %2241 = vmatprep.subr.mxu0 0.0
        %2242 = vmatpush1.msra.mxu0 0.0
        %2243 = vmatprep.subr.mxu0 0.0
        %2244 = vmatpush1.msra.mxu0 0.0
        %2245 = vmatprep.subr.mxu0 0.0
        %2246 = vmatpush1.msra.mxu0 0.0
        %2247 = vmatprep.subr.mxu0 0.0
        %2248 = vmatpush1.msra.mxu0 0.0
        %2249 = vmatprep.subr.mxu0 0.0
        %2250 = vmatpush1.msra.mxu0 0.0
        %2251 = vmatprep.subr.mxu0 0.0
        %2252 = vmatpush1.msra.mxu0 0.0
        %2253 = vmatprep.subr.mxu0 0.0
        %2254 = vmatpush1.msra.mxu0 0.0
        %2255 = vmatprep.subr.mxu0 0.0
        %2256 = vmatpush1.msra.mxu0 0.0
        %2257 = vmatprep.subr.mxu0 0.0
        %2258 = vmatpush1.msra.mxu0 0.0
        %2259 = vmatprep.subr.mxu0 0.0
        %2260 = vmatpush1.msra.mxu0 0.0
        %2261 = vmatprep.subr.mxu0 0.0
        %2262 = vmatpush1.msra.mxu0 0.0
        %2263 = vmatprep.subr.mxu0 0.0
        %2264 = vmatpush1.msra.mxu0 0.0
        %2265 = vmatprep.subr.mxu0 0.0
        %2266 = vmatpush1.msra.mxu0 0.0
        %2267 = vmatprep.subr.mxu0 0.0
        %2268 = vmatpush1.msra.mxu0 0.0
        %2269 = vmatprep.subr.mxu0 0.0
        %2270 = vmatpush1.msra.mxu0 0.0
        %2271 = vmatprep.mubr.f32.mxu0 0.0
        %2272 = vmatmul.mubr.f32.gmra.mrb[0].mxu0 %v2205
        %v2273 = vpop.f32.mrb[0].mxu0
        %v2274 = vadd.f32 %v1253, %v2273
        %v2275 = vpop.f32.mrb[0].mxu0
        %2276 = vdwg.mxu0
        %v2277 = vmax.f32 %v2274, 0.0
        %v2279 = vsel %vm651, %v2277, 0
        %2281 = vmatprep.subr.mxu0 0.0
        %2282 = vmatpush1.msra.mxu0 %v493
        %2283 = vmatprep.subr.mxu0 0.0
        %2284 = vmatpush1.msra.mxu0 %v1342
        %2285 = vmatprep.subr.mxu0 0.0
        %2286 = vmatpush1.msra.mxu0 0.0
        %2287 = vmatprep.subr.mxu0 0.0
        %2288 = vmatpush1.msra.mxu0 0.0
        %2289 = vmatprep.subr.mxu0 0.0
        %2290 = vmatpush1.msra.mxu0 0.0
        %2291 = vmatprep.subr.mxu0 0.0
        %2292 = vmatpush1.msra.mxu0 0.0
        %2293 = vmatprep.subr.mxu0 0.0
        %2294 = vmatpush1.msra.mxu0 0.0
        %2295 = vmatprep.subr.mxu0 0.0
        %2296 = vmatpush1.msra.mxu0 0.0
        %2297 = vmatprep.subr.mxu0 0.0
        %2298 = vmatpush1.msra.mxu0 0.0
        %2299 = vmatprep.subr.mxu0 0.0
        %2300 = vmatpush1.msra.mxu0 0.0
        %2301 = vmatprep.subr.mxu0 0.0
        %2302 = vmatpush1.msra.mxu0 0.0
        %2303 = vmatprep.subr.mxu0 0.0
        %2304 = vmatpush1.msra.mxu0 0.0
        %2305 = vmatprep.subr.mxu0 0.0
        %2306 = vmatpush1.msra.mxu0 0.0
        %2307 = vmatprep.subr.mxu0 0.0
        %2308 = vmatpush1.msra.mxu0 0.0
        %2309 = vmatprep.subr.mxu0 0.0
        %2310 = vmatpush1.msra.mxu0 0.0
        %2311 = vmatprep.subr.mxu0 0.0
        %2312 = vmatpush1.msra.mxu0 0.0
        %2313 = vmatprep.subr.mxu0 0.0
        %2314 = vmatpush1.msra.mxu0 0.0
        %2315 = vmatprep.subr.mxu0 0.0
        %2316 = vmatpush1.msra.mxu0 0.0
        %2317 = vmatprep.subr.mxu0 0.0
        %2318 = vmatpush1.msra.mxu0 0.0
        %2319 = vmatprep.subr.mxu0 0.0
        %2320 = vmatpush1.msra.mxu0 0.0
        %2321 = vmatprep.subr.mxu0 0.0
        %2322 = vmatpush1.msra.mxu0 0.0
        %2323 = vmatprep.subr.mxu0 0.0
        %2324 = vmatpush1.msra.mxu0 0.0
        %2325 = vmatprep.subr.mxu0 0.0
        %2326 = vmatpush1.msra.mxu0 0.0
        %2327 = vmatprep.subr.mxu0 0.0
        %2328 = vmatpush1.msra.mxu0 0.0
        %2329 = vmatprep.subr.mxu0 0.0
        %2330 = vmatpush1.msra.mxu0 0.0
        %2331 = vmatprep.subr.mxu0 0.0
        %2332 = vmatpush1.msra.mxu0 0.0
        %2333 = vmatprep.subr.mxu0 0.0
        %2334 = vmatpush1.msra.mxu0 0.0
        %2335 = vmatprep.subr.mxu0 0.0
        %2336 = vmatpush1.msra.mxu0 0.0
        %2337 = vmatprep.subr.mxu0 0.0
        %2338 = vmatpush1.msra.mxu0 0.0
        %2339 = vmatprep.subr.mxu0 0.0
        %2340 = vmatpush1.msra.mxu0 0.0
        %2341 = vmatprep.subr.mxu0 0.0
        %2342 = vmatpush1.msra.mxu0 0.0
        %2343 = vmatprep.subr.mxu0 0.0
        %2344 = vmatpush1.msra.mxu0 0.0
        %2345 = vmatprep.mubr.f32.mxu0 0.0
        %2346 = vmatmul.mubr.f32.gmra.mrb[0].mxu0 %v2279
        %v2347 = vpop.f32.mrb[0].mxu0
        %v2348 = vadd.f32 %v1336, %v2347
        %v2349 = vpop.f32.mrb[0].mxu0
        %2350 = vdwg.mxu0
        %v2351 = vld [vmem:[#allocation2] sm:$0xff]
        %v2353 = vsel %vm792, %v2351, 0
        %2355 = vmatprep.subr.mxu0 0.0
        %2356 = vmatpush1.msra.mxu0 %v508
        %2357 = vmatprep.subr.mxu0 0.0
        %2358 = vmatpush1.msra.mxu0 %v509
        %2359 = vmatprep.subr.mxu0 0.0
        %2360 = vmatpush1.msra.mxu0 %v510
        %2361 = vmatprep.subr.mxu0 0.0
        %2362 = vmatpush1.msra.mxu0 %v511
        %2363 = vmatprep.subr.mxu0 0.0
        %2364 = vmatpush1.msra.mxu0 0.0
        %2365 = vmatprep.subr.mxu0 0.0
        %2366 = vmatpush1.msra.mxu0 0.0
        %2367 = vmatprep.subr.mxu0 0.0
        %2368 = vmatpush1.msra.mxu0 0.0
        %2369 = vmatprep.subr.mxu0 0.0
        %2370 = vmatpush1.msra.mxu0 0.0
        %2371 = vmatprep.subr.mxu0 0.0
        %2372 = vmatpush1.msra.mxu0 0.0
        %2373 = vmatprep.subr.mxu0 0.0
        %2374 = vmatpush1.msra.mxu0 0.0
        %2375 = vmatprep.subr.mxu0 0.0
        %2376 = vmatpush1.msra.mxu0 0.0
        %2377 = vmatprep.subr.mxu0 0.0
        %2378 = vmatpush1.msra.mxu0 0.0
        %2379 = vmatprep.subr.mxu0 0.0
        %2380 = vmatpush1.msra.mxu0 0.0
        %2381 = vmatprep.subr.mxu0 0.0
        %2382 = vmatpush1.msra.mxu0 0.0
        %2383 = vmatprep.subr.mxu0 0.0
        %2384 = vmatpush1.msra.mxu0 0.0
        %2385 = vmatprep.subr.mxu0 0.0
        %2386 = vmatpush1.msra.mxu0 0.0
        %2387 = vmatprep.subr.mxu0 0.0
        %2388 = vmatpush1.msra.mxu0 0.0
        %2389 = vmatprep.subr.mxu0 0.0
        %2390 = vmatpush1.msra.mxu0 0.0
        %2391 = vmatprep.subr.mxu0 0.0
        %2392 = vmatpush1.msra.mxu0 0.0
        %2393 = vmatprep.subr.mxu0 0.0
        %2394 = vmatpush1.msra.mxu0 0.0
        %2395 = vmatprep.subr.mxu0 0.0
        %2396 = vmatpush1.msra.mxu0 0.0
        %2397 = vmatprep.subr.mxu0 0.0
        %2398 = vmatpush1.msra.mxu0 0.0
        %2399 = vmatprep.subr.mxu0 0.0
        %2400 = vmatpush1.msra.mxu0 0.0
        %2401 = vmatprep.subr.mxu0 0.0
        %2402 = vmatpush1.msra.mxu0 0.0
        %2403 = vmatprep.subr.mxu0 0.0
        %2404 = vmatpush1.msra.mxu0 0.0
        %2405 = vmatprep.subr.mxu0 0.0
        %2406 = vmatpush1.msra.mxu0 0.0
        %2407 = vmatprep.subr.mxu0 0.0
        %2408 = vmatpush1.msra.mxu0 0.0
        %2409 = vmatprep.subr.mxu0 0.0
        %2410 = vmatpush1.msra.mxu0 0.0
        %2411 = vmatprep.subr.mxu0 0.0
        %2412 = vmatpush1.msra.mxu0 0.0
        %2413 = vmatprep.subr.mxu0 0.0
        %2414 = vmatpush1.msra.mxu0 0.0
        %2415 = vmatprep.subr.mxu0 0.0
        %2416 = vmatpush1.msra.mxu0 0.0
        %2417 = vmatprep.subr.mxu0 0.0
        %2418 = vmatpush1.msra.mxu0 0.0
        %2419 = vmatprep.mubr.f32.mxu0 0.0
        %2420 = vmatmul.mubr.f32.gmra.mrb[0].mxu0 %v2353
        %v2421 = vpop.f32.mrb[0].mxu0
        %v2422 = vadd.f32 0.0, %v2421
        %v2423 = vpop.f32.mrb[0].mxu0
        %2424 = vdwg.mxu0
        %v2425 = vadd.f32 %v2348, %v2422
        %v2426 = vxor.u32 %v2425, 2147483648
        %v2427 = vmul.f32 %v2426, 1.442695
        %v2428 = vpow.pop %v2427
        %v2429 = vadd.f32 %v2428, 1.0
        %v2430 = vrcp.pop %v2429
        %v2431 = vmul.f32 1.0, %v2430
        %v2432 = vadd.f32 %v2422, %v1501
        %2434 = vrot.lane.b32.xlu0 %v2432, 64
        %v2435 = vpop.permute.xlu0 %2434
        %v2437 = vmul.f32 %v2431, %v2435
        %2439 = vrot.lane.b32.xlu0 %v2437, 64
        %v2440 = vpop.permute.xlu0 %2439
        %v2442 = vadd.f32 %v2348, %v2440
        %v2443 = vtanh.pop %v2442
        %v2444 = vsub.f32 1.0, %v2431
        %2446 = vrot.lane.b32.xlu0 %v2443, 96
        %v2447 = vpop.permute.xlu0 %2446
        %v2449 = vmul.f32 %v2444, %v2447
        %2450 = vrot.lane.b32.xlu0 %v2351, 32
        %v2451 = vpop.permute.xlu0 %2450
        %v2453 = vmul.f32 %v2431, %v2451
        %v2454 = vadd.f32 %v2449, %v2453
        %vm2455 = vcmask 523520
        %2456 = vst.msk [vmem:[%s476] sm:$0xff] %vm2455, %v2454
        %2458 = vrot.lane.b32.xlu0 %v2454, 96
        %v2459 = vpop.permute.xlu0 %2458
        %2461 = vst.msk [vmem:[#allocation2] sm:$0xff] %vm792, %v2459
        %2462 = vst.msk [vmem:[#allocation3] sm:$0xff] %vm792, %v2068
        %2464 = vrot.lane.b32.xlu0 %v2065, 96
        %v2465 = vpop.permute.xlu0 %2464
        %2467 = vst.msk [vmem:[#allocation4] sm:$0xff] %vm792, %v2465
        %v2468 = vld [vmem:[%s426 + $0x2] sm:$0x1]
        %v2469 = vld [vmem:[%s426 + $0xa] sm:$0x1]
        %v2470 = vld [vmem:[%s426 + $0x12] sm:$0x1]
        %v2471 = vld [vmem:[%s426 + $0x1a] sm:$0x1]
        %v2472 = vld [vmem:[%s426 + $0x22] sm:$0x1]
        %v2473 = vld [vmem:[%s426 + $0x2a] sm:$0x1]
        %v2474 = vld [vmem:[%s426 + $0x32] sm:$0x1]
        %v2475 = vld [vmem:[%s426 + $0x3a] sm:$0x1]
        %v2476 = vsub.f32 1.0, %v2468
        %v2477 = vsub.f32 1.0, %v2469
        %v2478 = vsub.f32 1.0, %v2470
        %v2479 = vsub.f32 1.0, %v2471
        %v2480 = vsub.f32 1.0, %v2472
        %v2481 = vsub.f32 1.0, %v2473
        %v2482 = vsub.f32 1.0, %v2474
        %v2483 = vsub.f32 1.0, %v2475
        %v2484 = vmax.f32 %v2476, 0.0
        %v2485 = vmax.f32 %v2477, 0.0
        %v2486 = vmax.f32 %v2478, 0.0
        %v2487 = vmax.f32 %v2479, 0.0
        %v2488 = vmax.f32 %v2480, 0.0
        %v2489 = vmax.f32 %v2481, 0.0
        %v2490 = vmax.f32 %v2482, 0.0
        %v2491 = vmax.f32 %v2483, 0.0
        %2500 = vrot.lane.b32.xlu0 %v2484, 118
        %v2501 = vpop.permute.xlu0 %2500
        %2502 = vrot.lane.b32.xlu0 %v2485, 118
        %v2503 = vpop.permute.xlu0 %2502
        %2504 = vrot.lane.b32.xlu0 %v2486, 118
        %v2505 = vpop.permute.xlu0 %2504
        %2506 = vrot.lane.b32.xlu0 %v2487, 118
        %v2507 = vpop.permute.xlu0 %2506
        %2508 = vrot.lane.b32.xlu0 %v2488, 118
        %v2509 = vpop.permute.xlu0 %2508
        %2510 = vrot.lane.b32.xlu0 %v2489, 118
        %v2511 = vpop.permute.xlu0 %2510
        %2512 = vrot.lane.b32.xlu0 %v2490, 118
        %v2513 = vpop.permute.xlu0 %2512
        %2514 = vrot.lane.b32.xlu0 %v2491, 118
        %v2515 = vpop.permute.xlu0 %2514
        %v2524 = vmul.f32 %v2468, %v2501
        %v2525 = vmul.f32 %v2469, %v2503
        %v2526 = vmul.f32 %v2470, %v2505
        %v2527 = vmul.f32 %v2471, %v2507
        %v2528 = vmul.f32 %v2472, %v2509
        %v2529 = vmul.f32 %v2473, %v2511
        %v2530 = vmul.f32 %v2474, %v2513
        %v2531 = vmul.f32 %v2475, %v2515
        %v2540 = vrot.slane %v2477, 7
        %v2541 = vsel %vm603, %v2540, %v2476
        %v2542 = vrot.slane %v2478, 6
        %v2543 = vsel %vm606, %v2542, %v2541
        %v2544 = vrot.slane %v2479, 5
        %v2545 = vsel %vm609, %v2544, %v2543
        %v2546 = vrot.slane %v2480, 4
        %v2547 = vsel %vm612, %v2546, %v2545
        %v2548 = vrot.slane %v2481, 3
        %v2549 = vsel %vm615, %v2548, %v2547
        %v2550 = vrot.slane %v2482, 2
        %v2551 = vsel %vm618, %v2550, %v2549
        %v2552 = vrot.slane %v2483, 1
        %v2553 = vsel %vm621, %v2552, %v2551
        %2554 = vrot.lane.b32.xlu0 %v2553, 118
        %v2555 = vpop.permute.xlu0 %2554
        %v2565 = vrot.slane %v2525, 7
        %v2566 = vsel %vm603, %v2565, %v2524
        %v2567 = vrot.slane %v2526, 6
        %v2568 = vsel %vm606, %v2567, %v2566
        %v2569 = vrot.slane %v2527, 5
        %v2570 = vsel %vm609, %v2569, %v2568
        %v2571 = vrot.slane %v2528, 4
        %v2572 = vsel %vm612, %v2571, %v2570
        %v2573 = vrot.slane %v2529, 3
        %v2574 = vsel %vm615, %v2573, %v2572
        %v2575 = vrot.slane %v2530, 2
        %v2576 = vsel %vm618, %v2575, %v2574
        %v2577 = vrot.slane %v2531, 1
        %v2578 = vsel %vm621, %v2577, %v2576
        %2579 = vrot.lane.b32.xlu0 %v2578, 10
        %v2580 = vpop.permute.xlu0 %2579
        %v2582 = vsel %vm651, %v2555, %v2580
        %v2584 = vsel %vm659, %v2582, 0
        %2586 = vmatprep.subr.mxu0 0.0
        %2587 = vmatpush1.msra.mxu0 %v486
        %2588 = vmatprep.subr.mxu0 0.0
        %2589 = vmatpush1.msra.mxu0 %v487
        %2590 = vmatprep.subr.mxu0 0.0
        %2591 = vmatpush1.msra.mxu0 %v665
        %2592 = vmatprep.subr.mxu0 0.0
        %2593 = vmatpush1.msra.mxu0 0.0
        %2594 = vmatprep.subr.mxu0 0.0
        %2595 = vmatpush1.msra.mxu0 0.0
        %2596 = vmatprep.subr.mxu0 0.0
        %2597 = vmatpush1.msra.mxu0 0.0
        %2598 = vmatprep.subr.mxu0 0.0
        %2599 = vmatpush1.msra.mxu0 0.0
        %2600 = vmatprep.subr.mxu0 0.0
        %2601 = vmatpush1.msra.mxu0 0.0
        %2602 = vmatprep.subr.mxu0 0.0
        %2603 = vmatpush1.msra.mxu0 0.0
        %2604 = vmatprep.subr.mxu0 0.0
        %2605 = vmatpush1.msra.mxu0 0.0
        %2606 = vmatprep.subr.mxu0 0.0
        %2607 = vmatpush1.msra.mxu0 0.0
        %2608 = vmatprep.subr.mxu0 0.0
        %2609 = vmatpush1.msra.mxu0 0.0
        %2610 = vmatprep.subr.mxu0 0.0
        %2611 = vmatpush1.msra.mxu0 0.0
        %2612 = vmatprep.subr.mxu0 0.0
        %2613 = vmatpush1.msra.mxu0 0.0
        %2614 = vmatprep.subr.mxu0 0.0
        %2615 = vmatpush1.msra.mxu0 0.0
        %2616 = vmatprep.subr.mxu0 0.0
        %2617 = vmatpush1.msra.mxu0 0.0
        %2618 = vmatprep.subr.mxu0 0.0
        %2619 = vmatpush1.msra.mxu0 0.0
        %2620 = vmatprep.subr.mxu0 0.0
        %2621 = vmatpush1.msra.mxu0 0.0
        %2622 = vmatprep.subr.mxu0 0.0
        %2623 = vmatpush1.msra.mxu0 0.0
        %2624 = vmatprep.subr.mxu0 0.0
        %2625 = vmatpush1.msra.mxu0 0.0
        %2626 = vmatprep.subr.mxu0 0.0
        %2627 = vmatpush1.msra.mxu0 0.0
        %2628 = vmatprep.subr.mxu0 0.0
        %2629 = vmatpush1.msra.mxu0 0.0
        %2630 = vmatprep.subr.mxu0 0.0
        %2631 = vmatpush1.msra.mxu0 0.0
        %2632 = vmatprep.subr.mxu0 0.0
        %2633 = vmatpush1.msra.mxu0 0.0
        %2634 = vmatprep.subr.mxu0 0.0
        %2635 = vmatpush1.msra.mxu0 0.0
        %2636 = vmatprep.subr.mxu0 0.0
        %2637 = vmatpush1.msra.mxu0 0.0
        %2638 = vmatprep.subr.mxu0 0.0
        %2639 = vmatpush1.msra.mxu0 0.0
        %2640 = vmatprep.subr.mxu0 0.0
        %2641 = vmatpush1.msra.mxu0 0.0
        %2642 = vmatprep.subr.mxu0 0.0
        %2643 = vmatpush1.msra.mxu0 0.0
        %2644 = vmatprep.subr.mxu0 0.0
        %2645 = vmatpush1.msra.mxu0 0.0
        %2646 = vmatprep.subr.mxu0 0.0
        %2647 = vmatpush1.msra.mxu0 0.0
        %2648 = vmatprep.subr.mxu0 0.0
        %2649 = vmatpush1.msra.mxu0 0.0
        %2650 = vmatprep.mubr.f32.mxu0 0.0
        %2651 = vmatmul.mubr.f32.gmra.mrb[0].mxu0 %v2584
        %v2652 = vpop.f32.mrb[0].mxu0
        %v2653 = vadd.f32 %v657, %v2652
        %v2654 = vpop.f32.mrb[0].mxu0
        %2655 = vdwg.mxu0
        %v2656 = vxor.u32 %v2653, 2147483648
        %v2657 = vmul.f32 %v2656, 1.442695
        %v2658 = vpow.pop %v2657
        %v2659 = vadd.f32 %v2658, 1.0
        %v2660 = vrcp.pop %v2659
        %v2661 = vmul.f32 1.0, %v2660
        %v2662 = vld [vmem:[#allocation3] sm:$0xff]
        %2664 = vset.pattern.permute.xlu0 20
        %2665 = vperm.xlu0 %2664, %v2468
        %v2666 = vpop.permute.xlu0 %2665
        %2668 = vset.pattern.permute.xlu0 20
        %2669 = vperm.xlu0 %2668, %v2469
        %v2670 = vpop.permute.xlu0 %2669
        %2672 = vset.pattern.permute.xlu0 20
        %2673 = vperm.xlu0 %2672, %v2470
        %v2674 = vpop.permute.xlu0 %2673
        %2676 = vset.pattern.permute.xlu0 20
        %2677 = vperm.xlu0 %2676, %v2471
        %v2678 = vpop.permute.xlu0 %2677
        %2680 = vset.pattern.permute.xlu0 20
        %2681 = vperm.xlu0 %2680, %v2472
        %v2682 = vpop.permute.xlu0 %2681
        %2684 = vset.pattern.permute.xlu0 20
        %2685 = vperm.xlu0 %2684, %v2473
        %v2686 = vpop.permute.xlu0 %2685
        %2688 = vset.pattern.permute.xlu0 20
        %2689 = vperm.xlu0 %2688, %v2474
        %v2690 = vpop.permute.xlu0 %2689
        %2692 = vset.pattern.permute.xlu0 20
        %2693 = vperm.xlu0 %2692, %v2475
        %v2694 = vpop.permute.xlu0 %2693
        %v2695 = vrot.slane %v2670, 7
        %v2696 = vsel %vm603, %v2695, %v2666
        %v2697 = vrot.slane %v2674, 6
        %v2698 = vsel %vm606, %v2697, %v2696
        %v2699 = vrot.slane %v2678, 5
        %v2700 = vsel %vm609, %v2699, %v2698
        %v2701 = vrot.slane %v2682, 4
        %v2702 = vsel %vm612, %v2701, %v2700
        %v2703 = vrot.slane %v2686, 3
        %v2704 = vsel %vm615, %v2703, %v2702
        %v2705 = vrot.slane %v2690, 2
        %v2706 = vsel %vm618, %v2705, %v2704
        %v2707 = vrot.slane %v2694, 1
        %v2708 = vsel %vm621, %v2707, %v2706
        %v2710 = vmul.f32 %v2662, %v2708
        %v2712 = vsel %vm792, %v2710, 0
        %2714 = vmatprep.subr.mxu0 0.0
        %2715 = vmatpush1.msra.mxu0 %v498
        %2716 = vmatprep.subr.mxu0 0.0
        %2717 = vmatpush1.msra.mxu0 %v499
        %2718 = vmatprep.subr.mxu0 0.0
        %2719 = vmatpush1.msra.mxu0 %v500
        %2720 = vmatprep.subr.mxu0 0.0
        %2721 = vmatpush1.msra.mxu0 %v501
        %2722 = vmatprep.subr.mxu0 0.0
        %2723 = vmatpush1.msra.mxu0 0.0
        %2724 = vmatprep.subr.mxu0 0.0
        %2725 = vmatpush1.msra.mxu0 0.0
        %2726 = vmatprep.subr.mxu0 0.0
        %2727 = vmatpush1.msra.mxu0 0.0
        %2728 = vmatprep.subr.mxu0 0.0
        %2729 = vmatpush1.msra.mxu0 0.0
        %2730 = vmatprep.subr.mxu0 0.0
        %2731 = vmatpush1.msra.mxu0 0.0
        %2732 = vmatprep.subr.mxu0 0.0
        %2733 = vmatpush1.msra.mxu0 0.0
        %2734 = vmatprep.subr.mxu0 0.0
        %2735 = vmatpush1.msra.mxu0 0.0
        %2736 = vmatprep.subr.mxu0 0.0
        %2737 = vmatpush1.msra.mxu0 0.0
        %2738 = vmatprep.subr.mxu0 0.0
        %2739 = vmatpush1.msra.mxu0 0.0
        %2740 = vmatprep.subr.mxu0 0.0
        %2741 = vmatpush1.msra.mxu0 0.0
        %2742 = vmatprep.subr.mxu0 0.0
        %2743 = vmatpush1.msra.mxu0 0.0
        %2744 = vmatprep.subr.mxu0 0.0
        %2745 = vmatpush1.msra.mxu0 0.0
        %2746 = vmatprep.subr.mxu0 0.0
        %2747 = vmatpush1.msra.mxu0 0.0
        %2748 = vmatprep.subr.mxu0 0.0
        %2749 = vmatpush1.msra.mxu0 0.0
        %2750 = vmatprep.subr.mxu0 0.0
        %2751 = vmatpush1.msra.mxu0 0.0
        %2752 = vmatprep.subr.mxu0 0.0
        %2753 = vmatpush1.msra.mxu0 0.0
        %2754 = vmatprep.subr.mxu0 0.0
        %2755 = vmatpush1.msra.mxu0 0.0
        %2756 = vmatprep.subr.mxu0 0.0
        %2757 = vmatpush1.msra.mxu0 0.0
        %2758 = vmatprep.subr.mxu0 0.0
        %2759 = vmatpush1.msra.mxu0 0.0
        %2760 = vmatprep.subr.mxu0 0.0
        %2761 = vmatpush1.msra.mxu0 0.0
        %2762 = vmatprep.subr.mxu0 0.0
        %2763 = vmatpush1.msra.mxu0 0.0
        %2764 = vmatprep.subr.mxu0 0.0
        %2765 = vmatpush1.msra.mxu0 0.0
        %2766 = vmatprep.subr.mxu0 0.0
        %2767 = vmatpush1.msra.mxu0 0.0
        %2768 = vmatprep.subr.mxu0 0.0
        %2769 = vmatpush1.msra.mxu0 0.0
        %2770 = vmatprep.subr.mxu0 0.0
        %2771 = vmatpush1.msra.mxu0 0.0
        %2772 = vmatprep.subr.mxu0 0.0
        %2773 = vmatpush1.msra.mxu0 0.0
        %2774 = vmatprep.subr.mxu0 0.0
        %2775 = vmatpush1.msra.mxu0 0.0
        %2776 = vmatprep.subr.mxu0 0.0
        %2777 = vmatpush1.msra.mxu0 0.0
        %2778 = vmatprep.mubr.f32.mxu0 0.0
        %2779 = vmatmul.mubr.f32.gmra.mrb[0].mxu0 %v2712
        %v2780 = vpop.f32.mrb[0].mxu0
        %v2781 = vadd.f32 0.0, %v2780
        %v2782 = vpop.f32.mrb[0].mxu0
        %2783 = vdwg.mxu0
        %2785 = vrot.lane.b32.xlu0 %v2781, 10
        %v2786 = vpop.permute.xlu0 %2785
        %v2788 = vadd.f32 %v2653, %v2786
        %v2789 = vxor.u32 %v2788, 2147483648
        %v2790 = vmul.f32 %v2789, 1.442695
        %v2791 = vpow.pop %v2790
        %v2792 = vadd.f32 %v2791, 1.0
        %v2793 = vrcp.pop %v2792
        %v2794 = vmul.f32 1.0, %v2793
        %v2795 = vadd.f32 %v2781, %v883
        %2797 = vrot.lane.b32.xlu0 %v2795, 74
        %v2798 = vpop.permute.xlu0 %2797
        %v2800 = vmul.f32 %v2794, %v2798
        %2802 = vrot.lane.b32.xlu0 %v2800, 64
        %v2803 = vpop.permute.xlu0 %2802
        %v2805 = vadd.f32 %v2653, %v2803
        %v2806 = vtanh.pop %v2805
        %v2807 = vsub.f32 1.0, %v2794
        %2809 = vrot.lane.b32.xlu0 %v2806, 96
        %v2810 = vpop.permute.xlu0 %2809
        %v2812 = vmul.f32 %v2807, %v2810
        %2813 = vrot.lane.b32.xlu0 %v2710, 42
        %v2814 = vpop.permute.xlu0 %2813
        %v2816 = vmul.f32 %v2794, %v2814
        %v2817 = vadd.f32 %v2812, %v2816
        %v2819 = vsel %vm651, %v2661, 0
        %2821 = vmatprep.subr.mxu0 0.0
        %2822 = vmatpush1.msra.mxu0 %v490
        %2823 = vmatprep.subr.mxu0 0.0
        %2824 = vmatpush1.msra.mxu0 %v919
        %2825 = vmatprep.subr.mxu0 0.0
        %2826 = vmatpush1.msra.mxu0 0.0
        %2827 = vmatprep.subr.mxu0 0.0
        %2828 = vmatpush1.msra.mxu0 0.0
        %2829 = vmatprep.subr.mxu0 0.0
        %2830 = vmatpush1.msra.mxu0 0.0
        %2831 = vmatprep.subr.mxu0 0.0
        %2832 = vmatpush1.msra.mxu0 0.0
        %2833 = vmatprep.subr.mxu0 0.0
        %2834 = vmatpush1.msra.mxu0 0.0
        %2835 = vmatprep.subr.mxu0 0.0
        %2836 = vmatpush1.msra.mxu0 0.0
        %2837 = vmatprep.subr.mxu0 0.0
        %2838 = vmatpush1.msra.mxu0 0.0
        %2839 = vmatprep.subr.mxu0 0.0
        %2840 = vmatpush1.msra.mxu0 0.0
        %2841 = vmatprep.subr.mxu0 0.0
        %2842 = vmatpush1.msra.mxu0 0.0
        %2843 = vmatprep.subr.mxu0 0.0
        %2844 = vmatpush1.msra.mxu0 0.0
        %2845 = vmatprep.subr.mxu0 0.0
        %2846 = vmatpush1.msra.mxu0 0.0
        %2847 = vmatprep.subr.mxu0 0.0
        %2848 = vmatpush1.msra.mxu0 0.0
        %2849 = vmatprep.subr.mxu0 0.0
        %2850 = vmatpush1.msra.mxu0 0.0
        %2851 = vmatprep.subr.mxu0 0.0
        %2852 = vmatpush1.msra.mxu0 0.0
        %2853 = vmatprep.subr.mxu0 0.0
        %2854 = vmatpush1.msra.mxu0 0.0
        %2855 = vmatprep.subr.mxu0 0.0
        %2856 = vmatpush1.msra.mxu0 0.0
        %2857 = vmatprep.subr.mxu0 0.0
        %2858 = vmatpush1.msra.mxu0 0.0
        %2859 = vmatprep.subr.mxu0 0.0
        %2860 = vmatpush1.msra.mxu0 0.0
        %2861 = vmatprep.subr.mxu0 0.0
        %2862 = vmatpush1.msra.mxu0 0.0
        %2863 = vmatprep.subr.mxu0 0.0
        %2864 = vmatpush1.msra.mxu0 0.0
        %2865 = vmatprep.subr.mxu0 0.0
        %2866 = vmatpush1.msra.mxu0 0.0
        %2867 = vmatprep.subr.mxu0 0.0
        %2868 = vmatpush1.msra.mxu0 0.0
        %2869 = vmatprep.subr.mxu0 0.0
        %2870 = vmatpush1.msra.mxu0 0.0
        %2871 = vmatprep.subr.mxu0 0.0
        %2872 = vmatpush1.msra.mxu0 0.0
        %2873 = vmatprep.subr.mxu0 0.0
        %2874 = vmatpush1.msra.mxu0 0.0
        %2875 = vmatprep.subr.mxu0 0.0
        %2876 = vmatpush1.msra.mxu0 0.0
        %2877 = vmatprep.subr.mxu0 0.0
        %2878 = vmatpush1.msra.mxu0 0.0
        %2879 = vmatprep.subr.mxu0 0.0
        %2880 = vmatpush1.msra.mxu0 0.0
        %2881 = vmatprep.subr.mxu0 0.0
        %2882 = vmatpush1.msra.mxu0 0.0
        %2883 = vmatprep.subr.mxu0 0.0
        %2884 = vmatpush1.msra.mxu0 0.0
        %2885 = vmatprep.mubr.f32.mxu0 0.0
        %2886 = vmatmul.mubr.f32.gmra.mrb[0].mxu0 %v2819
        %v2887 = vpop.f32.mrb[0].mxu0
        %v2888 = vadd.f32 %v912, %v2887
        %v2889 = vpop.f32.mrb[0].mxu0
        %2890 = vdwg.mxu0
        %v2891 = vld [vmem:[#allocation4] sm:$0xff]
        %v2892 = vmul.f32 %v2891, %v2708
        %v2894 = vsel %vm792, %v2892, 0
        %2896 = vmatprep.subr.mxu0 0.0
        %2897 = vmatpush1.msra.mxu0 %v503
        %2898 = vmatprep.subr.mxu0 0.0
        %2899 = vmatpush1.msra.mxu0 %v504
        %2900 = vmatprep.subr.mxu0 0.0
        %2901 = vmatpush1.msra.mxu0 %v505
        %2902 = vmatprep.subr.mxu0 0.0
        %2903 = vmatpush1.msra.mxu0 %v506
        %2904 = vmatprep.subr.mxu0 0.0
        %2905 = vmatpush1.msra.mxu0 0.0
        %2906 = vmatprep.subr.mxu0 0.0
        %2907 = vmatpush1.msra.mxu0 0.0
        %2908 = vmatprep.subr.mxu0 0.0
        %2909 = vmatpush1.msra.mxu0 0.0
        %2910 = vmatprep.subr.mxu0 0.0
        %2911 = vmatpush1.msra.mxu0 0.0
        %2912 = vmatprep.subr.mxu0 0.0
        %2913 = vmatpush1.msra.mxu0 0.0
        %2914 = vmatprep.subr.mxu0 0.0
        %2915 = vmatpush1.msra.mxu0 0.0
        %2916 = vmatprep.subr.mxu0 0.0
        %2917 = vmatpush1.msra.mxu0 0.0
        %2918 = vmatprep.subr.mxu0 0.0
        %2919 = vmatpush1.msra.mxu0 0.0
        %2920 = vmatprep.subr.mxu0 0.0
        %2921 = vmatpush1.msra.mxu0 0.0
        %2922 = vmatprep.subr.mxu0 0.0
        %2923 = vmatpush1.msra.mxu0 0.0
        %2924 = vmatprep.subr.mxu0 0.0
        %2925 = vmatpush1.msra.mxu0 0.0
        %2926 = vmatprep.subr.mxu0 0.0
        %2927 = vmatpush1.msra.mxu0 0.0
        %2928 = vmatprep.subr.mxu0 0.0
        %2929 = vmatpush1.msra.mxu0 0.0
        %2930 = vmatprep.subr.mxu0 0.0
        %2931 = vmatpush1.msra.mxu0 0.0
        %2932 = vmatprep.subr.mxu0 0.0
        %2933 = vmatpush1.msra.mxu0 0.0
        %2934 = vmatprep.subr.mxu0 0.0
        %2935 = vmatpush1.msra.mxu0 0.0
        %2936 = vmatprep.subr.mxu0 0.0
        %2937 = vmatpush1.msra.mxu0 0.0
        %2938 = vmatprep.subr.mxu0 0.0
        %2939 = vmatpush1.msra.mxu0 0.0
        %2940 = vmatprep.subr.mxu0 0.0
        %2941 = vmatpush1.msra.mxu0 0.0
        %2942 = vmatprep.subr.mxu0 0.0
        %2943 = vmatpush1.msra.mxu0 0.0
        %2944 = vmatprep.subr.mxu0 0.0
        %2945 = vmatpush1.msra.mxu0 0.0
        %2946 = vmatprep.subr.mxu0 0.0
        %2947 = vmatpush1.msra.mxu0 0.0
        %2948 = vmatprep.subr.mxu0 0.0
        %2949 = vmatpush1.msra.mxu0 0.0
        %2950 = vmatprep.subr.mxu0 0.0
        %2951 = vmatpush1.msra.mxu0 0.0
        %2952 = vmatprep.subr.mxu0 0.0
        %2953 = vmatpush1.msra.mxu0 0.0
        %2954 = vmatprep.subr.mxu0 0.0
        %2955 = vmatpush1.msra.mxu0 0.0
        %2956 = vmatprep.subr.mxu0 0.0
        %2957 = vmatpush1.msra.mxu0 0.0
        %2958 = vmatprep.subr.mxu0 0.0
        %2959 = vmatpush1.msra.mxu0 0.0
        %2960 = vmatprep.mubr.f32.mxu0 0.0
        %2961 = vmatmul.mubr.f32.gmra.mrb[0].mxu0 %v2894
        %v2962 = vpop.f32.mrb[0].mxu0
        %v2963 = vadd.f32 0.0, %v2962
        %v2964 = vpop.f32.mrb[0].mxu0
        %2965 = vdwg.mxu0
        %v2966 = vadd.f32 %v2888, %v2963
        %v2967 = vxor.u32 %v2966, 2147483648
        %v2968 = vmul.f32 %v2967, 1.442695
        %v2969 = vpow.pop %v2968
        %v2970 = vadd.f32 %v2969, 1.0
        %v2971 = vrcp.pop %v2970
        %v2972 = vmul.f32 1.0, %v2971
        %v2973 = vadd.f32 %v2963, %v1079
        %2975 = vrot.lane.b32.xlu0 %v2973, 64
        %v2976 = vpop.permute.xlu0 %2975
        %v2978 = vmul.f32 %v2972, %v2976
        %2980 = vrot.lane.b32.xlu0 %v2978, 64
        %v2981 = vpop.permute.xlu0 %2980
        %v2983 = vadd.f32 %v2888, %v2981
        %v2984 = vtanh.pop %v2983
        %v2985 = vsub.f32 1.0, %v2972
        %2987 = vrot.lane.b32.xlu0 %v2984, 96
        %v2988 = vpop.permute.xlu0 %2987
        %v2990 = vmul.f32 %v2985, %v2988
        %2991 = vrot.lane.b32.xlu0 %v2892, 32
        %v2992 = vpop.permute.xlu0 %2991
        %v2994 = vmul.f32 %v2972, %v2992
        %v2995 = vadd.f32 %v2990, %v2994
        %2997 = vrot.lane.b32.xlu0 %v2817, 86
        %v2998 = vpop.permute.xlu0 %2997
        %v3000 = vsel %vm792, %v2998, %v2995
        %v3002 = vsel %vm1115, %v3000, 0
        %3004 = vmatprep.subr.mxu0 0.0
        %3005 = vmatpush1.msra.mxu0 %v517
        %3006 = vmatprep.subr.mxu0 0.0
        %3007 = vmatpush1.msra.mxu0 %v518
        %3008 = vmatprep.subr.mxu0 0.0
        %3009 = vmatpush1.msra.mxu0 %v519
        %3010 = vmatprep.subr.mxu0 0.0
        %3011 = vmatpush1.msra.mxu0 %v520
        %3012 = vmatprep.subr.mxu0 0.0
        %3013 = vmatpush1.msra.mxu0 %v521
        %3014 = vmatprep.subr.mxu0 0.0
        %3015 = vmatpush1.msra.mxu0 %v522
        %3016 = vmatprep.subr.mxu0 0.0
        %3017 = vmatpush1.msra.mxu0 %v523
        %3018 = vmatprep.subr.mxu0 0.0
        %3019 = vmatpush1.msra.mxu0 %v524
        %3020 = vmatprep.subr.mxu0 0.0
        %3021 = vmatpush1.msra.mxu0 0.0
        %3022 = vmatprep.subr.mxu0 0.0
        %3023 = vmatpush1.msra.mxu0 0.0
        %3024 = vmatprep.subr.mxu0 0.0
        %3025 = vmatpush1.msra.mxu0 0.0
        %3026 = vmatprep.subr.mxu0 0.0
        %3027 = vmatpush1.msra.mxu0 0.0
        %3028 = vmatprep.subr.mxu0 0.0
        %3029 = vmatpush1.msra.mxu0 0.0
        %3030 = vmatprep.subr.mxu0 0.0
        %3031 = vmatpush1.msra.mxu0 0.0
        %3032 = vmatprep.subr.mxu0 0.0
        %3033 = vmatpush1.msra.mxu0 0.0
        %3034 = vmatprep.subr.mxu0 0.0
        %3035 = vmatpush1.msra.mxu0 0.0
        %3036 = vmatprep.subr.mxu0 0.0
        %3037 = vmatpush1.msra.mxu0 0.0
        %3038 = vmatprep.subr.mxu0 0.0
        %3039 = vmatpush1.msra.mxu0 0.0
        %3040 = vmatprep.subr.mxu0 0.0
        %3041 = vmatpush1.msra.mxu0 0.0
        %3042 = vmatprep.subr.mxu0 0.0
        %3043 = vmatpush1.msra.mxu0 0.0
        %3044 = vmatprep.subr.mxu0 0.0
        %3045 = vmatpush1.msra.mxu0 0.0
        %3046 = vmatprep.subr.mxu0 0.0
        %3047 = vmatpush1.msra.mxu0 0.0
        %3048 = vmatprep.subr.mxu0 0.0
        %3049 = vmatpush1.msra.mxu0 0.0
        %3050 = vmatprep.subr.mxu0 0.0
        %3051 = vmatpush1.msra.mxu0 0.0
        %3052 = vmatprep.subr.mxu0 0.0
        %3053 = vmatpush1.msra.mxu0 0.0
        %3054 = vmatprep.subr.mxu0 0.0
        %3055 = vmatpush1.msra.mxu0 0.0
        %3056 = vmatprep.subr.mxu0 0.0
        %3057 = vmatpush1.msra.mxu0 0.0
        %3058 = vmatprep.subr.mxu0 0.0
        %3059 = vmatpush1.msra.mxu0 0.0
        %3060 = vmatprep.subr.mxu0 0.0
        %3061 = vmatpush1.msra.mxu0 0.0
        %3062 = vmatprep.subr.mxu0 0.0
        %3063 = vmatpush1.msra.mxu0 0.0
        %3064 = vmatprep.subr.mxu0 0.0
        %3065 = vmatpush1.msra.mxu0 0.0
        %3066 = vmatprep.subr.mxu0 0.0
        %3067 = vmatpush1.msra.mxu0 0.0
        %3068 = vmatprep.mubr.f32.mxu0 0.0
        %3069 = vmatmul.mubr.f32.gmra.mrb[0].mxu0 %v3002
        %v3070 = vpop.f32.mrb[0].mxu0
        %v3071 = vadd.f32 %v1113, %v3070
        %v3072 = vpop.f32.mrb[0].mxu0
        %3073 = vdwg.mxu0
        %v3074 = vxor.u32 %v3071, 2147483648
        %v3075 = vmul.f32 %v3074, 1.442695
        %v3076 = vpow.pop %v3075
        %v3077 = vadd.f32 %v3076, 1.0
        %v3078 = vrcp.pop %v3077
        %v3079 = vmul.f32 1.0, %v3078
        %3081 = vrot.lane.b32.xlu0 %v3079, 118
        %v3082 = vpop.permute.xlu0 %3081
        %v3084 = vmul.f32 %v3071, %v3082
        %v3085 = vrot.slane %v2661, 1
        %v3086 = vrot.slane %v2661, 2
        %v3087 = vrot.slane %v2661, 3
        %v3088 = vrot.slane %v2661, 4
        %v3089 = vrot.slane %v2661, 5
        %v3090 = vrot.slane %v2661, 6
        %v3091 = vrot.slane %v2661, 7
        %v3100 = vmul.f32 %v2468, %v2661
        %v3101 = vmul.f32 %v2469, %v3085
        %v3102 = vmul.f32 %v2470, %v3086
        %v3103 = vmul.f32 %v2471, %v3087
        %v3104 = vmul.f32 %v2472, %v3088
        %v3105 = vmul.f32 %v2473, %v3089
        %v3106 = vmul.f32 %v2474, %v3090
        %v3107 = vmul.f32 %v2475, %v3091
        %v3116 = vrot.slane %v3101, 7
        %v3117 = vsel %vm603, %v3116, %v3100
        %v3118 = vrot.slane %v3102, 6
        %v3119 = vsel %vm606, %v3118, %v3117
        %v3120 = vrot.slane %v3103, 5
        %v3121 = vsel %vm609, %v3120, %v3119
        %v3122 = vrot.slane %v3104, 4
        %v3123 = vsel %vm612, %v3122, %v3121
        %v3124 = vrot.slane %v3105, 3
        %v3125 = vsel %vm615, %v3124, %v3123
        %v3126 = vrot.slane %v3106, 2
        %v3127 = vsel %vm618, %v3126, %v3125
        %v3128 = vrot.slane %v3107, 1
        %v3129 = vsel %vm621, %v3128, %v3127
        %3130 = vrot.lane.b32.xlu0 %v3129, 10
        %v3131 = vpop.permute.xlu0 %3130
        %v3133 = vsel %vm651, %v3084, %v3131
        %v3135 = vsel %vm659, %v3133, 0
        %3137 = vmatprep.subr.mxu0 0.0
        %3138 = vmatpush1.msra.mxu0 %v526
        %3139 = vmatprep.subr.mxu0 0.0
        %3140 = vmatpush1.msra.mxu0 %v527
        %3141 = vmatprep.subr.mxu0 0.0
        %3142 = vmatpush1.msra.mxu0 %v1259
        %3143 = vmatprep.subr.mxu0 0.0
        %3144 = vmatpush1.msra.mxu0 0.0
        %3145 = vmatprep.subr.mxu0 0.0
        %3146 = vmatpush1.msra.mxu0 0.0
        %3147 = vmatprep.subr.mxu0 0.0
        %3148 = vmatpush1.msra.mxu0 0.0
        %3149 = vmatprep.subr.mxu0 0.0
        %3150 = vmatpush1.msra.mxu0 0.0
        %3151 = vmatprep.subr.mxu0 0.0
        %3152 = vmatpush1.msra.mxu0 0.0
        %3153 = vmatprep.subr.mxu0 0.0
        %3154 = vmatpush1.msra.mxu0 0.0
        %3155 = vmatprep.subr.mxu0 0.0
        %3156 = vmatpush1.msra.mxu0 0.0
        %3157 = vmatprep.subr.mxu0 0.0
        %3158 = vmatpush1.msra.mxu0 0.0
        %3159 = vmatprep.subr.mxu0 0.0
        %3160 = vmatpush1.msra.mxu0 0.0
        %3161 = vmatprep.subr.mxu0 0.0
        %3162 = vmatpush1.msra.mxu0 0.0
        %3163 = vmatprep.subr.mxu0 0.0
        %3164 = vmatpush1.msra.mxu0 0.0
        %3165 = vmatprep.subr.mxu0 0.0
        %3166 = vmatpush1.msra.mxu0 0.0
        %3167 = vmatprep.subr.mxu0 0.0
        %3168 = vmatpush1.msra.mxu0 0.0
        %3169 = vmatprep.subr.mxu0 0.0
        %3170 = vmatpush1.msra.mxu0 0.0
        %3171 = vmatprep.subr.mxu0 0.0
        %3172 = vmatpush1.msra.mxu0 0.0
        %3173 = vmatprep.subr.mxu0 0.0
        %3174 = vmatpush1.msra.mxu0 0.0
        %3175 = vmatprep.subr.mxu0 0.0
        %3176 = vmatpush1.msra.mxu0 0.0
        %3177 = vmatprep.subr.mxu0 0.0
        %3178 = vmatpush1.msra.mxu0 0.0
        %3179 = vmatprep.subr.mxu0 0.0
        %3180 = vmatpush1.msra.mxu0 0.0
        %3181 = vmatprep.subr.mxu0 0.0
        %3182 = vmatpush1.msra.mxu0 0.0
        %3183 = vmatprep.subr.mxu0 0.0
        %3184 = vmatpush1.msra.mxu0 0.0
        %3185 = vmatprep.subr.mxu0 0.0
        %3186 = vmatpush1.msra.mxu0 0.0
        %3187 = vmatprep.subr.mxu0 0.0
        %3188 = vmatpush1.msra.mxu0 0.0
        %3189 = vmatprep.subr.mxu0 0.0
        %3190 = vmatpush1.msra.mxu0 0.0
        %3191 = vmatprep.subr.mxu0 0.0
        %3192 = vmatpush1.msra.mxu0 0.0
        %3193 = vmatprep.subr.mxu0 0.0
        %3194 = vmatpush1.msra.mxu0 0.0
        %3195 = vmatprep.subr.mxu0 0.0
        %3196 = vmatpush1.msra.mxu0 0.0
        %3197 = vmatprep.subr.mxu0 0.0
        %3198 = vmatpush1.msra.mxu0 0.0
        %3199 = vmatprep.subr.mxu0 0.0
        %3200 = vmatpush1.msra.mxu0 0.0
        %3201 = vmatprep.mubr.f32.mxu0 0.0
        %3202 = vmatmul.mubr.f32.gmra.mrb[0].mxu0 %v3135
        %v3203 = vpop.f32.mrb[0].mxu0
        %v3204 = vadd.f32 %v1253, %v3203
        %v3205 = vpop.f32.mrb[0].mxu0
        %3206 = vdwg.mxu0
        %v3207 = vmax.f32 %v3204, 0.0
        %v3209 = vsel %vm651, %v3207, 0
        %3211 = vmatprep.subr.mxu0 0.0
        %3212 = vmatpush1.msra.mxu0 %v493
        %3213 = vmatprep.subr.mxu0 0.0
        %3214 = vmatpush1.msra.mxu0 %v1342
        %3215 = vmatprep.subr.mxu0 0.0
        %3216 = vmatpush1.msra.mxu0 0.0
        %3217 = vmatprep.subr.mxu0 0.0
        %3218 = vmatpush1.msra.mxu0 0.0
        %3219 = vmatprep.subr.mxu0 0.0
        %3220 = vmatpush1.msra.mxu0 0.0
        %3221 = vmatprep.subr.mxu0 0.0
        %3222 = vmatpush1.msra.mxu0 0.0
        %3223 = vmatprep.subr.mxu0 0.0
        %3224 = vmatpush1.msra.mxu0 0.0
        %3225 = vmatprep.subr.mxu0 0.0
        %3226 = vmatpush1.msra.mxu0 0.0
        %3227 = vmatprep.subr.mxu0 0.0
        %3228 = vmatpush1.msra.mxu0 0.0
        %3229 = vmatprep.subr.mxu0 0.0
        %3230 = vmatpush1.msra.mxu0 0.0
        %3231 = vmatprep.subr.mxu0 0.0
        %3232 = vmatpush1.msra.mxu0 0.0
        %3233 = vmatprep.subr.mxu0 0.0
        %3234 = vmatpush1.msra.mxu0 0.0
        %3235 = vmatprep.subr.mxu0 0.0
        %3236 = vmatpush1.msra.mxu0 0.0
        %3237 = vmatprep.subr.mxu0 0.0
        %3238 = vmatpush1.msra.mxu0 0.0
        %3239 = vmatprep.subr.mxu0 0.0
        %3240 = vmatpush1.msra.mxu0 0.0
        %3241 = vmatprep.subr.mxu0 0.0
        %3242 = vmatpush1.msra.mxu0 0.0
        %3243 = vmatprep.subr.mxu0 0.0
        %3244 = vmatpush1.msra.mxu0 0.0
        %3245 = vmatprep.subr.mxu0 0.0
        %3246 = vmatpush1.msra.mxu0 0.0
        %3247 = vmatprep.subr.mxu0 0.0
        %3248 = vmatpush1.msra.mxu0 0.0
        %3249 = vmatprep.subr.mxu0 0.0
        %3250 = vmatpush1.msra.mxu0 0.0
        %3251 = vmatprep.subr.mxu0 0.0
        %3252 = vmatpush1.msra.mxu0 0.0
        %3253 = vmatprep.subr.mxu0 0.0
        %3254 = vmatpush1.msra.mxu0 0.0
        %3255 = vmatprep.subr.mxu0 0.0
        %3256 = vmatpush1.msra.mxu0 0.0
        %3257 = vmatprep.subr.mxu0 0.0
        %3258 = vmatpush1.msra.mxu0 0.0
        %3259 = vmatprep.subr.mxu0 0.0
        %3260 = vmatpush1.msra.mxu0 0.0
        %3261 = vmatprep.subr.mxu0 0.0
        %3262 = vmatpush1.msra.mxu0 0.0
        %3263 = vmatprep.subr.mxu0 0.0
        %3264 = vmatpush1.msra.mxu0 0.0
        %3265 = vmatprep.subr.mxu0 0.0
        %3266 = vmatpush1.msra.mxu0 0.0
        %3267 = vmatprep.subr.mxu0 0.0
        %3268 = vmatpush1.msra.mxu0 0.0
        %3269 = vmatprep.subr.mxu0 0.0
        %3270 = vmatpush1.msra.mxu0 0.0
        %3271 = vmatprep.subr.mxu0 0.0
        %3272 = vmatpush1.msra.mxu0 0.0
        %3273 = vmatprep.subr.mxu0 0.0
        %3274 = vmatpush1.msra.mxu0 0.0
        %3275 = vmatprep.mubr.f32.mxu0 0.0
        %3276 = vmatmul.mubr.f32.gmra.mrb[0].mxu0 %v3209
        %v3277 = vpop.f32.mrb[0].mxu0
        %v3278 = vadd.f32 %v1336, %v3277
        %v3279 = vpop.f32.mrb[0].mxu0
        %3280 = vdwg.mxu0
        %v3281 = vld [vmem:[#allocation2] sm:$0xff]
        %v3283 = vsel %vm792, %v3281, 0
        %3285 = vmatprep.subr.mxu0 0.0
        %3286 = vmatpush1.msra.mxu0 %v508
        %3287 = vmatprep.subr.mxu0 0.0
        %3288 = vmatpush1.msra.mxu0 %v509
        %3289 = vmatprep.subr.mxu0 0.0
        %3290 = vmatpush1.msra.mxu0 %v510
        %3291 = vmatprep.subr.mxu0 0.0
        %3292 = vmatpush1.msra.mxu0 %v511
        %3293 = vmatprep.subr.mxu0 0.0
        %3294 = vmatpush1.msra.mxu0 0.0
        %3295 = vmatprep.subr.mxu0 0.0
        %3296 = vmatpush1.msra.mxu0 0.0
        %3297 = vmatprep.subr.mxu0 0.0
        %3298 = vmatpush1.msra.mxu0 0.0
        %3299 = vmatprep.subr.mxu0 0.0
        %3300 = vmatpush1.msra.mxu0 0.0
        %3301 = vmatprep.subr.mxu0 0.0
        %3302 = vmatpush1.msra.mxu0 0.0
        %3303 = vmatprep.subr.mxu0 0.0
        %3304 = vmatpush1.msra.mxu0 0.0
        %3305 = vmatprep.subr.mxu0 0.0
        %3306 = vmatpush1.msra.mxu0 0.0
        %3307 = vmatprep.subr.mxu0 0.0
        %3308 = vmatpush1.msra.mxu0 0.0
        %3309 = vmatprep.subr.mxu0 0.0
        %3310 = vmatpush1.msra.mxu0 0.0
        %3311 = vmatprep.subr.mxu0 0.0
        %3312 = vmatpush1.msra.mxu0 0.0
        %3313 = vmatprep.subr.mxu0 0.0
        %3314 = vmatpush1.msra.mxu0 0.0
        %3315 = vmatprep.subr.mxu0 0.0
        %3316 = vmatpush1.msra.mxu0 0.0
        %3317 = vmatprep.subr.mxu0 0.0
        %3318 = vmatpush1.msra.mxu0 0.0
        %3319 = vmatprep.subr.mxu0 0.0
        %3320 = vmatpush1.msra.mxu0 0.0
        %3321 = vmatprep.subr.mxu0 0.0
        %3322 = vmatpush1.msra.mxu0 0.0
        %3323 = vmatprep.subr.mxu0 0.0
        %3324 = vmatpush1.msra.mxu0 0.0
        %3325 = vmatprep.subr.mxu0 0.0
        %3326 = vmatpush1.msra.mxu0 0.0
        %3327 = vmatprep.subr.mxu0 0.0
        %3328 = vmatpush1.msra.mxu0 0.0
        %3329 = vmatprep.subr.mxu0 0.0
        %3330 = vmatpush1.msra.mxu0 0.0
        %3331 = vmatprep.subr.mxu0 0.0
        %3332 = vmatpush1.msra.mxu0 0.0
        %3333 = vmatprep.subr.mxu0 0.0
        %3334 = vmatpush1.msra.mxu0 0.0
        %3335 = vmatprep.subr.mxu0 0.0
        %3336 = vmatpush1.msra.mxu0 0.0
        %3337 = vmatprep.subr.mxu0 0.0
        %3338 = vmatpush1.msra.mxu0 0.0
        %3339 = vmatprep.subr.mxu0 0.0
        %3340 = vmatpush1.msra.mxu0 0.0
        %3341 = vmatprep.subr.mxu0 0.0
        %3342 = vmatpush1.msra.mxu0 0.0
        %3343 = vmatprep.subr.mxu0 0.0
        %3344 = vmatpush1.msra.mxu0 0.0
        %3345 = vmatprep.subr.mxu0 0.0
        %3346 = vmatpush1.msra.mxu0 0.0
        %3347 = vmatprep.subr.mxu0 0.0
        %3348 = vmatpush1.msra.mxu0 0.0
        %3349 = vmatprep.mubr.f32.mxu0 0.0
        %3350 = vmatmul.mubr.f32.gmra.mrb[0].mxu0 %v3283
        %v3351 = vpop.f32.mrb[0].mxu0
        %v3352 = vadd.f32 0.0, %v3351
        %v3353 = vpop.f32.mrb[0].mxu0
        %3354 = vdwg.mxu0
        %v3355 = vadd.f32 %v3278, %v3352
        %v3356 = vxor.u32 %v3355, 2147483648
        %v3357 = vmul.f32 %v3356, 1.442695
        %v3358 = vpow.pop %v3357
        %v3359 = vadd.f32 %v3358, 1.0
        %v3360 = vrcp.pop %v3359
        %v3361 = vmul.f32 1.0, %v3360
        %v3362 = vadd.f32 %v3352, %v1501
        %3364 = vrot.lane.b32.xlu0 %v3362, 64
        %v3365 = vpop.permute.xlu0 %3364
        %v3367 = vmul.f32 %v3361, %v3365
        %3369 = vrot.lane.b32.xlu0 %v3367, 64
        %v3370 = vpop.permute.xlu0 %3369
        %v3372 = vadd.f32 %v3278, %v3370
        %v3373 = vtanh.pop %v3372
        %v3374 = vsub.f32 1.0, %v3361
        %3376 = vrot.lane.b32.xlu0 %v3373, 96
        %v3377 = vpop.permute.xlu0 %3376
        %v3379 = vmul.f32 %v3374, %v3377
        %3380 = vrot.lane.b32.xlu0 %v3281, 32
        %v3381 = vpop.permute.xlu0 %3380
        %v3383 = vmul.f32 %v3361, %v3381
        %v3384 = vadd.f32 %v3379, %v3383
        %3386 = vrot.lane.b32.xlu0 %v3384, 32
        %v3387 = vpop.permute.xlu0 %3386
        %vm3389 = vcmask 785920
        %3390 = vst.msk [vmem:[%s476] sm:$0xff] %vm3389, %v3387
        %3391 = vrot.lane.b32.xlu0 %v3384, 96
        %v3392 = vpop.permute.xlu0 %3391
        %3394 = vst.msk [vmem:[#allocation2] sm:$0xff] %vm792, %v3392
        %3395 = vst.msk [vmem:[#allocation3] sm:$0xff] %vm792, %v2998
        %3397 = vrot.lane.b32.xlu0 %v2995, 96
        %v3398 = vpop.permute.xlu0 %3397
        %3400 = vst.msk [vmem:[#allocation4] sm:$0xff] %vm792, %v3398
        %v3401 = vld [vmem:[%s426 + $0x3] sm:$0x1]
        %v3402 = vld [vmem:[%s426 + $0xb] sm:$0x1]
        %v3403 = vld [vmem:[%s426 + $0x13] sm:$0x1]
        %v3404 = vld [vmem:[%s426 + $0x1b] sm:$0x1]
        %v3405 = vld [vmem:[%s426 + $0x23] sm:$0x1]
        %v3406 = vld [vmem:[%s426 + $0x2b] sm:$0x1]
        %v3407 = vld [vmem:[%s426 + $0x33] sm:$0x1]
        %v3408 = vld [vmem:[%s426 + $0x3b] sm:$0x1]
        %v3409 = vsub.f32 1.0, %v3401
        %v3410 = vsub.f32 1.0, %v3402
        %v3411 = vsub.f32 1.0, %v3403
        %v3412 = vsub.f32 1.0, %v3404
        %v3413 = vsub.f32 1.0, %v3405
        %v3414 = vsub.f32 1.0, %v3406
        %v3415 = vsub.f32 1.0, %v3407
        %v3416 = vsub.f32 1.0, %v3408
        %v3417 = vmax.f32 %v3409, 0.0
        %v3418 = vmax.f32 %v3410, 0.0
        %v3419 = vmax.f32 %v3411, 0.0
        %v3420 = vmax.f32 %v3412, 0.0
        %v3421 = vmax.f32 %v3413, 0.0
        %v3422 = vmax.f32 %v3414, 0.0
        %v3423 = vmax.f32 %v3415, 0.0
        %v3424 = vmax.f32 %v3416, 0.0
        %3433 = vrot.lane.b32.xlu0 %v3417, 118
        %v3434 = vpop.permute.xlu0 %3433
        %3435 = vrot.lane.b32.xlu0 %v3418, 118
        %v3436 = vpop.permute.xlu0 %3435
        %3437 = vrot.lane.b32.xlu0 %v3419, 118
        %v3438 = vpop.permute.xlu0 %3437
        %3439 = vrot.lane.b32.xlu0 %v3420, 118
        %v3440 = vpop.permute.xlu0 %3439
        %3441 = vrot.lane.b32.xlu0 %v3421, 118
        %v3442 = vpop.permute.xlu0 %3441
        %3443 = vrot.lane.b32.xlu0 %v3422, 118
        %v3444 = vpop.permute.xlu0 %3443
        %3445 = vrot.lane.b32.xlu0 %v3423, 118
        %v3446 = vpop.permute.xlu0 %3445
        %3447 = vrot.lane.b32.xlu0 %v3424, 118
        %v3448 = vpop.permute.xlu0 %3447
        %v3457 = vmul.f32 %v3401, %v3434
        %v3458 = vmul.f32 %v3402, %v3436
        %v3459 = vmul.f32 %v3403, %v3438
        %v3460 = vmul.f32 %v3404, %v3440
        %v3461 = vmul.f32 %v3405, %v3442
        %v3462 = vmul.f32 %v3406, %v3444
        %v3463 = vmul.f32 %v3407, %v3446
        %v3464 = vmul.f32 %v3408, %v3448
        %v3473 = vrot.slane %v3410, 7
        %v3474 = vsel %vm603, %v3473, %v3409
        %v3475 = vrot.slane %v3411, 6
        %v3476 = vsel %vm606, %v3475, %v3474
        %v3477 = vrot.slane %v3412, 5
        %v3478 = vsel %vm609, %v3477, %v3476
        %v3479 = vrot.slane %v3413, 4
        %v3480 = vsel %vm612, %v3479, %v3478
        %v3481 = vrot.slane %v3414, 3
        %v3482 = vsel %vm615, %v3481, %v3480
        %v3483 = vrot.slane %v3415, 2
        %v3484 = vsel %vm618, %v3483, %v3482
        %v3485 = vrot.slane %v3416, 1
        %v3486 = vsel %vm621, %v3485, %v3484
        %3487 = vrot.lane.b32.xlu0 %v3486, 118
        %v3488 = vpop.permute.xlu0 %3487
        %v3498 = vrot.slane %v3458, 7
        %v3499 = vsel %vm603, %v3498, %v3457
        %v3500 = vrot.slane %v3459, 6
        %v3501 = vsel %vm606, %v3500, %v3499
        %v3502 = vrot.slane %v3460, 5
        %v3503 = vsel %vm609, %v3502, %v3501
        %v3504 = vrot.slane %v3461, 4
        %v3505 = vsel %vm612, %v3504, %v3503
        %v3506 = vrot.slane %v3462, 3
        %v3507 = vsel %vm615, %v3506, %v3505
        %v3508 = vrot.slane %v3463, 2
        %v3509 = vsel %vm618, %v3508, %v3507
        %v3510 = vrot.slane %v3464, 1
        %v3511 = vsel %vm621, %v3510, %v3509
        %3512 = vrot.lane.b32.xlu0 %v3511, 10
        %v3513 = vpop.permute.xlu0 %3512
        %v3515 = vsel %vm651, %v3488, %v3513
        %v3517 = vsel %vm659, %v3515, 0
        %3519 = vmatprep.subr.mxu0 0.0
        %3520 = vmatpush1.msra.mxu0 %v486
        %3521 = vmatprep.subr.mxu0 0.0
        %3522 = vmatpush1.msra.mxu0 %v487
        %3523 = vmatprep.subr.mxu0 0.0
        %3524 = vmatpush1.msra.mxu0 %v665
        %3525 = vmatprep.subr.mxu0 0.0
        %3526 = vmatpush1.msra.mxu0 0.0
        %3527 = vmatprep.subr.mxu0 0.0
        %3528 = vmatpush1.msra.mxu0 0.0
        %3529 = vmatprep.subr.mxu0 0.0
        %3530 = vmatpush1.msra.mxu0 0.0
        %3531 = vmatprep.subr.mxu0 0.0
        %3532 = vmatpush1.msra.mxu0 0.0
        %3533 = vmatprep.subr.mxu0 0.0
        %3534 = vmatpush1.msra.mxu0 0.0
        %3535 = vmatprep.subr.mxu0 0.0
        %3536 = vmatpush1.msra.mxu0 0.0
        %3537 = vmatprep.subr.mxu0 0.0
        %3538 = vmatpush1.msra.mxu0 0.0
        %3539 = vmatprep.subr.mxu0 0.0
        %3540 = vmatpush1.msra.mxu0 0.0
        %3541 = vmatprep.subr.mxu0 0.0
        %3542 = vmatpush1.msra.mxu0 0.0
        %3543 = vmatprep.subr.mxu0 0.0
        %3544 = vmatpush1.msra.mxu0 0.0
        %3545 = vmatprep.subr.mxu0 0.0
        %3546 = vmatpush1.msra.mxu0 0.0
        %3547 = vmatprep.subr.mxu0 0.0
        %3548 = vmatpush1.msra.mxu0 0.0
        %3549 = vmatprep.subr.mxu0 0.0
        %3550 = vmatpush1.msra.mxu0 0.0
        %3551 = vmatprep.subr.mxu0 0.0
        %3552 = vmatpush1.msra.mxu0 0.0
        %3553 = vmatprep.subr.mxu0 0.0
        %3554 = vmatpush1.msra.mxu0 0.0
        %3555 = vmatprep.subr.mxu0 0.0
        %3556 = vmatpush1.msra.mxu0 0.0
        %3557 = vmatprep.subr.mxu0 0.0
        %3558 = vmatpush1.msra.mxu0 0.0
        %3559 = vmatprep.subr.mxu0 0.0
        %3560 = vmatpush1.msra.mxu0 0.0
        %3561 = vmatprep.subr.mxu0 0.0
        %3562 = vmatpush1.msra.mxu0 0.0
        %3563 = vmatprep.subr.mxu0 0.0
        %3564 = vmatpush1.msra.mxu0 0.0
        %3565 = vmatprep.subr.mxu0 0.0
        %3566 = vmatpush1.msra.mxu0 0.0
        %3567 = vmatprep.subr.mxu0 0.0
        %3568 = vmatpush1.msra.mxu0 0.0
        %3569 = vmatprep.subr.mxu0 0.0
        %3570 = vmatpush1.msra.mxu0 0.0
        %3571 = vmatprep.subr.mxu0 0.0
        %3572 = vmatpush1.msra.mxu0 0.0
        %3573 = vmatprep.subr.mxu0 0.0
        %3574 = vmatpush1.msra.mxu0 0.0
        %3575 = vmatprep.subr.mxu0 0.0
        %3576 = vmatpush1.msra.mxu0 0.0
        %3577 = vmatprep.subr.mxu0 0.0
        %3578 = vmatpush1.msra.mxu0 0.0
        %3579 = vmatprep.subr.mxu0 0.0
        %3580 = vmatpush1.msra.mxu0 0.0
        %3581 = vmatprep.subr.mxu0 0.0
        %3582 = vmatpush1.msra.mxu0 0.0
        %3583 = vmatprep.mubr.f32.mxu0 0.0
        %3584 = vmatmul.mubr.f32.gmra.mrb[0].mxu0 %v3517
        %v3585 = vpop.f32.mrb[0].mxu0
        %v3586 = vadd.f32 %v657, %v3585
        %v3587 = vpop.f32.mrb[0].mxu0
        %3588 = vdwg.mxu0
        %v3589 = vxor.u32 %v3586, 2147483648
        %v3590 = vmul.f32 %v3589, 1.442695
        %v3591 = vpow.pop %v3590
        %v3592 = vadd.f32 %v3591, 1.0
        %v3593 = vrcp.pop %v3592
        %v3594 = vmul.f32 1.0, %v3593
        %v3595 = vld [vmem:[#allocation3] sm:$0xff]
        %3597 = vset.pattern.permute.xlu0 20
        %3598 = vperm.xlu0 %3597, %v3401
        %v3599 = vpop.permute.xlu0 %3598
        %3601 = vset.pattern.permute.xlu0 20
        %3602 = vperm.xlu0 %3601, %v3402
        %v3603 = vpop.permute.xlu0 %3602
        %3605 = vset.pattern.permute.xlu0 20
        %3606 = vperm.xlu0 %3605, %v3403
        %v3607 = vpop.permute.xlu0 %3606
        %3609 = vset.pattern.permute.xlu0 20
        %3610 = vperm.xlu0 %3609, %v3404
        %v3611 = vpop.permute.xlu0 %3610
        %3613 = vset.pattern.permute.xlu0 20
        %3614 = vperm.xlu0 %3613, %v3405
        %v3615 = vpop.permute.xlu0 %3614
        %3617 = vset.pattern.permute.xlu0 20
        %3618 = vperm.xlu0 %3617, %v3406
        %v3619 = vpop.permute.xlu0 %3618
        %3621 = vset.pattern.permute.xlu0 20
        %3622 = vperm.xlu0 %3621, %v3407
        %v3623 = vpop.permute.xlu0 %3622
        %3625 = vset.pattern.permute.xlu0 20
        %3626 = vperm.xlu0 %3625, %v3408
        %v3627 = vpop.permute.xlu0 %3626
        %v3628 = vrot.slane %v3603, 7
        %v3629 = vsel %vm603, %v3628, %v3599
        %v3630 = vrot.slane %v3607, 6
        %v3631 = vsel %vm606, %v3630, %v3629
        %v3632 = vrot.slane %v3611, 5
        %v3633 = vsel %vm609, %v3632, %v3631
        %v3634 = vrot.slane %v3615, 4
        %v3635 = vsel %vm612, %v3634, %v3633
        %v3636 = vrot.slane %v3619, 3
        %v3637 = vsel %vm615, %v3636, %v3635
        %v3638 = vrot.slane %v3623, 2
        %v3639 = vsel %vm618, %v3638, %v3637
        %v3640 = vrot.slane %v3627, 1
        %v3641 = vsel %vm621, %v3640, %v3639
        %v3643 = vmul.f32 %v3595, %v3641
        %v3645 = vsel %vm792, %v3643, 0
        %3647 = vmatprep.subr.mxu0 0.0
        %3648 = vmatpush1.msra.mxu0 %v498
        %3649 = vmatprep.subr.mxu0 0.0
        %3650 = vmatpush1.msra.mxu0 %v499
        %3651 = vmatprep.subr.mxu0 0.0
        %3652 = vmatpush1.msra.mxu0 %v500
        %3653 = vmatprep.subr.mxu0 0.0
        %3654 = vmatpush1.msra.mxu0 %v501
        %3655 = vmatprep.subr.mxu0 0.0
        %3656 = vmatpush1.msra.mxu0 0.0
        %3657 = vmatprep.subr.mxu0 0.0
        %3658 = vmatpush1.msra.mxu0 0.0
        %3659 = vmatprep.subr.mxu0 0.0
        %3660 = vmatpush1.msra.mxu0 0.0
        %3661 = vmatprep.subr.mxu0 0.0
        %3662 = vmatpush1.msra.mxu0 0.0
        %3663 = vmatprep.subr.mxu0 0.0
        %3664 = vmatpush1.msra.mxu0 0.0
        %3665 = vmatprep.subr.mxu0 0.0
        %3666 = vmatpush1.msra.mxu0 0.0
        %3667 = vmatprep.subr.mxu0 0.0
        %3668 = vmatpush1.msra.mxu0 0.0
        %3669 = vmatprep.subr.mxu0 0.0
        %3670 = vmatpush1.msra.mxu0 0.0
        %3671 = vmatprep.subr.mxu0 0.0
        %3672 = vmatpush1.msra.mxu0 0.0
        %3673 = vmatprep.subr.mxu0 0.0
        %3674 = vmatpush1.msra.mxu0 0.0
        %3675 = vmatprep.subr.mxu0 0.0
        %3676 = vmatpush1.msra.mxu0 0.0
        %3677 = vmatprep.subr.mxu0 0.0
        %3678 = vmatpush1.msra.mxu0 0.0
        %3679 = vmatprep.subr.mxu0 0.0
        %3680 = vmatpush1.msra.mxu0 0.0
        %3681 = vmatprep.subr.mxu0 0.0
        %3682 = vmatpush1.msra.mxu0 0.0
        %3683 = vmatprep.subr.mxu0 0.0
        %3684 = vmatpush1.msra.mxu0 0.0
        %3685 = vmatprep.subr.mxu0 0.0
        %3686 = vmatpush1.msra.mxu0 0.0
        %3687 = vmatprep.subr.mxu0 0.0
        %3688 = vmatpush1.msra.mxu0 0.0
        %3689 = vmatprep.subr.mxu0 0.0
        %3690 = vmatpush1.msra.mxu0 0.0
        %3691 = vmatprep.subr.mxu0 0.0
        %3692 = vmatpush1.msra.mxu0 0.0
        %3693 = vmatprep.subr.mxu0 0.0
        %3694 = vmatpush1.msra.mxu0 0.0
        %3695 = vmatprep.subr.mxu0 0.0
        %3696 = vmatpush1.msra.mxu0 0.0
        %3697 = vmatprep.subr.mxu0 0.0
        %3698 = vmatpush1.msra.mxu0 0.0
        %3699 = vmatprep.subr.mxu0 0.0
        %3700 = vmatpush1.msra.mxu0 0.0
        %3701 = vmatprep.subr.mxu0 0.0
        %3702 = vmatpush1.msra.mxu0 0.0
        %3703 = vmatprep.subr.mxu0 0.0
        %3704 = vmatpush1.msra.mxu0 0.0
        %3705 = vmatprep.subr.mxu0 0.0
        %3706 = vmatpush1.msra.mxu0 0.0
        %3707 = vmatprep.subr.mxu0 0.0
        %3708 = vmatpush1.msra.mxu0 0.0
        %3709 = vmatprep.subr.mxu0 0.0
        %3710 = vmatpush1.msra.mxu0 0.0
        %3711 = vmatprep.mubr.f32.mxu0 0.0
        %3712 = vmatmul.mubr.f32.gmra.mrb[0].mxu0 %v3645
        %v3713 = vpop.f32.mrb[0].mxu0
        %v3714 = vadd.f32 0.0, %v3713
        %v3715 = vpop.f32.mrb[0].mxu0
        %3716 = vdwg.mxu0
        %3718 = vrot.lane.b32.xlu0 %v3714, 10
        %v3719 = vpop.permute.xlu0 %3718
        %v3721 = vadd.f32 %v3586, %v3719
        %v3722 = vxor.u32 %v3721, 2147483648
        %v3723 = vmul.f32 %v3722, 1.442695
        %v3724 = vpow.pop %v3723
        %v3725 = vadd.f32 %v3724, 1.0
        %v3726 = vrcp.pop %v3725
        %v3727 = vmul.f32 1.0, %v3726
        %v3728 = vadd.f32 %v3714, %v883
        %3730 = vrot.lane.b32.xlu0 %v3728, 74
        %v3731 = vpop.permute.xlu0 %3730
        %v3733 = vmul.f32 %v3727, %v3731
        %3735 = vrot.lane.b32.xlu0 %v3733, 64
        %v3736 = vpop.permute.xlu0 %3735
        %v3738 = vadd.f32 %v3586, %v3736
        %v3739 = vtanh.pop %v3738
        %v3740 = vsub.f32 1.0, %v3727
        %3742 = vrot.lane.b32.xlu0 %v3739, 96
        %v3743 = vpop.permute.xlu0 %3742
        %v3745 = vmul.f32 %v3740, %v3743
        %3746 = vrot.lane.b32.xlu0 %v3643, 42
        %v3747 = vpop.permute.xlu0 %3746
        %v3749 = vmul.f32 %v3727, %v3747
        %v3750 = vadd.f32 %v3745, %v3749
        %v3752 = vsel %vm651, %v3594, 0
        %3754 = vmatprep.subr.mxu0 0.0
        %3755 = vmatpush1.msra.mxu0 %v490
        %3756 = vmatprep.subr.mxu0 0.0
        %3757 = vmatpush1.msra.mxu0 %v919
        %3758 = vmatprep.subr.mxu0 0.0
        %3759 = vmatpush1.msra.mxu0 0.0
        %3760 = vmatprep.subr.mxu0 0.0
        %3761 = vmatpush1.msra.mxu0 0.0
        %3762 = vmatprep.subr.mxu0 0.0
        %3763 = vmatpush1.msra.mxu0 0.0
        %3764 = vmatprep.subr.mxu0 0.0
        %3765 = vmatpush1.msra.mxu0 0.0
        %3766 = vmatprep.subr.mxu0 0.0
        %3767 = vmatpush1.msra.mxu0 0.0
        %3768 = vmatprep.subr.mxu0 0.0
        %3769 = vmatpush1.msra.mxu0 0.0
        %3770 = vmatprep.subr.mxu0 0.0
        %3771 = vmatpush1.msra.mxu0 0.0
        %3772 = vmatprep.subr.mxu0 0.0
        %3773 = vmatpush1.msra.mxu0 0.0
        %3774 = vmatprep.subr.mxu0 0.0
        %3775 = vmatpush1.msra.mxu0 0.0
        %3776 = vmatprep.subr.mxu0 0.0
        %3777 = vmatpush1.msra.mxu0 0.0
        %3778 = vmatprep.subr.mxu0 0.0
        %3779 = vmatpush1.msra.mxu0 0.0
        %3780 = vmatprep.subr.mxu0 0.0
        %3781 = vmatpush1.msra.mxu0 0.0
        %3782 = vmatprep.subr.mxu0 0.0
        %3783 = vmatpush1.msra.mxu0 0.0
        %3784 = vmatprep.subr.mxu0 0.0
        %3785 = vmatpush1.msra.mxu0 0.0
        %3786 = vmatprep.subr.mxu0 0.0
        %3787 = vmatpush1.msra.mxu0 0.0
        %3788 = vmatprep.subr.mxu0 0.0
        %3789 = vmatpush1.msra.mxu0 0.0
        %3790 = vmatprep.subr.mxu0 0.0
        %3791 = vmatpush1.msra.mxu0 0.0
        %3792 = vmatprep.subr.mxu0 0.0
        %3793 = vmatpush1.msra.mxu0 0.0
        %3794 = vmatprep.subr.mxu0 0.0
        %3795 = vmatpush1.msra.mxu0 0.0
        %3796 = vmatprep.subr.mxu0 0.0
        %3797 = vmatpush1.msra.mxu0 0.0
        %3798 = vmatprep.subr.mxu0 0.0
        %3799 = vmatpush1.msra.mxu0 0.0
        %3800 = vmatprep.subr.mxu0 0.0
        %3801 = vmatpush1.msra.mxu0 0.0
        %3802 = vmatprep.subr.mxu0 0.0
        %3803 = vmatpush1.msra.mxu0 0.0
        %3804 = vmatprep.subr.mxu0 0.0
        %3805 = vmatpush1.msra.mxu0 0.0
        %3806 = vmatprep.subr.mxu0 0.0
        %3807 = vmatpush1.msra.mxu0 0.0
        %3808 = vmatprep.subr.mxu0 0.0
        %3809 = vmatpush1.msra.mxu0 0.0
        %3810 = vmatprep.subr.mxu0 0.0
        %3811 = vmatpush1.msra.mxu0 0.0
        %3812 = vmatprep.subr.mxu0 0.0
        %3813 = vmatpush1.msra.mxu0 0.0
        %3814 = vmatprep.subr.mxu0 0.0
        %3815 = vmatpush1.msra.mxu0 0.0
        %3816 = vmatprep.subr.mxu0 0.0
        %3817 = vmatpush1.msra.mxu0 0.0
        %3818 = vmatprep.mubr.f32.mxu0 0.0
        %3819 = vmatmul.mubr.f32.gmra.mrb[0].mxu0 %v3752
        %v3820 = vpop.f32.mrb[0].mxu0
        %v3821 = vadd.f32 %v912, %v3820
        %v3822 = vpop.f32.mrb[0].mxu0
        %3823 = vdwg.mxu0
        %v3824 = vld [vmem:[#allocation4] sm:$0xff]
        %v3825 = vmul.f32 %v3824, %v3641
        %v3827 = vsel %vm792, %v3825, 0
        %3829 = vmatprep.subr.mxu0 0.0
        %3830 = vmatpush1.msra.mxu0 %v503
        %3831 = vmatprep.subr.mxu0 0.0
        %3832 = vmatpush1.msra.mxu0 %v504
        %3833 = vmatprep.subr.mxu0 0.0
        %3834 = vmatpush1.msra.mxu0 %v505
        %3835 = vmatprep.subr.mxu0 0.0
        %3836 = vmatpush1.msra.mxu0 %v506
        %3837 = vmatprep.subr.mxu0 0.0
        %3838 = vmatpush1.msra.mxu0 0.0
        %3839 = vmatprep.subr.mxu0 0.0
        %3840 = vmatpush1.msra.mxu0 0.0
        %3841 = vmatprep.subr.mxu0 0.0
        %3842 = vmatpush1.msra.mxu0 0.0
        %3843 = vmatprep.subr.mxu0 0.0
        %3844 = vmatpush1.msra.mxu0 0.0
        %3845 = vmatprep.subr.mxu0 0.0
        %3846 = vmatpush1.msra.mxu0 0.0
        %3847 = vmatprep.subr.mxu0 0.0
        %3848 = vmatpush1.msra.mxu0 0.0
        %3849 = vmatprep.subr.mxu0 0.0
        %3850 = vmatpush1.msra.mxu0 0.0
        %3851 = vmatprep.subr.mxu0 0.0
        %3852 = vmatpush1.msra.mxu0 0.0
        %3853 = vmatprep.subr.mxu0 0.0
        %3854 = vmatpush1.msra.mxu0 0.0
        %3855 = vmatprep.subr.mxu0 0.0
        %3856 = vmatpush1.msra.mxu0 0.0
        %3857 = vmatprep.subr.mxu0 0.0
        %3858 = vmatpush1.msra.mxu0 0.0
        %3859 = vmatprep.subr.mxu0 0.0
        %3860 = vmatpush1.msra.mxu0 0.0
        %3861 = vmatprep.subr.mxu0 0.0
        %3862 = vmatpush1.msra.mxu0 0.0
        %3863 = vmatprep.subr.mxu0 0.0
        %3864 = vmatpush1.msra.mxu0 0.0
        %3865 = vmatprep.subr.mxu0 0.0
        %3866 = vmatpush1.msra.mxu0 0.0
        %3867 = vmatprep.subr.mxu0 0.0
        %3868 = vmatpush1.msra.mxu0 0.0
        %3869 = vmatprep.subr.mxu0 0.0
        %3870 = vmatpush1.msra.mxu0 0.0
        %3871 = vmatprep.subr.mxu0 0.0
        %3872 = vmatpush1.msra.mxu0 0.0
        %3873 = vmatprep.subr.mxu0 0.0
        %3874 = vmatpush1.msra.mxu0 0.0
        %3875 = vmatprep.subr.mxu0 0.0
        %3876 = vmatpush1.msra.mxu0 0.0
        %3877 = vmatprep.subr.mxu0 0.0
        %3878 = vmatpush1.msra.mxu0 0.0
        %3879 = vmatprep.subr.mxu0 0.0
        %3880 = vmatpush1.msra.mxu0 0.0
        %3881 = vmatprep.subr.mxu0 0.0
        %3882 = vmatpush1.msra.mxu0 0.0
        %3883 = vmatprep.subr.mxu0 0.0
        %3884 = vmatpush1.msra.mxu0 0.0
        %3885 = vmatprep.subr.mxu0 0.0
        %3886 = vmatpush1.msra.mxu0 0.0
        %3887 = vmatprep.subr.mxu0 0.0
        %3888 = vmatpush1.msra.mxu0 0.0
        %3889 = vmatprep.subr.mxu0 0.0
        %3890 = vmatpush1.msra.mxu0 0.0
        %3891 = vmatprep.subr.mxu0 0.0
        %3892 = vmatpush1.msra.mxu0 0.0
        %3893 = vmatprep.mubr.f32.mxu0 0.0
        %3894 = vmatmul.mubr.f32.gmra.mrb[0].mxu0 %v3827
        %v3895 = vpop.f32.mrb[0].mxu0
        %v3896 = vadd.f32 0.0, %v3895
        %v3897 = vpop.f32.mrb[0].mxu0
        %3898 = vdwg.mxu0
        %v3899 = vadd.f32 %v3821, %v3896
        %v3900 = vxor.u32 %v3899, 2147483648
        %v3901 = vmul.f32 %v3900, 1.442695
        %v3902 = vpow.pop %v3901
        %v3903 = vadd.f32 %v3902, 1.0
        %v3904 = vrcp.pop %v3903
        %v3905 = vmul.f32 1.0, %v3904
        %v3906 = vadd.f32 %v3896, %v1079
        %3908 = vrot.lane.b32.xlu0 %v3906, 64
        %v3909 = vpop.permute.xlu0 %3908
        %v3911 = vmul.f32 %v3905, %v3909
        %3913 = vrot.lane.b32.xlu0 %v3911, 64
        %v3914 = vpop.permute.xlu0 %3913
        %v3916 = vadd.f32 %v3821, %v3914
        %v3917 = vtanh.pop %v3916
        %v3918 = vsub.f32 1.0, %v3905
        %3920 = vrot.lane.b32.xlu0 %v3917, 96
        %v3921 = vpop.permute.xlu0 %3920
        %v3923 = vmul.f32 %v3918, %v3921
        %3924 = vrot.lane.b32.xlu0 %v3825, 32
        %v3925 = vpop.permute.xlu0 %3924
        %v3927 = vmul.f32 %v3905, %v3925
        %v3928 = vadd.f32 %v3923, %v3927
        %3930 = vrot.lane.b32.xlu0 %v3750, 86
        %v3931 = vpop.permute.xlu0 %3930
        %v3933 = vsel %vm792, %v3931, %v3928
        %v3935 = vsel %vm1115, %v3933, 0
        %3937 = vmatprep.subr.mxu0 0.0
        %3938 = vmatpush1.msra.mxu0 %v517
        %3939 = vmatprep.subr.mxu0 0.0
        %3940 = vmatpush1.msra.mxu0 %v518
        %3941 = vmatprep.subr.mxu0 0.0
        %3942 = vmatpush1.msra.mxu0 %v519
        %3943 = vmatprep.subr.mxu0 0.0
        %3944 = vmatpush1.msra.mxu0 %v520
        %3945 = vmatprep.subr.mxu0 0.0
        %3946 = vmatpush1.msra.mxu0 %v521
        %3947 = vmatprep.subr.mxu0 0.0
        %3948 = vmatpush1.msra.mxu0 %v522
        %3949 = vmatprep.subr.mxu0 0.0
        %3950 = vmatpush1.msra.mxu0 %v523
        %3951 = vmatprep.subr.mxu0 0.0
        %3952 = vmatpush1.msra.mxu0 %v524
        %3953 = vmatprep.subr.mxu0 0.0
        %3954 = vmatpush1.msra.mxu0 0.0
        %3955 = vmatprep.subr.mxu0 0.0
        %3956 = vmatpush1.msra.mxu0 0.0
        %3957 = vmatprep.subr.mxu0 0.0
        %3958 = vmatpush1.msra.mxu0 0.0
        %3959 = vmatprep.subr.mxu0 0.0
        %3960 = vmatpush1.msra.mxu0 0.0
        %3961 = vmatprep.subr.mxu0 0.0
        %3962 = vmatpush1.msra.mxu0 0.0
        %3963 = vmatprep.subr.mxu0 0.0
        %3964 = vmatpush1.msra.mxu0 0.0
        %3965 = vmatprep.subr.mxu0 0.0
        %3966 = vmatpush1.msra.mxu0 0.0
        %3967 = vmatprep.subr.mxu0 0.0
        %3968 = vmatpush1.msra.mxu0 0.0
        %3969 = vmatprep.subr.mxu0 0.0
        %3970 = vmatpush1.msra.mxu0 0.0
        %3971 = vmatprep.subr.mxu0 0.0
        %3972 = vmatpush1.msra.mxu0 0.0
        %3973 = vmatprep.subr.mxu0 0.0
        %3974 = vmatpush1.msra.mxu0 0.0
        %3975 = vmatprep.subr.mxu0 0.0
        %3976 = vmatpush1.msra.mxu0 0.0
        %3977 = vmatprep.subr.mxu0 0.0
        %3978 = vmatpush1.msra.mxu0 0.0
        %3979 = vmatprep.subr.mxu0 0.0
        %3980 = vmatpush1.msra.mxu0 0.0
        %3981 = vmatprep.subr.mxu0 0.0
        %3982 = vmatpush1.msra.mxu0 0.0
        %3983 = vmatprep.subr.mxu0 0.0
        %3984 = vmatpush1.msra.mxu0 0.0
        %3985 = vmatprep.subr.mxu0 0.0
        %3986 = vmatpush1.msra.mxu0 0.0
        %3987 = vmatprep.subr.mxu0 0.0
        %3988 = vmatpush1.msra.mxu0 0.0
        %3989 = vmatprep.subr.mxu0 0.0
        %3990 = vmatpush1.msra.mxu0 0.0
        %3991 = vmatprep.subr.mxu0 0.0
        %3992 = vmatpush1.msra.mxu0 0.0
        %3993 = vmatprep.subr.mxu0 0.0
        %3994 = vmatpush1.msra.mxu0 0.0
        %3995 = vmatprep.subr.mxu0 0.0
        %3996 = vmatpush1.msra.mxu0 0.0
        %3997 = vmatprep.subr.mxu0 0.0
        %3998 = vmatpush1.msra.mxu0 0.0
        %3999 = vmatprep.subr.mxu0 0.0
        %4000 = vmatpush1.msra.mxu0 0.0
        %4001 = vmatprep.mubr.f32.mxu0 0.0
        %4002 = vmatmul.mubr.f32.gmra.mrb[0].mxu0 %v3935
        %v4003 = vpop.f32.mrb[0].mxu0
        %v4004 = vadd.f32 %v1113, %v4003
        %v4005 = vpop.f32.mrb[0].mxu0
        %4006 = vdwg.mxu0
        %v4007 = vxor.u32 %v4004, 2147483648
        %v4008 = vmul.f32 %v4007, 1.442695
        %v4009 = vpow.pop %v4008
        %v4010 = vadd.f32 %v4009, 1.0
        %v4011 = vrcp.pop %v4010
        %v4012 = vmul.f32 1.0, %v4011
        %4014 = vrot.lane.b32.xlu0 %v4012, 118
        %v4015 = vpop.permute.xlu0 %4014
        %v4017 = vmul.f32 %v4004, %v4015
        %v4018 = vrot.slane %v3594, 1
        %v4019 = vrot.slane %v3594, 2
        %v4020 = vrot.slane %v3594, 3
        %v4021 = vrot.slane %v3594, 4
        %v4022 = vrot.slane %v3594, 5
        %v4023 = vrot.slane %v3594, 6
        %v4024 = vrot.slane %v3594, 7
        %v4033 = vmul.f32 %v3401, %v3594
        %v4034 = vmul.f32 %v3402, %v4018
        %v4035 = vmul.f32 %v3403, %v4019
        %v4036 = vmul.f32 %v3404, %v4020
        %v4037 = vmul.f32 %v3405, %v4021
        %v4038 = vmul.f32 %v3406, %v4022
        %v4039 = vmul.f32 %v3407, %v4023
        %v4040 = vmul.f32 %v3408, %v4024
        %v4049 = vrot.slane %v4034, 7
        %v4050 = vsel %vm603, %v4049, %v4033
        %v4051 = vrot.slane %v4035, 6
        %v4052 = vsel %vm606, %v4051, %v4050
        %v4053 = vrot.slane %v4036, 5
        %v4054 = vsel %vm609, %v4053, %v4052
        %v4055 = vrot.slane %v4037, 4
        %v4056 = vsel %vm612, %v4055, %v4054
        %v4057 = vrot.slane %v4038, 3
        %v4058 = vsel %vm615, %v4057, %v4056
        %v4059 = vrot.slane %v4039, 2
        %v4060 = vsel %vm618, %v4059, %v4058
        %v4061 = vrot.slane %v4040, 1
        %v4062 = vsel %vm621, %v4061, %v4060
        %4063 = vrot.lane.b32.xlu0 %v4062, 10
        %v4064 = vpop.permute.xlu0 %4063
        %v4066 = vsel %vm651, %v4017, %v4064
        %v4068 = vsel %vm659, %v4066, 0
        %4070 = vmatprep.subr.mxu0 0.0
        %4071 = vmatpush1.msra.mxu0 %v526
        %4072 = vmatprep.subr.mxu0 0.0
        %4073 = vmatpush1.msra.mxu0 %v527
        %4074 = vmatprep.subr.mxu0 0.0
        %4075 = vmatpush1.msra.mxu0 %v1259
        %4076 = vmatprep.subr.mxu0 0.0
        %4077 = vmatpush1.msra.mxu0 0.0
        %4078 = vmatprep.subr.mxu0 0.0
        %4079 = vmatpush1.msra.mxu0 0.0
        %4080 = vmatprep.subr.mxu0 0.0
        %4081 = vmatpush1.msra.mxu0 0.0
        %4082 = vmatprep.subr.mxu0 0.0
        %4083 = vmatpush1.msra.mxu0 0.0
        %4084 = vmatprep.subr.mxu0 0.0
        %4085 = vmatpush1.msra.mxu0 0.0
        %4086 = vmatprep.subr.mxu0 0.0
        %4087 = vmatpush1.msra.mxu0 0.0
        %4088 = vmatprep.subr.mxu0 0.0
        %4089 = vmatpush1.msra.mxu0 0.0
        %4090 = vmatprep.subr.mxu0 0.0
        %4091 = vmatpush1.msra.mxu0 0.0
        %4092 = vmatprep.subr.mxu0 0.0
        %4093 = vmatpush1.msra.mxu0 0.0
        %4094 = vmatprep.subr.mxu0 0.0
        %4095 = vmatpush1.msra.mxu0 0.0
        %4096 = vmatprep.subr.mxu0 0.0
        %4097 = vmatpush1.msra.mxu0 0.0
        %4098 = vmatprep.subr.mxu0 0.0
        %4099 = vmatpush1.msra.mxu0 0.0
        %4100 = vmatprep.subr.mxu0 0.0
        %4101 = vmatpush1.msra.mxu0 0.0
        %4102 = vmatprep.subr.mxu0 0.0
        %4103 = vmatpush1.msra.mxu0 0.0
        %4104 = vmatprep.subr.mxu0 0.0
        %4105 = vmatpush1.msra.mxu0 0.0
        %4106 = vmatprep.subr.mxu0 0.0
        %4107 = vmatpush1.msra.mxu0 0.0
        %4108 = vmatprep.subr.mxu0 0.0
        %4109 = vmatpush1.msra.mxu0 0.0
        %4110 = vmatprep.subr.mxu0 0.0
        %4111 = vmatpush1.msra.mxu0 0.0
        %4112 = vmatprep.subr.mxu0 0.0
        %4113 = vmatpush1.msra.mxu0 0.0
        %4114 = vmatprep.subr.mxu0 0.0
        %4115 = vmatpush1.msra.mxu0 0.0
        %4116 = vmatprep.subr.mxu0 0.0
        %4117 = vmatpush1.msra.mxu0 0.0
        %4118 = vmatprep.subr.mxu0 0.0
        %4119 = vmatpush1.msra.mxu0 0.0
        %4120 = vmatprep.subr.mxu0 0.0
        %4121 = vmatpush1.msra.mxu0 0.0
        %4122 = vmatprep.subr.mxu0 0.0
        %4123 = vmatpush1.msra.mxu0 0.0
        %4124 = vmatprep.subr.mxu0 0.0
        %4125 = vmatpush1.msra.mxu0 0.0
        %4126 = vmatprep.subr.mxu0 0.0
        %4127 = vmatpush1.msra.mxu0 0.0
        %4128 = vmatprep.subr.mxu0 0.0
        %4129 = vmatpush1.msra.mxu0 0.0
        %4130 = vmatprep.subr.mxu0 0.0
        %4131 = vmatpush1.msra.mxu0 0.0
        %4132 = vmatprep.subr.mxu0 0.0
        %4133 = vmatpush1.msra.mxu0 0.0
        %4134 = vmatprep.mubr.f32.mxu0 0.0
        %4135 = vmatmul.mubr.f32.gmra.mrb[0].mxu0 %v4068
        %v4136 = vpop.f32.mrb[0].mxu0
        %v4137 = vadd.f32 %v1253, %v4136
        %v4138 = vpop.f32.mrb[0].mxu0
        %4139 = vdwg.mxu0
        %v4140 = vmax.f32 %v4137, 0.0
        %v4142 = vsel %vm651, %v4140, 0
        %4144 = vmatprep.subr.mxu0 0.0
        %4145 = vmatpush1.msra.mxu0 %v493
        %4146 = vmatprep.subr.mxu0 0.0
        %4147 = vmatpush1.msra.mxu0 %v1342
        %4148 = vmatprep.subr.mxu0 0.0
        %4149 = vmatpush1.msra.mxu0 0.0
        %4150 = vmatprep.subr.mxu0 0.0
        %4151 = vmatpush1.msra.mxu0 0.0
        %4152 = vmatprep.subr.mxu0 0.0
        %4153 = vmatpush1.msra.mxu0 0.0
        %4154 = vmatprep.subr.mxu0 0.0
        %4155 = vmatpush1.msra.mxu0 0.0
        %4156 = vmatprep.subr.mxu0 0.0
        %4157 = vmatpush1.msra.mxu0 0.0
        %4158 = vmatprep.subr.mxu0 0.0
        %4159 = vmatpush1.msra.mxu0 0.0
        %4160 = vmatprep.subr.mxu0 0.0
        %4161 = vmatpush1.msra.mxu0 0.0
        %4162 = vmatprep.subr.mxu0 0.0
        %4163 = vmatpush1.msra.mxu0 0.0
        %4164 = vmatprep.subr.mxu0 0.0
        %4165 = vmatpush1.msra.mxu0 0.0
        %4166 = vmatprep.subr.mxu0 0.0
        %4167 = vmatpush1.msra.mxu0 0.0
        %4168 = vmatprep.subr.mxu0 0.0
        %4169 = vmatpush1.msra.mxu0 0.0
        %4170 = vmatprep.subr.mxu0 0.0
        %4171 = vmatpush1.msra.mxu0 0.0
        %4172 = vmatprep.subr.mxu0 0.0
        %4173 = vmatpush1.msra.mxu0 0.0
        %4174 = vmatprep.subr.mxu0 0.0
        %4175 = vmatpush1.msra.mxu0 0.0
        %4176 = vmatprep.subr.mxu0 0.0
        %4177 = vmatpush1.msra.mxu0 0.0
        %4178 = vmatprep.subr.mxu0 0.0
        %4179 = vmatpush1.msra.mxu0 0.0
        %4180 = vmatprep.subr.mxu0 0.0
        %4181 = vmatpush1.msra.mxu0 0.0
        %4182 = vmatprep.subr.mxu0 0.0
        %4183 = vmatpush1.msra.mxu0 0.0
        %4184 = vmatprep.subr.mxu0 0.0
        %4185 = vmatpush1.msra.mxu0 0.0
        %4186 = vmatprep.subr.mxu0 0.0
        %4187 = vmatpush1.msra.mxu0 0.0
        %4188 = vmatprep.subr.mxu0 0.0
        %4189 = vmatpush1.msra.mxu0 0.0
        %4190 = vmatprep.subr.mxu0 0.0
        %4191 = vmatpush1.msra.mxu0 0.0
        %4192 = vmatprep.subr.mxu0 0.0
        %4193 = vmatpush1.msra.mxu0 0.0
        %4194 = vmatprep.subr.mxu0 0.0
        %4195 = vmatpush1.msra.mxu0 0.0
        %4196 = vmatprep.subr.mxu0 0.0
        %4197 = vmatpush1.msra.mxu0 0.0
        %4198 = vmatprep.subr.mxu0 0.0
        %4199 = vmatpush1.msra.mxu0 0.0
        %4200 = vmatprep.subr.mxu0 0.0
        %4201 = vmatpush1.msra.mxu0 0.0
        %4202 = vmatprep.subr.mxu0 0.0
        %4203 = vmatpush1.msra.mxu0 0.0
        %4204 = vmatprep.subr.mxu0 0.0
        %4205 = vmatpush1.msra.mxu0 0.0
        %4206 = vmatprep.subr.mxu0 0.0
        %4207 = vmatpush1.msra.mxu0 0.0
        %4208 = vmatprep.mubr.f32.mxu0 0.0
        %4209 = vmatmul.mubr.f32.gmra.mrb[0].mxu0 %v4142
        %v4210 = vpop.f32.mrb[0].mxu0
        %v4211 = vadd.f32 %v1336, %v4210
        %v4212 = vpop.f32.mrb[0].mxu0
        %4213 = vdwg.mxu0
        %v4214 = vld [vmem:[#allocation2] sm:$0xff]
        %v4216 = vsel %vm792, %v4214, 0
        %4218 = vmatprep.subr.mxu0 0.0
        %4219 = vmatpush1.msra.mxu0 %v508
        %4220 = vmatprep.subr.mxu0 0.0
        %4221 = vmatpush1.msra.mxu0 %v509
        %4222 = vmatprep.subr.mxu0 0.0
        %4223 = vmatpush1.msra.mxu0 %v510
        %4224 = vmatprep.subr.mxu0 0.0
        %4225 = vmatpush1.msra.mxu0 %v511
        %4226 = vmatprep.subr.mxu0 0.0
        %4227 = vmatpush1.msra.mxu0 0.0
        %4228 = vmatprep.subr.mxu0 0.0
        %4229 = vmatpush1.msra.mxu0 0.0
        %4230 = vmatprep.subr.mxu0 0.0
        %4231 = vmatpush1.msra.mxu0 0.0
        %4232 = vmatprep.subr.mxu0 0.0
        %4233 = vmatpush1.msra.mxu0 0.0
        %4234 = vmatprep.subr.mxu0 0.0
        %4235 = vmatpush1.msra.mxu0 0.0
        %4236 = vmatprep.subr.mxu0 0.0
        %4237 = vmatpush1.msra.mxu0 0.0
        %4238 = vmatprep.subr.mxu0 0.0
        %4239 = vmatpush1.msra.mxu0 0.0
        %4240 = vmatprep.subr.mxu0 0.0
        %4241 = vmatpush1.msra.mxu0 0.0
        %4242 = vmatprep.subr.mxu0 0.0
        %4243 = vmatpush1.msra.mxu0 0.0
        %4244 = vmatprep.subr.mxu0 0.0
        %4245 = vmatpush1.msra.mxu0 0.0
        %4246 = vmatprep.subr.mxu0 0.0
        %4247 = vmatpush1.msra.mxu0 0.0
        %4248 = vmatprep.subr.mxu0 0.0
        %4249 = vmatpush1.msra.mxu0 0.0
        %4250 = vmatprep.subr.mxu0 0.0
        %4251 = vmatpush1.msra.mxu0 0.0
        %4252 = vmatprep.subr.mxu0 0.0
        %4253 = vmatpush1.msra.mxu0 0.0
        %4254 = vmatprep.subr.mxu0 0.0
        %4255 = vmatpush1.msra.mxu0 0.0
        %4256 = vmatprep.subr.mxu0 0.0
        %4257 = vmatpush1.msra.mxu0 0.0
        %4258 = vmatprep.subr.mxu0 0.0
        %4259 = vmatpush1.msra.mxu0 0.0
        %4260 = vmatprep.subr.mxu0 0.0
        %4261 = vmatpush1.msra.mxu0 0.0
        %4262 = vmatprep.subr.mxu0 0.0
        %4263 = vmatpush1.msra.mxu0 0.0
        %4264 = vmatprep.subr.mxu0 0.0
        %4265 = vmatpush1.msra.mxu0 0.0
        %4266 = vmatprep.subr.mxu0 0.0
        %4267 = vmatpush1.msra.mxu0 0.0
        %4268 = vmatprep.subr.mxu0 0.0
        %4269 = vmatpush1.msra.mxu0 0.0
        %4270 = vmatprep.subr.mxu0 0.0
        %4271 = vmatpush1.msra.mxu0 0.0
        %4272 = vmatprep.subr.mxu0 0.0
        %4273 = vmatpush1.msra.mxu0 0.0
        %4274 = vmatprep.subr.mxu0 0.0
        %4275 = vmatpush1.msra.mxu0 0.0
        %4276 = vmatprep.subr.mxu0 0.0
        %4277 = vmatpush1.msra.mxu0 0.0
        %4278 = vmatprep.subr.mxu0 0.0
        %4279 = vmatpush1.msra.mxu0 0.0
        %4280 = vmatprep.subr.mxu0 0.0
        %4281 = vmatpush1.msra.mxu0 0.0
        %4282 = vmatprep.mubr.f32.mxu0 0.0
        %4283 = vmatmul.mubr.f32.gmra.mrb[0].mxu0 %v4216
        %v4284 = vpop.f32.mrb[0].mxu0
        %v4285 = vadd.f32 0.0, %v4284
        %v4286 = vpop.f32.mrb[0].mxu0
        %4287 = vdwg.mxu0
        %v4288 = vadd.f32 %v4211, %v4285
        %v4289 = vxor.u32 %v4288, 2147483648
        %v4290 = vmul.f32 %v4289, 1.442695
        %v4291 = vpow.pop %v4290
        %v4292 = vadd.f32 %v4291, 1.0
        %v4293 = vrcp.pop %v4292
        %v4294 = vmul.f32 1.0, %v4293
        %v4295 = vadd.f32 %v4285, %v1501
        %4297 = vrot.lane.b32.xlu0 %v4295, 64
        %v4298 = vpop.permute.xlu0 %4297
        %v4300 = vmul.f32 %v4294, %v4298
        %4302 = vrot.lane.b32.xlu0 %v4300, 64
        %v4303 = vpop.permute.xlu0 %4302
        %v4305 = vadd.f32 %v4211, %v4303
        %v4306 = vtanh.pop %v4305
        %v4307 = vsub.f32 1.0, %v4294
        %4309 = vrot.lane.b32.xlu0 %v4306, 96
        %v4310 = vpop.permute.xlu0 %4309
        %v4312 = vmul.f32 %v4307, %v4310
        %4313 = vrot.lane.b32.xlu0 %v4214, 32
        %v4314 = vpop.permute.xlu0 %4313
        %v4316 = vmul.f32 %v4294, %v4314
        %v4317 = vadd.f32 %v4312, %v4316
        %4319 = vrot.lane.b32.xlu0 %v4317, 64
        %v4320 = vpop.permute.xlu0 %4319
        %vm4322 = vcmask 1048320
        %4323 = vst.msk [vmem:[%s476] sm:$0xff] %vm4322, %v4320
        %4324 = vrot.lane.b32.xlu0 %v4317, 96
        %v4325 = vpop.permute.xlu0 %4324
        %4327 = vst.msk [vmem:[#allocation2] sm:$0xff] %vm792, %v4325
        %4328 = vst.msk [vmem:[#allocation3] sm:$0xff] %vm792, %v3931
        %4330 = vrot.lane.b32.xlu0 %v3928, 96
        %v4331 = vpop.permute.xlu0 %4330
        %4333 = vst.msk [vmem:[#allocation4] sm:$0xff] %vm792, %v4331
        %v4334 = vld [vmem:[%s426 + $0x4] sm:$0x1]
        %v4335 = vld [vmem:[%s426 + $0xc] sm:$0x1]
        %v4336 = vld [vmem:[%s426 + $0x14] sm:$0x1]
        %v4337 = vld [vmem:[%s426 + $0x1c] sm:$0x1]
        %v4338 = vld [vmem:[%s426 + $0x24] sm:$0x1]
        %v4339 = vld [vmem:[%s426 + $0x2c] sm:$0x1]
        %v4340 = vld [vmem:[%s426 + $0x34] sm:$0x1]
        %v4341 = vld [vmem:[%s426 + $0x3c] sm:$0x1]
        %v4342 = vsub.f32 1.0, %v4334
        %v4343 = vsub.f32 1.0, %v4335
        %v4344 = vsub.f32 1.0, %v4336
        %v4345 = vsub.f32 1.0, %v4337
        %v4346 = vsub.f32 1.0, %v4338
        %v4347 = vsub.f32 1.0, %v4339
        %v4348 = vsub.f32 1.0, %v4340
        %v4349 = vsub.f32 1.0, %v4341
        %v4350 = vmax.f32 %v4342, 0.0
        %v4351 = vmax.f32 %v4343, 0.0
        %v4352 = vmax.f32 %v4344, 0.0
        %v4353 = vmax.f32 %v4345, 0.0
        %v4354 = vmax.f32 %v4346, 0.0
        %v4355 = vmax.f32 %v4347, 0.0
        %v4356 = vmax.f32 %v4348, 0.0
        %v4357 = vmax.f32 %v4349, 0.0
        %4366 = vrot.lane.b32.xlu0 %v4350, 118
        %v4367 = vpop.permute.xlu0 %4366
        %4368 = vrot.lane.b32.xlu0 %v4351, 118
        %v4369 = vpop.permute.xlu0 %4368
        %4370 = vrot.lane.b32.xlu0 %v4352, 118
        %v4371 = vpop.permute.xlu0 %4370
        %4372 = vrot.lane.b32.xlu0 %v4353, 118
        %v4373 = vpop.permute.xlu0 %4372
        %4374 = vrot.lane.b32.xlu0 %v4354, 118
        %v4375 = vpop.permute.xlu0 %4374
        %4376 = vrot.lane.b32.xlu0 %v4355, 118
        %v4377 = vpop.permute.xlu0 %4376
        %4378 = vrot.lane.b32.xlu0 %v4356, 118
        %v4379 = vpop.permute.xlu0 %4378
        %4380 = vrot.lane.b32.xlu0 %v4357, 118
        %v4381 = vpop.permute.xlu0 %4380
        %v4390 = vmul.f32 %v4334, %v4367
        %v4391 = vmul.f32 %v4335, %v4369
        %v4392 = vmul.f32 %v4336, %v4371
        %v4393 = vmul.f32 %v4337, %v4373
        %v4394 = vmul.f32 %v4338, %v4375
        %v4395 = vmul.f32 %v4339, %v4377
        %v4396 = vmul.f32 %v4340, %v4379
        %v4397 = vmul.f32 %v4341, %v4381
        %v4406 = vrot.slane %v4343, 7
        %v4407 = vsel %vm603, %v4406, %v4342
        %v4408 = vrot.slane %v4344, 6
        %v4409 = vsel %vm606, %v4408, %v4407
        %v4410 = vrot.slane %v4345, 5
        %v4411 = vsel %vm609, %v4410, %v4409
        %v4412 = vrot.slane %v4346, 4
        %v4413 = vsel %vm612, %v4412, %v4411
        %v4414 = vrot.slane %v4347, 3
        %v4415 = vsel %vm615, %v4414, %v4413
        %v4416 = vrot.slane %v4348, 2
        %v4417 = vsel %vm618, %v4416, %v4415
        %v4418 = vrot.slane %v4349, 1
        %v4419 = vsel %vm621, %v4418, %v4417
        %4420 = vrot.lane.b32.xlu0 %v4419, 118
        %v4421 = vpop.permute.xlu0 %4420
        %v4431 = vrot.slane %v4391, 7
        %v4432 = vsel %vm603, %v4431, %v4390
        %v4433 = vrot.slane %v4392, 6
        %v4434 = vsel %vm606, %v4433, %v4432
        %v4435 = vrot.slane %v4393, 5
        %v4436 = vsel %vm609, %v4435, %v4434
        %v4437 = vrot.slane %v4394, 4
        %v4438 = vsel %vm612, %v4437, %v4436
        %v4439 = vrot.slane %v4395, 3
        %v4440 = vsel %vm615, %v4439, %v4438
        %v4441 = vrot.slane %v4396, 2
        %v4442 = vsel %vm618, %v4441, %v4440
        %v4443 = vrot.slane %v4397, 1
        %v4444 = vsel %vm621, %v4443, %v4442
        %4445 = vrot.lane.b32.xlu0 %v4444, 10
        %v4446 = vpop.permute.xlu0 %4445
        %v4448 = vsel %vm651, %v4421, %v4446
        %v4450 = vsel %vm659, %v4448, 0
        %4452 = vmatprep.subr.mxu0 0.0
        %4453 = vmatpush1.msra.mxu0 %v486
        %4454 = vmatprep.subr.mxu0 0.0
        %4455 = vmatpush1.msra.mxu0 %v487
        %4456 = vmatprep.subr.mxu0 0.0
        %4457 = vmatpush1.msra.mxu0 %v665
        %4458 = vmatprep.subr.mxu0 0.0
        %4459 = vmatpush1.msra.mxu0 0.0
        %4460 = vmatprep.subr.mxu0 0.0
        %4461 = vmatpush1.msra.mxu0 0.0
        %4462 = vmatprep.subr.mxu0 0.0
        %4463 = vmatpush1.msra.mxu0 0.0
        %4464 = vmatprep.subr.mxu0 0.0
        %4465 = vmatpush1.msra.mxu0 0.0
        %4466 = vmatprep.subr.mxu0 0.0
        %4467 = vmatpush1.msra.mxu0 0.0
        %4468 = vmatprep.subr.mxu0 0.0
        %4469 = vmatpush1.msra.mxu0 0.0
        %4470 = vmatprep.subr.mxu0 0.0
        %4471 = vmatpush1.msra.mxu0 0.0
        %4472 = vmatprep.subr.mxu0 0.0
        %4473 = vmatpush1.msra.mxu0 0.0
        %4474 = vmatprep.subr.mxu0 0.0
        %4475 = vmatpush1.msra.mxu0 0.0
        %4476 = vmatprep.subr.mxu0 0.0
        %4477 = vmatpush1.msra.mxu0 0.0
        %4478 = vmatprep.subr.mxu0 0.0
        %4479 = vmatpush1.msra.mxu0 0.0
        %4480 = vmatprep.subr.mxu0 0.0
        %4481 = vmatpush1.msra.mxu0 0.0
        %4482 = vmatprep.subr.mxu0 0.0
        %4483 = vmatpush1.msra.mxu0 0.0
        %4484 = vmatprep.subr.mxu0 0.0
        %4485 = vmatpush1.msra.mxu0 0.0
        %4486 = vmatprep.subr.mxu0 0.0
        %4487 = vmatpush1.msra.mxu0 0.0
        %4488 = vmatprep.subr.mxu0 0.0
        %4489 = vmatpush1.msra.mxu0 0.0
        %4490 = vmatprep.subr.mxu0 0.0
        %4491 = vmatpush1.msra.mxu0 0.0
        %4492 = vmatprep.subr.mxu0 0.0
        %4493 = vmatpush1.msra.mxu0 0.0
        %4494 = vmatprep.subr.mxu0 0.0
        %4495 = vmatpush1.msra.mxu0 0.0
        %4496 = vmatprep.subr.mxu0 0.0
        %4497 = vmatpush1.msra.mxu0 0.0
        %4498 = vmatprep.subr.mxu0 0.0
        %4499 = vmatpush1.msra.mxu0 0.0
        %4500 = vmatprep.subr.mxu0 0.0
        %4501 = vmatpush1.msra.mxu0 0.0
        %4502 = vmatprep.subr.mxu0 0.0
        %4503 = vmatpush1.msra.mxu0 0.0
        %4504 = vmatprep.subr.mxu0 0.0
        %4505 = vmatpush1.msra.mxu0 0.0
        %4506 = vmatprep.subr.mxu0 0.0
        %4507 = vmatpush1.msra.mxu0 0.0
        %4508 = vmatprep.subr.mxu0 0.0
        %4509 = vmatpush1.msra.mxu0 0.0
        %4510 = vmatprep.subr.mxu0 0.0
        %4511 = vmatpush1.msra.mxu0 0.0
        %4512 = vmatprep.subr.mxu0 0.0
        %4513 = vmatpush1.msra.mxu0 0.0
        %4514 = vmatprep.subr.mxu0 0.0
        %4515 = vmatpush1.msra.mxu0 0.0
        %4516 = vmatprep.mubr.f32.mxu0 0.0
        %4517 = vmatmul.mubr.f32.gmra.mrb[0].mxu0 %v4450
        %v4518 = vpop.f32.mrb[0].mxu0
        %v4519 = vadd.f32 %v657, %v4518
        %v4520 = vpop.f32.mrb[0].mxu0
        %4521 = vdwg.mxu0
        %v4522 = vxor.u32 %v4519, 2147483648
        %v4523 = vmul.f32 %v4522, 1.442695
        %v4524 = vpow.pop %v4523
        %v4525 = vadd.f32 %v4524, 1.0
        %v4526 = vrcp.pop %v4525
        %v4527 = vmul.f32 1.0, %v4526
        %v4528 = vld [vmem:[#allocation3] sm:$0xff]
        %4530 = vset.pattern.permute.xlu0 20
        %4531 = vperm.xlu0 %4530, %v4334
        %v4532 = vpop.permute.xlu0 %4531
        %4534 = vset.pattern.permute.xlu0 20
        %4535 = vperm.xlu0 %4534, %v4335
        %v4536 = vpop.permute.xlu0 %4535
        %4538 = vset.pattern.permute.xlu0 20
        %4539 = vperm.xlu0 %4538, %v4336
        %v4540 = vpop.permute.xlu0 %4539
        %4542 = vset.pattern.permute.xlu0 20
        %4543 = vperm.xlu0 %4542, %v4337
        %v4544 = vpop.permute.xlu0 %4543
        %4546 = vset.pattern.permute.xlu0 20
        %4547 = vperm.xlu0 %4546, %v4338
        %v4548 = vpop.permute.xlu0 %4547
        %4550 = vset.pattern.permute.xlu0 20
        %4551 = vperm.xlu0 %4550, %v4339
        %v4552 = vpop.permute.xlu0 %4551
        %4554 = vset.pattern.permute.xlu0 20
        %4555 = vperm.xlu0 %4554, %v4340
        %v4556 = vpop.permute.xlu0 %4555
        %4558 = vset.pattern.permute.xlu0 20
        %4559 = vperm.xlu0 %4558, %v4341
        %v4560 = vpop.permute.xlu0 %4559
        %v4561 = vrot.slane %v4536, 7
        %v4562 = vsel %vm603, %v4561, %v4532
        %v4563 = vrot.slane %v4540, 6
        %v4564 = vsel %vm606, %v4563, %v4562
        %v4565 = vrot.slane %v4544, 5
        %v4566 = vsel %vm609, %v4565, %v4564
        %v4567 = vrot.slane %v4548, 4
        %v4568 = vsel %vm612, %v4567, %v4566
        %v4569 = vrot.slane %v4552, 3
        %v4570 = vsel %vm615, %v4569, %v4568
        %v4571 = vrot.slane %v4556, 2
        %v4572 = vsel %vm618, %v4571, %v4570
        %v4573 = vrot.slane %v4560, 1
        %v4574 = vsel %vm621, %v4573, %v4572
        %v4576 = vmul.f32 %v4528, %v4574
        %v4578 = vsel %vm792, %v4576, 0
        %4580 = vmatprep.subr.mxu0 0.0
        %4581 = vmatpush1.msra.mxu0 %v498
        %4582 = vmatprep.subr.mxu0 0.0
        %4583 = vmatpush1.msra.mxu0 %v499
        %4584 = vmatprep.subr.mxu0 0.0
        %4585 = vmatpush1.msra.mxu0 %v500
        %4586 = vmatprep.subr.mxu0 0.0
        %4587 = vmatpush1.msra.mxu0 %v501
        %4588 = vmatprep.subr.mxu0 0.0
        %4589 = vmatpush1.msra.mxu0 0.0
        %4590 = vmatprep.subr.mxu0 0.0
        %4591 = vmatpush1.msra.mxu0 0.0
        %4592 = vmatprep.subr.mxu0 0.0
        %4593 = vmatpush1.msra.mxu0 0.0
        %4594 = vmatprep.subr.mxu0 0.0
        %4595 = vmatpush1.msra.mxu0 0.0
        %4596 = vmatprep.subr.mxu0 0.0
        %4597 = vmatpush1.msra.mxu0 0.0
        %4598 = vmatprep.subr.mxu0 0.0
        %4599 = vmatpush1.msra.mxu0 0.0
        %4600 = vmatprep.subr.mxu0 0.0
        %4601 = vmatpush1.msra.mxu0 0.0
        %4602 = vmatprep.subr.mxu0 0.0
        %4603 = vmatpush1.msra.mxu0 0.0
        %4604 = vmatprep.subr.mxu0 0.0
        %4605 = vmatpush1.msra.mxu0 0.0
        %4606 = vmatprep.subr.mxu0 0.0
        %4607 = vmatpush1.msra.mxu0 0.0
        %4608 = vmatprep.subr.mxu0 0.0
        %4609 = vmatpush1.msra.mxu0 0.0
        %4610 = vmatprep.subr.mxu0 0.0
        %4611 = vmatpush1.msra.mxu0 0.0
        %4612 = vmatprep.subr.mxu0 0.0
        %4613 = vmatpush1.msra.mxu0 0.0
        %4614 = vmatprep.subr.mxu0 0.0
        %4615 = vmatpush1.msra.mxu0 0.0
        %4616 = vmatprep.subr.mxu0 0.0
        %4617 = vmatpush1.msra.mxu0 0.0
        %4618 = vmatprep.subr.mxu0 0.0
        %4619 = vmatpush1.msra.mxu0 0.0
        %4620 = vmatprep.subr.mxu0 0.0
        %4621 = vmatpush1.msra.mxu0 0.0
        %4622 = vmatprep.subr.mxu0 0.0
        %4623 = vmatpush1.msra.mxu0 0.0
        %4624 = vmatprep.subr.mxu0 0.0
        %4625 = vmatpush1.msra.mxu0 0.0
        %4626 = vmatprep.subr.mxu0 0.0
        %4627 = vmatpush1.msra.mxu0 0.0
        %4628 = vmatprep.subr.mxu0 0.0
        %4629 = vmatpush1.msra.mxu0 0.0
        %4630 = vmatprep.subr.mxu0 0.0
        %4631 = vmatpush1.msra.mxu0 0.0
        %4632 = vmatprep.subr.mxu0 0.0
        %4633 = vmatpush1.msra.mxu0 0.0
        %4634 = vmatprep.subr.mxu0 0.0
        %4635 = vmatpush1.msra.mxu0 0.0
        %4636 = vmatprep.subr.mxu0 0.0
        %4637 = vmatpush1.msra.mxu0 0.0
        %4638 = vmatprep.subr.mxu0 0.0
        %4639 = vmatpush1.msra.mxu0 0.0
        %4640 = vmatprep.subr.mxu0 0.0
        %4641 = vmatpush1.msra.mxu0 0.0
        %4642 = vmatprep.subr.mxu0 0.0
        %4643 = vmatpush1.msra.mxu0 0.0
        %4644 = vmatprep.mubr.f32.mxu0 0.0
        %4645 = vmatmul.mubr.f32.gmra.mrb[0].mxu0 %v4578
        %v4646 = vpop.f32.mrb[0].mxu0
        %v4647 = vadd.f32 0.0, %v4646
        %v4648 = vpop.f32.mrb[0].mxu0
        %4649 = vdwg.mxu0
        %4651 = vrot.lane.b32.xlu0 %v4647, 10
        %v4652 = vpop.permute.xlu0 %4651
        %v4654 = vadd.f32 %v4519, %v4652
        %v4655 = vxor.u32 %v4654, 2147483648
        %v4656 = vmul.f32 %v4655, 1.442695
        %v4657 = vpow.pop %v4656
        %v4658 = vadd.f32 %v4657, 1.0
        %v4659 = vrcp.pop %v4658
        %v4660 = vmul.f32 1.0, %v4659
        %v4661 = vadd.f32 %v4647, %v883
        %4663 = vrot.lane.b32.xlu0 %v4661, 74
        %v4664 = vpop.permute.xlu0 %4663
        %v4666 = vmul.f32 %v4660, %v4664
        %4668 = vrot.lane.b32.xlu0 %v4666, 64
        %v4669 = vpop.permute.xlu0 %4668
        %v4671 = vadd.f32 %v4519, %v4669
        %v4672 = vtanh.pop %v4671
        %v4673 = vsub.f32 1.0, %v4660
        %4675 = vrot.lane.b32.xlu0 %v4672, 96
        %v4676 = vpop.permute.xlu0 %4675
        %v4678 = vmul.f32 %v4673, %v4676
        %4679 = vrot.lane.b32.xlu0 %v4576, 42
        %v4680 = vpop.permute.xlu0 %4679
        %v4682 = vmul.f32 %v4660, %v4680
        %v4683 = vadd.f32 %v4678, %v4682
        %v4685 = vsel %vm651, %v4527, 0
        %4687 = vmatprep.subr.mxu0 0.0
        %4688 = vmatpush1.msra.mxu0 %v490
        %4689 = vmatprep.subr.mxu0 0.0
        %4690 = vmatpush1.msra.mxu0 %v919
        %4691 = vmatprep.subr.mxu0 0.0
        %4692 = vmatpush1.msra.mxu0 0.0
        %4693 = vmatprep.subr.mxu0 0.0
        %4694 = vmatpush1.msra.mxu0 0.0
        %4695 = vmatprep.subr.mxu0 0.0
        %4696 = vmatpush1.msra.mxu0 0.0
        %4697 = vmatprep.subr.mxu0 0.0
        %4698 = vmatpush1.msra.mxu0 0.0
        %4699 = vmatprep.subr.mxu0 0.0
        %4700 = vmatpush1.msra.mxu0 0.0
        %4701 = vmatprep.subr.mxu0 0.0
        %4702 = vmatpush1.msra.mxu0 0.0
        %4703 = vmatprep.subr.mxu0 0.0
        %4704 = vmatpush1.msra.mxu0 0.0
        %4705 = vmatprep.subr.mxu0 0.0
        %4706 = vmatpush1.msra.mxu0 0.0
        %4707 = vmatprep.subr.mxu0 0.0
        %4708 = vmatpush1.msra.mxu0 0.0
        %4709 = vmatprep.subr.mxu0 0.0
        %4710 = vmatpush1.msra.mxu0 0.0
        %4711 = vmatprep.subr.mxu0 0.0
        %4712 = vmatpush1.msra.mxu0 0.0
        %4713 = vmatprep.subr.mxu0 0.0
        %4714 = vmatpush1.msra.mxu0 0.0
        %4715 = vmatprep.subr.mxu0 0.0
        %4716 = vmatpush1.msra.mxu0 0.0
        %4717 = vmatprep.subr.mxu0 0.0
        %4718 = vmatpush1.msra.mxu0 0.0
        %4719 = vmatprep.subr.mxu0 0.0
        %4720 = vmatpush1.msra.mxu0 0.0
        %4721 = vmatprep.subr.mxu0 0.0
        %4722 = vmatpush1.msra.mxu0 0.0
        %4723 = vmatprep.subr.mxu0 0.0
        %4724 = vmatpush1.msra.mxu0 0.0
        %4725 = vmatprep.subr.mxu0 0.0
        %4726 = vmatpush1.msra.mxu0 0.0
        %4727 = vmatprep.subr.mxu0 0.0
        %4728 = vmatpush1.msra.mxu0 0.0
        %4729 = vmatprep.subr.mxu0 0.0
        %4730 = vmatpush1.msra.mxu0 0.0
        %4731 = vmatprep.subr.mxu0 0.0
        %4732 = vmatpush1.msra.mxu0 0.0
        %4733 = vmatprep.subr.mxu0 0.0
        %4734 = vmatpush1.msra.mxu0 0.0
        %4735 = vmatprep.subr.mxu0 0.0
        %4736 = vmatpush1.msra.mxu0 0.0
        %4737 = vmatprep.subr.mxu0 0.0
        %4738 = vmatpush1.msra.mxu0 0.0
        %4739 = vmatprep.subr.mxu0 0.0
        %4740 = vmatpush1.msra.mxu0 0.0
        %4741 = vmatprep.subr.mxu0 0.0
        %4742 = vmatpush1.msra.mxu0 0.0
        %4743 = vmatprep.subr.mxu0 0.0
        %4744 = vmatpush1.msra.mxu0 0.0
        %4745 = vmatprep.subr.mxu0 0.0
        %4746 = vmatpush1.msra.mxu0 0.0
        %4747 = vmatprep.subr.mxu0 0.0
        %4748 = vmatpush1.msra.mxu0 0.0
        %4749 = vmatprep.subr.mxu0 0.0
        %4750 = vmatpush1.msra.mxu0 0.0
        %4751 = vmatprep.mubr.f32.mxu0 0.0
        %4752 = vmatmul.mubr.f32.gmra.mrb[0].mxu0 %v4685
        %v4753 = vpop.f32.mrb[0].mxu0
        %v4754 = vadd.f32 %v912, %v4753
        %v4755 = vpop.f32.mrb[0].mxu0
        %4756 = vdwg.mxu0
        %v4757 = vld [vmem:[#allocation4] sm:$0xff]
        %v4758 = vmul.f32 %v4757, %v4574
        %v4760 = vsel %vm792, %v4758, 0
        %4762 = vmatprep.subr.mxu0 0.0
        %4763 = vmatpush1.msra.mxu0 %v503
        %4764 = vmatprep.subr.mxu0 0.0
        %4765 = vmatpush1.msra.mxu0 %v504
        %4766 = vmatprep.subr.mxu0 0.0
        %4767 = vmatpush1.msra.mxu0 %v505
        %4768 = vmatprep.subr.mxu0 0.0
        %4769 = vmatpush1.msra.mxu0 %v506
        %4770 = vmatprep.subr.mxu0 0.0
        %4771 = vmatpush1.msra.mxu0 0.0
        %4772 = vmatprep.subr.mxu0 0.0
        %4773 = vmatpush1.msra.mxu0 0.0
        %4774 = vmatprep.subr.mxu0 0.0
        %4775 = vmatpush1.msra.mxu0 0.0
        %4776 = vmatprep.subr.mxu0 0.0
        %4777 = vmatpush1.msra.mxu0 0.0
        %4778 = vmatprep.subr.mxu0 0.0
        %4779 = vmatpush1.msra.mxu0 0.0
        %4780 = vmatprep.subr.mxu0 0.0
        %4781 = vmatpush1.msra.mxu0 0.0
        %4782 = vmatprep.subr.mxu0 0.0
        %4783 = vmatpush1.msra.mxu0 0.0
        %4784 = vmatprep.subr.mxu0 0.0
        %4785 = vmatpush1.msra.mxu0 0.0
        %4786 = vmatprep.subr.mxu0 0.0
        %4787 = vmatpush1.msra.mxu0 0.0
        %4788 = vmatprep.subr.mxu0 0.0
        %4789 = vmatpush1.msra.mxu0 0.0
        %4790 = vmatprep.subr.mxu0 0.0
        %4791 = vmatpush1.msra.mxu0 0.0
        %4792 = vmatprep.subr.mxu0 0.0
        %4793 = vmatpush1.msra.mxu0 0.0
        %4794 = vmatprep.subr.mxu0 0.0
        %4795 = vmatpush1.msra.mxu0 0.0
        %4796 = vmatprep.subr.mxu0 0.0
        %4797 = vmatpush1.msra.mxu0 0.0
        %4798 = vmatprep.subr.mxu0 0.0
        %4799 = vmatpush1.msra.mxu0 0.0
        %4800 = vmatprep.subr.mxu0 0.0
        %4801 = vmatpush1.msra.mxu0 0.0
        %4802 = vmatprep.subr.mxu0 0.0
        %4803 = vmatpush1.msra.mxu0 0.0
        %4804 = vmatprep.subr.mxu0 0.0
        %4805 = vmatpush1.msra.mxu0 0.0
        %4806 = vmatprep.subr.mxu0 0.0
        %4807 = vmatpush1.msra.mxu0 0.0
        %4808 = vmatprep.subr.mxu0 0.0
        %4809 = vmatpush1.msra.mxu0 0.0
        %4810 = vmatprep.subr.mxu0 0.0
        %4811 = vmatpush1.msra.mxu0 0.0
        %4812 = vmatprep.subr.mxu0 0.0
        %4813 = vmatpush1.msra.mxu0 0.0
        %4814 = vmatprep.subr.mxu0 0.0
        %4815 = vmatpush1.msra.mxu0 0.0
        %4816 = vmatprep.subr.mxu0 0.0
        %4817 = vmatpush1.msra.mxu0 0.0
        %4818 = vmatprep.subr.mxu0 0.0
        %4819 = vmatpush1.msra.mxu0 0.0
        %4820 = vmatprep.subr.mxu0 0.0
        %4821 = vmatpush1.msra.mxu0 0.0
        %4822 = vmatprep.subr.mxu0 0.0
        %4823 = vmatpush1.msra.mxu0 0.0
        %4824 = vmatprep.subr.mxu0 0.0
        %4825 = vmatpush1.msra.mxu0 0.0
        %4826 = vmatprep.mubr.f32.mxu0 0.0
        %4827 = vmatmul.mubr.f32.gmra.mrb[0].mxu0 %v4760
        %v4828 = vpop.f32.mrb[0].mxu0
        %v4829 = vadd.f32 0.0, %v4828
        %v4830 = vpop.f32.mrb[0].mxu0
        %4831 = vdwg.mxu0
        %v4832 = vadd.f32 %v4754, %v4829
        %v4833 = vxor.u32 %v4832, 2147483648
        %v4834 = vmul.f32 %v4833, 1.442695
        %v4835 = vpow.pop %v4834
        %v4836 = vadd.f32 %v4835, 1.0
        %v4837 = vrcp.pop %v4836
        %v4838 = vmul.f32 1.0, %v4837
        %v4839 = vadd.f32 %v4829, %v1079
        %4841 = vrot.lane.b32.xlu0 %v4839, 64
        %v4842 = vpop.permute.xlu0 %4841
        %v4844 = vmul.f32 %v4838, %v4842
        %4846 = vrot.lane.b32.xlu0 %v4844, 64
        %v4847 = vpop.permute.xlu0 %4846
        %v4849 = vadd.f32 %v4754, %v4847
        %v4850 = vtanh.pop %v4849
        %v4851 = vsub.f32 1.0, %v4838
        %4853 = vrot.lane.b32.xlu0 %v4850, 96
        %v4854 = vpop.permute.xlu0 %4853
        %v4856 = vmul.f32 %v4851, %v4854
        %4857 = vrot.lane.b32.xlu0 %v4758, 32
        %v4858 = vpop.permute.xlu0 %4857
        %v4860 = vmul.f32 %v4838, %v4858
        %v4861 = vadd.f32 %v4856, %v4860
        %4863 = vrot.lane.b32.xlu0 %v4683, 86
        %v4864 = vpop.permute.xlu0 %4863
        %v4866 = vsel %vm792, %v4864, %v4861
        %v4868 = vsel %vm1115, %v4866, 0
        %4870 = vmatprep.subr.mxu0 0.0
        %4871 = vmatpush1.msra.mxu0 %v517
        %4872 = vmatprep.subr.mxu0 0.0
        %4873 = vmatpush1.msra.mxu0 %v518
        %4874 = vmatprep.subr.mxu0 0.0
        %4875 = vmatpush1.msra.mxu0 %v519
        %4876 = vmatprep.subr.mxu0 0.0
        %4877 = vmatpush1.msra.mxu0 %v520
        %4878 = vmatprep.subr.mxu0 0.0
        %4879 = vmatpush1.msra.mxu0 %v521
        %4880 = vmatprep.subr.mxu0 0.0
        %4881 = vmatpush1.msra.mxu0 %v522
        %4882 = vmatprep.subr.mxu0 0.0
        %4883 = vmatpush1.msra.mxu0 %v523
        %4884 = vmatprep.subr.mxu0 0.0
        %4885 = vmatpush1.msra.mxu0 %v524
        %4886 = vmatprep.subr.mxu0 0.0
        %4887 = vmatpush1.msra.mxu0 0.0
        %4888 = vmatprep.subr.mxu0 0.0
        %4889 = vmatpush1.msra.mxu0 0.0
        %4890 = vmatprep.subr.mxu0 0.0
        %4891 = vmatpush1.msra.mxu0 0.0
        %4892 = vmatprep.subr.mxu0 0.0
        %4893 = vmatpush1.msra.mxu0 0.0
        %4894 = vmatprep.subr.mxu0 0.0
        %4895 = vmatpush1.msra.mxu0 0.0
        %4896 = vmatprep.subr.mxu0 0.0
        %4897 = vmatpush1.msra.mxu0 0.0
        %4898 = vmatprep.subr.mxu0 0.0
        %4899 = vmatpush1.msra.mxu0 0.0
        %4900 = vmatprep.subr.mxu0 0.0
        %4901 = vmatpush1.msra.mxu0 0.0
        %4902 = vmatprep.subr.mxu0 0.0
        %4903 = vmatpush1.msra.mxu0 0.0
        %4904 = vmatprep.subr.mxu0 0.0
        %4905 = vmatpush1.msra.mxu0 0.0
        %4906 = vmatprep.subr.mxu0 0.0
        %4907 = vmatpush1.msra.mxu0 0.0
        %4908 = vmatprep.subr.mxu0 0.0
        %4909 = vmatpush1.msra.mxu0 0.0
        %4910 = vmatprep.subr.mxu0 0.0
        %4911 = vmatpush1.msra.mxu0 0.0
        %4912 = vmatprep.subr.mxu0 0.0
        %4913 = vmatpush1.msra.mxu0 0.0
        %4914 = vmatprep.subr.mxu0 0.0
        %4915 = vmatpush1.msra.mxu0 0.0
        %4916 = vmatprep.subr.mxu0 0.0
        %4917 = vmatpush1.msra.mxu0 0.0
        %4918 = vmatprep.subr.mxu0 0.0
        %4919 = vmatpush1.msra.mxu0 0.0
        %4920 = vmatprep.subr.mxu0 0.0
        %4921 = vmatpush1.msra.mxu0 0.0
        %4922 = vmatprep.subr.mxu0 0.0
        %4923 = vmatpush1.msra.mxu0 0.0
        %4924 = vmatprep.subr.mxu0 0.0
        %4925 = vmatpush1.msra.mxu0 0.0
        %4926 = vmatprep.subr.mxu0 0.0
        %4927 = vmatpush1.msra.mxu0 0.0
        %4928 = vmatprep.subr.mxu0 0.0
        %4929 = vmatpush1.msra.mxu0 0.0
        %4930 = vmatprep.subr.mxu0 0.0
        %4931 = vmatpush1.msra.mxu0 0.0
        %4932 = vmatprep.subr.mxu0 0.0
        %4933 = vmatpush1.msra.mxu0 0.0
        %4934 = vmatprep.mubr.f32.mxu0 0.0
        %4935 = vmatmul.mubr.f32.gmra.mrb[0].mxu0 %v4868
        %v4936 = vpop.f32.mrb[0].mxu0
        %v4937 = vadd.f32 %v1113, %v4936
        %v4938 = vpop.f32.mrb[0].mxu0
        %4939 = vdwg.mxu0
        %v4940 = vxor.u32 %v4937, 2147483648
        %v4941 = vmul.f32 %v4940, 1.442695
        %v4942 = vpow.pop %v4941
        %v4943 = vadd.f32 %v4942, 1.0
        %v4944 = vrcp.pop %v4943
        %v4945 = vmul.f32 1.0, %v4944
        %4947 = vrot.lane.b32.xlu0 %v4945, 118
        %v4948 = vpop.permute.xlu0 %4947
        %v4950 = vmul.f32 %v4937, %v4948
        %v4951 = vrot.slane %v4527, 1
        %v4952 = vrot.slane %v4527, 2
        %v4953 = vrot.slane %v4527, 3
        %v4954 = vrot.slane %v4527, 4
        %v4955 = vrot.slane %v4527, 5
        %v4956 = vrot.slane %v4527, 6
        %v4957 = vrot.slane %v4527, 7
        %v4966 = vmul.f32 %v4334, %v4527
        %v4967 = vmul.f32 %v4335, %v4951
        %v4968 = vmul.f32 %v4336, %v4952
        %v4969 = vmul.f32 %v4337, %v4953
        %v4970 = vmul.f32 %v4338, %v4954
        %v4971 = vmul.f32 %v4339, %v4955
        %v4972 = vmul.f32 %v4340, %v4956
        %v4973 = vmul.f32 %v4341, %v4957
        %v4982 = vrot.slane %v4967, 7
        %v4983 = vsel %vm603, %v4982, %v4966
        %v4984 = vrot.slane %v4968, 6
        %v4985 = vsel %vm606, %v4984, %v4983
        %v4986 = vrot.slane %v4969, 5
        %v4987 = vsel %vm609, %v4986, %v4985
        %v4988 = vrot.slane %v4970, 4
        %v4989 = vsel %vm612, %v4988, %v4987
        %v4990 = vrot.slane %v4971, 3
        %v4991 = vsel %vm615, %v4990, %v4989
        %v4992 = vrot.slane %v4972, 2
        %v4993 = vsel %vm618, %v4992, %v4991
        %v4994 = vrot.slane %v4973, 1
        %v4995 = vsel %vm621, %v4994, %v4993
        %4996 = vrot.lane.b32.xlu0 %v4995, 10
        %v4997 = vpop.permute.xlu0 %4996
        %v4999 = vsel %vm651, %v4950, %v4997
        %v5001 = vsel %vm659, %v4999, 0
        %5003 = vmatprep.subr.mxu0 0.0
        %5004 = vmatpush1.msra.mxu0 %v526
        %5005 = vmatprep.subr.mxu0 0.0
        %5006 = vmatpush1.msra.mxu0 %v527
        %5007 = vmatprep.subr.mxu0 0.0
        %5008 = vmatpush1.msra.mxu0 %v1259
        %5009 = vmatprep.subr.mxu0 0.0
        %5010 = vmatpush1.msra.mxu0 0.0
        %5011 = vmatprep.subr.mxu0 0.0
        %5012 = vmatpush1.msra.mxu0 0.0
        %5013 = vmatprep.subr.mxu0 0.0
        %5014 = vmatpush1.msra.mxu0 0.0
        %5015 = vmatprep.subr.mxu0 0.0
        %5016 = vmatpush1.msra.mxu0 0.0
        %5017 = vmatprep.subr.mxu0 0.0
        %5018 = vmatpush1.msra.mxu0 0.0
        %5019 = vmatprep.subr.mxu0 0.0
        %5020 = vmatpush1.msra.mxu0 0.0
        %5021 = vmatprep.subr.mxu0 0.0
        %5022 = vmatpush1.msra.mxu0 0.0
        %5023 = vmatprep.subr.mxu0 0.0
        %5024 = vmatpush1.msra.mxu0 0.0
        %5025 = vmatprep.subr.mxu0 0.0
        %5026 = vmatpush1.msra.mxu0 0.0
        %5027 = vmatprep.subr.mxu0 0.0
        %5028 = vmatpush1.msra.mxu0 0.0
        %5029 = vmatprep.subr.mxu0 0.0
        %5030 = vmatpush1.msra.mxu0 0.0
        %5031 = vmatprep.subr.mxu0 0.0
        %5032 = vmatpush1.msra.mxu0 0.0
        %5033 = vmatprep.subr.mxu0 0.0
        %5034 = vmatpush1.msra.mxu0 0.0
        %5035 = vmatprep.subr.mxu0 0.0
        %5036 = vmatpush1.msra.mxu0 0.0
        %5037 = vmatprep.subr.mxu0 0.0
        %5038 = vmatpush1.msra.mxu0 0.0
        %5039 = vmatprep.subr.mxu0 0.0
        %5040 = vmatpush1.msra.mxu0 0.0
        %5041 = vmatprep.subr.mxu0 0.0
        %5042 = vmatpush1.msra.mxu0 0.0
        %5043 = vmatprep.subr.mxu0 0.0
        %5044 = vmatpush1.msra.mxu0 0.0
        %5045 = vmatprep.subr.mxu0 0.0
        %5046 = vmatpush1.msra.mxu0 0.0
        %5047 = vmatprep.subr.mxu0 0.0
        %5048 = vmatpush1.msra.mxu0 0.0
        %5049 = vmatprep.subr.mxu0 0.0
        %5050 = vmatpush1.msra.mxu0 0.0
        %5051 = vmatprep.subr.mxu0 0.0
        %5052 = vmatpush1.msra.mxu0 0.0
        %5053 = vmatprep.subr.mxu0 0.0
        %5054 = vmatpush1.msra.mxu0 0.0
        %5055 = vmatprep.subr.mxu0 0.0
        %5056 = vmatpush1.msra.mxu0 0.0
        %5057 = vmatprep.subr.mxu0 0.0
        %5058 = vmatpush1.msra.mxu0 0.0
        %5059 = vmatprep.subr.mxu0 0.0
        %5060 = vmatpush1.msra.mxu0 0.0
        %5061 = vmatprep.subr.mxu0 0.0
        %5062 = vmatpush1.msra.mxu0 0.0
        %5063 = vmatprep.subr.mxu0 0.0
        %5064 = vmatpush1.msra.mxu0 0.0
        %5065 = vmatprep.subr.mxu0 0.0
        %5066 = vmatpush1.msra.mxu0 0.0
        %5067 = vmatprep.mubr.f32.mxu0 0.0
        %5068 = vmatmul.mubr.f32.gmra.mrb[0].mxu0 %v5001
        %v5069 = vpop.f32.mrb[0].mxu0
        %v5070 = vadd.f32 %v1253, %v5069
        %v5071 = vpop.f32.mrb[0].mxu0
        %5072 = vdwg.mxu0
        %v5073 = vmax.f32 %v5070, 0.0
        %v5075 = vsel %vm651, %v5073, 0
        %5077 = vmatprep.subr.mxu0 0.0
        %5078 = vmatpush1.msra.mxu0 %v493
        %5079 = vmatprep.subr.mxu0 0.0
        %5080 = vmatpush1.msra.mxu0 %v1342
        %5081 = vmatprep.subr.mxu0 0.0
        %5082 = vmatpush1.msra.mxu0 0.0
        %5083 = vmatprep.subr.mxu0 0.0
        %5084 = vmatpush1.msra.mxu0 0.0
        %5085 = vmatprep.subr.mxu0 0.0
        %5086 = vmatpush1.msra.mxu0 0.0
        %5087 = vmatprep.subr.mxu0 0.0
        %5088 = vmatpush1.msra.mxu0 0.0
        %5089 = vmatprep.subr.mxu0 0.0
        %5090 = vmatpush1.msra.mxu0 0.0
        %5091 = vmatprep.subr.mxu0 0.0
        %5092 = vmatpush1.msra.mxu0 0.0
        %5093 = vmatprep.subr.mxu0 0.0
        %5094 = vmatpush1.msra.mxu0 0.0
        %5095 = vmatprep.subr.mxu0 0.0
        %5096 = vmatpush1.msra.mxu0 0.0
        %5097 = vmatprep.subr.mxu0 0.0
        %5098 = vmatpush1.msra.mxu0 0.0
        %5099 = vmatprep.subr.mxu0 0.0
        %5100 = vmatpush1.msra.mxu0 0.0
        %5101 = vmatprep.subr.mxu0 0.0
        %5102 = vmatpush1.msra.mxu0 0.0
        %5103 = vmatprep.subr.mxu0 0.0
        %5104 = vmatpush1.msra.mxu0 0.0
        %5105 = vmatprep.subr.mxu0 0.0
        %5106 = vmatpush1.msra.mxu0 0.0
        %5107 = vmatprep.subr.mxu0 0.0
        %5108 = vmatpush1.msra.mxu0 0.0
        %5109 = vmatprep.subr.mxu0 0.0
        %5110 = vmatpush1.msra.mxu0 0.0
        %5111 = vmatprep.subr.mxu0 0.0
        %5112 = vmatpush1.msra.mxu0 0.0
        %5113 = vmatprep.subr.mxu0 0.0
        %5114 = vmatpush1.msra.mxu0 0.0
        %5115 = vmatprep.subr.mxu0 0.0
        %5116 = vmatpush1.msra.mxu0 0.0
        %5117 = vmatprep.subr.mxu0 0.0
        %5118 = vmatpush1.msra.mxu0 0.0
        %5119 = vmatprep.subr.mxu0 0.0
        %5120 = vmatpush1.msra.mxu0 0.0
        %5121 = vmatprep.subr.mxu0 0.0
        %5122 = vmatpush1.msra.mxu0 0.0
        %5123 = vmatprep.subr.mxu0 0.0
        %5124 = vmatpush1.msra.mxu0 0.0
        %5125 = vmatprep.subr.mxu0 0.0
        %5126 = vmatpush1.msra.mxu0 0.0
        %5127 = vmatprep.subr.mxu0 0.0
        %5128 = vmatpush1.msra.mxu0 0.0
        %5129 = vmatprep.subr.mxu0 0.0
        %5130 = vmatpush1.msra.mxu0 0.0
        %5131 = vmatprep.subr.mxu0 0.0
        %5132 = vmatpush1.msra.mxu0 0.0
        %5133 = vmatprep.subr.mxu0 0.0
        %5134 = vmatpush1.msra.mxu0 0.0
        %5135 = vmatprep.subr.mxu0 0.0
        %5136 = vmatpush1.msra.mxu0 0.0
        %5137 = vmatprep.subr.mxu0 0.0
        %5138 = vmatpush1.msra.mxu0 0.0
        %5139 = vmatprep.subr.mxu0 0.0
        %5140 = vmatpush1.msra.mxu0 0.0
        %5141 = vmatprep.mubr.f32.mxu0 0.0
        %5142 = vmatmul.mubr.f32.gmra.mrb[0].mxu0 %v5075
        %v5143 = vpop.f32.mrb[0].mxu0
        %v5144 = vadd.f32 %v1336, %v5143
        %v5145 = vpop.f32.mrb[0].mxu0
        %5146 = vdwg.mxu0
        %v5147 = vld [vmem:[#allocation2] sm:$0xff]
        %v5149 = vsel %vm792, %v5147, 0
        %5151 = vmatprep.subr.mxu0 0.0
        %5152 = vmatpush1.msra.mxu0 %v508
        %5153 = vmatprep.subr.mxu0 0.0
        %5154 = vmatpush1.msra.mxu0 %v509
        %5155 = vmatprep.subr.mxu0 0.0
        %5156 = vmatpush1.msra.mxu0 %v510
        %5157 = vmatprep.subr.mxu0 0.0
        %5158 = vmatpush1.msra.mxu0 %v511
        %5159 = vmatprep.subr.mxu0 0.0
        %5160 = vmatpush1.msra.mxu0 0.0
        %5161 = vmatprep.subr.mxu0 0.0
        %5162 = vmatpush1.msra.mxu0 0.0
        %5163 = vmatprep.subr.mxu0 0.0
        %5164 = vmatpush1.msra.mxu0 0.0
        %5165 = vmatprep.subr.mxu0 0.0
        %5166 = vmatpush1.msra.mxu0 0.0
        %5167 = vmatprep.subr.mxu0 0.0
        %5168 = vmatpush1.msra.mxu0 0.0
        %5169 = vmatprep.subr.mxu0 0.0
        %5170 = vmatpush1.msra.mxu0 0.0
        %5171 = vmatprep.subr.mxu0 0.0
        %5172 = vmatpush1.msra.mxu0 0.0
        %5173 = vmatprep.subr.mxu0 0.0
        %5174 = vmatpush1.msra.mxu0 0.0
        %5175 = vmatprep.subr.mxu0 0.0
        %5176 = vmatpush1.msra.mxu0 0.0
        %5177 = vmatprep.subr.mxu0 0.0
        %5178 = vmatpush1.msra.mxu0 0.0
        %5179 = vmatprep.subr.mxu0 0.0
        %5180 = vmatpush1.msra.mxu0 0.0
        %5181 = vmatprep.subr.mxu0 0.0
        %5182 = vmatpush1.msra.mxu0 0.0
        %5183 = vmatprep.subr.mxu0 0.0
        %5184 = vmatpush1.msra.mxu0 0.0
        %5185 = vmatprep.subr.mxu0 0.0
        %5186 = vmatpush1.msra.mxu0 0.0
        %5187 = vmatprep.subr.mxu0 0.0
        %5188 = vmatpush1.msra.mxu0 0.0
        %5189 = vmatprep.subr.mxu0 0.0
        %5190 = vmatpush1.msra.mxu0 0.0
        %5191 = vmatprep.subr.mxu0 0.0
        %5192 = vmatpush1.msra.mxu0 0.0
        %5193 = vmatprep.subr.mxu0 0.0
        %5194 = vmatpush1.msra.mxu0 0.0
        %5195 = vmatprep.subr.mxu0 0.0
        %5196 = vmatpush1.msra.mxu0 0.0
        %5197 = vmatprep.subr.mxu0 0.0
        %5198 = vmatpush1.msra.mxu0 0.0
        %5199 = vmatprep.subr.mxu0 0.0
        %5200 = vmatpush1.msra.mxu0 0.0
        %5201 = vmatprep.subr.mxu0 0.0
        %5202 = vmatpush1.msra.mxu0 0.0
        %5203 = vmatprep.subr.mxu0 0.0
        %5204 = vmatpush1.msra.mxu0 0.0
        %5205 = vmatprep.subr.mxu0 0.0
        %5206 = vmatpush1.msra.mxu0 0.0
        %5207 = vmatprep.subr.mxu0 0.0
        %5208 = vmatpush1.msra.mxu0 0.0
        %5209 = vmatprep.subr.mxu0 0.0
        %5210 = vmatpush1.msra.mxu0 0.0
        %5211 = vmatprep.subr.mxu0 0.0
        %5212 = vmatpush1.msra.mxu0 0.0
        %5213 = vmatprep.subr.mxu0 0.0
        %5214 = vmatpush1.msra.mxu0 0.0
        %5215 = vmatprep.mubr.f32.mxu0 0.0
        %5216 = vmatmul.mubr.f32.gmra.mrb[0].mxu0 %v5149
        %v5217 = vpop.f32.mrb[0].mxu0
        %v5218 = vadd.f32 0.0, %v5217
        %v5219 = vpop.f32.mrb[0].mxu0
        %5220 = vdwg.mxu0
        %v5221 = vadd.f32 %v5144, %v5218
        %v5222 = vxor.u32 %v5221, 2147483648
        %v5223 = vmul.f32 %v5222, 1.442695
        %v5224 = vpow.pop %v5223
        %v5225 = vadd.f32 %v5224, 1.0
        %v5226 = vrcp.pop %v5225
        %v5227 = vmul.f32 1.0, %v5226
        %v5228 = vadd.f32 %v5218, %v1501
        %5230 = vrot.lane.b32.xlu0 %v5228, 64
        %v5231 = vpop.permute.xlu0 %5230
        %v5233 = vmul.f32 %v5227, %v5231
        %5235 = vrot.lane.b32.xlu0 %v5233, 64
        %v5236 = vpop.permute.xlu0 %5235
        %v5238 = vadd.f32 %v5144, %v5236
        %v5239 = vtanh.pop %v5238
        %v5240 = vsub.f32 1.0, %v5227
        %5242 = vrot.lane.b32.xlu0 %v5239, 96
        %v5243 = vpop.permute.xlu0 %5242
        %v5245 = vmul.f32 %v5240, %v5243
        %5246 = vrot.lane.b32.xlu0 %v5147, 32
        %v5247 = vpop.permute.xlu0 %5246
        %v5249 = vmul.f32 %v5227, %v5247
        %v5250 = vadd.f32 %v5245, %v5249
        %5252 = vrot.lane.b32.xlu0 %v5250, 96
        %v5253 = vpop.permute.xlu0 %5252
        %5255 = vst.msk [vmem:[%s476 + $0x8] sm:$0xff] %vm792, %v5253
        %5256 = vst.msk [vmem:[#allocation2] sm:$0xff] %vm792, %v5253
        %5257 = vst.msk [vmem:[#allocation3] sm:$0xff] %vm792, %v4864
        %5259 = vrot.lane.b32.xlu0 %v4861, 96
        %v5260 = vpop.permute.xlu0 %5259
        %5262 = vst.msk [vmem:[#allocation4] sm:$0xff] %vm792, %v5260
        %v5263 = vld [vmem:[%s426 + $0x5] sm:$0x1]
        %v5264 = vld [vmem:[%s426 + $0xd] sm:$0x1]
        %v5265 = vld [vmem:[%s426 + $0x15] sm:$0x1]
        %v5266 = vld [vmem:[%s426 + $0x1d] sm:$0x1]
        %v5267 = vld [vmem:[%s426 + $0x25] sm:$0x1]
        %v5268 = vld [vmem:[%s426 + $0x2d] sm:$0x1]
        %v5269 = vld [vmem:[%s426 + $0x35] sm:$0x1]
        %v5270 = vld [vmem:[%s426 + $0x3d] sm:$0x1]
        %v5271 = vsub.f32 1.0, %v5263
        %v5272 = vsub.f32 1.0, %v5264
        %v5273 = vsub.f32 1.0, %v5265
        %v5274 = vsub.f32 1.0, %v5266
        %v5275 = vsub.f32 1.0, %v5267
        %v5276 = vsub.f32 1.0, %v5268
        %v5277 = vsub.f32 1.0, %v5269
        %v5278 = vsub.f32 1.0, %v5270
        %v5279 = vmax.f32 %v5271, 0.0
        %v5280 = vmax.f32 %v5272, 0.0
        %v5281 = vmax.f32 %v5273, 0.0
        %v5282 = vmax.f32 %v5274, 0.0
        %v5283 = vmax.f32 %v5275, 0.0
        %v5284 = vmax.f32 %v5276, 0.0
        %v5285 = vmax.f32 %v5277, 0.0
        %v5286 = vmax.f32 %v5278, 0.0
        %5295 = vrot.lane.b32.xlu0 %v5279, 118
        %v5296 = vpop.permute.xlu0 %5295
        %5297 = vrot.lane.b32.xlu0 %v5280, 118
        %v5298 = vpop.permute.xlu0 %5297
        %5299 = vrot.lane.b32.xlu0 %v5281, 118
        %v5300 = vpop.permute.xlu0 %5299
        %5301 = vrot.lane.b32.xlu0 %v5282, 118
        %v5302 = vpop.permute.xlu0 %5301
        %5303 = vrot.lane.b32.xlu0 %v5283, 118
        %v5304 = vpop.permute.xlu0 %5303
        %5305 = vrot.lane.b32.xlu0 %v5284, 118
        %v5306 = vpop.permute.xlu0 %5305
        %5307 = vrot.lane.b32.xlu0 %v5285, 118
        %v5308 = vpop.permute.xlu0 %5307
        %5309 = vrot.lane.b32.xlu0 %v5286, 118
        %v5310 = vpop.permute.xlu0 %5309
        %v5319 = vmul.f32 %v5263, %v5296
        %v5320 = vmul.f32 %v5264, %v5298
        %v5321 = vmul.f32 %v5265, %v5300
        %v5322 = vmul.f32 %v5266, %v5302
        %v5323 = vmul.f32 %v5267, %v5304
        %v5324 = vmul.f32 %v5268, %v5306
        %v5325 = vmul.f32 %v5269, %v5308
        %v5326 = vmul.f32 %v5270, %v5310
        %v5335 = vrot.slane %v5272, 7
        %v5336 = vsel %vm603, %v5335, %v5271
        %v5337 = vrot.slane %v5273, 6
        %v5338 = vsel %vm606, %v5337, %v5336
        %v5339 = vrot.slane %v5274, 5
        %v5340 = vsel %vm609, %v5339, %v5338
        %v5341 = vrot.slane %v5275, 4
        %v5342 = vsel %vm612, %v5341, %v5340
        %v5343 = vrot.slane %v5276, 3
        %v5344 = vsel %vm615, %v5343, %v5342
        %v5345 = vrot.slane %v5277, 2
        %v5346 = vsel %vm618, %v5345, %v5344
        %v5347 = vrot.slane %v5278, 1
        %v5348 = vsel %vm621, %v5347, %v5346
        %5349 = vrot.lane.b32.xlu0 %v5348, 118
        %v5350 = vpop.permute.xlu0 %5349
        %v5360 = vrot.slane %v5320, 7
        %v5361 = vsel %vm603, %v5360, %v5319
        %v5362 = vrot.slane %v5321, 6
        %v5363 = vsel %vm606, %v5362, %v5361
        %v5364 = vrot.slane %v5322, 5
        %v5365 = vsel %vm609, %v5364, %v5363
        %v5366 = vrot.slane %v5323, 4
        %v5367 = vsel %vm612, %v5366, %v5365
        %v5368 = vrot.slane %v5324, 3
        %v5369 = vsel %vm615, %v5368, %v5367
        %v5370 = vrot.slane %v5325, 2
        %v5371 = vsel %vm618, %v5370, %v5369
        %v5372 = vrot.slane %v5326, 1
        %v5373 = vsel %vm621, %v5372, %v5371
        %5374 = vrot.lane.b32.xlu0 %v5373, 10
        %v5375 = vpop.permute.xlu0 %5374
        %v5377 = vsel %vm651, %v5350, %v5375
        %v5379 = vsel %vm659, %v5377, 0
        %5381 = vmatprep.subr.mxu0 0.0
        %5382 = vmatpush1.msra.mxu0 %v486
        %5383 = vmatprep.subr.mxu0 0.0
        %5384 = vmatpush1.msra.mxu0 %v487
        %5385 = vmatprep.subr.mxu0 0.0
        %5386 = vmatpush1.msra.mxu0 %v665
        %5387 = vmatprep.subr.mxu0 0.0
        %5388 = vmatpush1.msra.mxu0 0.0
        %5389 = vmatprep.subr.mxu0 0.0
        %5390 = vmatpush1.msra.mxu0 0.0
        %5391 = vmatprep.subr.mxu0 0.0
        %5392 = vmatpush1.msra.mxu0 0.0
        %5393 = vmatprep.subr.mxu0 0.0
        %5394 = vmatpush1.msra.mxu0 0.0
        %5395 = vmatprep.subr.mxu0 0.0
        %5396 = vmatpush1.msra.mxu0 0.0
        %5397 = vmatprep.subr.mxu0 0.0
        %5398 = vmatpush1.msra.mxu0 0.0
        %5399 = vmatprep.subr.mxu0 0.0
        %5400 = vmatpush1.msra.mxu0 0.0
        %5401 = vmatprep.subr.mxu0 0.0
        %5402 = vmatpush1.msra.mxu0 0.0
        %5403 = vmatprep.subr.mxu0 0.0
        %5404 = vmatpush1.msra.mxu0 0.0
        %5405 = vmatprep.subr.mxu0 0.0
        %5406 = vmatpush1.msra.mxu0 0.0
        %5407 = vmatprep.subr.mxu0 0.0
        %5408 = vmatpush1.msra.mxu0 0.0
        %5409 = vmatprep.subr.mxu0 0.0
        %5410 = vmatpush1.msra.mxu0 0.0
        %5411 = vmatprep.subr.mxu0 0.0
        %5412 = vmatpush1.msra.mxu0 0.0
        %5413 = vmatprep.subr.mxu0 0.0
        %5414 = vmatpush1.msra.mxu0 0.0
        %5415 = vmatprep.subr.mxu0 0.0
        %5416 = vmatpush1.msra.mxu0 0.0
        %5417 = vmatprep.subr.mxu0 0.0
        %5418 = vmatpush1.msra.mxu0 0.0
        %5419 = vmatprep.subr.mxu0 0.0
        %5420 = vmatpush1.msra.mxu0 0.0
        %5421 = vmatprep.subr.mxu0 0.0
        %5422 = vmatpush1.msra.mxu0 0.0
        %5423 = vmatprep.subr.mxu0 0.0
        %5424 = vmatpush1.msra.mxu0 0.0
        %5425 = vmatprep.subr.mxu0 0.0
        %5426 = vmatpush1.msra.mxu0 0.0
        %5427 = vmatprep.subr.mxu0 0.0
        %5428 = vmatpush1.msra.mxu0 0.0
        %5429 = vmatprep.subr.mxu0 0.0
        %5430 = vmatpush1.msra.mxu0 0.0
        %5431 = vmatprep.subr.mxu0 0.0
        %5432 = vmatpush1.msra.mxu0 0.0
        %5433 = vmatprep.subr.mxu0 0.0
        %5434 = vmatpush1.msra.mxu0 0.0
        %5435 = vmatprep.subr.mxu0 0.0
        %5436 = vmatpush1.msra.mxu0 0.0
        %5437 = vmatprep.subr.mxu0 0.0
        %5438 = vmatpush1.msra.mxu0 0.0
        %5439 = vmatprep.subr.mxu0 0.0
        %5440 = vmatpush1.msra.mxu0 0.0
        %5441 = vmatprep.subr.mxu0 0.0
        %5442 = vmatpush1.msra.mxu0 0.0
        %5443 = vmatprep.subr.mxu0 0.0
        %5444 = vmatpush1.msra.mxu0 0.0
        %5445 = vmatprep.mubr.f32.mxu0 0.0
        %5446 = vmatmul.mubr.f32.gmra.mrb[0].mxu0 %v5379
        %v5447 = vpop.f32.mrb[0].mxu0
        %v5448 = vadd.f32 %v657, %v5447
        %v5449 = vpop.f32.mrb[0].mxu0
        %5450 = vdwg.mxu0
        %v5451 = vxor.u32 %v5448, 2147483648
        %v5452 = vmul.f32 %v5451, 1.442695
        %v5453 = vpow.pop %v5452
        %v5454 = vadd.f32 %v5453, 1.0
        %v5455 = vrcp.pop %v5454
        %v5456 = vmul.f32 1.0, %v5455
        %v5457 = vld [vmem:[#allocation3] sm:$0xff]
        %5459 = vset.pattern.permute.xlu0 20
        %5460 = vperm.xlu0 %5459, %v5263
        %v5461 = vpop.permute.xlu0 %5460
        %5463 = vset.pattern.permute.xlu0 20
        %5464 = vperm.xlu0 %5463, %v5264
        %v5465 = vpop.permute.xlu0 %5464
        %5467 = vset.pattern.permute.xlu0 20
        %5468 = vperm.xlu0 %5467, %v5265
        %v5469 = vpop.permute.xlu0 %5468
        %5471 = vset.pattern.permute.xlu0 20
        %5472 = vperm.xlu0 %5471, %v5266
        %v5473 = vpop.permute.xlu0 %5472
        %5475 = vset.pattern.permute.xlu0 20
        %5476 = vperm.xlu0 %5475, %v5267
        %v5477 = vpop.permute.xlu0 %5476
        %5479 = vset.pattern.permute.xlu0 20
        %5480 = vperm.xlu0 %5479, %v5268
        %v5481 = vpop.permute.xlu0 %5480
        %5483 = vset.pattern.permute.xlu0 20
        %5484 = vperm.xlu0 %5483, %v5269
        %v5485 = vpop.permute.xlu0 %5484
        %5487 = vset.pattern.permute.xlu0 20
        %5488 = vperm.xlu0 %5487, %v5270
        %v5489 = vpop.permute.xlu0 %5488
        %v5490 = vrot.slane %v5465, 7
        %v5491 = vsel %vm603, %v5490, %v5461
        %v5492 = vrot.slane %v5469, 6
        %v5493 = vsel %vm606, %v5492, %v5491
        %v5494 = vrot.slane %v5473, 5
        %v5495 = vsel %vm609, %v5494, %v5493
        %v5496 = vrot.slane %v5477, 4
        %v5497 = vsel %vm612, %v5496, %v5495
        %v5498 = vrot.slane %v5481, 3
        %v5499 = vsel %vm615, %v5498, %v5497
        %v5500 = vrot.slane %v5485, 2
        %v5501 = vsel %vm618, %v5500, %v5499
        %v5502 = vrot.slane %v5489, 1
        %v5503 = vsel %vm621, %v5502, %v5501
        %v5505 = vmul.f32 %v5457, %v5503
        %v5507 = vsel %vm792, %v5505, 0
        %5509 = vmatprep.subr.mxu0 0.0
        %5510 = vmatpush1.msra.mxu0 %v498
        %5511 = vmatprep.subr.mxu0 0.0
        %5512 = vmatpush1.msra.mxu0 %v499
        %5513 = vmatprep.subr.mxu0 0.0
        %5514 = vmatpush1.msra.mxu0 %v500
        %5515 = vmatprep.subr.mxu0 0.0
        %5516 = vmatpush1.msra.mxu0 %v501
        %5517 = vmatprep.subr.mxu0 0.0
        %5518 = vmatpush1.msra.mxu0 0.0
        %5519 = vmatprep.subr.mxu0 0.0
        %5520 = vmatpush1.msra.mxu0 0.0
        %5521 = vmatprep.subr.mxu0 0.0
        %5522 = vmatpush1.msra.mxu0 0.0
        %5523 = vmatprep.subr.mxu0 0.0
        %5524 = vmatpush1.msra.mxu0 0.0
        %5525 = vmatprep.subr.mxu0 0.0
        %5526 = vmatpush1.msra.mxu0 0.0
        %5527 = vmatprep.subr.mxu0 0.0
        %5528 = vmatpush1.msra.mxu0 0.0
        %5529 = vmatprep.subr.mxu0 0.0
        %5530 = vmatpush1.msra.mxu0 0.0
        %5531 = vmatprep.subr.mxu0 0.0
        %5532 = vmatpush1.msra.mxu0 0.0
        %5533 = vmatprep.subr.mxu0 0.0
        %5534 = vmatpush1.msra.mxu0 0.0
        %5535 = vmatprep.subr.mxu0 0.0
        %5536 = vmatpush1.msra.mxu0 0.0
        %5537 = vmatprep.subr.mxu0 0.0
        %5538 = vmatpush1.msra.mxu0 0.0
        %5539 = vmatprep.subr.mxu0 0.0
        %5540 = vmatpush1.msra.mxu0 0.0
        %5541 = vmatprep.subr.mxu0 0.0
        %5542 = vmatpush1.msra.mxu0 0.0
        %5543 = vmatprep.subr.mxu0 0.0
        %5544 = vmatpush1.msra.mxu0 0.0
        %5545 = vmatprep.subr.mxu0 0.0
        %5546 = vmatpush1.msra.mxu0 0.0
        %5547 = vmatprep.subr.mxu0 0.0
        %5548 = vmatpush1.msra.mxu0 0.0
        %5549 = vmatprep.subr.mxu0 0.0
        %5550 = vmatpush1.msra.mxu0 0.0
        %5551 = vmatprep.subr.mxu0 0.0
        %5552 = vmatpush1.msra.mxu0 0.0
        %5553 = vmatprep.subr.mxu0 0.0
        %5554 = vmatpush1.msra.mxu0 0.0
        %5555 = vmatprep.subr.mxu0 0.0
        %5556 = vmatpush1.msra.mxu0 0.0
        %5557 = vmatprep.subr.mxu0 0.0
        %5558 = vmatpush1.msra.mxu0 0.0
        %5559 = vmatprep.subr.mxu0 0.0
        %5560 = vmatpush1.msra.mxu0 0.0
        %5561 = vmatprep.subr.mxu0 0.0
        %5562 = vmatpush1.msra.mxu0 0.0
        %5563 = vmatprep.subr.mxu0 0.0
        %5564 = vmatpush1.msra.mxu0 0.0
        %5565 = vmatprep.subr.mxu0 0.0
        %5566 = vmatpush1.msra.mxu0 0.0
        %5567 = vmatprep.subr.mxu0 0.0
        %5568 = vmatpush1.msra.mxu0 0.0
        %5569 = vmatprep.subr.mxu0 0.0
        %5570 = vmatpush1.msra.mxu0 0.0
        %5571 = vmatprep.subr.mxu0 0.0
        %5572 = vmatpush1.msra.mxu0 0.0
        %5573 = vmatprep.mubr.f32.mxu0 0.0
        %5574 = vmatmul.mubr.f32.gmra.mrb[0].mxu0 %v5507
        %v5575 = vpop.f32.mrb[0].mxu0
        %v5576 = vadd.f32 0.0, %v5575
        %v5577 = vpop.f32.mrb[0].mxu0
        %5578 = vdwg.mxu0
        %5580 = vrot.lane.b32.xlu0 %v5576, 10
        %v5581 = vpop.permute.xlu0 %5580
        %v5583 = vadd.f32 %v5448, %v5581
        %v5584 = vxor.u32 %v5583, 2147483648
        %v5585 = vmul.f32 %v5584, 1.442695
        %v5586 = vpow.pop %v5585
        %v5587 = vadd.f32 %v5586, 1.0
        %v5588 = vrcp.pop %v5587
        %v5589 = vmul.f32 1.0, %v5588
        %v5590 = vadd.f32 %v5576, %v883
        %5592 = vrot.lane.b32.xlu0 %v5590, 74
        %v5593 = vpop.permute.xlu0 %5592
        %v5595 = vmul.f32 %v5589, %v5593
        %5597 = vrot.lane.b32.xlu0 %v5595, 64
        %v5598 = vpop.permute.xlu0 %5597
        %v5600 = vadd.f32 %v5448, %v5598
        %v5601 = vtanh.pop %v5600
        %v5602 = vsub.f32 1.0, %v5589
        %5604 = vrot.lane.b32.xlu0 %v5601, 96
        %v5605 = vpop.permute.xlu0 %5604
        %v5607 = vmul.f32 %v5602, %v5605
        %5608 = vrot.lane.b32.xlu0 %v5505, 42
        %v5609 = vpop.permute.xlu0 %5608
        %v5611 = vmul.f32 %v5589, %v5609
        %v5612 = vadd.f32 %v5607, %v5611
        %v5614 = vsel %vm651, %v5456, 0
        %5616 = vmatprep.subr.mxu0 0.0
        %5617 = vmatpush1.msra.mxu0 %v490
        %5618 = vmatprep.subr.mxu0 0.0
        %5619 = vmatpush1.msra.mxu0 %v919
        %5620 = vmatprep.subr.mxu0 0.0
        %5621 = vmatpush1.msra.mxu0 0.0
        %5622 = vmatprep.subr.mxu0 0.0
        %5623 = vmatpush1.msra.mxu0 0.0
        %5624 = vmatprep.subr.mxu0 0.0
        %5625 = vmatpush1.msra.mxu0 0.0
        %5626 = vmatprep.subr.mxu0 0.0
        %5627 = vmatpush1.msra.mxu0 0.0
        %5628 = vmatprep.subr.mxu0 0.0
        %5629 = vmatpush1.msra.mxu0 0.0
        %5630 = vmatprep.subr.mxu0 0.0
        %5631 = vmatpush1.msra.mxu0 0.0
        %5632 = vmatprep.subr.mxu0 0.0
        %5633 = vmatpush1.msra.mxu0 0.0
        %5634 = vmatprep.subr.mxu0 0.0
        %5635 = vmatpush1.msra.mxu0 0.0
        %5636 = vmatprep.subr.mxu0 0.0
        %5637 = vmatpush1.msra.mxu0 0.0
        %5638 = vmatprep.subr.mxu0 0.0
        %5639 = vmatpush1.msra.mxu0 0.0
        %5640 = vmatprep.subr.mxu0 0.0
        %5641 = vmatpush1.msra.mxu0 0.0
        %5642 = vmatprep.subr.mxu0 0.0
        %5643 = vmatpush1.msra.mxu0 0.0
        %5644 = vmatprep.subr.mxu0 0.0
        %5645 = vmatpush1.msra.mxu0 0.0
        %5646 = vmatprep.subr.mxu0 0.0
        %5647 = vmatpush1.msra.mxu0 0.0
        %5648 = vmatprep.subr.mxu0 0.0
        %5649 = vmatpush1.msra.mxu0 0.0
        %5650 = vmatprep.subr.mxu0 0.0
        %5651 = vmatpush1.msra.mxu0 0.0
        %5652 = vmatprep.subr.mxu0 0.0
        %5653 = vmatpush1.msra.mxu0 0.0
        %5654 = vmatprep.subr.mxu0 0.0
        %5655 = vmatpush1.msra.mxu0 0.0
        %5656 = vmatprep.subr.mxu0 0.0
        %5657 = vmatpush1.msra.mxu0 0.0
        %5658 = vmatprep.subr.mxu0 0.0
        %5659 = vmatpush1.msra.mxu0 0.0
        %5660 = vmatprep.subr.mxu0 0.0
        %5661 = vmatpush1.msra.mxu0 0.0
        %5662 = vmatprep.subr.mxu0 0.0
        %5663 = vmatpush1.msra.mxu0 0.0
        %5664 = vmatprep.subr.mxu0 0.0
        %5665 = vmatpush1.msra.mxu0 0.0
        %5666 = vmatprep.subr.mxu0 0.0
        %5667 = vmatpush1.msra.mxu0 0.0
        %5668 = vmatprep.subr.mxu0 0.0
        %5669 = vmatpush1.msra.mxu0 0.0
        %5670 = vmatprep.subr.mxu0 0.0
        %5671 = vmatpush1.msra.mxu0 0.0
        %5672 = vmatprep.subr.mxu0 0.0
        %5673 = vmatpush1.msra.mxu0 0.0
        %5674 = vmatprep.subr.mxu0 0.0
        %5675 = vmatpush1.msra.mxu0 0.0
        %5676 = vmatprep.subr.mxu0 0.0
        %5677 = vmatpush1.msra.mxu0 0.0
        %5678 = vmatprep.subr.mxu0 0.0
        %5679 = vmatpush1.msra.mxu0 0.0
        %5680 = vmatprep.mubr.f32.mxu0 0.0
        %5681 = vmatmul.mubr.f32.gmra.mrb[0].mxu0 %v5614
        %v5682 = vpop.f32.mrb[0].mxu0
        %v5683 = vadd.f32 %v912, %v5682
        %v5684 = vpop.f32.mrb[0].mxu0
        %5685 = vdwg.mxu0
        %v5686 = vld [vmem:[#allocation4] sm:$0xff]
        %v5687 = vmul.f32 %v5686, %v5503
        %v5689 = vsel %vm792, %v5687, 0
        %5691 = vmatprep.subr.mxu0 0.0
        %5692 = vmatpush1.msra.mxu0 %v503
        %5693 = vmatprep.subr.mxu0 0.0
        %5694 = vmatpush1.msra.mxu0 %v504
        %5695 = vmatprep.subr.mxu0 0.0
        %5696 = vmatpush1.msra.mxu0 %v505
        %5697 = vmatprep.subr.mxu0 0.0
        %5698 = vmatpush1.msra.mxu0 %v506
        %5699 = vmatprep.subr.mxu0 0.0
        %5700 = vmatpush1.msra.mxu0 0.0
        %5701 = vmatprep.subr.mxu0 0.0
        %5702 = vmatpush1.msra.mxu0 0.0
        %5703 = vmatprep.subr.mxu0 0.0
        %5704 = vmatpush1.msra.mxu0 0.0
        %5705 = vmatprep.subr.mxu0 0.0
        %5706 = vmatpush1.msra.mxu0 0.0
        %5707 = vmatprep.subr.mxu0 0.0
        %5708 = vmatpush1.msra.mxu0 0.0
        %5709 = vmatprep.subr.mxu0 0.0
        %5710 = vmatpush1.msra.mxu0 0.0
        %5711 = vmatprep.subr.mxu0 0.0
        %5712 = vmatpush1.msra.mxu0 0.0
        %5713 = vmatprep.subr.mxu0 0.0
        %5714 = vmatpush1.msra.mxu0 0.0
        %5715 = vmatprep.subr.mxu0 0.0
        %5716 = vmatpush1.msra.mxu0 0.0
        %5717 = vmatprep.subr.mxu0 0.0
        %5718 = vmatpush1.msra.mxu0 0.0
        %5719 = vmatprep.subr.mxu0 0.0
        %5720 = vmatpush1.msra.mxu0 0.0
        %5721 = vmatprep.subr.mxu0 0.0
        %5722 = vmatpush1.msra.mxu0 0.0
        %5723 = vmatprep.subr.mxu0 0.0
        %5724 = vmatpush1.msra.mxu0 0.0
        %5725 = vmatprep.subr.mxu0 0.0
        %5726 = vmatpush1.msra.mxu0 0.0
        %5727 = vmatprep.subr.mxu0 0.0
        %5728 = vmatpush1.msra.mxu0 0.0
        %5729 = vmatprep.subr.mxu0 0.0
        %5730 = vmatpush1.msra.mxu0 0.0
        %5731 = vmatprep.subr.mxu0 0.0
        %5732 = vmatpush1.msra.mxu0 0.0
        %5733 = vmatprep.subr.mxu0 0.0
        %5734 = vmatpush1.msra.mxu0 0.0
        %5735 = vmatprep.subr.mxu0 0.0
        %5736 = vmatpush1.msra.mxu0 0.0
        %5737 = vmatprep.subr.mxu0 0.0
        %5738 = vmatpush1.msra.mxu0 0.0
        %5739 = vmatprep.subr.mxu0 0.0
        %5740 = vmatpush1.msra.mxu0 0.0
        %5741 = vmatprep.subr.mxu0 0.0
        %5742 = vmatpush1.msra.mxu0 0.0
        %5743 = vmatprep.subr.mxu0 0.0
        %5744 = vmatpush1.msra.mxu0 0.0
        %5745 = vmatprep.subr.mxu0 0.0
        %5746 = vmatpush1.msra.mxu0 0.0
        %5747 = vmatprep.subr.mxu0 0.0
        %5748 = vmatpush1.msra.mxu0 0.0
        %5749 = vmatprep.subr.mxu0 0.0
        %5750 = vmatpush1.msra.mxu0 0.0
        %5751 = vmatprep.subr.mxu0 0.0
        %5752 = vmatpush1.msra.mxu0 0.0
        %5753 = vmatprep.subr.mxu0 0.0
        %5754 = vmatpush1.msra.mxu0 0.0
        %5755 = vmatprep.mubr.f32.mxu0 0.0
        %5756 = vmatmul.mubr.f32.gmra.mrb[0].mxu0 %v5689
        %v5757 = vpop.f32.mrb[0].mxu0
        %v5758 = vadd.f32 0.0, %v5757
        %v5759 = vpop.f32.mrb[0].mxu0
        %5760 = vdwg.mxu0
        %v5761 = vadd.f32 %v5683, %v5758
        %v5762 = vxor.u32 %v5761, 2147483648
        %v5763 = vmul.f32 %v5762, 1.442695
        %v5764 = vpow.pop %v5763
        %v5765 = vadd.f32 %v5764, 1.0
        %v5766 = vrcp.pop %v5765
        %v5767 = vmul.f32 1.0, %v5766
        %v5768 = vadd.f32 %v5758, %v1079
        %5770 = vrot.lane.b32.xlu0 %v5768, 64
        %v5771 = vpop.permute.xlu0 %5770
        %v5773 = vmul.f32 %v5767, %v5771
        %5775 = vrot.lane.b32.xlu0 %v5773, 64
        %v5776 = vpop.permute.xlu0 %5775
        %v5778 = vadd.f32 %v5683, %v5776
        %v5779 = vtanh.pop %v5778
        %v5780 = vsub.f32 1.0, %v5767
        %5782 = vrot.lane.b32.xlu0 %v5779, 96
        %v5783 = vpop.permute.xlu0 %5782
        %v5785 = vmul.f32 %v5780, %v5783
        %5786 = vrot.lane.b32.xlu0 %v5687, 32
        %v5787 = vpop.permute.xlu0 %5786
        %v5789 = vmul.f32 %v5767, %v5787
        %v5790 = vadd.f32 %v5785, %v5789
        %5792 = vrot.lane.b32.xlu0 %v5612, 86
        %v5793 = vpop.permute.xlu0 %5792
        %v5795 = vsel %vm792, %v5793, %v5790
        %v5797 = vsel %vm1115, %v5795, 0
        %5799 = vmatprep.subr.mxu0 0.0
        %5800 = vmatpush1.msra.mxu0 %v517
        %5801 = vmatprep.subr.mxu0 0.0
        %5802 = vmatpush1.msra.mxu0 %v518
        %5803 = vmatprep.subr.mxu0 0.0
        %5804 = vmatpush1.msra.mxu0 %v519
        %5805 = vmatprep.subr.mxu0 0.0
        %5806 = vmatpush1.msra.mxu0 %v520
        %5807 = vmatprep.subr.mxu0 0.0
        %5808 = vmatpush1.msra.mxu0 %v521
        %5809 = vmatprep.subr.mxu0 0.0
        %5810 = vmatpush1.msra.mxu0 %v522
        %5811 = vmatprep.subr.mxu0 0.0
        %5812 = vmatpush1.msra.mxu0 %v523
        %5813 = vmatprep.subr.mxu0 0.0
        %5814 = vmatpush1.msra.mxu0 %v524
        %5815 = vmatprep.subr.mxu0 0.0
        %5816 = vmatpush1.msra.mxu0 0.0
        %5817 = vmatprep.subr.mxu0 0.0
        %5818 = vmatpush1.msra.mxu0 0.0
        %5819 = vmatprep.subr.mxu0 0.0
        %5820 = vmatpush1.msra.mxu0 0.0
        %5821 = vmatprep.subr.mxu0 0.0
        %5822 = vmatpush1.msra.mxu0 0.0
        %5823 = vmatprep.subr.mxu0 0.0
        %5824 = vmatpush1.msra.mxu0 0.0
        %5825 = vmatprep.subr.mxu0 0.0
        %5826 = vmatpush1.msra.mxu0 0.0
        %5827 = vmatprep.subr.mxu0 0.0
        %5828 = vmatpush1.msra.mxu0 0.0
        %5829 = vmatprep.subr.mxu0 0.0
        %5830 = vmatpush1.msra.mxu0 0.0
        %5831 = vmatprep.subr.mxu0 0.0
        %5832 = vmatpush1.msra.mxu0 0.0
        %5833 = vmatprep.subr.mxu0 0.0
        %5834 = vmatpush1.msra.mxu0 0.0
        %5835 = vmatprep.subr.mxu0 0.0
        %5836 = vmatpush1.msra.mxu0 0.0
        %5837 = vmatprep.subr.mxu0 0.0
        %5838 = vmatpush1.msra.mxu0 0.0
        %5839 = vmatprep.subr.mxu0 0.0
        %5840 = vmatpush1.msra.mxu0 0.0
        %5841 = vmatprep.subr.mxu0 0.0
        %5842 = vmatpush1.msra.mxu0 0.0
        %5843 = vmatprep.subr.mxu0 0.0
        %5844 = vmatpush1.msra.mxu0 0.0
        %5845 = vmatprep.subr.mxu0 0.0
        %5846 = vmatpush1.msra.mxu0 0.0
        %5847 = vmatprep.subr.mxu0 0.0
        %5848 = vmatpush1.msra.mxu0 0.0
        %5849 = vmatprep.subr.mxu0 0.0
        %5850 = vmatpush1.msra.mxu0 0.0
        %5851 = vmatprep.subr.mxu0 0.0
        %5852 = vmatpush1.msra.mxu0 0.0
        %5853 = vmatprep.subr.mxu0 0.0
        %5854 = vmatpush1.msra.mxu0 0.0
        %5855 = vmatprep.subr.mxu0 0.0
        %5856 = vmatpush1.msra.mxu0 0.0
        %5857 = vmatprep.subr.mxu0 0.0
        %5858 = vmatpush1.msra.mxu0 0.0
        %5859 = vmatprep.subr.mxu0 0.0
        %5860 = vmatpush1.msra.mxu0 0.0
        %5861 = vmatprep.subr.mxu0 0.0
        %5862 = vmatpush1.msra.mxu0 0.0
        %5863 = vmatprep.mubr.f32.mxu0 0.0
        %5864 = vmatmul.mubr.f32.gmra.mrb[0].mxu0 %v5797
        %v5865 = vpop.f32.mrb[0].mxu0
        %v5866 = vadd.f32 %v1113, %v5865
        %v5867 = vpop.f32.mrb[0].mxu0
        %5868 = vdwg.mxu0
        %v5869 = vxor.u32 %v5866, 2147483648
        %v5870 = vmul.f32 %v5869, 1.442695
        %v5871 = vpow.pop %v5870
        %v5872 = vadd.f32 %v5871, 1.0
        %v5873 = vrcp.pop %v5872
        %v5874 = vmul.f32 1.0, %v5873
        %5876 = vrot.lane.b32.xlu0 %v5874, 118
        %v5877 = vpop.permute.xlu0 %5876
        %v5879 = vmul.f32 %v5866, %v5877
        %v5880 = vrot.slane %v5456, 1
        %v5881 = vrot.slane %v5456, 2
        %v5882 = vrot.slane %v5456, 3
        %v5883 = vrot.slane %v5456, 4
        %v5884 = vrot.slane %v5456, 5
        %v5885 = vrot.slane %v5456, 6
        %v5886 = vrot.slane %v5456, 7
        %v5895 = vmul.f32 %v5263, %v5456
        %v5896 = vmul.f32 %v5264, %v5880
        %v5897 = vmul.f32 %v5265, %v5881
        %v5898 = vmul.f32 %v5266, %v5882
        %v5899 = vmul.f32 %v5267, %v5883
        %v5900 = vmul.f32 %v5268, %v5884
        %v5901 = vmul.f32 %v5269, %v5885
        %v5902 = vmul.f32 %v5270, %v5886
        %v5911 = vrot.slane %v5896, 7
        %v5912 = vsel %vm603, %v5911, %v5895
        %v5913 = vrot.slane %v5897, 6
        %v5914 = vsel %vm606, %v5913, %v5912
        %v5915 = vrot.slane %v5898, 5
        %v5916 = vsel %vm609, %v5915, %v5914
        %v5917 = vrot.slane %v5899, 4
        %v5918 = vsel %vm612, %v5917, %v5916
        %v5919 = vrot.slane %v5900, 3
        %v5920 = vsel %vm615, %v5919, %v5918
        %v5921 = vrot.slane %v5901, 2
        %v5922 = vsel %vm618, %v5921, %v5920
        %v5923 = vrot.slane %v5902, 1
        %v5924 = vsel %vm621, %v5923, %v5922
        %5925 = vrot.lane.b32.xlu0 %v5924, 10
        %v5926 = vpop.permute.xlu0 %5925
        %v5928 = vsel %vm651, %v5879, %v5926
        %v5930 = vsel %vm659, %v5928, 0
        %5932 = vmatprep.subr.mxu0 0.0
        %5933 = vmatpush1.msra.mxu0 %v526
        %5934 = vmatprep.subr.mxu0 0.0
        %5935 = vmatpush1.msra.mxu0 %v527
        %5936 = vmatprep.subr.mxu0 0.0
        %5937 = vmatpush1.msra.mxu0 %v1259
        %5938 = vmatprep.subr.mxu0 0.0
        %5939 = vmatpush1.msra.mxu0 0.0
        %5940 = vmatprep.subr.mxu0 0.0
        %5941 = vmatpush1.msra.mxu0 0.0
        %5942 = vmatprep.subr.mxu0 0.0
        %5943 = vmatpush1.msra.mxu0 0.0
        %5944 = vmatprep.subr.mxu0 0.0
        %5945 = vmatpush1.msra.mxu0 0.0
        %5946 = vmatprep.subr.mxu0 0.0
        %5947 = vmatpush1.msra.mxu0 0.0
        %5948 = vmatprep.subr.mxu0 0.0
        %5949 = vmatpush1.msra.mxu0 0.0
        %5950 = vmatprep.subr.mxu0 0.0
        %5951 = vmatpush1.msra.mxu0 0.0
        %5952 = vmatprep.subr.mxu0 0.0
        %5953 = vmatpush1.msra.mxu0 0.0
        %5954 = vmatprep.subr.mxu0 0.0
        %5955 = vmatpush1.msra.mxu0 0.0
        %5956 = vmatprep.subr.mxu0 0.0
        %5957 = vmatpush1.msra.mxu0 0.0
        %5958 = vmatprep.subr.mxu0 0.0
        %5959 = vmatpush1.msra.mxu0 0.0
        %5960 = vmatprep.subr.mxu0 0.0
        %5961 = vmatpush1.msra.mxu0 0.0
        %5962 = vmatprep.subr.mxu0 0.0
        %5963 = vmatpush1.msra.mxu0 0.0
        %5964 = vmatprep.subr.mxu0 0.0
        %5965 = vmatpush1.msra.mxu0 0.0
        %5966 = vmatprep.subr.mxu0 0.0
        %5967 = vmatpush1.msra.mxu0 0.0
        %5968 = vmatprep.subr.mxu0 0.0
        %5969 = vmatpush1.msra.mxu0 0.0
        %5970 = vmatprep.subr.mxu0 0.0
        %5971 = vmatpush1.msra.mxu0 0.0
        %5972 = vmatprep.subr.mxu0 0.0
        %5973 = vmatpush1.msra.mxu0 0.0
        %5974 = vmatprep.subr.mxu0 0.0
        %5975 = vmatpush1.msra.mxu0 0.0
        %5976 = vmatprep.subr.mxu0 0.0
        %5977 = vmatpush1.msra.mxu0 0.0
        %5978 = vmatprep.subr.mxu0 0.0
        %5979 = vmatpush1.msra.mxu0 0.0
        %5980 = vmatprep.subr.mxu0 0.0
        %5981 = vmatpush1.msra.mxu0 0.0
        %5982 = vmatprep.subr.mxu0 0.0
        %5983 = vmatpush1.msra.mxu0 0.0
        %5984 = vmatprep.subr.mxu0 0.0
        %5985 = vmatpush1.msra.mxu0 0.0
        %5986 = vmatprep.subr.mxu0 0.0
        %5987 = vmatpush1.msra.mxu0 0.0
        %5988 = vmatprep.subr.mxu0 0.0
        %5989 = vmatpush1.msra.mxu0 0.0
        %5990 = vmatprep.subr.mxu0 0.0
        %5991 = vmatpush1.msra.mxu0 0.0
        %5992 = vmatprep.subr.mxu0 0.0
        %5993 = vmatpush1.msra.mxu0 0.0
        %5994 = vmatprep.subr.mxu0 0.0
        %5995 = vmatpush1.msra.mxu0 0.0
        %5996 = vmatprep.mubr.f32.mxu0 0.0
        %5997 = vmatmul.mubr.f32.gmra.mrb[0].mxu0 %v5930
        %v5998 = vpop.f32.mrb[0].mxu0
        %v5999 = vadd.f32 %v1253, %v5998
        %v6000 = vpop.f32.mrb[0].mxu0
        %6001 = vdwg.mxu0
        %v6002 = vmax.f32 %v5999, 0.0
        %v6004 = vsel %vm651, %v6002, 0
        %6006 = vmatprep.subr.mxu0 0.0
        %6007 = vmatpush1.msra.mxu0 %v493
        %6008 = vmatprep.subr.mxu0 0.0
        %6009 = vmatpush1.msra.mxu0 %v1342
        %6010 = vmatprep.subr.mxu0 0.0
        %6011 = vmatpush1.msra.mxu0 0.0
        %6012 = vmatprep.subr.mxu0 0.0
        %6013 = vmatpush1.msra.mxu0 0.0
        %6014 = vmatprep.subr.mxu0 0.0
        %6015 = vmatpush1.msra.mxu0 0.0
        %6016 = vmatprep.subr.mxu0 0.0
        %6017 = vmatpush1.msra.mxu0 0.0
        %6018 = vmatprep.subr.mxu0 0.0
        %6019 = vmatpush1.msra.mxu0 0.0
        %6020 = vmatprep.subr.mxu0 0.0
        %6021 = vmatpush1.msra.mxu0 0.0
        %6022 = vmatprep.subr.mxu0 0.0
        %6023 = vmatpush1.msra.mxu0 0.0
        %6024 = vmatprep.subr.mxu0 0.0
        %6025 = vmatpush1.msra.mxu0 0.0
        %6026 = vmatprep.subr.mxu0 0.0
        %6027 = vmatpush1.msra.mxu0 0.0
        %6028 = vmatprep.subr.mxu0 0.0
        %6029 = vmatpush1.msra.mxu0 0.0
        %6030 = vmatprep.subr.mxu0 0.0
        %6031 = vmatpush1.msra.mxu0 0.0
        %6032 = vmatprep.subr.mxu0 0.0
        %6033 = vmatpush1.msra.mxu0 0.0
        %6034 = vmatprep.subr.mxu0 0.0
        %6035 = vmatpush1.msra.mxu0 0.0
        %6036 = vmatprep.subr.mxu0 0.0
        %6037 = vmatpush1.msra.mxu0 0.0
        %6038 = vmatprep.subr.mxu0 0.0
        %6039 = vmatpush1.msra.mxu0 0.0
        %6040 = vmatprep.subr.mxu0 0.0
        %6041 = vmatpush1.msra.mxu0 0.0
        %6042 = vmatprep.subr.mxu0 0.0
        %6043 = vmatpush1.msra.mxu0 0.0
        %6044 = vmatprep.subr.mxu0 0.0
        %6045 = vmatpush1.msra.mxu0 0.0
        %6046 = vmatprep.subr.mxu0 0.0
        %6047 = vmatpush1.msra.mxu0 0.0
        %6048 = vmatprep.subr.mxu0 0.0
        %6049 = vmatpush1.msra.mxu0 0.0
        %6050 = vmatprep.subr.mxu0 0.0
        %6051 = vmatpush1.msra.mxu0 0.0
        %6052 = vmatprep.subr.mxu0 0.0
        %6053 = vmatpush1.msra.mxu0 0.0
        %6054 = vmatprep.subr.mxu0 0.0
        %6055 = vmatpush1.msra.mxu0 0.0
        %6056 = vmatprep.subr.mxu0 0.0
        %6057 = vmatpush1.msra.mxu0 0.0
        %6058 = vmatprep.subr.mxu0 0.0
        %6059 = vmatpush1.msra.mxu0 0.0
        %6060 = vmatprep.subr.mxu0 0.0
        %6061 = vmatpush1.msra.mxu0 0.0
        %6062 = vmatprep.subr.mxu0 0.0
        %6063 = vmatpush1.msra.mxu0 0.0
        %6064 = vmatprep.subr.mxu0 0.0
        %6065 = vmatpush1.msra.mxu0 0.0
        %6066 = vmatprep.subr.mxu0 0.0
        %6067 = vmatpush1.msra.mxu0 0.0
        %6068 = vmatprep.subr.mxu0 0.0
        %6069 = vmatpush1.msra.mxu0 0.0
        %6070 = vmatprep.mubr.f32.mxu0 0.0
        %6071 = vmatmul.mubr.f32.gmra.mrb[0].mxu0 %v6004
        %v6072 = vpop.f32.mrb[0].mxu0
        %v6073 = vadd.f32 %v1336, %v6072
        %v6074 = vpop.f32.mrb[0].mxu0
        %6075 = vdwg.mxu0
        %v6076 = vld [vmem:[#allocation2] sm:$0xff]
        %v6078 = vsel %vm792, %v6076, 0
        %6080 = vmatprep.subr.mxu0 0.0
        %6081 = vmatpush1.msra.mxu0 %v508
        %6082 = vmatprep.subr.mxu0 0.0
        %6083 = vmatpush1.msra.mxu0 %v509
        %6084 = vmatprep.subr.mxu0 0.0
        %6085 = vmatpush1.msra.mxu0 %v510
        %6086 = vmatprep.subr.mxu0 0.0
        %6087 = vmatpush1.msra.mxu0 %v511
        %6088 = vmatprep.subr.mxu0 0.0
        %6089 = vmatpush1.msra.mxu0 0.0
        %6090 = vmatprep.subr.mxu0 0.0
        %6091 = vmatpush1.msra.mxu0 0.0
        %6092 = vmatprep.subr.mxu0 0.0
        %6093 = vmatpush1.msra.mxu0 0.0
        %6094 = vmatprep.subr.mxu0 0.0
        %6095 = vmatpush1.msra.mxu0 0.0
        %6096 = vmatprep.subr.mxu0 0.0
        %6097 = vmatpush1.msra.mxu0 0.0
        %6098 = vmatprep.subr.mxu0 0.0
        %6099 = vmatpush1.msra.mxu0 0.0
        %6100 = vmatprep.subr.mxu0 0.0
        %6101 = vmatpush1.msra.mxu0 0.0
        %6102 = vmatprep.subr.mxu0 0.0
        %6103 = vmatpush1.msra.mxu0 0.0
        %6104 = vmatprep.subr.mxu0 0.0
        %6105 = vmatpush1.msra.mxu0 0.0
        %6106 = vmatprep.subr.mxu0 0.0
        %6107 = vmatpush1.msra.mxu0 0.0
        %6108 = vmatprep.subr.mxu0 0.0
        %6109 = vmatpush1.msra.mxu0 0.0
        %6110 = vmatprep.subr.mxu0 0.0
        %6111 = vmatpush1.msra.mxu0 0.0
        %6112 = vmatprep.subr.mxu0 0.0
        %6113 = vmatpush1.msra.mxu0 0.0
        %6114 = vmatprep.subr.mxu0 0.0
        %6115 = vmatpush1.msra.mxu0 0.0
        %6116 = vmatprep.subr.mxu0 0.0
        %6117 = vmatpush1.msra.mxu0 0.0
        %6118 = vmatprep.subr.mxu0 0.0
        %6119 = vmatpush1.msra.mxu0 0.0
        %6120 = vmatprep.subr.mxu0 0.0
        %6121 = vmatpush1.msra.mxu0 0.0
        %6122 = vmatprep.subr.mxu0 0.0
        %6123 = vmatpush1.msra.mxu0 0.0
        %6124 = vmatprep.subr.mxu0 0.0
        %6125 = vmatpush1.msra.mxu0 0.0
        %6126 = vmatprep.subr.mxu0 0.0
        %6127 = vmatpush1.msra.mxu0 0.0
        %6128 = vmatprep.subr.mxu0 0.0
        %6129 = vmatpush1.msra.mxu0 0.0
        %6130 = vmatprep.subr.mxu0 0.0
        %6131 = vmatpush1.msra.mxu0 0.0
        %6132 = vmatprep.subr.mxu0 0.0
        %6133 = vmatpush1.msra.mxu0 0.0
        %6134 = vmatprep.subr.mxu0 0.0
        %6135 = vmatpush1.msra.mxu0 0.0
        %6136 = vmatprep.subr.mxu0 0.0
        %6137 = vmatpush1.msra.mxu0 0.0
        %6138 = vmatprep.subr.mxu0 0.0
        %6139 = vmatpush1.msra.mxu0 0.0
        %6140 = vmatprep.subr.mxu0 0.0
        %6141 = vmatpush1.msra.mxu0 0.0
        %6142 = vmatprep.subr.mxu0 0.0
        %6143 = vmatpush1.msra.mxu0 0.0
        %6144 = vmatprep.mubr.f32.mxu0 0.0
        %6145 = vmatmul.mubr.f32.gmra.mrb[0].mxu0 %v6078
        %v6146 = vpop.f32.mrb[0].mxu0
        %v6147 = vadd.f32 0.0, %v6146
        %v6148 = vpop.f32.mrb[0].mxu0
        %6149 = vdwg.mxu0
        %v6150 = vadd.f32 %v6073, %v6147
        %v6151 = vxor.u32 %v6150, 2147483648
        %v6152 = vmul.f32 %v6151, 1.442695
        %v6153 = vpow.pop %v6152
        %v6154 = vadd.f32 %v6153, 1.0
        %v6155 = vrcp.pop %v6154
        %v6156 = vmul.f32 1.0, %v6155
        %v6157 = vadd.f32 %v6147, %v1501
        %6159 = vrot.lane.b32.xlu0 %v6157, 64
        %v6160 = vpop.permute.xlu0 %6159
        %v6162 = vmul.f32 %v6156, %v6160
        %6164 = vrot.lane.b32.xlu0 %v6162, 64
        %v6165 = vpop.permute.xlu0 %6164
        %v6167 = vadd.f32 %v6073, %v6165
        %v6168 = vtanh.pop %v6167
        %v6169 = vsub.f32 1.0, %v6156
        %6171 = vrot.lane.b32.xlu0 %v6168, 96
        %v6172 = vpop.permute.xlu0 %6171
        %v6174 = vmul.f32 %v6169, %v6172
        %6175 = vrot.lane.b32.xlu0 %v6076, 32
        %v6176 = vpop.permute.xlu0 %6175
        %v6178 = vmul.f32 %v6156, %v6176
        %v6179 = vadd.f32 %v6174, %v6178
        %6180 = vst.msk [vmem:[%s476 + $0x8] sm:$0xff] %vm2455, %v6179
        %6182 = vrot.lane.b32.xlu0 %v6179, 96
        %v6183 = vpop.permute.xlu0 %6182
        %6185 = vst.msk [vmem:[#allocation2] sm:$0xff] %vm792, %v6183
        %6186 = vst.msk [vmem:[#allocation3] sm:$0xff] %vm792, %v5793
        %6188 = vrot.lane.b32.xlu0 %v5790, 96
        %v6189 = vpop.permute.xlu0 %6188
        %6191 = vst.msk [vmem:[#allocation4] sm:$0xff] %vm792, %v6189
        %v6192 = vld [vmem:[%s426 + $0x6] sm:$0x1]
        %v6193 = vld [vmem:[%s426 + $0xe] sm:$0x1]
        %v6194 = vld [vmem:[%s426 + $0x16] sm:$0x1]
        %v6195 = vld [vmem:[%s426 + $0x1e] sm:$0x1]
        %v6196 = vld [vmem:[%s426 + $0x26] sm:$0x1]
        %v6197 = vld [vmem:[%s426 + $0x2e] sm:$0x1]
        %v6198 = vld [vmem:[%s426 + $0x36] sm:$0x1]
        %v6199 = vld [vmem:[%s426 + $0x3e] sm:$0x1]
        %v6200 = vsub.f32 1.0, %v6192
        %v6201 = vsub.f32 1.0, %v6193
        %v6202 = vsub.f32 1.0, %v6194
        %v6203 = vsub.f32 1.0, %v6195
        %v6204 = vsub.f32 1.0, %v6196
        %v6205 = vsub.f32 1.0, %v6197
        %v6206 = vsub.f32 1.0, %v6198
        %v6207 = vsub.f32 1.0, %v6199
        %v6208 = vmax.f32 %v6200, 0.0
        %v6209 = vmax.f32 %v6201, 0.0
        %v6210 = vmax.f32 %v6202, 0.0
        %v6211 = vmax.f32 %v6203, 0.0
        %v6212 = vmax.f32 %v6204, 0.0
        %v6213 = vmax.f32 %v6205, 0.0
        %v6214 = vmax.f32 %v6206, 0.0
        %v6215 = vmax.f32 %v6207, 0.0
        %6224 = vrot.lane.b32.xlu0 %v6208, 118
        %v6225 = vpop.permute.xlu0 %6224
        %6226 = vrot.lane.b32.xlu0 %v6209, 118
        %v6227 = vpop.permute.xlu0 %6226
        %6228 = vrot.lane.b32.xlu0 %v6210, 118
        %v6229 = vpop.permute.xlu0 %6228
        %6230 = vrot.lane.b32.xlu0 %v6211, 118
        %v6231 = vpop.permute.xlu0 %6230
        %6232 = vrot.lane.b32.xlu0 %v6212, 118
        %v6233 = vpop.permute.xlu0 %6232
        %6234 = vrot.lane.b32.xlu0 %v6213, 118
        %v6235 = vpop.permute.xlu0 %6234
        %6236 = vrot.lane.b32.xlu0 %v6214, 118
        %v6237 = vpop.permute.xlu0 %6236
        %6238 = vrot.lane.b32.xlu0 %v6215, 118
        %v6239 = vpop.permute.xlu0 %6238
        %v6248 = vmul.f32 %v6192, %v6225
        %v6249 = vmul.f32 %v6193, %v6227
        %v6250 = vmul.f32 %v6194, %v6229
        %v6251 = vmul.f32 %v6195, %v6231
        %v6252 = vmul.f32 %v6196, %v6233
        %v6253 = vmul.f32 %v6197, %v6235
        %v6254 = vmul.f32 %v6198, %v6237
        %v6255 = vmul.f32 %v6199, %v6239
        %v6264 = vrot.slane %v6201, 7
        %v6265 = vsel %vm603, %v6264, %v6200
        %v6266 = vrot.slane %v6202, 6
        %v6267 = vsel %vm606, %v6266, %v6265
        %v6268 = vrot.slane %v6203, 5
        %v6269 = vsel %vm609, %v6268, %v6267
        %v6270 = vrot.slane %v6204, 4
        %v6271 = vsel %vm612, %v6270, %v6269
        %v6272 = vrot.slane %v6205, 3
        %v6273 = vsel %vm615, %v6272, %v6271
        %v6274 = vrot.slane %v6206, 2
        %v6275 = vsel %vm618, %v6274, %v6273
        %v6276 = vrot.slane %v6207, 1
        %v6277 = vsel %vm621, %v6276, %v6275
        %6278 = vrot.lane.b32.xlu0 %v6277, 118
        %v6279 = vpop.permute.xlu0 %6278
        %v6289 = vrot.slane %v6249, 7
        %v6290 = vsel %vm603, %v6289, %v6248
        %v6291 = vrot.slane %v6250, 6
        %v6292 = vsel %vm606, %v6291, %v6290
        %v6293 = vrot.slane %v6251, 5
        %v6294 = vsel %vm609, %v6293, %v6292
        %v6295 = vrot.slane %v6252, 4
        %v6296 = vsel %vm612, %v6295, %v6294
        %v6297 = vrot.slane %v6253, 3
        %v6298 = vsel %vm615, %v6297, %v6296
        %v6299 = vrot.slane %v6254, 2
        %v6300 = vsel %vm618, %v6299, %v6298
        %v6301 = vrot.slane %v6255, 1
        %v6302 = vsel %vm621, %v6301, %v6300
        %6303 = vrot.lane.b32.xlu0 %v6302, 10
        %v6304 = vpop.permute.xlu0 %6303
        %v6306 = vsel %vm651, %v6279, %v6304
        %v6308 = vsel %vm659, %v6306, 0
        %6310 = vmatprep.subr.mxu0 0.0
        %6311 = vmatpush1.msra.mxu0 %v486
        %6312 = vmatprep.subr.mxu0 0.0
        %6313 = vmatpush1.msra.mxu0 %v487
        %6314 = vmatprep.subr.mxu0 0.0
        %6315 = vmatpush1.msra.mxu0 %v665
        %6316 = vmatprep.subr.mxu0 0.0
        %6317 = vmatpush1.msra.mxu0 0.0
        %6318 = vmatprep.subr.mxu0 0.0
        %6319 = vmatpush1.msra.mxu0 0.0
        %6320 = vmatprep.subr.mxu0 0.0
        %6321 = vmatpush1.msra.mxu0 0.0
        %6322 = vmatprep.subr.mxu0 0.0
        %6323 = vmatpush1.msra.mxu0 0.0
        %6324 = vmatprep.subr.mxu0 0.0
        %6325 = vmatpush1.msra.mxu0 0.0
        %6326 = vmatprep.subr.mxu0 0.0
        %6327 = vmatpush1.msra.mxu0 0.0
        %6328 = vmatprep.subr.mxu0 0.0
        %6329 = vmatpush1.msra.mxu0 0.0
        %6330 = vmatprep.subr.mxu0 0.0
        %6331 = vmatpush1.msra.mxu0 0.0
        %6332 = vmatprep.subr.mxu0 0.0
        %6333 = vmatpush1.msra.mxu0 0.0
        %6334 = vmatprep.subr.mxu0 0.0
        %6335 = vmatpush1.msra.mxu0 0.0
        %6336 = vmatprep.subr.mxu0 0.0
        %6337 = vmatpush1.msra.mxu0 0.0
        %6338 = vmatprep.subr.mxu0 0.0
        %6339 = vmatpush1.msra.mxu0 0.0
        %6340 = vmatprep.subr.mxu0 0.0
        %6341 = vmatpush1.msra.mxu0 0.0
        %6342 = vmatprep.subr.mxu0 0.0
        %6343 = vmatpush1.msra.mxu0 0.0
        %6344 = vmatprep.subr.mxu0 0.0
        %6345 = vmatpush1.msra.mxu0 0.0
        %6346 = vmatprep.subr.mxu0 0.0
        %6347 = vmatpush1.msra.mxu0 0.0
        %6348 = vmatprep.subr.mxu0 0.0
        %6349 = vmatpush1.msra.mxu0 0.0
        %6350 = vmatprep.subr.mxu0 0.0
        %6351 = vmatpush1.msra.mxu0 0.0
        %6352 = vmatprep.subr.mxu0 0.0
        %6353 = vmatpush1.msra.mxu0 0.0
        %6354 = vmatprep.subr.mxu0 0.0
        %6355 = vmatpush1.msra.mxu0 0.0
        %6356 = vmatprep.subr.mxu0 0.0
        %6357 = vmatpush1.msra.mxu0 0.0
        %6358 = vmatprep.subr.mxu0 0.0
        %6359 = vmatpush1.msra.mxu0 0.0
        %6360 = vmatprep.subr.mxu0 0.0
        %6361 = vmatpush1.msra.mxu0 0.0
        %6362 = vmatprep.subr.mxu0 0.0
        %6363 = vmatpush1.msra.mxu0 0.0
        %6364 = vmatprep.subr.mxu0 0.0
        %6365 = vmatpush1.msra.mxu0 0.0
        %6366 = vmatprep.subr.mxu0 0.0
        %6367 = vmatpush1.msra.mxu0 0.0
        %6368 = vmatprep.subr.mxu0 0.0
        %6369 = vmatpush1.msra.mxu0 0.0
        %6370 = vmatprep.subr.mxu0 0.0
        %6371 = vmatpush1.msra.mxu0 0.0
        %6372 = vmatprep.subr.mxu0 0.0
        %6373 = vmatpush1.msra.mxu0 0.0
        %6374 = vmatprep.mubr.f32.mxu0 0.0
        %6375 = vmatmul.mubr.f32.gmra.mrb[0].mxu0 %v6308
        %v6376 = vpop.f32.mrb[0].mxu0
        %v6377 = vadd.f32 %v657, %v6376
        %v6378 = vpop.f32.mrb[0].mxu0
        %6379 = vdwg.mxu0
        %v6380 = vxor.u32 %v6377, 2147483648
        %v6381 = vmul.f32 %v6380, 1.442695
        %v6382 = vpow.pop %v6381
        %v6383 = vadd.f32 %v6382, 1.0
        %v6384 = vrcp.pop %v6383
        %v6385 = vmul.f32 1.0, %v6384
        %v6386 = vld [vmem:[#allocation3] sm:$0xff]
        %6388 = vset.pattern.permute.xlu0 20
        %6389 = vperm.xlu0 %6388, %v6192
        %v6390 = vpop.permute.xlu0 %6389
        %6392 = vset.pattern.permute.xlu0 20
        %6393 = vperm.xlu0 %6392, %v6193
        %v6394 = vpop.permute.xlu0 %6393
        %6396 = vset.pattern.permute.xlu0 20
        %6397 = vperm.xlu0 %6396, %v6194
        %v6398 = vpop.permute.xlu0 %6397
        %6400 = vset.pattern.permute.xlu0 20
        %6401 = vperm.xlu0 %6400, %v6195
        %v6402 = vpop.permute.xlu0 %6401
        %6404 = vset.pattern.permute.xlu0 20
        %6405 = vperm.xlu0 %6404, %v6196
        %v6406 = vpop.permute.xlu0 %6405
        %6408 = vset.pattern.permute.xlu0 20
        %6409 = vperm.xlu0 %6408, %v6197
        %v6410 = vpop.permute.xlu0 %6409
        %6412 = vset.pattern.permute.xlu0 20
        %6413 = vperm.xlu0 %6412, %v6198
        %v6414 = vpop.permute.xlu0 %6413
        %6416 = vset.pattern.permute.xlu0 20
        %6417 = vperm.xlu0 %6416, %v6199
        %v6418 = vpop.permute.xlu0 %6417
        %v6419 = vrot.slane %v6394, 7
        %v6420 = vsel %vm603, %v6419, %v6390
        %v6421 = vrot.slane %v6398, 6
        %v6422 = vsel %vm606, %v6421, %v6420
        %v6423 = vrot.slane %v6402, 5
        %v6424 = vsel %vm609, %v6423, %v6422
        %v6425 = vrot.slane %v6406, 4
        %v6426 = vsel %vm612, %v6425, %v6424
        %v6427 = vrot.slane %v6410, 3
        %v6428 = vsel %vm615, %v6427, %v6426
        %v6429 = vrot.slane %v6414, 2
        %v6430 = vsel %vm618, %v6429, %v6428
        %v6431 = vrot.slane %v6418, 1
        %v6432 = vsel %vm621, %v6431, %v6430
        %v6434 = vmul.f32 %v6386, %v6432
        %v6436 = vsel %vm792, %v6434, 0
        %6438 = vmatprep.subr.mxu0 0.0
        %6439 = vmatpush1.msra.mxu0 %v498
        %6440 = vmatprep.subr.mxu0 0.0
        %6441 = vmatpush1.msra.mxu0 %v499
        %6442 = vmatprep.subr.mxu0 0.0
        %6443 = vmatpush1.msra.mxu0 %v500
        %6444 = vmatprep.subr.mxu0 0.0
        %6445 = vmatpush1.msra.mxu0 %v501
        %6446 = vmatprep.subr.mxu0 0.0
        %6447 = vmatpush1.msra.mxu0 0.0
        %6448 = vmatprep.subr.mxu0 0.0
        %6449 = vmatpush1.msra.mxu0 0.0
        %6450 = vmatprep.subr.mxu0 0.0
        %6451 = vmatpush1.msra.mxu0 0.0
        %6452 = vmatprep.subr.mxu0 0.0
        %6453 = vmatpush1.msra.mxu0 0.0
        %6454 = vmatprep.subr.mxu0 0.0
        %6455 = vmatpush1.msra.mxu0 0.0
        %6456 = vmatprep.subr.mxu0 0.0
        %6457 = vmatpush1.msra.mxu0 0.0
        %6458 = vmatprep.subr.mxu0 0.0
        %6459 = vmatpush1.msra.mxu0 0.0
        %6460 = vmatprep.subr.mxu0 0.0
        %6461 = vmatpush1.msra.mxu0 0.0
        %6462 = vmatprep.subr.mxu0 0.0
        %6463 = vmatpush1.msra.mxu0 0.0
        %6464 = vmatprep.subr.mxu0 0.0
        %6465 = vmatpush1.msra.mxu0 0.0
        %6466 = vmatprep.subr.mxu0 0.0
        %6467 = vmatpush1.msra.mxu0 0.0
        %6468 = vmatprep.subr.mxu0 0.0
        %6469 = vmatpush1.msra.mxu0 0.0
        %6470 = vmatprep.subr.mxu0 0.0
        %6471 = vmatpush1.msra.mxu0 0.0
        %6472 = vmatprep.subr.mxu0 0.0
        %6473 = vmatpush1.msra.mxu0 0.0
        %6474 = vmatprep.subr.mxu0 0.0
        %6475 = vmatpush1.msra.mxu0 0.0
        %6476 = vmatprep.subr.mxu0 0.0
        %6477 = vmatpush1.msra.mxu0 0.0
        %6478 = vmatprep.subr.mxu0 0.0
        %6479 = vmatpush1.msra.mxu0 0.0
        %6480 = vmatprep.subr.mxu0 0.0
        %6481 = vmatpush1.msra.mxu0 0.0
        %6482 = vmatprep.subr.mxu0 0.0
        %6483 = vmatpush1.msra.mxu0 0.0
        %6484 = vmatprep.subr.mxu0 0.0
        %6485 = vmatpush1.msra.mxu0 0.0
        %6486 = vmatprep.subr.mxu0 0.0
        %6487 = vmatpush1.msra.mxu0 0.0
        %6488 = vmatprep.subr.mxu0 0.0
        %6489 = vmatpush1.msra.mxu0 0.0
        %6490 = vmatprep.subr.mxu0 0.0
        %6491 = vmatpush1.msra.mxu0 0.0
        %6492 = vmatprep.subr.mxu0 0.0
        %6493 = vmatpush1.msra.mxu0 0.0
        %6494 = vmatprep.subr.mxu0 0.0
        %6495 = vmatpush1.msra.mxu0 0.0
        %6496 = vmatprep.subr.mxu0 0.0
        %6497 = vmatpush1.msra.mxu0 0.0
        %6498 = vmatprep.subr.mxu0 0.0
        %6499 = vmatpush1.msra.mxu0 0.0
        %6500 = vmatprep.subr.mxu0 0.0
        %6501 = vmatpush1.msra.mxu0 0.0
        %6502 = vmatprep.mubr.f32.mxu0 0.0
        %6503 = vmatmul.mubr.f32.gmra.mrb[0].mxu0 %v6436
        %v6504 = vpop.f32.mrb[0].mxu0
        %v6505 = vadd.f32 0.0, %v6504
        %v6506 = vpop.f32.mrb[0].mxu0
        %6507 = vdwg.mxu0
        %6509 = vrot.lane.b32.xlu0 %v6505, 10
        %v6510 = vpop.permute.xlu0 %6509
        %v6512 = vadd.f32 %v6377, %v6510
        %v6513 = vxor.u32 %v6512, 2147483648
        %v6514 = vmul.f32 %v6513, 1.442695
        %v6515 = vpow.pop %v6514
        %v6516 = vadd.f32 %v6515, 1.0
        %v6517 = vrcp.pop %v6516
        %v6518 = vmul.f32 1.0, %v6517
        %v6519 = vadd.f32 %v6505, %v883
        %6521 = vrot.lane.b32.xlu0 %v6519, 74
        %v6522 = vpop.permute.xlu0 %6521
        %v6524 = vmul.f32 %v6518, %v6522
        %6526 = vrot.lane.b32.xlu0 %v6524, 64
        %v6527 = vpop.permute.xlu0 %6526
        %v6529 = vadd.f32 %v6377, %v6527
        %v6530 = vtanh.pop %v6529
        %v6531 = vsub.f32 1.0, %v6518
        %6533 = vrot.lane.b32.xlu0 %v6530, 96
        %v6534 = vpop.permute.xlu0 %6533
        %v6536 = vmul.f32 %v6531, %v6534
        %6537 = vrot.lane.b32.xlu0 %v6434, 42
        %v6538 = vpop.permute.xlu0 %6537
        %v6540 = vmul.f32 %v6518, %v6538
        %v6541 = vadd.f32 %v6536, %v6540
        %v6543 = vsel %vm651, %v6385, 0
        %6545 = vmatprep.subr.mxu0 0.0
        %6546 = vmatpush1.msra.mxu0 %v490
        %6547 = vmatprep.subr.mxu0 0.0
        %6548 = vmatpush1.msra.mxu0 %v919
        %6549 = vmatprep.subr.mxu0 0.0
        %6550 = vmatpush1.msra.mxu0 0.0
        %6551 = vmatprep.subr.mxu0 0.0
        %6552 = vmatpush1.msra.mxu0 0.0
        %6553 = vmatprep.subr.mxu0 0.0
        %6554 = vmatpush1.msra.mxu0 0.0
        %6555 = vmatprep.subr.mxu0 0.0
        %6556 = vmatpush1.msra.mxu0 0.0
        %6557 = vmatprep.subr.mxu0 0.0
        %6558 = vmatpush1.msra.mxu0 0.0
        %6559 = vmatprep.subr.mxu0 0.0
        %6560 = vmatpush1.msra.mxu0 0.0
        %6561 = vmatprep.subr.mxu0 0.0
        %6562 = vmatpush1.msra.mxu0 0.0
        %6563 = vmatprep.subr.mxu0 0.0
        %6564 = vmatpush1.msra.mxu0 0.0
        %6565 = vmatprep.subr.mxu0 0.0
        %6566 = vmatpush1.msra.mxu0 0.0
        %6567 = vmatprep.subr.mxu0 0.0
        %6568 = vmatpush1.msra.mxu0 0.0
        %6569 = vmatprep.subr.mxu0 0.0
        %6570 = vmatpush1.msra.mxu0 0.0
        %6571 = vmatprep.subr.mxu0 0.0
        %6572 = vmatpush1.msra.mxu0 0.0
        %6573 = vmatprep.subr.mxu0 0.0
        %6574 = vmatpush1.msra.mxu0 0.0
        %6575 = vmatprep.subr.mxu0 0.0
        %6576 = vmatpush1.msra.mxu0 0.0
        %6577 = vmatprep.subr.mxu0 0.0
        %6578 = vmatpush1.msra.mxu0 0.0
        %6579 = vmatprep.subr.mxu0 0.0
        %6580 = vmatpush1.msra.mxu0 0.0
        %6581 = vmatprep.subr.mxu0 0.0
        %6582 = vmatpush1.msra.mxu0 0.0
        %6583 = vmatprep.subr.mxu0 0.0
        %6584 = vmatpush1.msra.mxu0 0.0
        %6585 = vmatprep.subr.mxu0 0.0
        %6586 = vmatpush1.msra.mxu0 0.0
        %6587 = vmatprep.subr.mxu0 0.0
        %6588 = vmatpush1.msra.mxu0 0.0
        %6589 = vmatprep.subr.mxu0 0.0
        %6590 = vmatpush1.msra.mxu0 0.0
        %6591 = vmatprep.subr.mxu0 0.0
        %6592 = vmatpush1.msra.mxu0 0.0
        %6593 = vmatprep.subr.mxu0 0.0
        %6594 = vmatpush1.msra.mxu0 0.0
        %6595 = vmatprep.subr.mxu0 0.0
        %6596 = vmatpush1.msra.mxu0 0.0
        %6597 = vmatprep.subr.mxu0 0.0
        %6598 = vmatpush1.msra.mxu0 0.0
        %6599 = vmatprep.subr.mxu0 0.0
        %6600 = vmatpush1.msra.mxu0 0.0
        %6601 = vmatprep.subr.mxu0 0.0
        %6602 = vmatpush1.msra.mxu0 0.0
        %6603 = vmatprep.subr.mxu0 0.0
        %6604 = vmatpush1.msra.mxu0 0.0
        %6605 = vmatprep.subr.mxu0 0.0
        %6606 = vmatpush1.msra.mxu0 0.0
        %6607 = vmatprep.subr.mxu0 0.0
        %6608 = vmatpush1.msra.mxu0 0.0
        %6609 = vmatprep.mubr.f32.mxu0 0.0
        %6610 = vmatmul.mubr.f32.gmra.mrb[0].mxu0 %v6543
        %v6611 = vpop.f32.mrb[0].mxu0
        %v6612 = vadd.f32 %v912, %v6611
        %v6613 = vpop.f32.mrb[0].mxu0
        %6614 = vdwg.mxu0
        %v6615 = vld [vmem:[#allocation4] sm:$0xff]
        %v6616 = vmul.f32 %v6615, %v6432
        %v6618 = vsel %vm792, %v6616, 0
        %6620 = vmatprep.subr.mxu0 0.0
        %6621 = vmatpush1.msra.mxu0 %v503
        %6622 = vmatprep.subr.mxu0 0.0
        %6623 = vmatpush1.msra.mxu0 %v504
        %6624 = vmatprep.subr.mxu0 0.0
        %6625 = vmatpush1.msra.mxu0 %v505
        %6626 = vmatprep.subr.mxu0 0.0
        %6627 = vmatpush1.msra.mxu0 %v506
        %6628 = vmatprep.subr.mxu0 0.0
        %6629 = vmatpush1.msra.mxu0 0.0
        %6630 = vmatprep.subr.mxu0 0.0
        %6631 = vmatpush1.msra.mxu0 0.0
        %6632 = vmatprep.subr.mxu0 0.0
        %6633 = vmatpush1.msra.mxu0 0.0
        %6634 = vmatprep.subr.mxu0 0.0
        %6635 = vmatpush1.msra.mxu0 0.0
        %6636 = vmatprep.subr.mxu0 0.0
        %6637 = vmatpush1.msra.mxu0 0.0
        %6638 = vmatprep.subr.mxu0 0.0
        %6639 = vmatpush1.msra.mxu0 0.0
        %6640 = vmatprep.subr.mxu0 0.0
        %6641 = vmatpush1.msra.mxu0 0.0
        %6642 = vmatprep.subr.mxu0 0.0
        %6643 = vmatpush1.msra.mxu0 0.0
        %6644 = vmatprep.subr.mxu0 0.0
        %6645 = vmatpush1.msra.mxu0 0.0
        %6646 = vmatprep.subr.mxu0 0.0
        %6647 = vmatpush1.msra.mxu0 0.0
        %6648 = vmatprep.subr.mxu0 0.0
        %6649 = vmatpush1.msra.mxu0 0.0
        %6650 = vmatprep.subr.mxu0 0.0
        %6651 = vmatpush1.msra.mxu0 0.0
        %6652 = vmatprep.subr.mxu0 0.0
        %6653 = vmatpush1.msra.mxu0 0.0
        %6654 = vmatprep.subr.mxu0 0.0
        %6655 = vmatpush1.msra.mxu0 0.0
        %6656 = vmatprep.subr.mxu0 0.0
        %6657 = vmatpush1.msra.mxu0 0.0
        %6658 = vmatprep.subr.mxu0 0.0
        %6659 = vmatpush1.msra.mxu0 0.0
        %6660 = vmatprep.subr.mxu0 0.0
        %6661 = vmatpush1.msra.mxu0 0.0
        %6662 = vmatprep.subr.mxu0 0.0
        %6663 = vmatpush1.msra.mxu0 0.0
        %6664 = vmatprep.subr.mxu0 0.0
        %6665 = vmatpush1.msra.mxu0 0.0
        %6666 = vmatprep.subr.mxu0 0.0
        %6667 = vmatpush1.msra.mxu0 0.0
        %6668 = vmatprep.subr.mxu0 0.0
        %6669 = vmatpush1.msra.mxu0 0.0
        %6670 = vmatprep.subr.mxu0 0.0
        %6671 = vmatpush1.msra.mxu0 0.0
        %6672 = vmatprep.subr.mxu0 0.0
        %6673 = vmatpush1.msra.mxu0 0.0
        %6674 = vmatprep.subr.mxu0 0.0
        %6675 = vmatpush1.msra.mxu0 0.0
        %6676 = vmatprep.subr.mxu0 0.0
        %6677 = vmatpush1.msra.mxu0 0.0
        %6678 = vmatprep.subr.mxu0 0.0
        %6679 = vmatpush1.msra.mxu0 0.0
        %6680 = vmatprep.subr.mxu0 0.0
        %6681 = vmatpush1.msra.mxu0 0.0
        %6682 = vmatprep.subr.mxu0 0.0
        %6683 = vmatpush1.msra.mxu0 0.0
        %6684 = vmatprep.mubr.f32.mxu0 0.0
        %6685 = vmatmul.mubr.f32.gmra.mrb[0].mxu0 %v6618
        %v6686 = vpop.f32.mrb[0].mxu0
        %v6687 = vadd.f32 0.0, %v6686
        %v6688 = vpop.f32.mrb[0].mxu0
        %6689 = vdwg.mxu0
        %v6690 = vadd.f32 %v6612, %v6687
        %v6691 = vxor.u32 %v6690, 2147483648
        %v6692 = vmul.f32 %v6691, 1.442695
        %v6693 = vpow.pop %v6692
        %v6694 = vadd.f32 %v6693, 1.0
        %v6695 = vrcp.pop %v6694
        %v6696 = vmul.f32 1.0, %v6695
        %v6697 = vadd.f32 %v6687, %v1079
        %6699 = vrot.lane.b32.xlu0 %v6697, 64
        %v6700 = vpop.permute.xlu0 %6699
        %v6702 = vmul.f32 %v6696, %v6700
        %6704 = vrot.lane.b32.xlu0 %v6702, 64
        %v6705 = vpop.permute.xlu0 %6704
        %v6707 = vadd.f32 %v6612, %v6705
        %v6708 = vtanh.pop %v6707
        %v6709 = vsub.f32 1.0, %v6696
        %6711 = vrot.lane.b32.xlu0 %v6708, 96
        %v6712 = vpop.permute.xlu0 %6711
        %v6714 = vmul.f32 %v6709, %v6712
        %6715 = vrot.lane.b32.xlu0 %v6616, 32
        %v6716 = vpop.permute.xlu0 %6715
        %v6718 = vmul.f32 %v6696, %v6716
        %v6719 = vadd.f32 %v6714, %v6718
        %6721 = vrot.lane.b32.xlu0 %v6541, 86
        %v6722 = vpop.permute.xlu0 %6721
        %v6724 = vsel %vm792, %v6722, %v6719
        %v6726 = vsel %vm1115, %v6724, 0
        %6728 = vmatprep.subr.mxu0 0.0
        %6729 = vmatpush1.msra.mxu0 %v517
        %6730 = vmatprep.subr.mxu0 0.0
        %6731 = vmatpush1.msra.mxu0 %v518
        %6732 = vmatprep.subr.mxu0 0.0
        %6733 = vmatpush1.msra.mxu0 %v519
        %6734 = vmatprep.subr.mxu0 0.0
        %6735 = vmatpush1.msra.mxu0 %v520
        %6736 = vmatprep.subr.mxu0 0.0
        %6737 = vmatpush1.msra.mxu0 %v521
        %6738 = vmatprep.subr.mxu0 0.0
        %6739 = vmatpush1.msra.mxu0 %v522
        %6740 = vmatprep.subr.mxu0 0.0
        %6741 = vmatpush1.msra.mxu0 %v523
        %6742 = vmatprep.subr.mxu0 0.0
        %6743 = vmatpush1.msra.mxu0 %v524
        %6744 = vmatprep.subr.mxu0 0.0
        %6745 = vmatpush1.msra.mxu0 0.0
        %6746 = vmatprep.subr.mxu0 0.0
        %6747 = vmatpush1.msra.mxu0 0.0
        %6748 = vmatprep.subr.mxu0 0.0
        %6749 = vmatpush1.msra.mxu0 0.0
        %6750 = vmatprep.subr.mxu0 0.0
        %6751 = vmatpush1.msra.mxu0 0.0
        %6752 = vmatprep.subr.mxu0 0.0
        %6753 = vmatpush1.msra.mxu0 0.0
        %6754 = vmatprep.subr.mxu0 0.0
        %6755 = vmatpush1.msra.mxu0 0.0
        %6756 = vmatprep.subr.mxu0 0.0
        %6757 = vmatpush1.msra.mxu0 0.0
        %6758 = vmatprep.subr.mxu0 0.0
        %6759 = vmatpush1.msra.mxu0 0.0
        %6760 = vmatprep.subr.mxu0 0.0
        %6761 = vmatpush1.msra.mxu0 0.0
        %6762 = vmatprep.subr.mxu0 0.0
        %6763 = vmatpush1.msra.mxu0 0.0
        %6764 = vmatprep.subr.mxu0 0.0
        %6765 = vmatpush1.msra.mxu0 0.0
        %6766 = vmatprep.subr.mxu0 0.0
        %6767 = vmatpush1.msra.mxu0 0.0
        %6768 = vmatprep.subr.mxu0 0.0
        %6769 = vmatpush1.msra.mxu0 0.0
        %6770 = vmatprep.subr.mxu0 0.0
        %6771 = vmatpush1.msra.mxu0 0.0
        %6772 = vmatprep.subr.mxu0 0.0
        %6773 = vmatpush1.msra.mxu0 0.0
        %6774 = vmatprep.subr.mxu0 0.0
        %6775 = vmatpush1.msra.mxu0 0.0
        %6776 = vmatprep.subr.mxu0 0.0
        %6777 = vmatpush1.msra.mxu0 0.0
        %6778 = vmatprep.subr.mxu0 0.0
        %6779 = vmatpush1.msra.mxu0 0.0
        %6780 = vmatprep.subr.mxu0 0.0
        %6781 = vmatpush1.msra.mxu0 0.0
        %6782 = vmatprep.subr.mxu0 0.0
        %6783 = vmatpush1.msra.mxu0 0.0
        %6784 = vmatprep.subr.mxu0 0.0
        %6785 = vmatpush1.msra.mxu0 0.0
        %6786 = vmatprep.subr.mxu0 0.0
        %6787 = vmatpush1.msra.mxu0 0.0
        %6788 = vmatprep.subr.mxu0 0.0
        %6789 = vmatpush1.msra.mxu0 0.0
        %6790 = vmatprep.subr.mxu0 0.0
        %6791 = vmatpush1.msra.mxu0 0.0
        %6792 = vmatprep.mubr.f32.mxu0 0.0
        %6793 = vmatmul.mubr.f32.gmra.mrb[0].mxu0 %v6726
        %v6794 = vpop.f32.mrb[0].mxu0
        %v6795 = vadd.f32 %v1113, %v6794
        %v6796 = vpop.f32.mrb[0].mxu0
        %6797 = vdwg.mxu0
        %v6798 = vxor.u32 %v6795, 2147483648
        %v6799 = vmul.f32 %v6798, 1.442695
        %v6800 = vpow.pop %v6799
        %v6801 = vadd.f32 %v6800, 1.0
        %v6802 = vrcp.pop %v6801
        %v6803 = vmul.f32 1.0, %v6802
        %6805 = vrot.lane.b32.xlu0 %v6803, 118
        %v6806 = vpop.permute.xlu0 %6805
        %v6808 = vmul.f32 %v6795, %v6806
        %v6809 = vrot.slane %v6385, 1
        %v6810 = vrot.slane %v6385, 2
        %v6811 = vrot.slane %v6385, 3
        %v6812 = vrot.slane %v6385, 4
        %v6813 = vrot.slane %v6385, 5
        %v6814 = vrot.slane %v6385, 6
        %v6815 = vrot.slane %v6385, 7
        %v6824 = vmul.f32 %v6192, %v6385
        %v6825 = vmul.f32 %v6193, %v6809
        %v6826 = vmul.f32 %v6194, %v6810
        %v6827 = vmul.f32 %v6195, %v6811
        %v6828 = vmul.f32 %v6196, %v6812
        %v6829 = vmul.f32 %v6197, %v6813
        %v6830 = vmul.f32 %v6198, %v6814
        %v6831 = vmul.f32 %v6199, %v6815
        %v6840 = vrot.slane %v6825, 7
        %v6841 = vsel %vm603, %v6840, %v6824
        %v6842 = vrot.slane %v6826, 6
        %v6843 = vsel %vm606, %v6842, %v6841
        %v6844 = vrot.slane %v6827, 5
        %v6845 = vsel %vm609, %v6844, %v6843
        %v6846 = vrot.slane %v6828, 4
        %v6847 = vsel %vm612, %v6846, %v6845
        %v6848 = vrot.slane %v6829, 3
        %v6849 = vsel %vm615, %v6848, %v6847
        %v6850 = vrot.slane %v6830, 2
        %v6851 = vsel %vm618, %v6850, %v6849
        %v6852 = vrot.slane %v6831, 1
        %v6853 = vsel %vm621, %v6852, %v6851
        %6854 = vrot.lane.b32.xlu0 %v6853, 10
        %v6855 = vpop.permute.xlu0 %6854
        %v6857 = vsel %vm651, %v6808, %v6855
        %v6859 = vsel %vm659, %v6857, 0
        %6861 = vmatprep.subr.mxu0 0.0
        %6862 = vmatpush1.msra.mxu0 %v526
        %6863 = vmatprep.subr.mxu0 0.0
        %6864 = vmatpush1.msra.mxu0 %v527
        %6865 = vmatprep.subr.mxu0 0.0
        %6866 = vmatpush1.msra.mxu0 %v1259
        %6867 = vmatprep.subr.mxu0 0.0
        %6868 = vmatpush1.msra.mxu0 0.0
        %6869 = vmatprep.subr.mxu0 0.0
        %6870 = vmatpush1.msra.mxu0 0.0
        %6871 = vmatprep.subr.mxu0 0.0
        %6872 = vmatpush1.msra.mxu0 0.0
        %6873 = vmatprep.subr.mxu0 0.0
        %6874 = vmatpush1.msra.mxu0 0.0
        %6875 = vmatprep.subr.mxu0 0.0
        %6876 = vmatpush1.msra.mxu0 0.0
        %6877 = vmatprep.subr.mxu0 0.0
        %6878 = vmatpush1.msra.mxu0 0.0
        %6879 = vmatprep.subr.mxu0 0.0
        %6880 = vmatpush1.msra.mxu0 0.0
        %6881 = vmatprep.subr.mxu0 0.0
        %6882 = vmatpush1.msra.mxu0 0.0
        %6883 = vmatprep.subr.mxu0 0.0
        %6884 = vmatpush1.msra.mxu0 0.0
        %6885 = vmatprep.subr.mxu0 0.0
        %6886 = vmatpush1.msra.mxu0 0.0
        %6887 = vmatprep.subr.mxu0 0.0
        %6888 = vmatpush1.msra.mxu0 0.0
        %6889 = vmatprep.subr.mxu0 0.0
        %6890 = vmatpush1.msra.mxu0 0.0
        %6891 = vmatprep.subr.mxu0 0.0
        %6892 = vmatpush1.msra.mxu0 0.0
        %6893 = vmatprep.subr.mxu0 0.0
        %6894 = vmatpush1.msra.mxu0 0.0
        %6895 = vmatprep.subr.mxu0 0.0
        %6896 = vmatpush1.msra.mxu0 0.0
        %6897 = vmatprep.subr.mxu0 0.0
        %6898 = vmatpush1.msra.mxu0 0.0
        %6899 = vmatprep.subr.mxu0 0.0
        %6900 = vmatpush1.msra.mxu0 0.0
        %6901 = vmatprep.subr.mxu0 0.0
        %6902 = vmatpush1.msra.mxu0 0.0
        %6903 = vmatprep.subr.mxu0 0.0
        %6904 = vmatpush1.msra.mxu0 0.0
        %6905 = vmatprep.subr.mxu0 0.0
        %6906 = vmatpush1.msra.mxu0 0.0
        %6907 = vmatprep.subr.mxu0 0.0
        %6908 = vmatpush1.msra.mxu0 0.0
        %6909 = vmatprep.subr.mxu0 0.0
        %6910 = vmatpush1.msra.mxu0 0.0
        %6911 = vmatprep.subr.mxu0 0.0
        %6912 = vmatpush1.msra.mxu0 0.0
        %6913 = vmatprep.subr.mxu0 0.0
        %6914 = vmatpush1.msra.mxu0 0.0
        %6915 = vmatprep.subr.mxu0 0.0
        %6916 = vmatpush1.msra.mxu0 0.0
        %6917 = vmatprep.subr.mxu0 0.0
        %6918 = vmatpush1.msra.mxu0 0.0
        %6919 = vmatprep.subr.mxu0 0.0
        %6920 = vmatpush1.msra.mxu0 0.0
        %6921 = vmatprep.subr.mxu0 0.0
        %6922 = vmatpush1.msra.mxu0 0.0
        %6923 = vmatprep.subr.mxu0 0.0
        %6924 = vmatpush1.msra.mxu0 0.0
        %6925 = vmatprep.mubr.f32.mxu0 0.0
        %6926 = vmatmul.mubr.f32.gmra.mrb[0].mxu0 %v6859
        %v6927 = vpop.f32.mrb[0].mxu0
        %v6928 = vadd.f32 %v1253, %v6927
        %v6929 = vpop.f32.mrb[0].mxu0
        %6930 = vdwg.mxu0
        %v6931 = vmax.f32 %v6928, 0.0
        %v6933 = vsel %vm651, %v6931, 0
        %6935 = vmatprep.subr.mxu0 0.0
        %6936 = vmatpush1.msra.mxu0 %v493
        %6937 = vmatprep.subr.mxu0 0.0
        %6938 = vmatpush1.msra.mxu0 %v1342
        %6939 = vmatprep.subr.mxu0 0.0
        %6940 = vmatpush1.msra.mxu0 0.0
        %6941 = vmatprep.subr.mxu0 0.0
        %6942 = vmatpush1.msra.mxu0 0.0
        %6943 = vmatprep.subr.mxu0 0.0
        %6944 = vmatpush1.msra.mxu0 0.0
        %6945 = vmatprep.subr.mxu0 0.0
        %6946 = vmatpush1.msra.mxu0 0.0
        %6947 = vmatprep.subr.mxu0 0.0
        %6948 = vmatpush1.msra.mxu0 0.0
        %6949 = vmatprep.subr.mxu0 0.0
        %6950 = vmatpush1.msra.mxu0 0.0
        %6951 = vmatprep.subr.mxu0 0.0
        %6952 = vmatpush1.msra.mxu0 0.0
        %6953 = vmatprep.subr.mxu0 0.0
        %6954 = vmatpush1.msra.mxu0 0.0
        %6955 = vmatprep.subr.mxu0 0.0
        %6956 = vmatpush1.msra.mxu0 0.0
        %6957 = vmatprep.subr.mxu0 0.0
        %6958 = vmatpush1.msra.mxu0 0.0
        %6959 = vmatprep.subr.mxu0 0.0
        %6960 = vmatpush1.msra.mxu0 0.0
        %6961 = vmatprep.subr.mxu0 0.0
        %6962 = vmatpush1.msra.mxu0 0.0
        %6963 = vmatprep.subr.mxu0 0.0
        %6964 = vmatpush1.msra.mxu0 0.0
        %6965 = vmatprep.subr.mxu0 0.0
        %6966 = vmatpush1.msra.mxu0 0.0
        %6967 = vmatprep.subr.mxu0 0.0
        %6968 = vmatpush1.msra.mxu0 0.0
        %6969 = vmatprep.subr.mxu0 0.0
        %6970 = vmatpush1.msra.mxu0 0.0
        %6971 = vmatprep.subr.mxu0 0.0
        %6972 = vmatpush1.msra.mxu0 0.0
        %6973 = vmatprep.subr.mxu0 0.0
        %6974 = vmatpush1.msra.mxu0 0.0
        %6975 = vmatprep.subr.mxu0 0.0
        %6976 = vmatpush1.msra.mxu0 0.0
        %6977 = vmatprep.subr.mxu0 0.0
        %6978 = vmatpush1.msra.mxu0 0.0
        %6979 = vmatprep.subr.mxu0 0.0
        %6980 = vmatpush1.msra.mxu0 0.0
        %6981 = vmatprep.subr.mxu0 0.0
        %6982 = vmatpush1.msra.mxu0 0.0
        %6983 = vmatprep.subr.mxu0 0.0
        %6984 = vmatpush1.msra.mxu0 0.0
        %6985 = vmatprep.subr.mxu0 0.0
        %6986 = vmatpush1.msra.mxu0 0.0
        %6987 = vmatprep.subr.mxu0 0.0
        %6988 = vmatpush1.msra.mxu0 0.0
        %6989 = vmatprep.subr.mxu0 0.0
        %6990 = vmatpush1.msra.mxu0 0.0
        %6991 = vmatprep.subr.mxu0 0.0
        %6992 = vmatpush1.msra.mxu0 0.0
        %6993 = vmatprep.subr.mxu0 0.0
        %6994 = vmatpush1.msra.mxu0 0.0
        %6995 = vmatprep.subr.mxu0 0.0
        %6996 = vmatpush1.msra.mxu0 0.0
        %6997 = vmatprep.subr.mxu0 0.0
        %6998 = vmatpush1.msra.mxu0 0.0
        %6999 = vmatprep.mubr.f32.mxu0 0.0
        %7000 = vmatmul.mubr.f32.gmra.mrb[0].mxu0 %v6933
        %v7001 = vpop.f32.mrb[0].mxu0
        %v7002 = vadd.f32 %v1336, %v7001
        %v7003 = vpop.f32.mrb[0].mxu0
        %7004 = vdwg.mxu0
        %v7005 = vld [vmem:[#allocation2] sm:$0xff]
        %v7007 = vsel %vm792, %v7005, 0
        %7009 = vmatprep.subr.mxu0 0.0
        %7010 = vmatpush1.msra.mxu0 %v508
        %7011 = vmatprep.subr.mxu0 0.0
        %7012 = vmatpush1.msra.mxu0 %v509
        %7013 = vmatprep.subr.mxu0 0.0
        %7014 = vmatpush1.msra.mxu0 %v510
        %7015 = vmatprep.subr.mxu0 0.0
        %7016 = vmatpush1.msra.mxu0 %v511
        %7017 = vmatprep.subr.mxu0 0.0
        %7018 = vmatpush1.msra.mxu0 0.0
        %7019 = vmatprep.subr.mxu0 0.0
        %7020 = vmatpush1.msra.mxu0 0.0
        %7021 = vmatprep.subr.mxu0 0.0
        %7022 = vmatpush1.msra.mxu0 0.0
        %7023 = vmatprep.subr.mxu0 0.0
        %7024 = vmatpush1.msra.mxu0 0.0
        %7025 = vmatprep.subr.mxu0 0.0
        %7026 = vmatpush1.msra.mxu0 0.0
        %7027 = vmatprep.subr.mxu0 0.0
        %7028 = vmatpush1.msra.mxu0 0.0
        %7029 = vmatprep.subr.mxu0 0.0
        %7030 = vmatpush1.msra.mxu0 0.0
        %7031 = vmatprep.subr.mxu0 0.0
        %7032 = vmatpush1.msra.mxu0 0.0
        %7033 = vmatprep.subr.mxu0 0.0
        %7034 = vmatpush1.msra.mxu0 0.0
        %7035 = vmatprep.subr.mxu0 0.0
        %7036 = vmatpush1.msra.mxu0 0.0
        %7037 = vmatprep.subr.mxu0 0.0
        %7038 = vmatpush1.msra.mxu0 0.0
        %7039 = vmatprep.subr.mxu0 0.0
        %7040 = vmatpush1.msra.mxu0 0.0
        %7041 = vmatprep.subr.mxu0 0.0
        %7042 = vmatpush1.msra.mxu0 0.0
        %7043 = vmatprep.subr.mxu0 0.0
        %7044 = vmatpush1.msra.mxu0 0.0
        %7045 = vmatprep.subr.mxu0 0.0
        %7046 = vmatpush1.msra.mxu0 0.0
        %7047 = vmatprep.subr.mxu0 0.0
        %7048 = vmatpush1.msra.mxu0 0.0
        %7049 = vmatprep.subr.mxu0 0.0
        %7050 = vmatpush1.msra.mxu0 0.0
        %7051 = vmatprep.subr.mxu0 0.0
        %7052 = vmatpush1.msra.mxu0 0.0
        %7053 = vmatprep.subr.mxu0 0.0
        %7054 = vmatpush1.msra.mxu0 0.0
        %7055 = vmatprep.subr.mxu0 0.0
        %7056 = vmatpush1.msra.mxu0 0.0
        %7057 = vmatprep.subr.mxu0 0.0
        %7058 = vmatpush1.msra.mxu0 0.0
        %7059 = vmatprep.subr.mxu0 0.0
        %7060 = vmatpush1.msra.mxu0 0.0
        %7061 = vmatprep.subr.mxu0 0.0
        %7062 = vmatpush1.msra.mxu0 0.0
        %7063 = vmatprep.subr.mxu0 0.0
        %7064 = vmatpush1.msra.mxu0 0.0
        %7065 = vmatprep.subr.mxu0 0.0
        %7066 = vmatpush1.msra.mxu0 0.0
        %7067 = vmatprep.subr.mxu0 0.0
        %7068 = vmatpush1.msra.mxu0 0.0
        %7069 = vmatprep.subr.mxu0 0.0
        %7070 = vmatpush1.msra.mxu0 0.0
        %7071 = vmatprep.subr.mxu0 0.0
        %7072 = vmatpush1.msra.mxu0 0.0
        %7073 = vmatprep.mubr.f32.mxu0 0.0
        %7074 = vmatmul.mubr.f32.gmra.mrb[0].mxu0 %v7007
        %v7075 = vpop.f32.mrb[0].mxu0
        %v7076 = vadd.f32 0.0, %v7075
        %v7077 = vpop.f32.mrb[0].mxu0
        %7078 = vdwg.mxu0
        %v7079 = vadd.f32 %v7002, %v7076
        %v7080 = vxor.u32 %v7079, 2147483648
        %v7081 = vmul.f32 %v7080, 1.442695
        %v7082 = vpow.pop %v7081
        %v7083 = vadd.f32 %v7082, 1.0
        %v7084 = vrcp.pop %v7083
        %v7085 = vmul.f32 1.0, %v7084
        %v7086 = vadd.f32 %v7076, %v1501
        %7088 = vrot.lane.b32.xlu0 %v7086, 64
        %v7089 = vpop.permute.xlu0 %7088
        %v7091 = vmul.f32 %v7085, %v7089
        %7093 = vrot.lane.b32.xlu0 %v7091, 64
        %v7094 = vpop.permute.xlu0 %7093
        %v7096 = vadd.f32 %v7002, %v7094
        %v7097 = vtanh.pop %v7096
        %v7098 = vsub.f32 1.0, %v7085
        %7100 = vrot.lane.b32.xlu0 %v7097, 96
        %v7101 = vpop.permute.xlu0 %7100
        %v7103 = vmul.f32 %v7098, %v7101
        %7104 = vrot.lane.b32.xlu0 %v7005, 32
        %v7105 = vpop.permute.xlu0 %7104
        %v7107 = vmul.f32 %v7085, %v7105
        %v7108 = vadd.f32 %v7103, %v7107
        %7110 = vrot.lane.b32.xlu0 %v7108, 32
        %v7111 = vpop.permute.xlu0 %7110
        %7113 = vst.msk [vmem:[%s476 + $0x8] sm:$0xff] %vm3389, %v7111
        %7114 = vrot.lane.b32.xlu0 %v7108, 96
        %v7115 = vpop.permute.xlu0 %7114
        %7117 = vst.msk [vmem:[#allocation2] sm:$0xff] %vm792, %v7115
        %7118 = vst.msk [vmem:[#allocation3] sm:$0xff] %vm792, %v6722
        %7120 = vrot.lane.b32.xlu0 %v6719, 96
        %v7121 = vpop.permute.xlu0 %7120
        %7123 = vst.msk [vmem:[#allocation4] sm:$0xff] %vm792, %v7121
        %v7124 = vld [vmem:[%s426 + $0x7] sm:$0x1]
        %v7125 = vld [vmem:[%s426 + $0xf] sm:$0x1]
        %v7126 = vld [vmem:[%s426 + $0x17] sm:$0x1]
        %v7127 = vld [vmem:[%s426 + $0x1f] sm:$0x1]
        %v7128 = vld [vmem:[%s426 + $0x27] sm:$0x1]
        %v7129 = vld [vmem:[%s426 + $0x2f] sm:$0x1]
        %v7130 = vld [vmem:[%s426 + $0x37] sm:$0x1]
        %v7131 = vld [vmem:[%s426 + $0x3f] sm:$0x1]
        %v7132 = vsub.f32 1.0, %v7124
        %v7133 = vsub.f32 1.0, %v7125
        %v7134 = vsub.f32 1.0, %v7126
        %v7135 = vsub.f32 1.0, %v7127
        %v7136 = vsub.f32 1.0, %v7128
        %v7137 = vsub.f32 1.0, %v7129
        %v7138 = vsub.f32 1.0, %v7130
        %v7139 = vsub.f32 1.0, %v7131
        %v7140 = vmax.f32 %v7132, 0.0
        %v7141 = vmax.f32 %v7133, 0.0
        %v7142 = vmax.f32 %v7134, 0.0
        %v7143 = vmax.f32 %v7135, 0.0
        %v7144 = vmax.f32 %v7136, 0.0
        %v7145 = vmax.f32 %v7137, 0.0
        %v7146 = vmax.f32 %v7138, 0.0
        %v7147 = vmax.f32 %v7139, 0.0
        %7156 = vrot.lane.b32.xlu0 %v7140, 118
        %v7157 = vpop.permute.xlu0 %7156
        %7158 = vrot.lane.b32.xlu0 %v7141, 118
        %v7159 = vpop.permute.xlu0 %7158
        %7160 = vrot.lane.b32.xlu0 %v7142, 118
        %v7161 = vpop.permute.xlu0 %7160
        %7162 = vrot.lane.b32.xlu0 %v7143, 118
        %v7163 = vpop.permute.xlu0 %7162
        %7164 = vrot.lane.b32.xlu0 %v7144, 118
        %v7165 = vpop.permute.xlu0 %7164
        %7166 = vrot.lane.b32.xlu0 %v7145, 118
        %v7167 = vpop.permute.xlu0 %7166
        %7168 = vrot.lane.b32.xlu0 %v7146, 118
        %v7169 = vpop.permute.xlu0 %7168
        %7170 = vrot.lane.b32.xlu0 %v7147, 118
        %v7171 = vpop.permute.xlu0 %7170
        %v7180 = vmul.f32 %v7124, %v7157
        %v7181 = vmul.f32 %v7125, %v7159
        %v7182 = vmul.f32 %v7126, %v7161
        %v7183 = vmul.f32 %v7127, %v7163
        %v7184 = vmul.f32 %v7128, %v7165
        %v7185 = vmul.f32 %v7129, %v7167
        %v7186 = vmul.f32 %v7130, %v7169
        %v7187 = vmul.f32 %v7131, %v7171
        %v7196 = vrot.slane %v7133, 7
        %v7197 = vsel %vm603, %v7196, %v7132
        %v7198 = vrot.slane %v7134, 6
        %v7199 = vsel %vm606, %v7198, %v7197
        %v7200 = vrot.slane %v7135, 5
        %v7201 = vsel %vm609, %v7200, %v7199
        %v7202 = vrot.slane %v7136, 4
        %v7203 = vsel %vm612, %v7202, %v7201
        %v7204 = vrot.slane %v7137, 3
        %v7205 = vsel %vm615, %v7204, %v7203
        %v7206 = vrot.slane %v7138, 2
        %v7207 = vsel %vm618, %v7206, %v7205
        %v7208 = vrot.slane %v7139, 1
        %v7209 = vsel %vm621, %v7208, %v7207
        %7210 = vrot.lane.b32.xlu0 %v7209, 118
        %v7211 = vpop.permute.xlu0 %7210
        %v7221 = vrot.slane %v7181, 7
        %v7222 = vsel %vm603, %v7221, %v7180
        %v7223 = vrot.slane %v7182, 6
        %v7224 = vsel %vm606, %v7223, %v7222
        %v7225 = vrot.slane %v7183, 5
        %v7226 = vsel %vm609, %v7225, %v7224
        %v7227 = vrot.slane %v7184, 4
        %v7228 = vsel %vm612, %v7227, %v7226
        %v7229 = vrot.slane %v7185, 3
        %v7230 = vsel %vm615, %v7229, %v7228
        %v7231 = vrot.slane %v7186, 2
        %v7232 = vsel %vm618, %v7231, %v7230
        %v7233 = vrot.slane %v7187, 1
        %v7234 = vsel %vm621, %v7233, %v7232
        %7235 = vrot.lane.b32.xlu0 %v7234, 10
        %v7236 = vpop.permute.xlu0 %7235
        %v7238 = vsel %vm651, %v7211, %v7236
        %v7240 = vsel %vm659, %v7238, 0
        %7242 = vmatprep.subr.mxu0 0.0
        %7243 = vmatpush1.msra.mxu0 %v486
        %7244 = vmatprep.subr.mxu0 0.0
        %7245 = vmatpush1.msra.mxu0 %v487
        %7246 = vmatprep.subr.mxu0 0.0
        %7247 = vmatpush1.msra.mxu0 %v665
        %7248 = vmatprep.subr.mxu0 0.0
        %7249 = vmatpush1.msra.mxu0 0.0
        %7250 = vmatprep.subr.mxu0 0.0
        %7251 = vmatpush1.msra.mxu0 0.0
        %7252 = vmatprep.subr.mxu0 0.0
        %7253 = vmatpush1.msra.mxu0 0.0
        %7254 = vmatprep.subr.mxu0 0.0
        %7255 = vmatpush1.msra.mxu0 0.0
        %7256 = vmatprep.subr.mxu0 0.0
        %7257 = vmatpush1.msra.mxu0 0.0
        %7258 = vmatprep.subr.mxu0 0.0
        %7259 = vmatpush1.msra.mxu0 0.0
        %7260 = vmatprep.subr.mxu0 0.0
        %7261 = vmatpush1.msra.mxu0 0.0
        %7262 = vmatprep.subr.mxu0 0.0
        %7263 = vmatpush1.msra.mxu0 0.0
        %7264 = vmatprep.subr.mxu0 0.0
        %7265 = vmatpush1.msra.mxu0 0.0
        %7266 = vmatprep.subr.mxu0 0.0
        %7267 = vmatpush1.msra.mxu0 0.0
        %7268 = vmatprep.subr.mxu0 0.0
        %7269 = vmatpush1.msra.mxu0 0.0
        %7270 = vmatprep.subr.mxu0 0.0
        %7271 = vmatpush1.msra.mxu0 0.0
        %7272 = vmatprep.subr.mxu0 0.0
        %7273 = vmatpush1.msra.mxu0 0.0
        %7274 = vmatprep.subr.mxu0 0.0
        %7275 = vmatpush1.msra.mxu0 0.0
        %7276 = vmatprep.subr.mxu0 0.0
        %7277 = vmatpush1.msra.mxu0 0.0
        %7278 = vmatprep.subr.mxu0 0.0
        %7279 = vmatpush1.msra.mxu0 0.0
        %7280 = vmatprep.subr.mxu0 0.0
        %7281 = vmatpush1.msra.mxu0 0.0
        %7282 = vmatprep.subr.mxu0 0.0
        %7283 = vmatpush1.msra.mxu0 0.0
        %7284 = vmatprep.subr.mxu0 0.0
        %7285 = vmatpush1.msra.mxu0 0.0
        %7286 = vmatprep.subr.mxu0 0.0
        %7287 = vmatpush1.msra.mxu0 0.0
        %7288 = vmatprep.subr.mxu0 0.0
        %7289 = vmatpush1.msra.mxu0 0.0
        %7290 = vmatprep.subr.mxu0 0.0
        %7291 = vmatpush1.msra.mxu0 0.0
        %7292 = vmatprep.subr.mxu0 0.0
        %7293 = vmatpush1.msra.mxu0 0.0
        %7294 = vmatprep.subr.mxu0 0.0
        %7295 = vmatpush1.msra.mxu0 0.0
        %7296 = vmatprep.subr.mxu0 0.0
        %7297 = vmatpush1.msra.mxu0 0.0
        %7298 = vmatprep.subr.mxu0 0.0
        %7299 = vmatpush1.msra.mxu0 0.0
        %7300 = vmatprep.subr.mxu0 0.0
        %7301 = vmatpush1.msra.mxu0 0.0
        %7302 = vmatprep.subr.mxu0 0.0
        %7303 = vmatpush1.msra.mxu0 0.0
        %7304 = vmatprep.subr.mxu0 0.0
        %7305 = vmatpush1.msra.mxu0 0.0
        %7306 = vmatprep.mubr.f32.mxu0 0.0
        %7307 = vmatmul.mubr.f32.gmra.mrb[0].mxu0 %v7240
        %v7308 = vpop.f32.mrb[0].mxu0
        %v7309 = vadd.f32 %v657, %v7308
        %v7310 = vpop.f32.mrb[0].mxu0
        %7311 = vdwg.mxu0
        %v7312 = vxor.u32 %v7309, 2147483648
        %v7313 = vmul.f32 %v7312, 1.442695
        %v7314 = vpow.pop %v7313
        %v7315 = vadd.f32 %v7314, 1.0
        %v7316 = vrcp.pop %v7315
        %v7317 = vmul.f32 1.0, %v7316
        %v7318 = vld [vmem:[#allocation3] sm:$0xff]
        %7320 = vset.pattern.permute.xlu0 20
        %7321 = vperm.xlu0 %7320, %v7124
        %v7322 = vpop.permute.xlu0 %7321
        %7324 = vset.pattern.permute.xlu0 20
        %7325 = vperm.xlu0 %7324, %v7125
        %v7326 = vpop.permute.xlu0 %7325
        %7328 = vset.pattern.permute.xlu0 20
        %7329 = vperm.xlu0 %7328, %v7126
        %v7330 = vpop.permute.xlu0 %7329
        %7332 = vset.pattern.permute.xlu0 20
        %7333 = vperm.xlu0 %7332, %v7127
        %v7334 = vpop.permute.xlu0 %7333
        %7336 = vset.pattern.permute.xlu0 20
        %7337 = vperm.xlu0 %7336, %v7128
        %v7338 = vpop.permute.xlu0 %7337
        %7340 = vset.pattern.permute.xlu0 20
        %7341 = vperm.xlu0 %7340, %v7129
        %v7342 = vpop.permute.xlu0 %7341
        %7344 = vset.pattern.permute.xlu0 20
        %7345 = vperm.xlu0 %7344, %v7130
        %v7346 = vpop.permute.xlu0 %7345
        %7348 = vset.pattern.permute.xlu0 20
        %7349 = vperm.xlu0 %7348, %v7131
        %v7350 = vpop.permute.xlu0 %7349
        %v7351 = vrot.slane %v7326, 7
        %v7352 = vsel %vm603, %v7351, %v7322
        %v7353 = vrot.slane %v7330, 6
        %v7354 = vsel %vm606, %v7353, %v7352
        %v7355 = vrot.slane %v7334, 5
        %v7356 = vsel %vm609, %v7355, %v7354
        %v7357 = vrot.slane %v7338, 4
        %v7358 = vsel %vm612, %v7357, %v7356
        %v7359 = vrot.slane %v7342, 3
        %v7360 = vsel %vm615, %v7359, %v7358
        %v7361 = vrot.slane %v7346, 2
        %v7362 = vsel %vm618, %v7361, %v7360
        %v7363 = vrot.slane %v7350, 1
        %v7364 = vsel %vm621, %v7363, %v7362
        %v7366 = vmul.f32 %v7318, %v7364
        %v7368 = vsel %vm792, %v7366, 0
        %7370 = vmatprep.subr.mxu0 0.0
        %7371 = vmatpush1.msra.mxu0 %v498
        %7372 = vmatprep.subr.mxu0 0.0
        %7373 = vmatpush1.msra.mxu0 %v499
        %7374 = vmatprep.subr.mxu0 0.0
        %7375 = vmatpush1.msra.mxu0 %v500
        %7376 = vmatprep.subr.mxu0 0.0
        %7377 = vmatpush1.msra.mxu0 %v501
        %7378 = vmatprep.subr.mxu0 0.0
        %7379 = vmatpush1.msra.mxu0 0.0
        %7380 = vmatprep.subr.mxu0 0.0
        %7381 = vmatpush1.msra.mxu0 0.0
        %7382 = vmatprep.subr.mxu0 0.0
        %7383 = vmatpush1.msra.mxu0 0.0
        %7384 = vmatprep.subr.mxu0 0.0
        %7385 = vmatpush1.msra.mxu0 0.0
        %7386 = vmatprep.subr.mxu0 0.0
        %7387 = vmatpush1.msra.mxu0 0.0
        %7388 = vmatprep.subr.mxu0 0.0
        %7389 = vmatpush1.msra.mxu0 0.0
        %7390 = vmatprep.subr.mxu0 0.0
        %7391 = vmatpush1.msra.mxu0 0.0
        %7392 = vmatprep.subr.mxu0 0.0
        %7393 = vmatpush1.msra.mxu0 0.0
        %7394 = vmatprep.subr.mxu0 0.0
        %7395 = vmatpush1.msra.mxu0 0.0
        %7396 = vmatprep.subr.mxu0 0.0
        %7397 = vmatpush1.msra.mxu0 0.0
        %7398 = vmatprep.subr.mxu0 0.0
        %7399 = vmatpush1.msra.mxu0 0.0
        %7400 = vmatprep.subr.mxu0 0.0
        %7401 = vmatpush1.msra.mxu0 0.0
        %7402 = vmatprep.subr.mxu0 0.0
        %7403 = vmatpush1.msra.mxu0 0.0
        %7404 = vmatprep.subr.mxu0 0.0
        %7405 = vmatpush1.msra.mxu0 0.0
        %7406 = vmatprep.subr.mxu0 0.0
        %7407 = vmatpush1.msra.mxu0 0.0
        %7408 = vmatprep.subr.mxu0 0.0
        %7409 = vmatpush1.msra.mxu0 0.0
        %7410 = vmatprep.subr.mxu0 0.0
        %7411 = vmatpush1.msra.mxu0 0.0
        %7412 = vmatprep.subr.mxu0 0.0
        %7413 = vmatpush1.msra.mxu0 0.0
        %7414 = vmatprep.subr.mxu0 0.0
        %7415 = vmatpush1.msra.mxu0 0.0
        %7416 = vmatprep.subr.mxu0 0.0
        %7417 = vmatpush1.msra.mxu0 0.0
        %7418 = vmatprep.subr.mxu0 0.0
        %7419 = vmatpush1.msra.mxu0 0.0
        %7420 = vmatprep.subr.mxu0 0.0
        %7421 = vmatpush1.msra.mxu0 0.0
        %7422 = vmatprep.subr.mxu0 0.0
        %7423 = vmatpush1.msra.mxu0 0.0
        %7424 = vmatprep.subr.mxu0 0.0
        %7425 = vmatpush1.msra.mxu0 0.0
        %7426 = vmatprep.subr.mxu0 0.0
        %7427 = vmatpush1.msra.mxu0 0.0
        %7428 = vmatprep.subr.mxu0 0.0
        %7429 = vmatpush1.msra.mxu0 0.0
        %7430 = vmatprep.subr.mxu0 0.0
        %7431 = vmatpush1.msra.mxu0 0.0
        %7432 = vmatprep.subr.mxu0 0.0
        %7433 = vmatpush1.msra.mxu0 0.0
        %7434 = vmatprep.mubr.f32.mxu0 0.0
        %7435 = vmatmul.mubr.f32.gmra.mrb[0].mxu0 %v7368
        %v7436 = vpop.f32.mrb[0].mxu0
        %v7437 = vadd.f32 0.0, %v7436
        %v7438 = vpop.f32.mrb[0].mxu0
        %7439 = vdwg.mxu0
        %7441 = vrot.lane.b32.xlu0 %v7437, 10
        %v7442 = vpop.permute.xlu0 %7441
        %v7444 = vadd.f32 %v7309, %v7442
        %v7445 = vxor.u32 %v7444, 2147483648
        %v7446 = vmul.f32 %v7445, 1.442695
        %v7447 = vpow.pop %v7446
        %v7448 = vadd.f32 %v7447, 1.0
        %v7449 = vrcp.pop %v7448
        %v7450 = vmul.f32 1.0, %v7449
        %v7451 = vadd.f32 %v7437, %v883
        %7453 = vrot.lane.b32.xlu0 %v7451, 74
        %v7454 = vpop.permute.xlu0 %7453
        %v7456 = vmul.f32 %v7450, %v7454
        %7458 = vrot.lane.b32.xlu0 %v7456, 64
        %v7459 = vpop.permute.xlu0 %7458
        %v7461 = vadd.f32 %v7309, %v7459
        %v7462 = vtanh.pop %v7461
        %v7463 = vsub.f32 1.0, %v7450
        %7465 = vrot.lane.b32.xlu0 %v7462, 96
        %v7466 = vpop.permute.xlu0 %7465
        %v7468 = vmul.f32 %v7463, %v7466
        %7469 = vrot.lane.b32.xlu0 %v7366, 42
        %v7470 = vpop.permute.xlu0 %7469
        %v7472 = vmul.f32 %v7450, %v7470
        %v7473 = vadd.f32 %v7468, %v7472
        %v7475 = vsel %vm651, %v7317, 0
        %7477 = vmatprep.subr.mxu0 0.0
        %7478 = vmatpush1.msra.mxu0 %v490
        %7479 = vmatprep.subr.mxu0 0.0
        %7480 = vmatpush1.msra.mxu0 %v919
        %7481 = vmatprep.subr.mxu0 0.0
        %7482 = vmatpush1.msra.mxu0 0.0
        %7483 = vmatprep.subr.mxu0 0.0
        %7484 = vmatpush1.msra.mxu0 0.0
        %7485 = vmatprep.subr.mxu0 0.0
        %7486 = vmatpush1.msra.mxu0 0.0
        %7487 = vmatprep.subr.mxu0 0.0
        %7488 = vmatpush1.msra.mxu0 0.0
        %7489 = vmatprep.subr.mxu0 0.0
        %7490 = vmatpush1.msra.mxu0 0.0
        %7491 = vmatprep.subr.mxu0 0.0
        %7492 = vmatpush1.msra.mxu0 0.0
        %7493 = vmatprep.subr.mxu0 0.0
        %7494 = vmatpush1.msra.mxu0 0.0
        %7495 = vmatprep.subr.mxu0 0.0
        %7496 = vmatpush1.msra.mxu0 0.0
        %7497 = vmatprep.subr.mxu0 0.0
        %7498 = vmatpush1.msra.mxu0 0.0
        %7499 = vmatprep.subr.mxu0 0.0
        %7500 = vmatpush1.msra.mxu0 0.0
        %7501 = vmatprep.subr.mxu0 0.0
        %7502 = vmatpush1.msra.mxu0 0.0
        %7503 = vmatprep.subr.mxu0 0.0
        %7504 = vmatpush1.msra.mxu0 0.0
        %7505 = vmatprep.subr.mxu0 0.0
        %7506 = vmatpush1.msra.mxu0 0.0
        %7507 = vmatprep.subr.mxu0 0.0
        %7508 = vmatpush1.msra.mxu0 0.0
        %7509 = vmatprep.subr.mxu0 0.0
        %7510 = vmatpush1.msra.mxu0 0.0
        %7511 = vmatprep.subr.mxu0 0.0
        %7512 = vmatpush1.msra.mxu0 0.0
        %7513 = vmatprep.subr.mxu0 0.0
        %7514 = vmatpush1.msra.mxu0 0.0
        %7515 = vmatprep.subr.mxu0 0.0
        %7516 = vmatpush1.msra.mxu0 0.0
        %7517 = vmatprep.subr.mxu0 0.0
        %7518 = vmatpush1.msra.mxu0 0.0
        %7519 = vmatprep.subr.mxu0 0.0
        %7520 = vmatpush1.msra.mxu0 0.0
        %7521 = vmatprep.subr.mxu0 0.0
        %7522 = vmatpush1.msra.mxu0 0.0
        %7523 = vmatprep.subr.mxu0 0.0
        %7524 = vmatpush1.msra.mxu0 0.0
        %7525 = vmatprep.subr.mxu0 0.0
        %7526 = vmatpush1.msra.mxu0 0.0
        %7527 = vmatprep.subr.mxu0 0.0
        %7528 = vmatpush1.msra.mxu0 0.0
        %7529 = vmatprep.subr.mxu0 0.0
        %7530 = vmatpush1.msra.mxu0 0.0
        %7531 = vmatprep.subr.mxu0 0.0
        %7532 = vmatpush1.msra.mxu0 0.0
        %7533 = vmatprep.subr.mxu0 0.0
        %7534 = vmatpush1.msra.mxu0 0.0
        %7535 = vmatprep.subr.mxu0 0.0
        %7536 = vmatpush1.msra.mxu0 0.0
        %7537 = vmatprep.subr.mxu0 0.0
        %7538 = vmatpush1.msra.mxu0 0.0
        %7539 = vmatprep.subr.mxu0 0.0
        %7540 = vmatpush1.msra.mxu0 0.0
        %7541 = vmatprep.mubr.f32.mxu0 0.0
        %7542 = vmatmul.mubr.f32.gmra.mrb[0].mxu0 %v7475
        %v7543 = vpop.f32.mrb[0].mxu0
        %v7544 = vadd.f32 %v912, %v7543
        %v7545 = vpop.f32.mrb[0].mxu0
        %7546 = vdwg.mxu0
        %v7547 = vld [vmem:[#allocation4] sm:$0xff]
        %v7548 = vmul.f32 %v7547, %v7364
        %v7550 = vsel %vm792, %v7548, 0
        %7552 = vmatprep.subr.mxu0 0.0
        %7553 = vmatpush1.msra.mxu0 %v503
        %7554 = vmatprep.subr.mxu0 0.0
        %7555 = vmatpush1.msra.mxu0 %v504
        %7556 = vmatprep.subr.mxu0 0.0
        %7557 = vmatpush1.msra.mxu0 %v505
        %7558 = vmatprep.subr.mxu0 0.0
        %7559 = vmatpush1.msra.mxu0 %v506
        %7560 = vmatprep.subr.mxu0 0.0
        %7561 = vmatpush1.msra.mxu0 0.0
        %7562 = vmatprep.subr.mxu0 0.0
        %7563 = vmatpush1.msra.mxu0 0.0
        %7564 = vmatprep.subr.mxu0 0.0
        %7565 = vmatpush1.msra.mxu0 0.0
        %7566 = vmatprep.subr.mxu0 0.0
        %7567 = vmatpush1.msra.mxu0 0.0
        %7568 = vmatprep.subr.mxu0 0.0
        %7569 = vmatpush1.msra.mxu0 0.0
        %7570 = vmatprep.subr.mxu0 0.0
        %7571 = vmatpush1.msra.mxu0 0.0
        %7572 = vmatprep.subr.mxu0 0.0
        %7573 = vmatpush1.msra.mxu0 0.0
        %7574 = vmatprep.subr.mxu0 0.0
        %7575 = vmatpush1.msra.mxu0 0.0
        %7576 = vmatprep.subr.mxu0 0.0
        %7577 = vmatpush1.msra.mxu0 0.0
        %7578 = vmatprep.subr.mxu0 0.0
        %7579 = vmatpush1.msra.mxu0 0.0
        %7580 = vmatprep.subr.mxu0 0.0
        %7581 = vmatpush1.msra.mxu0 0.0
        %7582 = vmatprep.subr.mxu0 0.0
        %7583 = vmatpush1.msra.mxu0 0.0
        %7584 = vmatprep.subr.mxu0 0.0
        %7585 = vmatpush1.msra.mxu0 0.0
        %7586 = vmatprep.subr.mxu0 0.0
        %7587 = vmatpush1.msra.mxu0 0.0
        %7588 = vmatprep.subr.mxu0 0.0
        %7589 = vmatpush1.msra.mxu0 0.0
        %7590 = vmatprep.subr.mxu0 0.0
        %7591 = vmatpush1.msra.mxu0 0.0
        %7592 = vmatprep.subr.mxu0 0.0
        %7593 = vmatpush1.msra.mxu0 0.0
        %7594 = vmatprep.subr.mxu0 0.0
        %7595 = vmatpush1.msra.mxu0 0.0
        %7596 = vmatprep.subr.mxu0 0.0
        %7597 = vmatpush1.msra.mxu0 0.0
        %7598 = vmatprep.subr.mxu0 0.0
        %7599 = vmatpush1.msra.mxu0 0.0
        %7600 = vmatprep.subr.mxu0 0.0
        %7601 = vmatpush1.msra.mxu0 0.0
        %7602 = vmatprep.subr.mxu0 0.0
        %7603 = vmatpush1.msra.mxu0 0.0
        %7604 = vmatprep.subr.mxu0 0.0
        %7605 = vmatpush1.msra.mxu0 0.0
        %7606 = vmatprep.subr.mxu0 0.0
        %7607 = vmatpush1.msra.mxu0 0.0
        %7608 = vmatprep.subr.mxu0 0.0
        %7609 = vmatpush1.msra.mxu0 0.0
        %7610 = vmatprep.subr.mxu0 0.0
        %7611 = vmatpush1.msra.mxu0 0.0
        %7612 = vmatprep.subr.mxu0 0.0
        %7613 = vmatpush1.msra.mxu0 0.0
        %7614 = vmatprep.subr.mxu0 0.0
        %7615 = vmatpush1.msra.mxu0 0.0
        %7616 = vmatprep.mubr.f32.mxu0 0.0
        %7617 = vmatmul.mubr.f32.gmra.mrb[0].mxu0 %v7550
        %v7618 = vpop.f32.mrb[0].mxu0
        %v7619 = vadd.f32 0.0, %v7618
        %v7620 = vpop.f32.mrb[0].mxu0
        %7621 = vdwg.mxu0
        %v7622 = vadd.f32 %v7544, %v7619
        %v7623 = vxor.u32 %v7622, 2147483648
        %v7624 = vmul.f32 %v7623, 1.442695
        %v7625 = vpow.pop %v7624
        %v7626 = vadd.f32 %v7625, 1.0
        %v7627 = vrcp.pop %v7626
        %v7628 = vmul.f32 1.0, %v7627
        %v7629 = vadd.f32 %v7619, %v1079
        %7631 = vrot.lane.b32.xlu0 %v7629, 64
        %v7632 = vpop.permute.xlu0 %7631
        %v7634 = vmul.f32 %v7628, %v7632
        %7636 = vrot.lane.b32.xlu0 %v7634, 64
        %v7637 = vpop.permute.xlu0 %7636
        %v7639 = vadd.f32 %v7544, %v7637
        %v7640 = vtanh.pop %v7639
        %v7641 = vsub.f32 1.0, %v7628
        %7643 = vrot.lane.b32.xlu0 %v7640, 96
        %v7644 = vpop.permute.xlu0 %7643
        %v7646 = vmul.f32 %v7641, %v7644
        %7647 = vrot.lane.b32.xlu0 %v7548, 32
        %v7648 = vpop.permute.xlu0 %7647
        %v7650 = vmul.f32 %v7628, %v7648
        %v7651 = vadd.f32 %v7646, %v7650
        %7653 = vrot.lane.b32.xlu0 %v7473, 86
        %v7654 = vpop.permute.xlu0 %7653
        %v7656 = vsel %vm792, %v7654, %v7651
        %v7658 = vsel %vm1115, %v7656, 0
        %7660 = vmatprep.subr.mxu0 0.0
        %7661 = vmatpush1.msra.mxu0 %v517
        %7662 = vmatprep.subr.mxu0 0.0
        %7663 = vmatpush1.msra.mxu0 %v518
        %7664 = vmatprep.subr.mxu0 0.0
        %7665 = vmatpush1.msra.mxu0 %v519
        %7666 = vmatprep.subr.mxu0 0.0
        %7667 = vmatpush1.msra.mxu0 %v520
        %7668 = vmatprep.subr.mxu0 0.0
        %7669 = vmatpush1.msra.mxu0 %v521
        %7670 = vmatprep.subr.mxu0 0.0
        %7671 = vmatpush1.msra.mxu0 %v522
        %7672 = vmatprep.subr.mxu0 0.0
        %7673 = vmatpush1.msra.mxu0 %v523
        %7674 = vmatprep.subr.mxu0 0.0
        %7675 = vmatpush1.msra.mxu0 %v524
        %7676 = vmatprep.subr.mxu0 0.0
        %7677 = vmatpush1.msra.mxu0 0.0
        %7678 = vmatprep.subr.mxu0 0.0
        %7679 = vmatpush1.msra.mxu0 0.0
        %7680 = vmatprep.subr.mxu0 0.0
        %7681 = vmatpush1.msra.mxu0 0.0
        %7682 = vmatprep.subr.mxu0 0.0
        %7683 = vmatpush1.msra.mxu0 0.0
        %7684 = vmatprep.subr.mxu0 0.0
        %7685 = vmatpush1.msra.mxu0 0.0
        %7686 = vmatprep.subr.mxu0 0.0
        %7687 = vmatpush1.msra.mxu0 0.0
        %7688 = vmatprep.subr.mxu0 0.0
        %7689 = vmatpush1.msra.mxu0 0.0
        %7690 = vmatprep.subr.mxu0 0.0
        %7691 = vmatpush1.msra.mxu0 0.0
        %7692 = vmatprep.subr.mxu0 0.0
        %7693 = vmatpush1.msra.mxu0 0.0
        %7694 = vmatprep.subr.mxu0 0.0
        %7695 = vmatpush1.msra.mxu0 0.0
        %7696 = vmatprep.subr.mxu0 0.0
        %7697 = vmatpush1.msra.mxu0 0.0
        %7698 = vmatprep.subr.mxu0 0.0
        %7699 = vmatpush1.msra.mxu0 0.0
        %7700 = vmatprep.subr.mxu0 0.0
        %7701 = vmatpush1.msra.mxu0 0.0
        %7702 = vmatprep.subr.mxu0 0.0
        %7703 = vmatpush1.msra.mxu0 0.0
        %7704 = vmatprep.subr.mxu0 0.0
        %7705 = vmatpush1.msra.mxu0 0.0
        %7706 = vmatprep.subr.mxu0 0.0
        %7707 = vmatpush1.msra.mxu0 0.0
        %7708 = vmatprep.subr.mxu0 0.0
        %7709 = vmatpush1.msra.mxu0 0.0
        %7710 = vmatprep.subr.mxu0 0.0
        %7711 = vmatpush1.msra.mxu0 0.0
        %7712 = vmatprep.subr.mxu0 0.0
        %7713 = vmatpush1.msra.mxu0 0.0
        %7714 = vmatprep.subr.mxu0 0.0
        %7715 = vmatpush1.msra.mxu0 0.0
        %7716 = vmatprep.subr.mxu0 0.0
        %7717 = vmatpush1.msra.mxu0 0.0
        %7718 = vmatprep.subr.mxu0 0.0
        %7719 = vmatpush1.msra.mxu0 0.0
        %7720 = vmatprep.subr.mxu0 0.0
        %7721 = vmatpush1.msra.mxu0 0.0
        %7722 = vmatprep.subr.mxu0 0.0
        %7723 = vmatpush1.msra.mxu0 0.0
        %7724 = vmatprep.mubr.f32.mxu0 0.0
        %7725 = vmatmul.mubr.f32.gmra.mrb[0].mxu0 %v7658
        %v7726 = vpop.f32.mrb[0].mxu0
        %v7727 = vadd.f32 %v1113, %v7726
        %v7728 = vpop.f32.mrb[0].mxu0
        %7729 = vdwg.mxu0
        %v7730 = vxor.u32 %v7727, 2147483648
        %v7731 = vmul.f32 %v7730, 1.442695
        %v7732 = vpow.pop %v7731
        %v7733 = vadd.f32 %v7732, 1.0
        %v7734 = vrcp.pop %v7733
        %v7735 = vmul.f32 1.0, %v7734
        %7737 = vrot.lane.b32.xlu0 %v7735, 118
        %v7738 = vpop.permute.xlu0 %7737
        %v7740 = vmul.f32 %v7727, %v7738
        %v7741 = vrot.slane %v7317, 1
        %v7742 = vrot.slane %v7317, 2
        %v7743 = vrot.slane %v7317, 3
        %v7744 = vrot.slane %v7317, 4
        %v7745 = vrot.slane %v7317, 5
        %v7746 = vrot.slane %v7317, 6
        %v7747 = vrot.slane %v7317, 7
        %v7756 = vmul.f32 %v7124, %v7317
        %v7757 = vmul.f32 %v7125, %v7741
        %v7758 = vmul.f32 %v7126, %v7742
        %v7759 = vmul.f32 %v7127, %v7743
        %v7760 = vmul.f32 %v7128, %v7744
        %v7761 = vmul.f32 %v7129, %v7745
        %v7762 = vmul.f32 %v7130, %v7746
        %v7763 = vmul.f32 %v7131, %v7747
        %v7772 = vrot.slane %v7757, 7
        %v7773 = vsel %vm603, %v7772, %v7756
        %v7774 = vrot.slane %v7758, 6
        %v7775 = vsel %vm606, %v7774, %v7773
        %v7776 = vrot.slane %v7759, 5
        %v7777 = vsel %vm609, %v7776, %v7775
        %v7778 = vrot.slane %v7760, 4
        %v7779 = vsel %vm612, %v7778, %v7777
        %v7780 = vrot.slane %v7761, 3
        %v7781 = vsel %vm615, %v7780, %v7779
        %v7782 = vrot.slane %v7762, 2
        %v7783 = vsel %vm618, %v7782, %v7781
        %v7784 = vrot.slane %v7763, 1
        %v7785 = vsel %vm621, %v7784, %v7783
        %7786 = vrot.lane.b32.xlu0 %v7785, 10
        %v7787 = vpop.permute.xlu0 %7786
        %v7789 = vsel %vm651, %v7740, %v7787
        %v7791 = vsel %vm659, %v7789, 0
        %7793 = vmatprep.subr.mxu0 0.0
        %7794 = vmatpush1.msra.mxu0 %v526
        %7795 = vmatprep.subr.mxu0 0.0
        %7796 = vmatpush1.msra.mxu0 %v527
        %7797 = vmatprep.subr.mxu0 0.0
        %7798 = vmatpush1.msra.mxu0 %v1259
        %7799 = vmatprep.subr.mxu0 0.0
        %7800 = vmatpush1.msra.mxu0 0.0
        %7801 = vmatprep.subr.mxu0 0.0
        %7802 = vmatpush1.msra.mxu0 0.0
        %7803 = vmatprep.subr.mxu0 0.0
        %7804 = vmatpush1.msra.mxu0 0.0
        %7805 = vmatprep.subr.mxu0 0.0
        %7806 = vmatpush1.msra.mxu0 0.0
        %7807 = vmatprep.subr.mxu0 0.0
        %7808 = vmatpush1.msra.mxu0 0.0
        %7809 = vmatprep.subr.mxu0 0.0
        %7810 = vmatpush1.msra.mxu0 0.0
        %7811 = vmatprep.subr.mxu0 0.0
        %7812 = vmatpush1.msra.mxu0 0.0
        %7813 = vmatprep.subr.mxu0 0.0
        %7814 = vmatpush1.msra.mxu0 0.0
        %7815 = vmatprep.subr.mxu0 0.0
        %7816 = vmatpush1.msra.mxu0 0.0
        %7817 = vmatprep.subr.mxu0 0.0
        %7818 = vmatpush1.msra.mxu0 0.0
        %7819 = vmatprep.subr.mxu0 0.0
        %7820 = vmatpush1.msra.mxu0 0.0
        %7821 = vmatprep.subr.mxu0 0.0
        %7822 = vmatpush1.msra.mxu0 0.0
        %7823 = vmatprep.subr.mxu0 0.0
        %7824 = vmatpush1.msra.mxu0 0.0
        %7825 = vmatprep.subr.mxu0 0.0
        %7826 = vmatpush1.msra.mxu0 0.0
        %7827 = vmatprep.subr.mxu0 0.0
        %7828 = vmatpush1.msra.mxu0 0.0
        %7829 = vmatprep.subr.mxu0 0.0
        %7830 = vmatpush1.msra.mxu0 0.0
        %7831 = vmatprep.subr.mxu0 0.0
        %7832 = vmatpush1.msra.mxu0 0.0
        %7833 = vmatprep.subr.mxu0 0.0
        %7834 = vmatpush1.msra.mxu0 0.0
        %7835 = vmatprep.subr.mxu0 0.0
        %7836 = vmatpush1.msra.mxu0 0.0
        %7837 = vmatprep.subr.mxu0 0.0
        %7838 = vmatpush1.msra.mxu0 0.0
        %7839 = vmatprep.subr.mxu0 0.0
        %7840 = vmatpush1.msra.mxu0 0.0
        %7841 = vmatprep.subr.mxu0 0.0
        %7842 = vmatpush1.msra.mxu0 0.0
        %7843 = vmatprep.subr.mxu0 0.0
        %7844 = vmatpush1.msra.mxu0 0.0
        %7845 = vmatprep.subr.mxu0 0.0
        %7846 = vmatpush1.msra.mxu0 0.0
        %7847 = vmatprep.subr.mxu0 0.0
        %7848 = vmatpush1.msra.mxu0 0.0
        %7849 = vmatprep.subr.mxu0 0.0
        %7850 = vmatpush1.msra.mxu0 0.0
        %7851 = vmatprep.subr.mxu0 0.0
        %7852 = vmatpush1.msra.mxu0 0.0
        %7853 = vmatprep.subr.mxu0 0.0
        %7854 = vmatpush1.msra.mxu0 0.0
        %7855 = vmatprep.subr.mxu0 0.0
        %7856 = vmatpush1.msra.mxu0 0.0
        %7857 = vmatprep.mubr.f32.mxu0 0.0
        %7858 = vmatmul.mubr.f32.gmra.mrb[0].mxu0 %v7791
        %v7859 = vpop.f32.mrb[0].mxu0
        %v7860 = vadd.f32 %v1253, %v7859
        %v7861 = vpop.f32.mrb[0].mxu0
        %7862 = vdwg.mxu0
        %v7863 = vmax.f32 %v7860, 0.0
        %v7865 = vsel %vm651, %v7863, 0
        %7867 = vmatprep.subr.mxu0 0.0
        %7868 = vmatpush1.msra.mxu0 %v493
        %7869 = vmatprep.subr.mxu0 0.0
        %7870 = vmatpush1.msra.mxu0 %v1342
        %7871 = vmatprep.subr.mxu0 0.0
        %7872 = vmatpush1.msra.mxu0 0.0
        %7873 = vmatprep.subr.mxu0 0.0
        %7874 = vmatpush1.msra.mxu0 0.0
        %7875 = vmatprep.subr.mxu0 0.0
        %7876 = vmatpush1.msra.mxu0 0.0
        %7877 = vmatprep.subr.mxu0 0.0
        %7878 = vmatpush1.msra.mxu0 0.0
        %7879 = vmatprep.subr.mxu0 0.0
        %7880 = vmatpush1.msra.mxu0 0.0
        %7881 = vmatprep.subr.mxu0 0.0
        %7882 = vmatpush1.msra.mxu0 0.0
        %7883 = vmatprep.subr.mxu0 0.0
        %7884 = vmatpush1.msra.mxu0 0.0
        %7885 = vmatprep.subr.mxu0 0.0
        %7886 = vmatpush1.msra.mxu0 0.0
        %7887 = vmatprep.subr.mxu0 0.0
        %7888 = vmatpush1.msra.mxu0 0.0
        %7889 = vmatprep.subr.mxu0 0.0
        %7890 = vmatpush1.msra.mxu0 0.0
        %7891 = vmatprep.subr.mxu0 0.0
        %7892 = vmatpush1.msra.mxu0 0.0
        %7893 = vmatprep.subr.mxu0 0.0
        %7894 = vmatpush1.msra.mxu0 0.0
        %7895 = vmatprep.subr.mxu0 0.0
        %7896 = vmatpush1.msra.mxu0 0.0
        %7897 = vmatprep.subr.mxu0 0.0
        %7898 = vmatpush1.msra.mxu0 0.0
        %7899 = vmatprep.subr.mxu0 0.0
        %7900 = vmatpush1.msra.mxu0 0.0
        %7901 = vmatprep.subr.mxu0 0.0
        %7902 = vmatpush1.msra.mxu0 0.0
        %7903 = vmatprep.subr.mxu0 0.0
        %7904 = vmatpush1.msra.mxu0 0.0
        %7905 = vmatprep.subr.mxu0 0.0
        %7906 = vmatpush1.msra.mxu0 0.0
        %7907 = vmatprep.subr.mxu0 0.0
        %7908 = vmatpush1.msra.mxu0 0.0
        %7909 = vmatprep.subr.mxu0 0.0
        %7910 = vmatpush1.msra.mxu0 0.0
        %7911 = vmatprep.subr.mxu0 0.0
        %7912 = vmatpush1.msra.mxu0 0.0
        %7913 = vmatprep.subr.mxu0 0.0
        %7914 = vmatpush1.msra.mxu0 0.0
        %7915 = vmatprep.subr.mxu0 0.0
        %7916 = vmatpush1.msra.mxu0 0.0
        %7917 = vmatprep.subr.mxu0 0.0
        %7918 = vmatpush1.msra.mxu0 0.0
        %7919 = vmatprep.subr.mxu0 0.0
        %7920 = vmatpush1.msra.mxu0 0.0
        %7921 = vmatprep.subr.mxu0 0.0
        %7922 = vmatpush1.msra.mxu0 0.0
        %7923 = vmatprep.subr.mxu0 0.0
        %7924 = vmatpush1.msra.mxu0 0.0
        %7925 = vmatprep.subr.mxu0 0.0
        %7926 = vmatpush1.msra.mxu0 0.0
        %7927 = vmatprep.subr.mxu0 0.0
        %7928 = vmatpush1.msra.mxu0 0.0
        %7929 = vmatprep.subr.mxu0 0.0
        %7930 = vmatpush1.msra.mxu0 0.0
        %7931 = vmatprep.mubr.f32.mxu0 0.0
        %7932 = vmatmul.mubr.f32.gmra.mrb[0].mxu0 %v7865
        %v7933 = vpop.f32.mrb[0].mxu0
        %v7934 = vadd.f32 %v1336, %v7933
        %v7935 = vpop.f32.mrb[0].mxu0
        %7936 = vdwg.mxu0
        %v7937 = vld [vmem:[#allocation2] sm:$0xff]
        %v7939 = vsel %vm792, %v7937, 0
        %7941 = vmatprep.subr.mxu0 0.0
        %7942 = vmatpush1.msra.mxu0 %v508
        %7943 = vmatprep.subr.mxu0 0.0
        %7944 = vmatpush1.msra.mxu0 %v509
        %7945 = vmatprep.subr.mxu0 0.0
        %7946 = vmatpush1.msra.mxu0 %v510
        %7947 = vmatprep.subr.mxu0 0.0
        %7948 = vmatpush1.msra.mxu0 %v511
        %7949 = vmatprep.subr.mxu0 0.0
        %7950 = vmatpush1.msra.mxu0 0.0
        %7951 = vmatprep.subr.mxu0 0.0
        %7952 = vmatpush1.msra.mxu0 0.0
        %7953 = vmatprep.subr.mxu0 0.0
        %7954 = vmatpush1.msra.mxu0 0.0
        %7955 = vmatprep.subr.mxu0 0.0
        %7956 = vmatpush1.msra.mxu0 0.0
        %7957 = vmatprep.subr.mxu0 0.0
        %7958 = vmatpush1.msra.mxu0 0.0
        %7959 = vmatprep.subr.mxu0 0.0
        %7960 = vmatpush1.msra.mxu0 0.0
        %7961 = vmatprep.subr.mxu0 0.0
        %7962 = vmatpush1.msra.mxu0 0.0
        %7963 = vmatprep.subr.mxu0 0.0
        %7964 = vmatpush1.msra.mxu0 0.0
        %7965 = vmatprep.subr.mxu0 0.0
        %7966 = vmatpush1.msra.mxu0 0.0
        %7967 = vmatprep.subr.mxu0 0.0
        %7968 = vmatpush1.msra.mxu0 0.0
        %7969 = vmatprep.subr.mxu0 0.0
        %7970 = vmatpush1.msra.mxu0 0.0
        %7971 = vmatprep.subr.mxu0 0.0
        %7972 = vmatpush1.msra.mxu0 0.0
        %7973 = vmatprep.subr.mxu0 0.0
        %7974 = vmatpush1.msra.mxu0 0.0
        %7975 = vmatprep.subr.mxu0 0.0
        %7976 = vmatpush1.msra.mxu0 0.0
        %7977 = vmatprep.subr.mxu0 0.0
        %7978 = vmatpush1.msra.mxu0 0.0
        %7979 = vmatprep.subr.mxu0 0.0
        %7980 = vmatpush1.msra.mxu0 0.0
        %7981 = vmatprep.subr.mxu0 0.0
        %7982 = vmatpush1.msra.mxu0 0.0
        %7983 = vmatprep.subr.mxu0 0.0
        %7984 = vmatpush1.msra.mxu0 0.0
        %7985 = vmatprep.subr.mxu0 0.0
        %7986 = vmatpush1.msra.mxu0 0.0
        %7987 = vmatprep.subr.mxu0 0.0
        %7988 = vmatpush1.msra.mxu0 0.0
        %7989 = vmatprep.subr.mxu0 0.0
        %7990 = vmatpush1.msra.mxu0 0.0
        %7991 = vmatprep.subr.mxu0 0.0
        %7992 = vmatpush1.msra.mxu0 0.0
        %7993 = vmatprep.subr.mxu0 0.0
        %7994 = vmatpush1.msra.mxu0 0.0
        %7995 = vmatprep.subr.mxu0 0.0
        %7996 = vmatpush1.msra.mxu0 0.0
        %7997 = vmatprep.subr.mxu0 0.0
        %7998 = vmatpush1.msra.mxu0 0.0
        %7999 = vmatprep.subr.mxu0 0.0
        %8000 = vmatpush1.msra.mxu0 0.0
        %8001 = vmatprep.subr.mxu0 0.0
        %8002 = vmatpush1.msra.mxu0 0.0
        %8003 = vmatprep.subr.mxu0 0.0
        %8004 = vmatpush1.msra.mxu0 0.0
        %8005 = vmatprep.mubr.f32.mxu0 0.0
        %8006 = vmatmul.mubr.f32.gmra.mrb[0].mxu0 %v7939
        %v8007 = vpop.f32.mrb[0].mxu0
        %v8008 = vadd.f32 0.0, %v8007
        %v8009 = vpop.f32.mrb[0].mxu0
        %8010 = vdwg.mxu0
        %v8011 = vadd.f32 %v7934, %v8008
        %v8012 = vxor.u32 %v8011, 2147483648
        %v8013 = vmul.f32 %v8012, 1.442695
        %v8014 = vpow.pop %v8013
        %v8015 = vadd.f32 %v8014, 1.0
        %v8016 = vrcp.pop %v8015
        %v8017 = vmul.f32 1.0, %v8016
        %v8018 = vadd.f32 %v8008, %v1501
        %8020 = vrot.lane.b32.xlu0 %v8018, 64
        %v8021 = vpop.permute.xlu0 %8020
        %v8023 = vmul.f32 %v8017, %v8021
        %8025 = vrot.lane.b32.xlu0 %v8023, 64
        %v8026 = vpop.permute.xlu0 %8025
        %v8028 = vadd.f32 %v7934, %v8026
        %v8029 = vtanh.pop %v8028
        %v8030 = vsub.f32 1.0, %v8017
        %8032 = vrot.lane.b32.xlu0 %v8029, 96
        %v8033 = vpop.permute.xlu0 %8032
        %v8035 = vmul.f32 %v8030, %v8033
        %8036 = vrot.lane.b32.xlu0 %v7937, 32
        %v8037 = vpop.permute.xlu0 %8036
        %v8039 = vmul.f32 %v8017, %v8037
        %v8040 = vadd.f32 %v8035, %v8039
        %8042 = vrot.lane.b32.xlu0 %v8040, 64
        %v8043 = vpop.permute.xlu0 %8042
        %8045 = vst.msk [vmem:[%s476 + $0x8] sm:$0xff] %vm4322, %v8043
        %8046 = vrot.lane.b32.xlu0 %v8040, 96
        %v8047 = vpop.permute.xlu0 %8046
        %8049 = vst.msk [vmem:[#allocation2] sm:$0xff] %vm792, %v8047
        %8050 = vst.msk [vmem:[#allocation3] sm:$0xff] %vm792, %v7654
        %8052 = vrot.lane.b32.xlu0 %v7651, 96
        %v8053 = vpop.permute.xlu0 %8052
        %8055 = vst.msk [vmem:[#allocation4] sm:$0xff] %vm792, %v8053
        %s8056 = smul.u32 2, %s27
        %p8057 = scmp.lt.s32.totalorder %s26, 0
        %s8058 = scalar_select %p8057, %s26, 0
        %p8059 = scmp.lt.s32.totalorder %s8056, 3
        %s8060 = scalar_select %p8059, %s8056, 3
        %s8061 = smul.addr %s8058, 4
        %s8062 = sadd.s32 %s8060, %s8061
        %s8063 = smul.addr %s8062, 8
        %s8064 = scalar_lea.vmem %s11, %s8063
        // Predicated region
        $region107: #{ts_encoder_pallas.1} parent=97 // pred_check
          %p8065 = pneg %p292
        $region108: #{ts_encoder_pallas.1} parent=97 // pred_check_branch
          %8067 = sbr.rel (%p8065) target = $region110
        $region109: #{ts_encoder_pallas.1} parent=97 // pred_region
          %s8068 = smul.u32 2, %s27
        $region110: #{ts_encoder_pallas.1} parent=97 // pred_fallthru
          _
      $region98: #{ts_encoder_pallas.1} parent=5 // pred_fallthru
        _
      %p8069 = scmp.le.s32.totalorder 2, %s17
      // Predicated region
      $region111: #{ts_encoder_pallas.1} parent=5 // pred_check
        %p8070 = pneg %p8069
      $region112: #{ts_encoder_pallas.1} parent=5 // pred_check_branch
        %8072 = sbr.rel (%p8070) target = $region114
      $region113: #{ts_encoder_pallas.1} parent=5 // pred_region
        %s8073 = ssub.s32 %s17, 2
        // Predicated region
        $region115: #{ts_encoder_pallas.1} parent=113 // pred_check
          %p8074 = pneg %p298
        $region116: #{ts_encoder_pallas.1} parent=113 // pred_check_branch
          %8076 = sbr.rel (%p8074) target = $region118
        $region117: #{ts_encoder_pallas.1} parent=113 // pred_region
          %s8077 = smul.u32 2, %s29
          %p8078 = scmp.lt.s32.totalorder %s28, 0
          %s8079 = scalar_select %p8078, %s28, 0
          %p8080 = scmp.lt.s32.totalorder %s8077, 3
          %s8081 = scalar_select %p8080, %s8077, 3
          %s8082 = smul.addr %s8079, 4
          %s8083 = sadd.s32 %s8081, %s8082
          %s8084 = smul.addr %s8083, 8
          %s8085 = scalar_lea.vmem %s11, %s8084
        $region118: #{ts_encoder_pallas.1} parent=113 // pred_fallthru
          _
      $region114: #{ts_encoder_pallas.1} parent=5 // pred_fallthru
        _
    $region6: #{ts_encoder_pallas.1} parent=1 // loop_footer
      %s21 = sadd.s32 1, %s17
    $region7: #{ts_encoder_pallas.1} parent=1 // loop_footer_branch
      %16 = sbr.rel target = $region3
    $region8: #{ts_encoder_pallas.1} parent=1 // loop_exit
      _

</llo_original>
